<compile_context>
chip_gen: v7x
topology: tpu7x:2x2x1
jax: 0.10.0
libtpu: 0.0.40
codegen_flags: <defaults>
</compile_context>

<pallas_src>
import math

import jax
import jax.numpy as jnp
from jax.experimental import pallas as pl
from jax.experimental.pallas import tpu as pltpu

# ----------------------------- configuration --------------------------------
BS, N, W, H, D = 2, 8, 8, 8, 8          # input: (bs, n, w, h, d)
HID = 32                                # trans_config.hidden_size == d_conv
NUM_CLASSES = 4
C_PAD = 128                             # lane-dense logits tile (sliced in wrapper)
NUM_HEADS = 4
HEAD_DIM = HID // NUM_HEADS
INTER = 64                              # trans_config.intermediate_size
NUM_LAYERS = 2                          # trans_config.num_hidden_layers
SEQ = N + 1                             # cls token + n patch embeddings
K3 = 27                                 # 3x3x3 conv taps
K3_PAD = 32                             # taps padded to exact sublane tiles
P = W * H * D                           # spatial positions per volume
NP = N * P                              # positions per batch element (lane dim)
LN_EPS = 1e-12                          # BERT LayerNorm eps

# ----------------------- per-generation kernel choices -----------------------
try:
    _KIND = jax.devices()[0].device_kind.lower()
except Exception:                                            # pragma: no cover
    _KIND = ""
# v7x: 2 TensorCores/chip -> one batch element per grid step; the "parallel"
# grid axis shards across the cores.  v5e/v6e: a single TC, the grid is just a
# serial loop for an overhead/VALU-bound kernel -> fold the whole batch into
# one grid step (batch stacked on sublanes inside the kernel).
_TWO_TENSORCORES = "v7" in _KIND
B_BLK = 1 if _TWO_TENSORCORES else BS                 # batch elements per step
# bf16 VPU exists on v6e/v7x; v5e has no bf16 element-wise path -> stay f32.
_BF16_ELEMWISE = any(t in _KIND for t in ("v6", "v7"))

BSEQ = B_BLK * SEQ                                    # sublane rows of BERT x
BNP = B_BLK * NP                                      # conv lanes per step


# ------------------------------ glue (JAX) -----------------------------------
def im2col_3d(x):
    """(bs, n, w, h, d), C_in=1 -> lane-dense patches (K3_PAD, bs*n*w*h*d)."""
    bs, n, w, h, d = x.shape
    xp = jnp.pad(x, ((0, 0), (0, 0), (1, 1), (1, 1), (1, 1)))
    taps = [xp[:, :, i:i + w, j:j + h, k:k + d]
            for i in range(3) for j in range(3) for k in range(3)]
    p = jnp.stack(taps, axis=0).reshape(K3, bs * n * w * h * d)   # (27, bs*NP)
    return jnp.pad(p, ((0, K3_PAD - K3), (0, 0)))                 # 5 zero taps


def _build_pool(b_blk):
    """Block-diagonal global-average-pool matrix, hoisted out of the kernel.

    Row b*SEQ is all-zero (cls slot, filled by cls_slab); row b*SEQ + 1 + v
    averages the P positions of volume v of local batch element b.
    """
    rows, cols = b_blk * SEQ, b_blk * NP
    r = jnp.arange(rows)[:, None]
    c = jnp.arange(cols)[None, :]
    rv = r % SEQ                                    # 0 == cls row
    same_batch = (r // SEQ) == (c // NP)
    same_vol = ((c % NP) // P) == (rv - 1)
    mask = (rv > 0) & same_batch & same_vol
    return jnp.where(mask, 1.0 / P, 0.0).astype(jnp.bfloat16)


# ----------------------------- kernel helpers --------------------------------
def _layernorm(x, g, b):
    mu = jnp.mean(x, axis=-1, keepdims=True)
    var = jnp.mean((x - mu) ** 2, axis=-1, keepdims=True)
    return (x - mu) * jax.lax.rsqrt(var + LN_EPS) * g + b


def _gelu(x):
    # TODO(synk): tanh approximation; band's BertModel 'gelu' is the exact erf
    #             form -> expect ~1e-3 numeric drift vs the PyTorch reference.
    c = math.sqrt(2.0 / math.pi)
    return 0.5 * x * (1.0 + jnp.tanh(c * (x + 0.044715 * x * x * x)))


# --------------------------- fused forward kernel ----------------------------
def make_kernel(b_blk, bf16_elemwise):
    """Kernel processing `b_blk` batch elements per grid step."""
    scale = 1.0 / math.sqrt(HEAD_DIM)
    f32 = jnp.float32
    bf16 = jnp.bfloat16

    def kernel(patch_ref, pool_ref, cls_ref, cw_ref, cb_ref,
               mm_ref, vec_ref, hw_ref, hb_ref, out_ref):
        # ---- conv (3x3x3, C_in=1) over all volumes of this step: ONE matmul --
        # cw: (HID, 32) bf16   patches: (32, b_blk*N*P) bf16 -> y: (HID, BNP)
        y = jnp.dot(cw_ref[...], patch_ref[...], preferred_element_type=f32)
        if bf16_elemwise:                       # v6e/v7x: bf16 VPU bias + ReLU
            yb = jnp.maximum(y.astype(bf16) + cb_ref[...].astype(bf16), 0.0)
        else:                                   # v5e: keep element-wise in f32
            yb = jnp.maximum(y + cb_ref[...], 0.0).astype(bf16)

        # ---- global average pool (hoisted block-diag matrix) + cls token -----
        # pool: (BSEQ, BNP) bf16; cls_slab carries the cls rows (pool rows = 0)
        x = jax.lax.dot_general(pool_ref[...], yb, (((1,), (1,)), ((), ())),
                                preferred_element_type=f32) + cls_ref[...]

        # ---- BERT encoder layers (weights stacked on a leading layer axis) ---
        for l in range(NUM_LAYERS):             # static 2-iteration loop
            slab = mm_ref[l]                    # (128, 128) bf16 weight slab
            vec = vec_ref[l]                    # (8, 128) f32 bias/LN slab
            wqkv = slab[0:HID, 0:3 * HID]                       # (32, 96)
            wo = slab[0:HID, 3 * HID:4 * HID]                   # (32, 32)
            wi = slab[HID:2 * HID, 0:INTER]                     # (32, 64)
            wf = slab[2 * HID:2 * HID + INTER, 0:HID]           # (64, 32)
            bqkv = vec[0:1, 0:3 * HID]
            bo = vec[1:2, 0:HID]
            g1, b1 = vec[2:3, 0:HID], vec[3:4, 0:HID]
            bi = vec[4:5, 0:INTER]
            bf_ = vec[5:6, 0:HID]
            g2, b2 = vec[6:7, 0:HID], vec[7:8, 0:HID]

            # fused Q/K/V projection: one (BSEQ,32)@(32,96) matmul
            qkv = jnp.dot(x.astype(bf16), wqkv,
                          preferred_element_type=f32) + bqkv    # (BSEQ, 96)

            attn_rows = []
            for b in range(b_blk):              # static, <= 2
                r0 = b * SEQ
                attn_b = None
                for h in range(NUM_HEADS):      # static, 4 heads
                    c0 = h * HEAD_DIM
                    qh = qkv[r0:r0 + SEQ, c0:c0 + HEAD_DIM].astype(bf16)
                    kh = qkv[r0:r0 + SEQ,
                             HID + c0:HID + c0 + HEAD_DIM].astype(bf16)
                    vh = qkv[r0:r0 + SEQ,
                             2 * HID + c0:2 * HID + c0 + HEAD_DIM].astype(bf16)
                    s = jax.lax.dot_general(qh, kh, (((1,), (1,)), ((), ())),
                                            preferred_element_type=f32) * scale
                    s = s - jnp.max(s, axis=-1, keepdims=True)  # softmax (no mask)
                    p = jnp.exp(s)
                    p = p / jnp.sum(p, axis=-1, keepdims=True)  # exact divide
                    ctx = jnp.dot(p.astype(bf16), vh,
                                  preferred_element_type=f32)   # (SEQ, HD)
                    # per-head output projection, summed (no lane-axis concat)
                    part = jnp.dot(ctx.astype(bf16), wo[c0:c0 + HEAD_DIM, :],
                                   preferred_element_type=f32)  # (SEQ, HID)
                    attn_b = part if attn_b is None else attn_b + part
                attn_rows.append(attn_b)
            attn = (attn_rows[0] if b_blk == 1
                    else jnp.concatenate(attn_rows, axis=0))    # (BSEQ, HID)
            x1 = _layernorm(attn + bo + x, g1, b1)   # dropout = identity (eval)

            inter = _gelu(jnp.dot(x1.astype(bf16), wi,
                                  preferred_element_type=f32) + bi)
            ffn = jnp.dot(inter.astype(bf16), wf,
                          preferred_element_type=f32) + bf_
            x = _layernorm(ffn + x1, g2, b2)

        # ---- BERT pooler (first token of each element) + classifier ----------
        firsts = (x[0:1, :] if b_blk == 1 else
                  jnp.concatenate([x[b * SEQ:b * SEQ + 1, :]
                                   for b in range(b_blk)], axis=0))  # (b_blk, HID)
        pooled = jnp.tanh(jnp.dot(firsts.astype(bf16), hw_ref[:, 0:HID],
                                  preferred_element_type=f32) + hb_ref[:, 0:HID])
        logits = jnp.dot(pooled.astype(bf16), hw_ref[:, HID:HID + C_PAD],
                         preferred_element_type=f32) + hb_ref[:, HID:HID + C_PAD]
        for b in range(b_blk):
            out_ref[b] = logits[b:b + 1, :]                     # (1, C_PAD)

    return kernel


_fused_kernel = make_kernel(B_BLK, _BF16_ELEMWISE)


# ------------------------------ wrapper --------------------------------------
def _const_spec(shape):
    zeros = (0,) * len(shape)
    return pl.BlockSpec(shape, lambda i, _z=zeros: _z)


@jax.jit
def forward(x, params):
    bs = x.shape[0]
    patches = im2col_3d(x).astype(jnp.bfloat16)              # (32, bs*NP)
    # cls token injected through a zero slab added after the pool matmul
    cls_slab = jnp.zeros((BSEQ, HID), jnp.float32).at[::SEQ, :].set(
        jnp.broadcast_to(params['cls'], (B_BLK, HID)))

    args = (patches, params['pool_t'], cls_slab,
            params['conv_w'], params['conv_b'],
            params['mm'], params['vec'],
            params['head_w'], params['head_b'])
    in_specs = [pl.BlockSpec((K3_PAD, BNP), lambda i: (0, i))]
    in_specs += [_const_spec(a.shape) for a in args[1:]]

    logits_pad = pl.pallas_call(
        _fused_kernel,
        out_shape=jax.ShapeDtypeStruct((bs, 1, C_PAD), jnp.float32),
        grid=(bs // B_BLK,),
        in_specs=in_specs,
        out_specs=pl.BlockSpec((B_BLK, 1, C_PAD), lambda i: (i, 0, 0)),
        compiler_params=pltpu.CompilerParams(dimension_semantics=("parallel",)),
    )(*args)
    return logits_pad[:, 0, :NUM_CLASSES]


# ------------------------------ parameters -----------------------------------
def init_params(key):
    keys = iter(jax.random.split(key, 12))
    bf16 = jnp.bfloat16
    L = NUM_LAYERS

    def nrm(shape, s=0.02):
        return s * jax.random.normal(next(keys), shape, jnp.float32)

    # conv stand-in weights: 27 real taps + 5 zero taps (exact sublane tiles)
    conv_w = jnp.zeros((HID, K3_PAD), jnp.float32)
    conv_w = conv_w.at[:, :K3].set(nrm((HID, K3), s=1.0 / math.sqrt(K3)))

    # per-layer matmul weight slab (L, 128, 128):
    #   rows 0:32   lanes 0:96   -> W_qkv ([Q|K|V], 8-lane head blocks)
    #   rows 0:32   lanes 96:128 -> W_attn_out (8-row head blocks)
    #   rows 32:64  lanes 0:64   -> W_ffn_in
    #   rows 64:128 lanes 0:32   -> W_ffn_out
    mm = jnp.zeros((L, 4 * HID, 4 * HID), jnp.float32)
    mm = mm.at[:, 0:HID, 0:3 * HID].set(nrm((L, HID, 3 * HID)))
    mm = mm.at[:, 0:HID, 3 * HID:4 * HID].set(nrm((L, HID, HID)))
    mm = mm.at[:, HID:2 * HID, 0:INTER].set(nrm((L, HID, INTER)))
    mm = mm.at[:, 2 * HID:2 * HID + INTER, 0:HID].set(nrm((L, INTER, HID)))

    # per-layer bias / LayerNorm slab (L, 8, 128) f32:
    #   0: b_qkv(96)  1: b_attn_out(32)  2/3: LN1 gamma/beta
    #   4: b_ffn_in(64)  5: b_ffn_out(32)  6/7: LN2 gamma/beta
    vec = jnp.zeros((L, 8, 4 * HID), jnp.float32)
    vec = vec.at[:, 2, 0:HID].set(1.0)
    vec = vec.at[:, 6, 0:HID].set(1.0)

    # pooler + classifier slab: lanes [pooler(32) | classifier(128, 4 real)]
    head_w = jnp.zeros((HID, HID + C_PAD), jnp.float32)
    head_w = head_w.at[:, 0:HID].set(nrm((HID, HID)))
    head_w = head_w.at[:, HID:HID + NUM_CLASSES].set(nrm((HID, NUM_CLASSES)))

    return {
        'conv_w': conv_w.astype(bf16),
        'conv_b': jnp.zeros((HID, 1), jnp.float32),
        'cls': nrm((1, HID), s=1.0),          # nn.Parameter(torch.randn(1,1,H))
        'pool_t': _build_pool(B_BLK),         # hoisted pooling matrix (bf16)
        'mm': mm.astype(bf16),
        'vec': vec,
        'head_w': head_w.astype(bf16),
        'head_b': jnp.zeros((1, HID + C_PAD), jnp.float32),
    }


# ------------------------------- main -----------------------------------------
if __name__ == "__main__":
    key = jax.random.PRNGKey(0)
    kx, kp = jax.random.split(key)
    x = jax.random.normal(kx, (BS, N, W, H, D), dtype=jnp.float32)
    params = init_params(kp)
    logits = jax.block_until_ready(forward(x, params))
    assert logits.shape == (BS, NUM_CLASSES), logits.shape
    assert bool(jnp.all(jnp.isfinite(logits)))
    print("KERNEL_OK")
</pallas_src>

<mosaic_0001>
module attributes {stable_mosaic.version = 11 : i64} {
  func.func @kernel(%arg0: i32, %arg1: memref<32x8192xbf16, #tpu.memory_space<vmem>>, %arg2: memref<18x8192xbf16, #tpu.memory_space<vmem>>, %arg3: memref<18x32xf32, #tpu.memory_space<vmem>>, %arg4: memref<32x32xbf16, #tpu.memory_space<vmem>>, %arg5: memref<32x1xf32, #tpu.memory_space<vmem>>, %arg6: memref<2x128x128xbf16, #tpu.memory_space<vmem>>, %arg7: memref<2x8x128xf32, #tpu.memory_space<vmem>>, %arg8: memref<32x160xbf16, #tpu.memory_space<vmem>>, %arg9: memref<1x160xf32, #tpu.memory_space<vmem>>, %arg10: memref<2x1x128xf32, #tpu.memory_space<vmem>>) attributes {dimension_semantics = [#tpu.dimension_semantics<parallel>], iteration_bounds = array<i64: 1>, scalar_prefetch = 0 : i64, scratch_operands = 0 : i64, tpu.core_type = #tpu.core_type<tc>, window_params = [{transform_indices = @transform_0, window_bounds = array<i64: 32, 8192>}, {pipeline_mode = #tpu.pipeline_mode<synchronous>, transform_indices = @transform_1, window_bounds = array<i64: 18, 8192>}, {pipeline_mode = #tpu.pipeline_mode<synchronous>, transform_indices = @transform_2, window_bounds = array<i64: 18, 32>}, {pipeline_mode = #tpu.pipeline_mode<synchronous>, transform_indices = @transform_3, window_bounds = array<i64: 32, 32>}, {pipeline_mode = #tpu.pipeline_mode<synchronous>, transform_indices = @transform_4, window_bounds = array<i64: 32, 1>}, {pipeline_mode = #tpu.pipeline_mode<synchronous>, transform_indices = @transform_5, window_bounds = array<i64: 2, 128, 128>}, {pipeline_mode = #tpu.pipeline_mode<synchronous>, transform_indices = @transform_6, window_bounds = array<i64: 2, 8, 128>}, {pipeline_mode = #tpu.pipeline_mode<synchronous>, transform_indices = @transform_7, window_bounds = array<i64: 32, 160>}, {pipeline_mode = #tpu.pipeline_mode<synchronous>, transform_indices = @transform_8, window_bounds = array<i64: 1, 160>}, {transform_indices = @transform_9, window_bounds = array<i64: 2, 1, 128>}]} {
    %c0 = arith.constant 0 : index
    %c0_0 = arith.constant 0 : index
    %0 = vector.load %arg4[%c0, %c0_0] : memref<32x32xbf16, #tpu.memory_space<vmem>>, vector<32x32xbf16>
    %c0_1 = arith.constant 0 : index
    %c0_2 = arith.constant 0 : index
    %1 = vector.load %arg1[%c0_1, %c0_2] : memref<32x8192xbf16, #tpu.memory_space<vmem>>, vector<32x8192xbf16>
    %cst = arith.constant dense<0.000000e+00> : vector<32x8192xf32>
    %2 = tpu.matmul %0, %1, %cst {dimension_numbers = #tpu.dot_dimension_numbers<[1], [0], [0], [1], [0, 0, 1, 1], [], []>} : vector<32x32xbf16>, vector<32x8192xbf16>, vector<32x8192xf32> -> vector<32x8192xf32>
    %c0_3 = arith.constant 0 : index
    %c0_4 = arith.constant 0 : index
    %3 = vector.load %arg5[%c0_3, %c0_4] : memref<32x1xf32, #tpu.memory_space<vmem>>, vector<32x1xf32>
    %4 = vector.broadcast %3 : vector<32x1xf32> to vector<32x8192xf32>
    %5 = arith.addf %2, %4 : vector<32x8192xf32>
    %cst_5 = arith.constant 0.000000e+00 : f32
    %6 = vector.broadcast %cst_5 : f32 to vector<32x8192xf32>
    %7 = arith.maximumf %5, %6 : vector<32x8192xf32>
    %8 = arith.truncf %7 : vector<32x8192xf32> to vector<32x8192xbf16>
    %c0_6 = arith.constant 0 : index
    %c0_7 = arith.constant 0 : index
    %9 = vector.load %arg2[%c0_6, %c0_7] : memref<18x8192xbf16, #tpu.memory_space<vmem>>, vector<18x8192xbf16>
    %cst_8 = arith.constant dense<0.000000e+00> : vector<18x32xf32>
    %10 = tpu.matmul %9, %8, %cst_8 {dimension_numbers = #tpu.dot_dimension_numbers<[1], [1], [0], [0], [0, 0, 1, 0], [], []>} : vector<18x8192xbf16>, vector<32x8192xbf16>, vector<18x32xf32> -> vector<18x32xf32>
    %c0_9 = arith.constant 0 : index
    %c0_10 = arith.constant 0 : index
    %11 = vector.load %arg3[%c0_9, %c0_10] : memref<18x32xf32, #tpu.memory_space<vmem>>, vector<18x32xf32>
    %12 = arith.addf %10, %11 : vector<18x32xf32>
    %c0_11 = arith.constant 0 : index
    %c0_12 = arith.constant 0 : index
    %c0_13 = arith.constant 0 : index
    %13 = vector.load %arg6[%c0_11, %c0_12, %c0_13] : memref<2x128x128xbf16, #tpu.memory_space<vmem>>, vector<1x128x128xbf16>
    %14 = vector.shape_cast %13 : vector<1x128x128xbf16> to vector<128x128xbf16>
    %c0_14 = arith.constant 0 : index
    %c0_15 = arith.constant 0 : index
    %c0_16 = arith.constant 0 : index
    %15 = vector.load %arg7[%c0_14, %c0_15, %c0_16] : memref<2x8x128xf32, #tpu.memory_space<vmem>>, vector<1x8x128xf32>
    %16 = vector.shape_cast %15 : vector<1x8x128xf32> to vector<8x128xf32>
    %17 = vector.extract_strided_slice %14 {offsets = [0, 0], sizes = [32, 96], strides = [1, 1]} : vector<128x128xbf16> to vector<32x96xbf16>
    %18 = vector.extract_strided_slice %14 {offsets = [0, 96], sizes = [32, 32], strides = [1, 1]} : vector<128x128xbf16> to vector<32x32xbf16>
    %19 = vector.extract_strided_slice %14 {offsets = [32, 0], sizes = [32, 64], strides = [1, 1]} : vector<128x128xbf16> to vector<32x64xbf16>
    %20 = vector.extract_strided_slice %14 {offsets = [64, 0], sizes = [64, 32], strides = [1, 1]} : vector<128x128xbf16> to vector<64x32xbf16>
    %21 = vector.extract_strided_slice %16 {offsets = [0, 0], sizes = [1, 96], strides = [1, 1]} : vector<8x128xf32> to vector<1x96xf32>
    %22 = vector.extract_strided_slice %16 {offsets = [1, 0], sizes = [1, 32], strides = [1, 1]} : vector<8x128xf32> to vector<1x32xf32>
    %23 = vector.extract_strided_slice %16 {offsets = [2, 0], sizes = [1, 32], strides = [1, 1]} : vector<8x128xf32> to vector<1x32xf32>
    %24 = vector.extract_strided_slice %16 {offsets = [3, 0], sizes = [1, 32], strides = [1, 1]} : vector<8x128xf32> to vector<1x32xf32>
    %25 = vector.extract_strided_slice %16 {offsets = [4, 0], sizes = [1, 64], strides = [1, 1]} : vector<8x128xf32> to vector<1x64xf32>
    %26 = vector.extract_strided_slice %16 {offsets = [5, 0], sizes = [1, 32], strides = [1, 1]} : vector<8x128xf32> to vector<1x32xf32>
    %27 = vector.extract_strided_slice %16 {offsets = [6, 0], sizes = [1, 32], strides = [1, 1]} : vector<8x128xf32> to vector<1x32xf32>
    %28 = vector.extract_strided_slice %16 {offsets = [7, 0], sizes = [1, 32], strides = [1, 1]} : vector<8x128xf32> to vector<1x32xf32>
    %29 = arith.truncf %12 : vector<18x32xf32> to vector<18x32xbf16>
    %cst_17 = arith.constant dense<0.000000e+00> : vector<18x96xf32>
    %30 = tpu.matmul %29, %17, %cst_17 {dimension_numbers = #tpu.dot_dimension_numbers<[1], [0], [0], [1], [0, 0, 1, 1], [], []>} : vector<18x32xbf16>, vector<32x96xbf16>, vector<18x96xf32> -> vector<18x96xf32>
    %31 = vector.broadcast %21 : vector<1x96xf32> to vector<18x96xf32>
    %32 = arith.addf %30, %31 : vector<18x96xf32>
    %33 = vector.extract_strided_slice %32 {offsets = [0, 0], sizes = [9, 8], strides = [1, 1]} : vector<18x96xf32> to vector<9x8xf32>
    %34 = arith.truncf %33 : vector<9x8xf32> to vector<9x8xbf16>
    %35 = vector.extract_strided_slice %32 {offsets = [0, 32], sizes = [9, 8], strides = [1, 1]} : vector<18x96xf32> to vector<9x8xf32>
    %36 = arith.truncf %35 : vector<9x8xf32> to vector<9x8xbf16>
    %37 = vector.extract_strided_slice %32 {offsets = [0, 64], sizes = [9, 8], strides = [1, 1]} : vector<18x96xf32> to vector<9x8xf32>
    %38 = arith.truncf %37 : vector<9x8xf32> to vector<9x8xbf16>
    %cst_18 = arith.constant dense<0.000000e+00> : vector<9x9xf32>
    %39 = tpu.matmul %34, %36, %cst_18 {dimension_numbers = #tpu.dot_dimension_numbers<[1], [1], [0], [0], [0, 0, 1, 0], [], []>} : vector<9x8xbf16>, vector<9x8xbf16>, vector<9x9xf32> -> vector<9x9xf32>
    %cst_19 = arith.constant 0.353553385 : f32
    %40 = vector.broadcast %cst_19 : f32 to vector<9x9xf32>
    %41 = arith.mulf %39, %40 : vector<9x9xf32>
    %cst_20 = arith.constant dense<0xFF800000> : vector<9xf32>
    %42 = vector.multi_reduction <maximumf>, %41, %cst_20 [1] : vector<9x9xf32> to vector<9xf32>
    %43 = vector.shape_cast %42 : vector<9xf32> to vector<9x1xf32>
    %44 = vector.broadcast %43 : vector<9x1xf32> to vector<9x9xf32>
    %45 = arith.subf %41, %44 : vector<9x9xf32>
    %46 = math.exp %45 : vector<9x9xf32>
    %cst_21 = arith.constant dense<0.000000e+00> : vector<9xf32>
    %47 = vector.multi_reduction <add>, %46, %cst_21 [1] : vector<9x9xf32> to vector<9xf32>
    %48 = vector.shape_cast %47 : vector<9xf32> to vector<9x1xf32>
    %49 = vector.broadcast %48 : vector<9x1xf32> to vector<9x9xf32>
    %50 = arith.divf %46, %49 : vector<9x9xf32>
    %51 = arith.truncf %50 : vector<9x9xf32> to vector<9x9xbf16>
    %cst_22 = arith.constant dense<0.000000e+00> : vector<9x8xf32>
    %52 = tpu.matmul %51, %38, %cst_22 {dimension_numbers = #tpu.dot_dimension_numbers<[1], [0], [0], [1], [0, 0, 1, 1], [], []>} : vector<9x9xbf16>, vector<9x8xbf16>, vector<9x8xf32> -> vector<9x8xf32>
    %53 = arith.truncf %52 : vector<9x8xf32> to vector<9x8xbf16>
    %54 = vector.extract_strided_slice %18 {offsets = [0, 0], sizes = [8, 32], strides = [1, 1]} : vector<32x32xbf16> to vector<8x32xbf16>
    %cst_23 = arith.constant dense<0.000000e+00> : vector<9x32xf32>
    %55 = tpu.matmul %53, %54, %cst_23 {dimension_numbers = #tpu.dot_dimension_numbers<[1], [0], [0], [1], [0, 0, 1, 1], [], []>} : vector<9x8xbf16>, vector<8x32xbf16>, vector<9x32xf32> -> vector<9x32xf32>
    %56 = vector.extract_strided_slice %32 {offsets = [0, 8], sizes = [9, 8], strides = [1, 1]} : vector<18x96xf32> to vector<9x8xf32>
    %57 = arith.truncf %56 : vector<9x8xf32> to vector<9x8xbf16>
    %58 = vector.extract_strided_slice %32 {offsets = [0, 40], sizes = [9, 8], strides = [1, 1]} : vector<18x96xf32> to vector<9x8xf32>
    %59 = arith.truncf %58 : vector<9x8xf32> to vector<9x8xbf16>
    %60 = vector.extract_strided_slice %32 {offsets = [0, 72], sizes = [9, 8], strides = [1, 1]} : vector<18x96xf32> to vector<9x8xf32>
    %61 = arith.truncf %60 : vector<9x8xf32> to vector<9x8xbf16>
    %cst_24 = arith.constant dense<0.000000e+00> : vector<9x9xf32>
    %62 = tpu.matmul %57, %59, %cst_24 {dimension_numbers = #tpu.dot_dimension_numbers<[1], [1], [0], [0], [0, 0, 1, 0], [], []>} : vector<9x8xbf16>, vector<9x8xbf16>, vector<9x9xf32> -> vector<9x9xf32>
    %cst_25 = arith.constant 0.353553385 : f32
    %63 = vector.broadcast %cst_25 : f32 to vector<9x9xf32>
    %64 = arith.mulf %62, %63 : vector<9x9xf32>
    %cst_26 = arith.constant dense<0xFF800000> : vector<9xf32>
    %65 = vector.multi_reduction <maximumf>, %64, %cst_26 [1] : vector<9x9xf32> to vector<9xf32>
    %66 = vector.shape_cast %65 : vector<9xf32> to vector<9x1xf32>
    %67 = vector.broadcast %66 : vector<9x1xf32> to vector<9x9xf32>
    %68 = arith.subf %64, %67 : vector<9x9xf32>
    %69 = math.exp %68 : vector<9x9xf32>
    %cst_27 = arith.constant dense<0.000000e+00> : vector<9xf32>
    %70 = vector.multi_reduction <add>, %69, %cst_27 [1] : vector<9x9xf32> to vector<9xf32>
    %71 = vector.shape_cast %70 : vector<9xf32> to vector<9x1xf32>
    %72 = vector.broadcast %71 : vector<9x1xf32> to vector<9x9xf32>
    %73 = arith.divf %69, %72 : vector<9x9xf32>
    %74 = arith.truncf %73 : vector<9x9xf32> to vector<9x9xbf16>
    %cst_28 = arith.constant dense<0.000000e+00> : vector<9x8xf32>
    %75 = tpu.matmul %74, %61, %cst_28 {dimension_numbers = #tpu.dot_dimension_numbers<[1], [0], [0], [1], [0, 0, 1, 1], [], []>} : vector<9x9xbf16>, vector<9x8xbf16>, vector<9x8xf32> -> vector<9x8xf32>
    %76 = arith.truncf %75 : vector<9x8xf32> to vector<9x8xbf16>
    %77 = vector.extract_strided_slice %18 {offsets = [8, 0], sizes = [8, 32], strides = [1, 1]} : vector<32x32xbf16> to vector<8x32xbf16>
    %cst_29 = arith.constant dense<0.000000e+00> : vector<9x32xf32>
    %78 = tpu.matmul %76, %77, %cst_29 {dimension_numbers = #tpu.dot_dimension_numbers<[1], [0], [0], [1], [0, 0, 1, 1], [], []>} : vector<9x8xbf16>, vector<8x32xbf16>, vector<9x32xf32> -> vector<9x32xf32>
    %79 = arith.addf %55, %78 : vector<9x32xf32>
    %80 = vector.extract_strided_slice %32 {offsets = [0, 16], sizes = [9, 8], strides = [1, 1]} : vector<18x96xf32> to vector<9x8xf32>
    %81 = arith.truncf %80 : vector<9x8xf32> to vector<9x8xbf16>
    %82 = vector.extract_strided_slice %32 {offsets = [0, 48], sizes = [9, 8], strides = [1, 1]} : vector<18x96xf32> to vector<9x8xf32>
    %83 = arith.truncf %82 : vector<9x8xf32> to vector<9x8xbf16>
    %84 = vector.extract_strided_slice %32 {offsets = [0, 80], sizes = [9, 8], strides = [1, 1]} : vector<18x96xf32> to vector<9x8xf32>
    %85 = arith.truncf %84 : vector<9x8xf32> to vector<9x8xbf16>
    %cst_30 = arith.constant dense<0.000000e+00> : vector<9x9xf32>
    %86 = tpu.matmul %81, %83, %cst_30 {dimension_numbers = #tpu.dot_dimension_numbers<[1], [1], [0], [0], [0, 0, 1, 0], [], []>} : vector<9x8xbf16>, vector<9x8xbf16>, vector<9x9xf32> -> vector<9x9xf32>
    %cst_31 = arith.constant 0.353553385 : f32
    %87 = vector.broadcast %cst_31 : f32 to vector<9x9xf32>
    %88 = arith.mulf %86, %87 : vector<9x9xf32>
    %cst_32 = arith.constant dense<0xFF800000> : vector<9xf32>
    %89 = vector.multi_reduction <maximumf>, %88, %cst_32 [1] : vector<9x9xf32> to vector<9xf32>
    %90 = vector.shape_cast %89 : vector<9xf32> to vector<9x1xf32>
    %91 = vector.broadcast %90 : vector<9x1xf32> to vector<9x9xf32>
    %92 = arith.subf %88, %91 : vector<9x9xf32>
    %93 = math.exp %92 : vector<9x9xf32>
    %cst_33 = arith.constant dense<0.000000e+00> : vector<9xf32>
    %94 = vector.multi_reduction <add>, %93, %cst_33 [1] : vector<9x9xf32> to vector<9xf32>
    %95 = vector.shape_cast %94 : vector<9xf32> to vector<9x1xf32>
    %96 = vector.broadcast %95 : vector<9x1xf32> to vector<9x9xf32>
    %97 = arith.divf %93, %96 : vector<9x9xf32>
    %98 = arith.truncf %97 : vector<9x9xf32> to vector<9x9xbf16>
    %cst_34 = arith.constant dense<0.000000e+00> : vector<9x8xf32>
    %99 = tpu.matmul %98, %85, %cst_34 {dimension_numbers = #tpu.dot_dimension_numbers<[1], [0], [0], [1], [0, 0, 1, 1], [], []>} : vector<9x9xbf16>, vector<9x8xbf16>, vector<9x8xf32> -> vector<9x8xf32>
    %100 = arith.truncf %99 : vector<9x8xf32> to vector<9x8xbf16>
    %101 = vector.extract_strided_slice %18 {offsets = [16, 0], sizes = [8, 32], strides = [1, 1]} : vector<32x32xbf16> to vector<8x32xbf16>
    %cst_35 = arith.constant dense<0.000000e+00> : vector<9x32xf32>
    %102 = tpu.matmul %100, %101, %cst_35 {dimension_numbers = #tpu.dot_dimension_numbers<[1], [0], [0], [1], [0, 0, 1, 1], [], []>} : vector<9x8xbf16>, vector<8x32xbf16>, vector<9x32xf32> -> vector<9x32xf32>
    %103 = arith.addf %79, %102 : vector<9x32xf32>
    %104 = vector.extract_strided_slice %32 {offsets = [0, 24], sizes = [9, 8], strides = [1, 1]} : vector<18x96xf32> to vector<9x8xf32>
    %105 = arith.truncf %104 : vector<9x8xf32> to vector<9x8xbf16>
    %106 = vector.extract_strided_slice %32 {offsets = [0, 56], sizes = [9, 8], strides = [1, 1]} : vector<18x96xf32> to vector<9x8xf32>
    %107 = arith.truncf %106 : vector<9x8xf32> to vector<9x8xbf16>
    %108 = vector.extract_strided_slice %32 {offsets = [0, 88], sizes = [9, 8], strides = [1, 1]} : vector<18x96xf32> to vector<9x8xf32>
    %109 = arith.truncf %108 : vector<9x8xf32> to vector<9x8xbf16>
    %cst_36 = arith.constant dense<0.000000e+00> : vector<9x9xf32>
    %110 = tpu.matmul %105, %107, %cst_36 {dimension_numbers = #tpu.dot_dimension_numbers<[1], [1], [0], [0], [0, 0, 1, 0], [], []>} : vector<9x8xbf16>, vector<9x8xbf16>, vector<9x9xf32> -> vector<9x9xf32>
    %cst_37 = arith.constant 0.353553385 : f32
    %111 = vector.broadcast %cst_37 : f32 to vector<9x9xf32>
    %112 = arith.mulf %110, %111 : vector<9x9xf32>
    %cst_38 = arith.constant dense<0xFF800000> : vector<9xf32>
    %113 = vector.multi_reduction <maximumf>, %112, %cst_38 [1] : vector<9x9xf32> to vector<9xf32>
    %114 = vector.shape_cast %113 : vector<9xf32> to vector<9x1xf32>
    %115 = vector.broadcast %114 : vector<9x1xf32> to vector<9x9xf32>
    %116 = arith.subf %112, %115 : vector<9x9xf32>
    %117 = math.exp %116 : vector<9x9xf32>
    %cst_39 = arith.constant dense<0.000000e+00> : vector<9xf32>
    %118 = vector.multi_reduction <add>, %117, %cst_39 [1] : vector<9x9xf32> to vector<9xf32>
    %119 = vector.shape_cast %118 : vector<9xf32> to vector<9x1xf32>
    %120 = vector.broadcast %119 : vector<9x1xf32> to vector<9x9xf32>
    %121 = arith.divf %117, %120 : vector<9x9xf32>
    %122 = arith.truncf %121 : vector<9x9xf32> to vector<9x9xbf16>
    %cst_40 = arith.constant dense<0.000000e+00> : vector<9x8xf32>
    %123 = tpu.matmul %122, %109, %cst_40 {dimension_numbers = #tpu.dot_dimension_numbers<[1], [0], [0], [1], [0, 0, 1, 1], [], []>} : vector<9x9xbf16>, vector<9x8xbf16>, vector<9x8xf32> -> vector<9x8xf32>
    %124 = arith.truncf %123 : vector<9x8xf32> to vector<9x8xbf16>
    %125 = vector.extract_strided_slice %18 {offsets = [24, 0], sizes = [8, 32], strides = [1, 1]} : vector<32x32xbf16> to vector<8x32xbf16>
    %cst_41 = arith.constant dense<0.000000e+00> : vector<9x32xf32>
    %126 = tpu.matmul %124, %125, %cst_41 {dimension_numbers = #tpu.dot_dimension_numbers<[1], [0], [0], [1], [0, 0, 1, 1], [], []>} : vector<9x8xbf16>, vector<8x32xbf16>, vector<9x32xf32> -> vector<9x32xf32>
    %127 = arith.addf %103, %126 : vector<9x32xf32>
    %128 = vector.extract_strided_slice %32 {offsets = [9, 0], sizes = [9, 8], strides = [1, 1]} : vector<18x96xf32> to vector<9x8xf32>
    %129 = arith.truncf %128 : vector<9x8xf32> to vector<9x8xbf16>
    %130 = vector.extract_strided_slice %32 {offsets = [9, 32], sizes = [9, 8], strides = [1, 1]} : vector<18x96xf32> to vector<9x8xf32>
    %131 = arith.truncf %130 : vector<9x8xf32> to vector<9x8xbf16>
    %132 = vector.extract_strided_slice %32 {offsets = [9, 64], sizes = [9, 8], strides = [1, 1]} : vector<18x96xf32> to vector<9x8xf32>
    %133 = arith.truncf %132 : vector<9x8xf32> to vector<9x8xbf16>
    %cst_42 = arith.constant dense<0.000000e+00> : vector<9x9xf32>
    %134 = tpu.matmul %129, %131, %cst_42 {dimension_numbers = #tpu.dot_dimension_numbers<[1], [1], [0], [0], [0, 0, 1, 0], [], []>} : vector<9x8xbf16>, vector<9x8xbf16>, vector<9x9xf32> -> vector<9x9xf32>
    %cst_43 = arith.constant 0.353553385 : f32
    %135 = vector.broadcast %cst_43 : f32 to vector<9x9xf32>
    %136 = arith.mulf %134, %135 : vector<9x9xf32>
    %cst_44 = arith.constant dense<0xFF800000> : vector<9xf32>
    %137 = vector.multi_reduction <maximumf>, %136, %cst_44 [1] : vector<9x9xf32> to vector<9xf32>
    %138 = vector.shape_cast %137 : vector<9xf32> to vector<9x1xf32>
    %139 = vector.broadcast %138 : vector<9x1xf32> to vector<9x9xf32>
    %140 = arith.subf %136, %139 : vector<9x9xf32>
    %141 = math.exp %140 : vector<9x9xf32>
    %cst_45 = arith.constant dense<0.000000e+00> : vector<9xf32>
    %142 = vector.multi_reduction <add>, %141, %cst_45 [1] : vector<9x9xf32> to vector<9xf32>
    %143 = vector.shape_cast %142 : vector<9xf32> to vector<9x1xf32>
    %144 = vector.broadcast %143 : vector<9x1xf32> to vector<9x9xf32>
    %145 = arith.divf %141, %144 : vector<9x9xf32>
    %146 = arith.truncf %145 : vector<9x9xf32> to vector<9x9xbf16>
    %cst_46 = arith.constant dense<0.000000e+00> : vector<9x8xf32>
    %147 = tpu.matmul %146, %133, %cst_46 {dimension_numbers = #tpu.dot_dimension_numbers<[1], [0], [0], [1], [0, 0, 1, 1], [], []>} : vector<9x9xbf16>, vector<9x8xbf16>, vector<9x8xf32> -> vector<9x8xf32>
    %148 = arith.truncf %147 : vector<9x8xf32> to vector<9x8xbf16>
    %149 = vector.extract_strided_slice %18 {offsets = [0, 0], sizes = [8, 32], strides = [1, 1]} : vector<32x32xbf16> to vector<8x32xbf16>
    %cst_47 = arith.constant dense<0.000000e+00> : vector<9x32xf32>
    %150 = tpu.matmul %148, %149, %cst_47 {dimension_numbers = #tpu.dot_dimension_numbers<[1], [0], [0], [1], [0, 0, 1, 1], [], []>} : vector<9x8xbf16>, vector<8x32xbf16>, vector<9x32xf32> -> vector<9x32xf32>
    %151 = vector.extract_strided_slice %32 {offsets = [9, 8], sizes = [9, 8], strides = [1, 1]} : vector<18x96xf32> to vector<9x8xf32>
    %152 = arith.truncf %151 : vector<9x8xf32> to vector<9x8xbf16>
    %153 = vector.extract_strided_slice %32 {offsets = [9, 40], sizes = [9, 8], strides = [1, 1]} : vector<18x96xf32> to vector<9x8xf32>
    %154 = arith.truncf %153 : vector<9x8xf32> to vector<9x8xbf16>
    %155 = vector.extract_strided_slice %32 {offsets = [9, 72], sizes = [9, 8], strides = [1, 1]} : vector<18x96xf32> to vector<9x8xf32>
    %156 = arith.truncf %155 : vector<9x8xf32> to vector<9x8xbf16>
    %cst_48 = arith.constant dense<0.000000e+00> : vector<9x9xf32>
    %157 = tpu.matmul %152, %154, %cst_48 {dimension_numbers = #tpu.dot_dimension_numbers<[1], [1], [0], [0], [0, 0, 1, 0], [], []>} : vector<9x8xbf16>, vector<9x8xbf16>, vector<9x9xf32> -> vector<9x9xf32>
    %cst_49 = arith.constant 0.353553385 : f32
    %158 = vector.broadcast %cst_49 : f32 to vector<9x9xf32>
    %159 = arith.mulf %157, %158 : vector<9x9xf32>
    %cst_50 = arith.constant dense<0xFF800000> : vector<9xf32>
    %160 = vector.multi_reduction <maximumf>, %159, %cst_50 [1] : vector<9x9xf32> to vector<9xf32>
    %161 = vector.shape_cast %160 : vector<9xf32> to vector<9x1xf32>
    %162 = vector.broadcast %161 : vector<9x1xf32> to vector<9x9xf32>
    %163 = arith.subf %159, %162 : vector<9x9xf32>
    %164 = math.exp %163 : vector<9x9xf32>
    %cst_51 = arith.constant dense<0.000000e+00> : vector<9xf32>
    %165 = vector.multi_reduction <add>, %164, %cst_51 [1] : vector<9x9xf32> to vector<9xf32>
    %166 = vector.shape_cast %165 : vector<9xf32> to vector<9x1xf32>
    %167 = vector.broadcast %166 : vector<9x1xf32> to vector<9x9xf32>
    %168 = arith.divf %164, %167 : vector<9x9xf32>
    %169 = arith.truncf %168 : vector<9x9xf32> to vector<9x9xbf16>
    %cst_52 = arith.constant dense<0.000000e+00> : vector<9x8xf32>
    %170 = tpu.matmul %169, %156, %cst_52 {dimension_numbers = #tpu.dot_dimension_numbers<[1], [0], [0], [1], [0, 0, 1, 1], [], []>} : vector<9x9xbf16>, vector<9x8xbf16>, vector<9x8xf32> -> vector<9x8xf32>
    %171 = arith.truncf %170 : vector<9x8xf32> to vector<9x8xbf16>
    %172 = vector.extract_strided_slice %18 {offsets = [8, 0], sizes = [8, 32], strides = [1, 1]} : vector<32x32xbf16> to vector<8x32xbf16>
    %cst_53 = arith.constant dense<0.000000e+00> : vector<9x32xf32>
    %173 = tpu.matmul %171, %172, %cst_53 {dimension_numbers = #tpu.dot_dimension_numbers<[1], [0], [0], [1], [0, 0, 1, 1], [], []>} : vector<9x8xbf16>, vector<8x32xbf16>, vector<9x32xf32> -> vector<9x32xf32>
    %174 = arith.addf %150, %173 : vector<9x32xf32>
    %175 = vector.extract_strided_slice %32 {offsets = [9, 16], sizes = [9, 8], strides = [1, 1]} : vector<18x96xf32> to vector<9x8xf32>
    %176 = arith.truncf %175 : vector<9x8xf32> to vector<9x8xbf16>
    %177 = vector.extract_strided_slice %32 {offsets = [9, 48], sizes = [9, 8], strides = [1, 1]} : vector<18x96xf32> to vector<9x8xf32>
    %178 = arith.truncf %177 : vector<9x8xf32> to vector<9x8xbf16>
    %179 = vector.extract_strided_slice %32 {offsets = [9, 80], sizes = [9, 8], strides = [1, 1]} : vector<18x96xf32> to vector<9x8xf32>
    %180 = arith.truncf %179 : vector<9x8xf32> to vector<9x8xbf16>
    %cst_54 = arith.constant dense<0.000000e+00> : vector<9x9xf32>
    %181 = tpu.matmul %176, %178, %cst_54 {dimension_numbers = #tpu.dot_dimension_numbers<[1], [1], [0], [0], [0, 0, 1, 0], [], []>} : vector<9x8xbf16>, vector<9x8xbf16>, vector<9x9xf32> -> vector<9x9xf32>
    %cst_55 = arith.constant 0.353553385 : f32
    %182 = vector.broadcast %cst_55 : f32 to vector<9x9xf32>
    %183 = arith.mulf %181, %182 : vector<9x9xf32>
    %cst_56 = arith.constant dense<0xFF800000> : vector<9xf32>
    %184 = vector.multi_reduction <maximumf>, %183, %cst_56 [1] : vector<9x9xf32> to vector<9xf32>
    %185 = vector.shape_cast %184 : vector<9xf32> to vector<9x1xf32>
    %186 = vector.broadcast %185 : vector<9x1xf32> to vector<9x9xf32>
    %187 = arith.subf %183, %186 : vector<9x9xf32>
    %188 = math.exp %187 : vector<9x9xf32>
    %cst_57 = arith.constant dense<0.000000e+00> : vector<9xf32>
    %189 = vector.multi_reduction <add>, %188, %cst_57 [1] : vector<9x9xf32> to vector<9xf32>
    %190 = vector.shape_cast %189 : vector<9xf32> to vector<9x1xf32>
    %191 = vector.broadcast %190 : vector<9x1xf32> to vector<9x9xf32>
    %192 = arith.divf %188, %191 : vector<9x9xf32>
    %193 = arith.truncf %192 : vector<9x9xf32> to vector<9x9xbf16>
    %cst_58 = arith.constant dense<0.000000e+00> : vector<9x8xf32>
    %194 = tpu.matmul %193, %180, %cst_58 {dimension_numbers = #tpu.dot_dimension_numbers<[1], [0], [0], [1], [0, 0, 1, 1], [], []>} : vector<9x9xbf16>, vector<9x8xbf16>, vector<9x8xf32> -> vector<9x8xf32>
    %195 = arith.truncf %194 : vector<9x8xf32> to vector<9x8xbf16>
    %196 = vector.extract_strided_slice %18 {offsets = [16, 0], sizes = [8, 32], strides = [1, 1]} : vector<32x32xbf16> to vector<8x32xbf16>
    %cst_59 = arith.constant dense<0.000000e+00> : vector<9x32xf32>
    %197 = tpu.matmul %195, %196, %cst_59 {dimension_numbers = #tpu.dot_dimension_numbers<[1], [0], [0], [1], [0, 0, 1, 1], [], []>} : vector<9x8xbf16>, vector<8x32xbf16>, vector<9x32xf32> -> vector<9x32xf32>
    %198 = arith.addf %174, %197 : vector<9x32xf32>
    %199 = vector.extract_strided_slice %32 {offsets = [9, 24], sizes = [9, 8], strides = [1, 1]} : vector<18x96xf32> to vector<9x8xf32>
    %200 = arith.truncf %199 : vector<9x8xf32> to vector<9x8xbf16>
    %201 = vector.extract_strided_slice %32 {offsets = [9, 56], sizes = [9, 8], strides = [1, 1]} : vector<18x96xf32> to vector<9x8xf32>
    %202 = arith.truncf %201 : vector<9x8xf32> to vector<9x8xbf16>
    %203 = vector.extract_strided_slice %32 {offsets = [9, 88], sizes = [9, 8], strides = [1, 1]} : vector<18x96xf32> to vector<9x8xf32>
    %204 = arith.truncf %203 : vector<9x8xf32> to vector<9x8xbf16>
    %cst_60 = arith.constant dense<0.000000e+00> : vector<9x9xf32>
    %205 = tpu.matmul %200, %202, %cst_60 {dimension_numbers = #tpu.dot_dimension_numbers<[1], [1], [0], [0], [0, 0, 1, 0], [], []>} : vector<9x8xbf16>, vector<9x8xbf16>, vector<9x9xf32> -> vector<9x9xf32>
    %cst_61 = arith.constant 0.353553385 : f32
    %206 = vector.broadcast %cst_61 : f32 to vector<9x9xf32>
    %207 = arith.mulf %205, %206 : vector<9x9xf32>
    %cst_62 = arith.constant dense<0xFF800000> : vector<9xf32>
    %208 = vector.multi_reduction <maximumf>, %207, %cst_62 [1] : vector<9x9xf32> to vector<9xf32>
    %209 = vector.shape_cast %208 : vector<9xf32> to vector<9x1xf32>
    %210 = vector.broadcast %209 : vector<9x1xf32> to vector<9x9xf32>
    %211 = arith.subf %207, %210 : vector<9x9xf32>
    %212 = math.exp %211 : vector<9x9xf32>
    %cst_63 = arith.constant dense<0.000000e+00> : vector<9xf32>
    %213 = vector.multi_reduction <add>, %212, %cst_63 [1] : vector<9x9xf32> to vector<9xf32>
    %214 = vector.shape_cast %213 : vector<9xf32> to vector<9x1xf32>
    %215 = vector.broadcast %214 : vector<9x1xf32> to vector<9x9xf32>
    %216 = arith.divf %212, %215 : vector<9x9xf32>
    %217 = arith.truncf %216 : vector<9x9xf32> to vector<9x9xbf16>
    %cst_64 = arith.constant dense<0.000000e+00> : vector<9x8xf32>
    %218 = tpu.matmul %217, %204, %cst_64 {dimension_numbers = #tpu.dot_dimension_numbers<[1], [0], [0], [1], [0, 0, 1, 1], [], []>} : vector<9x9xbf16>, vector<9x8xbf16>, vector<9x8xf32> -> vector<9x8xf32>
    %219 = arith.truncf %218 : vector<9x8xf32> to vector<9x8xbf16>
    %220 = vector.extract_strided_slice %18 {offsets = [24, 0], sizes = [8, 32], strides = [1, 1]} : vector<32x32xbf16> to vector<8x32xbf16>
    %cst_65 = arith.constant dense<0.000000e+00> : vector<9x32xf32>
    %221 = tpu.matmul %219, %220, %cst_65 {dimension_numbers = #tpu.dot_dimension_numbers<[1], [0], [0], [1], [0, 0, 1, 1], [], []>} : vector<9x8xbf16>, vector<8x32xbf16>, vector<9x32xf32> -> vector<9x32xf32>
    %222 = arith.addf %198, %221 : vector<9x32xf32>
    %223 = tpu.concatenate %127, %222 in 0 : vector<9x32xf32>, vector<9x32xf32> -> vector<18x32xf32>
    %224 = vector.broadcast %22 : vector<1x32xf32> to vector<18x32xf32>
    %225 = arith.addf %223, %224 : vector<18x32xf32>
    %226 = arith.addf %225, %12 : vector<18x32xf32>
    %cst_66 = arith.constant dense<0.000000e+00> : vector<18xf32>
    %227 = vector.multi_reduction <add>, %226, %cst_66 [1] : vector<18x32xf32> to vector<18xf32>
    %228 = vector.shape_cast %227 : vector<18xf32> to vector<18x1xf32>
    %cst_67 = arith.constant 3.200000e+01 : f32
    %229 = vector.broadcast %cst_67 : f32 to vector<18x1xf32>
    %230 = arith.divf %228, %229 : vector<18x1xf32>
    %231 = vector.broadcast %230 : vector<18x1xf32> to vector<18x32xf32>
    %232 = arith.subf %226, %231 : vector<18x32xf32>
    %233 = arith.mulf %232, %232 : vector<18x32xf32>
    %cst_68 = arith.constant dense<0.000000e+00> : vector<18xf32>
    %234 = vector.multi_reduction <add>, %233, %cst_68 [1] : vector<18x32xf32> to vector<18xf32>
    %235 = vector.shape_cast %234 : vector<18xf32> to vector<18x1xf32>
    %cst_69 = arith.constant 3.200000e+01 : f32
    %236 = vector.broadcast %cst_69 : f32 to vector<18x1xf32>
    %237 = arith.divf %235, %236 : vector<18x1xf32>
    %238 = vector.broadcast %230 : vector<18x1xf32> to vector<18x32xf32>
    %239 = arith.subf %226, %238 : vector<18x32xf32>
    %cst_70 = arith.constant 9.99999996E-13 : f32
    %240 = vector.broadcast %cst_70 : f32 to vector<18x1xf32>
    %241 = arith.addf %237, %240 : vector<18x1xf32>
    %242 = math.rsqrt %241 : vector<18x1xf32>
    %243 = vector.broadcast %242 : vector<18x1xf32> to vector<18x32xf32>
    %244 = arith.mulf %239, %243 : vector<18x32xf32>
    %245 = vector.broadcast %23 : vector<1x32xf32> to vector<18x32xf32>
    %246 = arith.mulf %244, %245 : vector<18x32xf32>
    %247 = vector.broadcast %24 : vector<1x32xf32> to vector<18x32xf32>
    %248 = arith.addf %246, %247 : vector<18x32xf32>
    %249 = arith.truncf %248 : vector<18x32xf32> to vector<18x32xbf16>
    %cst_71 = arith.constant dense<0.000000e+00> : vector<18x64xf32>
    %250 = tpu.matmul %249, %19, %cst_71 {dimension_numbers = #tpu.dot_dimension_numbers<[1], [0], [0], [1], [0, 0, 1, 1], [], []>} : vector<18x32xbf16>, vector<32x64xbf16>, vector<18x64xf32> -> vector<18x64xf32>
    %251 = vector.broadcast %25 : vector<1x64xf32> to vector<18x64xf32>
    %252 = arith.addf %250, %251 : vector<18x64xf32>
    %cst_72 = arith.constant 5.000000e-01 : f32
    %253 = vector.broadcast %cst_72 : f32 to vector<18x64xf32>
    %254 = arith.mulf %253, %252 : vector<18x64xf32>
    %cst_73 = arith.constant 4.471500e-02 : f32
    %255 = vector.broadcast %cst_73 : f32 to vector<18x64xf32>
    %256 = arith.mulf %255, %252 : vector<18x64xf32>
    %257 = arith.mulf %256, %252 : vector<18x64xf32>
    %258 = arith.mulf %257, %252 : vector<18x64xf32>
    %259 = arith.addf %252, %258 : vector<18x64xf32>
    %cst_74 = arith.constant 0.797884583 : f32
    %260 = vector.broadcast %cst_74 : f32 to vector<18x64xf32>
    %261 = arith.mulf %260, %259 : vector<18x64xf32>
    %262 = math.tanh %261 : vector<18x64xf32>
    %cst_75 = arith.constant 1.000000e+00 : f32
    %263 = vector.broadcast %cst_75 : f32 to vector<18x64xf32>
    %264 = arith.addf %263, %262 : vector<18x64xf32>
    %265 = arith.mulf %254, %264 : vector<18x64xf32>
    %266 = arith.truncf %265 : vector<18x64xf32> to vector<18x64xbf16>
    %cst_76 = arith.constant dense<0.000000e+00> : vector<18x32xf32>
    %267 = tpu.matmul %266, %20, %cst_76 {dimension_numbers = #tpu.dot_dimension_numbers<[1], [0], [0], [1], [0, 0, 1, 1], [], []>} : vector<18x64xbf16>, vector<64x32xbf16>, vector<18x32xf32> -> vector<18x32xf32>
    %268 = vector.broadcast %26 : vector<1x32xf32> to vector<18x32xf32>
    %269 = arith.addf %267, %268 : vector<18x32xf32>
    %270 = arith.addf %269, %248 : vector<18x32xf32>
    %cst_77 = arith.constant dense<0.000000e+00> : vector<18xf32>
    %271 = vector.multi_reduction <add>, %270, %cst_77 [1] : vector<18x32xf32> to vector<18xf32>
    %272 = vector.shape_cast %271 : vector<18xf32> to vector<18x1xf32>
    %cst_78 = arith.constant 3.200000e+01 : f32
    %273 = vector.broadcast %cst_78 : f32 to vector<18x1xf32>
    %274 = arith.divf %272, %273 : vector<18x1xf32>
    %275 = vector.broadcast %274 : vector<18x1xf32> to vector<18x32xf32>
    %276 = arith.subf %270, %275 : vector<18x32xf32>
    %277 = arith.mulf %276, %276 : vector<18x32xf32>
    %cst_79 = arith.constant dense<0.000000e+00> : vector<18xf32>
    %278 = vector.multi_reduction <add>, %277, %cst_79 [1] : vector<18x32xf32> to vector<18xf32>
    %279 = vector.shape_cast %278 : vector<18xf32> to vector<18x1xf32>
    %cst_80 = arith.constant 3.200000e+01 : f32
    %280 = vector.broadcast %cst_80 : f32 to vector<18x1xf32>
    %281 = arith.divf %279, %280 : vector<18x1xf32>
    %282 = vector.broadcast %274 : vector<18x1xf32> to vector<18x32xf32>
    %283 = arith.subf %270, %282 : vector<18x32xf32>
    %cst_81 = arith.constant 9.99999996E-13 : f32
    %284 = vector.broadcast %cst_81 : f32 to vector<18x1xf32>
    %285 = arith.addf %281, %284 : vector<18x1xf32>
    %286 = math.rsqrt %285 : vector<18x1xf32>
    %287 = vector.broadcast %286 : vector<18x1xf32> to vector<18x32xf32>
    %288 = arith.mulf %283, %287 : vector<18x32xf32>
    %289 = vector.broadcast %27 : vector<1x32xf32> to vector<18x32xf32>
    %290 = arith.mulf %288, %289 : vector<18x32xf32>
    %291 = vector.broadcast %28 : vector<1x32xf32> to vector<18x32xf32>
    %292 = arith.addf %290, %291 : vector<18x32xf32>
    %c1 = arith.constant 1 : index
    %c0_82 = arith.constant 0 : index
    %c0_83 = arith.constant 0 : index
    %293 = vector.load %arg6[%c1, %c0_82, %c0_83] : memref<2x128x128xbf16, #tpu.memory_space<vmem>>, vector<1x128x128xbf16>
    %294 = vector.shape_cast %293 : vector<1x128x128xbf16> to vector<128x128xbf16>
    %c1_84 = arith.constant 1 : index
    %c0_85 = arith.constant 0 : index
    %c0_86 = arith.constant 0 : index
    %295 = vector.load %arg7[%c1_84, %c0_85, %c0_86] : memref<2x8x128xf32, #tpu.memory_space<vmem>>, vector<1x8x128xf32>
    %296 = vector.shape_cast %295 : vector<1x8x128xf32> to vector<8x128xf32>
    %297 = vector.extract_strided_slice %294 {offsets = [0, 0], sizes = [32, 96], strides = [1, 1]} : vector<128x128xbf16> to vector<32x96xbf16>
    %298 = vector.extract_strided_slice %294 {offsets = [0, 96], sizes = [32, 32], strides = [1, 1]} : vector<128x128xbf16> to vector<32x32xbf16>
    %299 = vector.extract_strided_slice %294 {offsets = [32, 0], sizes = [32, 64], strides = [1, 1]} : vector<128x128xbf16> to vector<32x64xbf16>
    %300 = vector.extract_strided_slice %294 {offsets = [64, 0], sizes = [64, 32], strides = [1, 1]} : vector<128x128xbf16> to vector<64x32xbf16>
    %301 = vector.extract_strided_slice %296 {offsets = [0, 0], sizes = [1, 96], strides = [1, 1]} : vector<8x128xf32> to vector<1x96xf32>
    %302 = vector.extract_strided_slice %296 {offsets = [1, 0], sizes = [1, 32], strides = [1, 1]} : vector<8x128xf32> to vector<1x32xf32>
    %303 = vector.extract_strided_slice %296 {offsets = [2, 0], sizes = [1, 32], strides = [1, 1]} : vector<8x128xf32> to vector<1x32xf32>
    %304 = vector.extract_strided_slice %296 {offsets = [3, 0], sizes = [1, 32], strides = [1, 1]} : vector<8x128xf32> to vector<1x32xf32>
    %305 = vector.extract_strided_slice %296 {offsets = [4, 0], sizes = [1, 64], strides = [1, 1]} : vector<8x128xf32> to vector<1x64xf32>
    %306 = vector.extract_strided_slice %296 {offsets = [5, 0], sizes = [1, 32], strides = [1, 1]} : vector<8x128xf32> to vector<1x32xf32>
    %307 = vector.extract_strided_slice %296 {offsets = [6, 0], sizes = [1, 32], strides = [1, 1]} : vector<8x128xf32> to vector<1x32xf32>
    %308 = vector.extract_strided_slice %296 {offsets = [7, 0], sizes = [1, 32], strides = [1, 1]} : vector<8x128xf32> to vector<1x32xf32>
    %309 = arith.truncf %292 : vector<18x32xf32> to vector<18x32xbf16>
    %cst_87 = arith.constant dense<0.000000e+00> : vector<18x96xf32>
    %310 = tpu.matmul %309, %297, %cst_87 {dimension_numbers = #tpu.dot_dimension_numbers<[1], [0], [0], [1], [0, 0, 1, 1], [], []>} : vector<18x32xbf16>, vector<32x96xbf16>, vector<18x96xf32> -> vector<18x96xf32>
    %311 = vector.broadcast %301 : vector<1x96xf32> to vector<18x96xf32>
    %312 = arith.addf %310, %311 : vector<18x96xf32>
    %313 = vector.extract_strided_slice %312 {offsets = [0, 0], sizes = [9, 8], strides = [1, 1]} : vector<18x96xf32> to vector<9x8xf32>
    %314 = arith.truncf %313 : vector<9x8xf32> to vector<9x8xbf16>
    %315 = vector.extract_strided_slice %312 {offsets = [0, 32], sizes = [9, 8], strides = [1, 1]} : vector<18x96xf32> to vector<9x8xf32>
    %316 = arith.truncf %315 : vector<9x8xf32> to vector<9x8xbf16>
    %317 = vector.extract_strided_slice %312 {offsets = [0, 64], sizes = [9, 8], strides = [1, 1]} : vector<18x96xf32> to vector<9x8xf32>
    %318 = arith.truncf %317 : vector<9x8xf32> to vector<9x8xbf16>
    %cst_88 = arith.constant dense<0.000000e+00> : vector<9x9xf32>
    %319 = tpu.matmul %314, %316, %cst_88 {dimension_numbers = #tpu.dot_dimension_numbers<[1], [1], [0], [0], [0, 0, 1, 0], [], []>} : vector<9x8xbf16>, vector<9x8xbf16>, vector<9x9xf32> -> vector<9x9xf32>
    %cst_89 = arith.constant 0.353553385 : f32
    %320 = vector.broadcast %cst_89 : f32 to vector<9x9xf32>
    %321 = arith.mulf %319, %320 : vector<9x9xf32>
    %cst_90 = arith.constant dense<0xFF800000> : vector<9xf32>
    %322 = vector.multi_reduction <maximumf>, %321, %cst_90 [1] : vector<9x9xf32> to vector<9xf32>
    %323 = vector.shape_cast %322 : vector<9xf32> to vector<9x1xf32>
    %324 = vector.broadcast %323 : vector<9x1xf32> to vector<9x9xf32>
    %325 = arith.subf %321, %324 : vector<9x9xf32>
    %326 = math.exp %325 : vector<9x9xf32>
    %cst_91 = arith.constant dense<0.000000e+00> : vector<9xf32>
    %327 = vector.multi_reduction <add>, %326, %cst_91 [1] : vector<9x9xf32> to vector<9xf32>
    %328 = vector.shape_cast %327 : vector<9xf32> to vector<9x1xf32>
    %329 = vector.broadcast %328 : vector<9x1xf32> to vector<9x9xf32>
    %330 = arith.divf %326, %329 : vector<9x9xf32>
    %331 = arith.truncf %330 : vector<9x9xf32> to vector<9x9xbf16>
    %cst_92 = arith.constant dense<0.000000e+00> : vector<9x8xf32>
    %332 = tpu.matmul %331, %318, %cst_92 {dimension_numbers = #tpu.dot_dimension_numbers<[1], [0], [0], [1], [0, 0, 1, 1], [], []>} : vector<9x9xbf16>, vector<9x8xbf16>, vector<9x8xf32> -> vector<9x8xf32>
    %333 = arith.truncf %332 : vector<9x8xf32> to vector<9x8xbf16>
    %334 = vector.extract_strided_slice %298 {offsets = [0, 0], sizes = [8, 32], strides = [1, 1]} : vector<32x32xbf16> to vector<8x32xbf16>
    %cst_93 = arith.constant dense<0.000000e+00> : vector<9x32xf32>
    %335 = tpu.matmul %333, %334, %cst_93 {dimension_numbers = #tpu.dot_dimension_numbers<[1], [0], [0], [1], [0, 0, 1, 1], [], []>} : vector<9x8xbf16>, vector<8x32xbf16>, vector<9x32xf32> -> vector<9x32xf32>
    %336 = vector.extract_strided_slice %312 {offsets = [0, 8], sizes = [9, 8], strides = [1, 1]} : vector<18x96xf32> to vector<9x8xf32>
    %337 = arith.truncf %336 : vector<9x8xf32> to vector<9x8xbf16>
    %338 = vector.extract_strided_slice %312 {offsets = [0, 40], sizes = [9, 8], strides = [1, 1]} : vector<18x96xf32> to vector<9x8xf32>
    %339 = arith.truncf %338 : vector<9x8xf32> to vector<9x8xbf16>
    %340 = vector.extract_strided_slice %312 {offsets = [0, 72], sizes = [9, 8], strides = [1, 1]} : vector<18x96xf32> to vector<9x8xf32>
    %341 = arith.truncf %340 : vector<9x8xf32> to vector<9x8xbf16>
    %cst_94 = arith.constant dense<0.000000e+00> : vector<9x9xf32>
    %342 = tpu.matmul %337, %339, %cst_94 {dimension_numbers = #tpu.dot_dimension_numbers<[1], [1], [0], [0], [0, 0, 1, 0], [], []>} : vector<9x8xbf16>, vector<9x8xbf16>, vector<9x9xf32> -> vector<9x9xf32>
    %cst_95 = arith.constant 0.353553385 : f32
    %343 = vector.broadcast %cst_95 : f32 to vector<9x9xf32>
    %344 = arith.mulf %342, %343 : vector<9x9xf32>
    %cst_96 = arith.constant dense<0xFF800000> : vector<9xf32>
    %345 = vector.multi_reduction <maximumf>, %344, %cst_96 [1] : vector<9x9xf32> to vector<9xf32>
    %346 = vector.shape_cast %345 : vector<9xf32> to vector<9x1xf32>
    %347 = vector.broadcast %346 : vector<9x1xf32> to vector<9x9xf32>
    %348 = arith.subf %344, %347 : vector<9x9xf32>
    %349 = math.exp %348 : vector<9x9xf32>
    %cst_97 = arith.constant dense<0.000000e+00> : vector<9xf32>
    %350 = vector.multi_reduction <add>, %349, %cst_97 [1] : vector<9x9xf32> to vector<9xf32>
    %351 = vector.shape_cast %350 : vector<9xf32> to vector<9x1xf32>
    %352 = vector.broadcast %351 : vector<9x1xf32> to vector<9x9xf32>
    %353 = arith.divf %349, %352 : vector<9x9xf32>
    %354 = arith.truncf %353 : vector<9x9xf32> to vector<9x9xbf16>
    %cst_98 = arith.constant dense<0.000000e+00> : vector<9x8xf32>
    %355 = tpu.matmul %354, %341, %cst_98 {dimension_numbers = #tpu.dot_dimension_numbers<[1], [0], [0], [1], [0, 0, 1, 1], [], []>} : vector<9x9xbf16>, vector<9x8xbf16>, vector<9x8xf32> -> vector<9x8xf32>
    %356 = arith.truncf %355 : vector<9x8xf32> to vector<9x8xbf16>
    %357 = vector.extract_strided_slice %298 {offsets = [8, 0], sizes = [8, 32], strides = [1, 1]} : vector<32x32xbf16> to vector<8x32xbf16>
    %cst_99 = arith.constant dense<0.000000e+00> : vector<9x32xf32>
    %358 = tpu.matmul %356, %357, %cst_99 {dimension_numbers = #tpu.dot_dimension_numbers<[1], [0], [0], [1], [0, 0, 1, 1], [], []>} : vector<9x8xbf16>, vector<8x32xbf16>, vector<9x32xf32> -> vector<9x32xf32>
    %359 = arith.addf %335, %358 : vector<9x32xf32>
    %360 = vector.extract_strided_slice %312 {offsets = [0, 16], sizes = [9, 8], strides = [1, 1]} : vector<18x96xf32> to vector<9x8xf32>
    %361 = arith.truncf %360 : vector<9x8xf32> to vector<9x8xbf16>
    %362 = vector.extract_strided_slice %312 {offsets = [0, 48], sizes = [9, 8], strides = [1, 1]} : vector<18x96xf32> to vector<9x8xf32>
    %363 = arith.truncf %362 : vector<9x8xf32> to vector<9x8xbf16>
    %364 = vector.extract_strided_slice %312 {offsets = [0, 80], sizes = [9, 8], strides = [1, 1]} : vector<18x96xf32> to vector<9x8xf32>
    %365 = arith.truncf %364 : vector<9x8xf32> to vector<9x8xbf16>
    %cst_100 = arith.constant dense<0.000000e+00> : vector<9x9xf32>
    %366 = tpu.matmul %361, %363, %cst_100 {dimension_numbers = #tpu.dot_dimension_numbers<[1], [1], [0], [0], [0, 0, 1, 0], [], []>} : vector<9x8xbf16>, vector<9x8xbf16>, vector<9x9xf32> -> vector<9x9xf32>
    %cst_101 = arith.constant 0.353553385 : f32
    %367 = vector.broadcast %cst_101 : f32 to vector<9x9xf32>
    %368 = arith.mulf %366, %367 : vector<9x9xf32>
    %cst_102 = arith.constant dense<0xFF800000> : vector<9xf32>
    %369 = vector.multi_reduction <maximumf>, %368, %cst_102 [1] : vector<9x9xf32> to vector<9xf32>
    %370 = vector.shape_cast %369 : vector<9xf32> to vector<9x1xf32>
    %371 = vector.broadcast %370 : vector<9x1xf32> to vector<9x9xf32>
    %372 = arith.subf %368, %371 : vector<9x9xf32>
    %373 = math.exp %372 : vector<9x9xf32>
    %cst_103 = arith.constant dense<0.000000e+00> : vector<9xf32>
    %374 = vector.multi_reduction <add>, %373, %cst_103 [1] : vector<9x9xf32> to vector<9xf32>
    %375 = vector.shape_cast %374 : vector<9xf32> to vector<9x1xf32>
    %376 = vector.broadcast %375 : vector<9x1xf32> to vector<9x9xf32>
    %377 = arith.divf %373, %376 : vector<9x9xf32>
    %378 = arith.truncf %377 : vector<9x9xf32> to vector<9x9xbf16>
    %cst_104 = arith.constant dense<0.000000e+00> : vector<9x8xf32>
    %379 = tpu.matmul %378, %365, %cst_104 {dimension_numbers = #tpu.dot_dimension_numbers<[1], [0], [0], [1], [0, 0, 1, 1], [], []>} : vector<9x9xbf16>, vector<9x8xbf16>, vector<9x8xf32> -> vector<9x8xf32>
    %380 = arith.truncf %379 : vector<9x8xf32> to vector<9x8xbf16>
    %381 = vector.extract_strided_slice %298 {offsets = [16, 0], sizes = [8, 32], strides = [1, 1]} : vector<32x32xbf16> to vector<8x32xbf16>
    %cst_105 = arith.constant dense<0.000000e+00> : vector<9x32xf32>
    %382 = tpu.matmul %380, %381, %cst_105 {dimension_numbers = #tpu.dot_dimension_numbers<[1], [0], [0], [1], [0, 0, 1, 1], [], []>} : vector<9x8xbf16>, vector<8x32xbf16>, vector<9x32xf32> -> vector<9x32xf32>
    %383 = arith.addf %359, %382 : vector<9x32xf32>
    %384 = vector.extract_strided_slice %312 {offsets = [0, 24], sizes = [9, 8], strides = [1, 1]} : vector<18x96xf32> to vector<9x8xf32>
    %385 = arith.truncf %384 : vector<9x8xf32> to vector<9x8xbf16>
    %386 = vector.extract_strided_slice %312 {offsets = [0, 56], sizes = [9, 8], strides = [1, 1]} : vector<18x96xf32> to vector<9x8xf32>
    %387 = arith.truncf %386 : vector<9x8xf32> to vector<9x8xbf16>
    %388 = vector.extract_strided_slice %312 {offsets = [0, 88], sizes = [9, 8], strides = [1, 1]} : vector<18x96xf32> to vector<9x8xf32>
    %389 = arith.truncf %388 : vector<9x8xf32> to vector<9x8xbf16>
    %cst_106 = arith.constant dense<0.000000e+00> : vector<9x9xf32>
    %390 = tpu.matmul %385, %387, %cst_106 {dimension_numbers = #tpu.dot_dimension_numbers<[1], [1], [0], [0], [0, 0, 1, 0], [], []>} : vector<9x8xbf16>, vector<9x8xbf16>, vector<9x9xf32> -> vector<9x9xf32>
    %cst_107 = arith.constant 0.353553385 : f32
    %391 = vector.broadcast %cst_107 : f32 to vector<9x9xf32>
    %392 = arith.mulf %390, %391 : vector<9x9xf32>
    %cst_108 = arith.constant dense<0xFF800000> : vector<9xf32>
    %393 = vector.multi_reduction <maximumf>, %392, %cst_108 [1] : vector<9x9xf32> to vector<9xf32>
    %394 = vector.shape_cast %393 : vector<9xf32> to vector<9x1xf32>
    %395 = vector.broadcast %394 : vector<9x1xf32> to vector<9x9xf32>
    %396 = arith.subf %392, %395 : vector<9x9xf32>
    %397 = math.exp %396 : vector<9x9xf32>
    %cst_109 = arith.constant dense<0.000000e+00> : vector<9xf32>
    %398 = vector.multi_reduction <add>, %397, %cst_109 [1] : vector<9x9xf32> to vector<9xf32>
    %399 = vector.shape_cast %398 : vector<9xf32> to vector<9x1xf32>
    %400 = vector.broadcast %399 : vector<9x1xf32> to vector<9x9xf32>
    %401 = arith.divf %397, %400 : vector<9x9xf32>
    %402 = arith.truncf %401 : vector<9x9xf32> to vector<9x9xbf16>
    %cst_110 = arith.constant dense<0.000000e+00> : vector<9x8xf32>
    %403 = tpu.matmul %402, %389, %cst_110 {dimension_numbers = #tpu.dot_dimension_numbers<[1], [0], [0], [1], [0, 0, 1, 1], [], []>} : vector<9x9xbf16>, vector<9x8xbf16>, vector<9x8xf32> -> vector<9x8xf32>
    %404 = arith.truncf %403 : vector<9x8xf32> to vector<9x8xbf16>
    %405 = vector.extract_strided_slice %298 {offsets = [24, 0], sizes = [8, 32], strides = [1, 1]} : vector<32x32xbf16> to vector<8x32xbf16>
    %cst_111 = arith.constant dense<0.000000e+00> : vector<9x32xf32>
    %406 = tpu.matmul %404, %405, %cst_111 {dimension_numbers = #tpu.dot_dimension_numbers<[1], [0], [0], [1], [0, 0, 1, 1], [], []>} : vector<9x8xbf16>, vector<8x32xbf16>, vector<9x32xf32> -> vector<9x32xf32>
    %407 = arith.addf %383, %406 : vector<9x32xf32>
    %408 = vector.extract_strided_slice %312 {offsets = [9, 0], sizes = [9, 8], strides = [1, 1]} : vector<18x96xf32> to vector<9x8xf32>
    %409 = arith.truncf %408 : vector<9x8xf32> to vector<9x8xbf16>
    %410 = vector.extract_strided_slice %312 {offsets = [9, 32], sizes = [9, 8], strides = [1, 1]} : vector<18x96xf32> to vector<9x8xf32>
    %411 = arith.truncf %410 : vector<9x8xf32> to vector<9x8xbf16>
    %412 = vector.extract_strided_slice %312 {offsets = [9, 64], sizes = [9, 8], strides = [1, 1]} : vector<18x96xf32> to vector<9x8xf32>
    %413 = arith.truncf %412 : vector<9x8xf32> to vector<9x8xbf16>
    %cst_112 = arith.constant dense<0.000000e+00> : vector<9x9xf32>
    %414 = tpu.matmul %409, %411, %cst_112 {dimension_numbers = #tpu.dot_dimension_numbers<[1], [1], [0], [0], [0, 0, 1, 0], [], []>} : vector<9x8xbf16>, vector<9x8xbf16>, vector<9x9xf32> -> vector<9x9xf32>
    %cst_113 = arith.constant 0.353553385 : f32
    %415 = vector.broadcast %cst_113 : f32 to vector<9x9xf32>
    %416 = arith.mulf %414, %415 : vector<9x9xf32>
    %cst_114 = arith.constant dense<0xFF800000> : vector<9xf32>
    %417 = vector.multi_reduction <maximumf>, %416, %cst_114 [1] : vector<9x9xf32> to vector<9xf32>
    %418 = vector.shape_cast %417 : vector<9xf32> to vector<9x1xf32>
    %419 = vector.broadcast %418 : vector<9x1xf32> to vector<9x9xf32>
    %420 = arith.subf %416, %419 : vector<9x9xf32>
    %421 = math.exp %420 : vector<9x9xf32>
    %cst_115 = arith.constant dense<0.000000e+00> : vector<9xf32>
    %422 = vector.multi_reduction <add>, %421, %cst_115 [1] : vector<9x9xf32> to vector<9xf32>
    %423 = vector.shape_cast %422 : vector<9xf32> to vector<9x1xf32>
    %424 = vector.broadcast %423 : vector<9x1xf32> to vector<9x9xf32>
    %425 = arith.divf %421, %424 : vector<9x9xf32>
    %426 = arith.truncf %425 : vector<9x9xf32> to vector<9x9xbf16>
    %cst_116 = arith.constant dense<0.000000e+00> : vector<9x8xf32>
    %427 = tpu.matmul %426, %413, %cst_116 {dimension_numbers = #tpu.dot_dimension_numbers<[1], [0], [0], [1], [0, 0, 1, 1], [], []>} : vector<9x9xbf16>, vector<9x8xbf16>, vector<9x8xf32> -> vector<9x8xf32>
    %428 = arith.truncf %427 : vector<9x8xf32> to vector<9x8xbf16>
    %429 = vector.extract_strided_slice %298 {offsets = [0, 0], sizes = [8, 32], strides = [1, 1]} : vector<32x32xbf16> to vector<8x32xbf16>
    %cst_117 = arith.constant dense<0.000000e+00> : vector<9x32xf32>
    %430 = tpu.matmul %428, %429, %cst_117 {dimension_numbers = #tpu.dot_dimension_numbers<[1], [0], [0], [1], [0, 0, 1, 1], [], []>} : vector<9x8xbf16>, vector<8x32xbf16>, vector<9x32xf32> -> vector<9x32xf32>
    %431 = vector.extract_strided_slice %312 {offsets = [9, 8], sizes = [9, 8], strides = [1, 1]} : vector<18x96xf32> to vector<9x8xf32>
    %432 = arith.truncf %431 : vector<9x8xf32> to vector<9x8xbf16>
    %433 = vector.extract_strided_slice %312 {offsets = [9, 40], sizes = [9, 8], strides = [1, 1]} : vector<18x96xf32> to vector<9x8xf32>
    %434 = arith.truncf %433 : vector<9x8xf32> to vector<9x8xbf16>
    %435 = vector.extract_strided_slice %312 {offsets = [9, 72], sizes = [9, 8], strides = [1, 1]} : vector<18x96xf32> to vector<9x8xf32>
    %436 = arith.truncf %435 : vector<9x8xf32> to vector<9x8xbf16>
    %cst_118 = arith.constant dense<0.000000e+00> : vector<9x9xf32>
    %437 = tpu.matmul %432, %434, %cst_118 {dimension_numbers = #tpu.dot_dimension_numbers<[1], [1], [0], [0], [0, 0, 1, 0], [], []>} : vector<9x8xbf16>, vector<9x8xbf16>, vector<9x9xf32> -> vector<9x9xf32>
    %cst_119 = arith.constant 0.353553385 : f32
    %438 = vector.broadcast %cst_119 : f32 to vector<9x9xf32>
    %439 = arith.mulf %437, %438 : vector<9x9xf32>
    %cst_120 = arith.constant dense<0xFF800000> : vector<9xf32>
    %440 = vector.multi_reduction <maximumf>, %439, %cst_120 [1] : vector<9x9xf32> to vector<9xf32>
    %441 = vector.shape_cast %440 : vector<9xf32> to vector<9x1xf32>
    %442 = vector.broadcast %441 : vector<9x1xf32> to vector<9x9xf32>
    %443 = arith.subf %439, %442 : vector<9x9xf32>
    %444 = math.exp %443 : vector<9x9xf32>
    %cst_121 = arith.constant dense<0.000000e+00> : vector<9xf32>
    %445 = vector.multi_reduction <add>, %444, %cst_121 [1] : vector<9x9xf32> to vector<9xf32>
    %446 = vector.shape_cast %445 : vector<9xf32> to vector<9x1xf32>
    %447 = vector.broadcast %446 : vector<9x1xf32> to vector<9x9xf32>
    %448 = arith.divf %444, %447 : vector<9x9xf32>
    %449 = arith.truncf %448 : vector<9x9xf32> to vector<9x9xbf16>
    %cst_122 = arith.constant dense<0.000000e+00> : vector<9x8xf32>
    %450 = tpu.matmul %449, %436, %cst_122 {dimension_numbers = #tpu.dot_dimension_numbers<[1], [0], [0], [1], [0, 0, 1, 1], [], []>} : vector<9x9xbf16>, vector<9x8xbf16>, vector<9x8xf32> -> vector<9x8xf32>
    %451 = arith.truncf %450 : vector<9x8xf32> to vector<9x8xbf16>
    %452 = vector.extract_strided_slice %298 {offsets = [8, 0], sizes = [8, 32], strides = [1, 1]} : vector<32x32xbf16> to vector<8x32xbf16>
    %cst_123 = arith.constant dense<0.000000e+00> : vector<9x32xf32>
    %453 = tpu.matmul %451, %452, %cst_123 {dimension_numbers = #tpu.dot_dimension_numbers<[1], [0], [0], [1], [0, 0, 1, 1], [], []>} : vector<9x8xbf16>, vector<8x32xbf16>, vector<9x32xf32> -> vector<9x32xf32>
    %454 = arith.addf %430, %453 : vector<9x32xf32>
    %455 = vector.extract_strided_slice %312 {offsets = [9, 16], sizes = [9, 8], strides = [1, 1]} : vector<18x96xf32> to vector<9x8xf32>
    %456 = arith.truncf %455 : vector<9x8xf32> to vector<9x8xbf16>
    %457 = vector.extract_strided_slice %312 {offsets = [9, 48], sizes = [9, 8], strides = [1, 1]} : vector<18x96xf32> to vector<9x8xf32>
    %458 = arith.truncf %457 : vector<9x8xf32> to vector<9x8xbf16>
    %459 = vector.extract_strided_slice %312 {offsets = [9, 80], sizes = [9, 8], strides = [1, 1]} : vector<18x96xf32> to vector<9x8xf32>
    %460 = arith.truncf %459 : vector<9x8xf32> to vector<9x8xbf16>
    %cst_124 = arith.constant dense<0.000000e+00> : vector<9x9xf32>
    %461 = tpu.matmul %456, %458, %cst_124 {dimension_numbers = #tpu.dot_dimension_numbers<[1], [1], [0], [0], [0, 0, 1, 0], [], []>} : vector<9x8xbf16>, vector<9x8xbf16>, vector<9x9xf32> -> vector<9x9xf32>
    %cst_125 = arith.constant 0.353553385 : f32
    %462 = vector.broadcast %cst_125 : f32 to vector<9x9xf32>
    %463 = arith.mulf %461, %462 : vector<9x9xf32>
    %cst_126 = arith.constant dense<0xFF800000> : vector<9xf32>
    %464 = vector.multi_reduction <maximumf>, %463, %cst_126 [1] : vector<9x9xf32> to vector<9xf32>
    %465 = vector.shape_cast %464 : vector<9xf32> to vector<9x1xf32>
    %466 = vector.broadcast %465 : vector<9x1xf32> to vector<9x9xf32>
    %467 = arith.subf %463, %466 : vector<9x9xf32>
    %468 = math.exp %467 : vector<9x9xf32>
    %cst_127 = arith.constant dense<0.000000e+00> : vector<9xf32>
    %469 = vector.multi_reduction <add>, %468, %cst_127 [1] : vector<9x9xf32> to vector<9xf32>
    %470 = vector.shape_cast %469 : vector<9xf32> to vector<9x1xf32>
    %471 = vector.broadcast %470 : vector<9x1xf32> to vector<9x9xf32>
    %472 = arith.divf %468, %471 : vector<9x9xf32>
    %473 = arith.truncf %472 : vector<9x9xf32> to vector<9x9xbf16>
    %cst_128 = arith.constant dense<0.000000e+00> : vector<9x8xf32>
    %474 = tpu.matmul %473, %460, %cst_128 {dimension_numbers = #tpu.dot_dimension_numbers<[1], [0], [0], [1], [0, 0, 1, 1], [], []>} : vector<9x9xbf16>, vector<9x8xbf16>, vector<9x8xf32> -> vector<9x8xf32>
    %475 = arith.truncf %474 : vector<9x8xf32> to vector<9x8xbf16>
    %476 = vector.extract_strided_slice %298 {offsets = [16, 0], sizes = [8, 32], strides = [1, 1]} : vector<32x32xbf16> to vector<8x32xbf16>
    %cst_129 = arith.constant dense<0.000000e+00> : vector<9x32xf32>
    %477 = tpu.matmul %475, %476, %cst_129 {dimension_numbers = #tpu.dot_dimension_numbers<[1], [0], [0], [1], [0, 0, 1, 1], [], []>} : vector<9x8xbf16>, vector<8x32xbf16>, vector<9x32xf32> -> vector<9x32xf32>
    %478 = arith.addf %454, %477 : vector<9x32xf32>
    %479 = vector.extract_strided_slice %312 {offsets = [9, 24], sizes = [9, 8], strides = [1, 1]} : vector<18x96xf32> to vector<9x8xf32>
    %480 = arith.truncf %479 : vector<9x8xf32> to vector<9x8xbf16>
    %481 = vector.extract_strided_slice %312 {offsets = [9, 56], sizes = [9, 8], strides = [1, 1]} : vector<18x96xf32> to vector<9x8xf32>
    %482 = arith.truncf %481 : vector<9x8xf32> to vector<9x8xbf16>
    %483 = vector.extract_strided_slice %312 {offsets = [9, 88], sizes = [9, 8], strides = [1, 1]} : vector<18x96xf32> to vector<9x8xf32>
    %484 = arith.truncf %483 : vector<9x8xf32> to vector<9x8xbf16>
    %cst_130 = arith.constant dense<0.000000e+00> : vector<9x9xf32>
    %485 = tpu.matmul %480, %482, %cst_130 {dimension_numbers = #tpu.dot_dimension_numbers<[1], [1], [0], [0], [0, 0, 1, 0], [], []>} : vector<9x8xbf16>, vector<9x8xbf16>, vector<9x9xf32> -> vector<9x9xf32>
    %cst_131 = arith.constant 0.353553385 : f32
    %486 = vector.broadcast %cst_131 : f32 to vector<9x9xf32>
    %487 = arith.mulf %485, %486 : vector<9x9xf32>
    %cst_132 = arith.constant dense<0xFF800000> : vector<9xf32>
    %488 = vector.multi_reduction <maximumf>, %487, %cst_132 [1] : vector<9x9xf32> to vector<9xf32>
    %489 = vector.shape_cast %488 : vector<9xf32> to vector<9x1xf32>
    %490 = vector.broadcast %489 : vector<9x1xf32> to vector<9x9xf32>
    %491 = arith.subf %487, %490 : vector<9x9xf32>
    %492 = math.exp %491 : vector<9x9xf32>
    %cst_133 = arith.constant dense<0.000000e+00> : vector<9xf32>
    %493 = vector.multi_reduction <add>, %492, %cst_133 [1] : vector<9x9xf32> to vector<9xf32>
    %494 = vector.shape_cast %493 : vector<9xf32> to vector<9x1xf32>
    %495 = vector.broadcast %494 : vector<9x1xf32> to vector<9x9xf32>
    %496 = arith.divf %492, %495 : vector<9x9xf32>
    %497 = arith.truncf %496 : vector<9x9xf32> to vector<9x9xbf16>
    %cst_134 = arith.constant dense<0.000000e+00> : vector<9x8xf32>
    %498 = tpu.matmul %497, %484, %cst_134 {dimension_numbers = #tpu.dot_dimension_numbers<[1], [0], [0], [1], [0, 0, 1, 1], [], []>} : vector<9x9xbf16>, vector<9x8xbf16>, vector<9x8xf32> -> vector<9x8xf32>
    %499 = arith.truncf %498 : vector<9x8xf32> to vector<9x8xbf16>
    %500 = vector.extract_strided_slice %298 {offsets = [24, 0], sizes = [8, 32], strides = [1, 1]} : vector<32x32xbf16> to vector<8x32xbf16>
    %cst_135 = arith.constant dense<0.000000e+00> : vector<9x32xf32>
    %501 = tpu.matmul %499, %500, %cst_135 {dimension_numbers = #tpu.dot_dimension_numbers<[1], [0], [0], [1], [0, 0, 1, 1], [], []>} : vector<9x8xbf16>, vector<8x32xbf16>, vector<9x32xf32> -> vector<9x32xf32>
    %502 = arith.addf %478, %501 : vector<9x32xf32>
    %503 = tpu.concatenate %407, %502 in 0 : vector<9x32xf32>, vector<9x32xf32> -> vector<18x32xf32>
    %504 = vector.broadcast %302 : vector<1x32xf32> to vector<18x32xf32>
    %505 = arith.addf %503, %504 : vector<18x32xf32>
    %506 = arith.addf %505, %292 : vector<18x32xf32>
    %cst_136 = arith.constant dense<0.000000e+00> : vector<18xf32>
    %507 = vector.multi_reduction <add>, %506, %cst_136 [1] : vector<18x32xf32> to vector<18xf32>
    %508 = vector.shape_cast %507 : vector<18xf32> to vector<18x1xf32>
    %cst_137 = arith.constant 3.200000e+01 : f32
    %509 = vector.broadcast %cst_137 : f32 to vector<18x1xf32>
    %510 = arith.divf %508, %509 : vector<18x1xf32>
    %511 = vector.broadcast %510 : vector<18x1xf32> to vector<18x32xf32>
    %512 = arith.subf %506, %511 : vector<18x32xf32>
    %513 = arith.mulf %512, %512 : vector<18x32xf32>
    %cst_138 = arith.constant dense<0.000000e+00> : vector<18xf32>
    %514 = vector.multi_reduction <add>, %513, %cst_138 [1] : vector<18x32xf32> to vector<18xf32>
    %515 = vector.shape_cast %514 : vector<18xf32> to vector<18x1xf32>
    %cst_139 = arith.constant 3.200000e+01 : f32
    %516 = vector.broadcast %cst_139 : f32 to vector<18x1xf32>
    %517 = arith.divf %515, %516 : vector<18x1xf32>
    %518 = vector.broadcast %510 : vector<18x1xf32> to vector<18x32xf32>
    %519 = arith.subf %506, %518 : vector<18x32xf32>
    %cst_140 = arith.constant 9.99999996E-13 : f32
    %520 = vector.broadcast %cst_140 : f32 to vector<18x1xf32>
    %521 = arith.addf %517, %520 : vector<18x1xf32>
    %522 = math.rsqrt %521 : vector<18x1xf32>
    %523 = vector.broadcast %522 : vector<18x1xf32> to vector<18x32xf32>
    %524 = arith.mulf %519, %523 : vector<18x32xf32>
    %525 = vector.broadcast %303 : vector<1x32xf32> to vector<18x32xf32>
    %526 = arith.mulf %524, %525 : vector<18x32xf32>
    %527 = vector.broadcast %304 : vector<1x32xf32> to vector<18x32xf32>
    %528 = arith.addf %526, %527 : vector<18x32xf32>
    %529 = arith.truncf %528 : vector<18x32xf32> to vector<18x32xbf16>
    %cst_141 = arith.constant dense<0.000000e+00> : vector<18x64xf32>
    %530 = tpu.matmul %529, %299, %cst_141 {dimension_numbers = #tpu.dot_dimension_numbers<[1], [0], [0], [1], [0, 0, 1, 1], [], []>} : vector<18x32xbf16>, vector<32x64xbf16>, vector<18x64xf32> -> vector<18x64xf32>
    %531 = vector.broadcast %305 : vector<1x64xf32> to vector<18x64xf32>
    %532 = arith.addf %530, %531 : vector<18x64xf32>
    %cst_142 = arith.constant 5.000000e-01 : f32
    %533 = vector.broadcast %cst_142 : f32 to vector<18x64xf32>
    %534 = arith.mulf %533, %532 : vector<18x64xf32>
    %cst_143 = arith.constant 4.471500e-02 : f32
    %535 = vector.broadcast %cst_143 : f32 to vector<18x64xf32>
    %536 = arith.mulf %535, %532 : vector<18x64xf32>
    %537 = arith.mulf %536, %532 : vector<18x64xf32>
    %538 = arith.mulf %537, %532 : vector<18x64xf32>
    %539 = arith.addf %532, %538 : vector<18x64xf32>
    %cst_144 = arith.constant 0.797884583 : f32
    %540 = vector.broadcast %cst_144 : f32 to vector<18x64xf32>
    %541 = arith.mulf %540, %539 : vector<18x64xf32>
    %542 = math.tanh %541 : vector<18x64xf32>
    %cst_145 = arith.constant 1.000000e+00 : f32
    %543 = vector.broadcast %cst_145 : f32 to vector<18x64xf32>
    %544 = arith.addf %543, %542 : vector<18x64xf32>
    %545 = arith.mulf %534, %544 : vector<18x64xf32>
    %546 = arith.truncf %545 : vector<18x64xf32> to vector<18x64xbf16>
    %cst_146 = arith.constant dense<0.000000e+00> : vector<18x32xf32>
    %547 = tpu.matmul %546, %300, %cst_146 {dimension_numbers = #tpu.dot_dimension_numbers<[1], [0], [0], [1], [0, 0, 1, 1], [], []>} : vector<18x64xbf16>, vector<64x32xbf16>, vector<18x32xf32> -> vector<18x32xf32>
    %548 = vector.broadcast %306 : vector<1x32xf32> to vector<18x32xf32>
    %549 = arith.addf %547, %548 : vector<18x32xf32>
    %550 = arith.addf %549, %528 : vector<18x32xf32>
    %cst_147 = arith.constant dense<0.000000e+00> : vector<18xf32>
    %551 = vector.multi_reduction <add>, %550, %cst_147 [1] : vector<18x32xf32> to vector<18xf32>
    %552 = vector.shape_cast %551 : vector<18xf32> to vector<18x1xf32>
    %cst_148 = arith.constant 3.200000e+01 : f32
    %553 = vector.broadcast %cst_148 : f32 to vector<18x1xf32>
    %554 = arith.divf %552, %553 : vector<18x1xf32>
    %555 = vector.broadcast %554 : vector<18x1xf32> to vector<18x32xf32>
    %556 = arith.subf %550, %555 : vector<18x32xf32>
    %557 = arith.mulf %556, %556 : vector<18x32xf32>
    %cst_149 = arith.constant dense<0.000000e+00> : vector<18xf32>
    %558 = vector.multi_reduction <add>, %557, %cst_149 [1] : vector<18x32xf32> to vector<18xf32>
    %559 = vector.shape_cast %558 : vector<18xf32> to vector<18x1xf32>
    %cst_150 = arith.constant 3.200000e+01 : f32
    %560 = vector.broadcast %cst_150 : f32 to vector<18x1xf32>
    %561 = arith.divf %559, %560 : vector<18x1xf32>
    %562 = vector.broadcast %554 : vector<18x1xf32> to vector<18x32xf32>
    %563 = arith.subf %550, %562 : vector<18x32xf32>
    %cst_151 = arith.constant 9.99999996E-13 : f32
    %564 = vector.broadcast %cst_151 : f32 to vector<18x1xf32>
    %565 = arith.addf %561, %564 : vector<18x1xf32>
    %566 = math.rsqrt %565 : vector<18x1xf32>
    %567 = vector.broadcast %566 : vector<18x1xf32> to vector<18x32xf32>
    %568 = arith.mulf %563, %567 : vector<18x32xf32>
    %569 = vector.broadcast %307 : vector<1x32xf32> to vector<18x32xf32>
    %570 = arith.mulf %568, %569 : vector<18x32xf32>
    %571 = vector.broadcast %308 : vector<1x32xf32> to vector<18x32xf32>
    %572 = arith.addf %570, %571 : vector<18x32xf32>
    %573 = vector.extract_strided_slice %572 {offsets = [0, 0], sizes = [1, 32], strides = [1, 1]} : vector<18x32xf32> to vector<1x32xf32>
    %574 = vector.extract_strided_slice %572 {offsets = [9, 0], sizes = [1, 32], strides = [1, 1]} : vector<18x32xf32> to vector<1x32xf32>
    %575 = tpu.concatenate %573, %574 in 0 : vector<1x32xf32>, vector<1x32xf32> -> vector<2x32xf32>
    %576 = arith.truncf %575 : vector<2x32xf32> to vector<2x32xbf16>
    %c0_152 = arith.constant 0 : index
    %c0_153 = arith.constant 0 : index
    %577 = vector.load %arg8[%c0_152, %c0_153] : memref<32x160xbf16, #tpu.memory_space<vmem>>, vector<32x32xbf16>
    %cst_154 = arith.constant dense<0.000000e+00> : vector<2x32xf32>
    %578 = tpu.matmul %576, %577, %cst_154 {dimension_numbers = #tpu.dot_dimension_numbers<[1], [0], [0], [1], [0, 0, 1, 1], [], []>} : vector<2x32xbf16>, vector<32x32xbf16>, vector<2x32xf32> -> vector<2x32xf32>
    %c0_155 = arith.constant 0 : index
    %c0_156 = arith.constant 0 : index
    %579 = vector.load %arg9[%c0_155, %c0_156] : memref<1x160xf32, #tpu.memory_space<vmem>>, vector<1x32xf32>
    %580 = vector.broadcast %579 : vector<1x32xf32> to vector<2x32xf32>
    %581 = arith.addf %578, %580 : vector<2x32xf32>
    %582 = math.tanh %581 : vector<2x32xf32>
    %583 = arith.truncf %582 : vector<2x32xf32> to vector<2x32xbf16>
    %c0_157 = arith.constant 0 : index
    %c32 = arith.constant 32 : index
    %584 = vector.load %arg8[%c0_157, %c32] : memref<32x160xbf16, #tpu.memory_space<vmem>>, vector<32x128xbf16>
    %cst_158 = arith.constant dense<0.000000e+00> : vector<2x128xf32>
    %585 = tpu.matmul %583, %584, %cst_158 {dimension_numbers = #tpu.dot_dimension_numbers<[1], [0], [0], [1], [0, 0, 1, 1], [], []>} : vector<2x32xbf16>, vector<32x128xbf16>, vector<2x128xf32> -> vector<2x128xf32>
    %c0_159 = arith.constant 0 : index
    %c32_160 = arith.constant 32 : index
    %586 = vector.load %arg9[%c0_159, %c32_160] : memref<1x160xf32, #tpu.memory_space<vmem>>, vector<1x128xf32>
    %587 = vector.broadcast %586 : vector<1x128xf32> to vector<2x128xf32>
    %588 = arith.addf %585, %587 : vector<2x128xf32>
    %589 = vector.extract_strided_slice %588 {offsets = [0, 0], sizes = [1, 128], strides = [1, 1]} : vector<2x128xf32> to vector<1x128xf32>
    %c0_161 = arith.constant 0 : index
    %c0_162 = arith.constant 0 : index
    %c0_163 = arith.constant 0 : index
    %590 = vector.load %arg10[%c0_161, %c0_162, %c0_163] : memref<2x1x128xf32, #tpu.memory_space<vmem>>, vector<1x1x128xf32>
    %591 = vector.shape_cast %590 : vector<1x1x128xf32> to vector<1x128xf32>
    %592 = vector.shape_cast %589 : vector<1x128xf32> to vector<1x1x128xf32>
    tpu.vector_store %arg10[%c0_161, %c0_162, %c0_163], %592 {strides = array<i32>} : memref<2x1x128xf32, #tpu.memory_space<vmem>>, vector<1x1x128xf32>,
    %593 = vector.extract_strided_slice %588 {offsets = [1, 0], sizes = [1, 128], strides = [1, 1]} : vector<2x128xf32> to vector<1x128xf32>
    %c1_164 = arith.constant 1 : index
    %c0_165 = arith.constant 0 : index
    %c0_166 = arith.constant 0 : index
    %594 = vector.load %arg10[%c1_164, %c0_165, %c0_166] : memref<2x1x128xf32, #tpu.memory_space<vmem>>, vector<1x1x128xf32>
    %595 = vector.shape_cast %594 : vector<1x1x128xf32> to vector<1x128xf32>
    %596 = vector.shape_cast %593 : vector<1x128xf32> to vector<1x1x128xf32>
    tpu.vector_store %arg10[%c1_164, %c0_165, %c0_166], %596 {strides = array<i32>} : memref<2x1x128xf32, #tpu.memory_space<vmem>>, vector<1x1x128xf32>,
    return
  }
  func.func @transform_0(%arg0: i32) -> (i32, i32) {
    %c0_i32 = arith.constant 0 : i32
    %c0_i32_0 = arith.constant 0 : i32
    return %c0_i32, %arg0 : i32, i32
  }
  func.func @transform_1(%arg0: i32) -> (i32, i32) {
    %c0_i32 = arith.constant 0 : i32
    %c0_i32_0 = arith.constant 0 : i32
    %c0_i32_1 = arith.constant 0 : i32
    return %c0_i32, %c0_i32_0 : i32, i32
  }
  func.func @transform_2(%arg0: i32) -> (i32, i32) {
    %c0_i32 = arith.constant 0 : i32
    %c0_i32_0 = arith.constant 0 : i32
    %c0_i32_1 = arith.constant 0 : i32
    return %c0_i32, %c0_i32_0 : i32, i32
  }
  func.func @transform_3(%arg0: i32) -> (i32, i32) {
    %c0_i32 = arith.constant 0 : i32
    %c0_i32_0 = arith.constant 0 : i32
    %c0_i32_1 = arith.constant 0 : i32
    return %c0_i32, %c0_i32_0 : i32, i32
  }
  func.func @transform_4(%arg0: i32) -> (i32, i32) {
    %c0_i32 = arith.constant 0 : i32
    %c0_i32_0 = arith.constant 0 : i32
    %c0_i32_1 = arith.constant 0 : i32
    return %c0_i32, %c0_i32_0 : i32, i32
  }
  func.func @transform_5(%arg0: i32) -> (i32, i32, i32) {
    %c0_i32 = arith.constant 0 : i32
    %c0_i32_0 = arith.constant 0 : i32
    %c0_i32_1 = arith.constant 0 : i32
    %c0_i32_2 = arith.constant 0 : i32
    return %c0_i32, %c0_i32_0, %c0_i32_1 : i32, i32, i32
  }
  func.func @transform_6(%arg0: i32) -> (i32, i32, i32) {
    %c0_i32 = arith.constant 0 : i32
    %c0_i32_0 = arith.constant 0 : i32
    %c0_i32_1 = arith.constant 0 : i32
    %c0_i32_2 = arith.constant 0 : i32
    return %c0_i32, %c0_i32_0, %c0_i32_1 : i32, i32, i32
  }
  func.func @transform_7(%arg0: i32) -> (i32, i32) {
    %c0_i32 = arith.constant 0 : i32
    %c0_i32_0 = arith.constant 0 : i32
    %c0_i32_1 = arith.constant 0 : i32
    return %c0_i32, %c0_i32_0 : i32, i32
  }
  func.func @transform_8(%arg0: i32) -> (i32, i32) {
    %c0_i32 = arith.constant 0 : i32
    %c0_i32_0 = arith.constant 0 : i32
    %c0_i32_1 = arith.constant 0 : i32
    return %c0_i32, %c0_i32_0 : i32, i32
  }
  func.func @transform_9(%arg0: i32) -> (i32, i32, i32) {
    %c0_i32 = arith.constant 0 : i32
    %c0_i32_0 = arith.constant 0 : i32
    %c0_i32_1 = arith.constant 0 : i32
    return %arg0, %c0_i32, %c0_i32_0 : i32, i32, i32
  }
}

</mosaic_0001>

<llo_original>
// kernel: forward.1
$region0: #{forward.1}
  #allocation0 [shape = 'u32[]', space=smem, size = 0x4, offset = 0x4, fixed_abs, tag = 'smem constant byte address 0x4 - core index']
  #allocation1 [shape = 'u32[144,128]{1,0:T(1,128)}', space=vmem, size = 0x12000, scoped, tag = 'internal scratch']
  %s0 = inlined_call_operand.vmem [shape: bf16[32,8192], index: 0, kind: input, shape index: {}]
  %s1 = inlined_call_operand.vmem [shape: bf16[18,8192], index: 1, kind: input, shape index: {}]
  %s2 = inlined_call_operand.vmem [shape: f32[18,32], index: 2, kind: input, shape index: {}]
  %s3 = inlined_call_operand.vmem [shape: bf16[32,32], index: 3, kind: input, shape index: {}]
  %s4 = inlined_call_operand.vmem [shape: f32[32,1], index: 4, kind: input, shape index: {}]
  %s5 = inlined_call_operand.vmem [shape: bf16[2,128,128], index: 5, kind: input, shape index: {}]
  %s6 = inlined_call_operand.vmem [shape: f32[2,8,128], index: 6, kind: input, shape index: {}]
  %s7 = inlined_call_operand.vmem [shape: bf16[32,160], index: 7, kind: input, shape index: {}]
  %s8 = inlined_call_operand.vmem [shape: f32[1,160], index: 8, kind: input, shape index: {}]
  %s9 = inlined_call_operand.hbm [shape: f32[2,1,128], index: 9, kind: output, shape index: {}]
  %s10 = sld [smem:[#allocation0]]
  $region46: #{forward.1} parent=0
    _
  %s12 = ssub.s32 1, %s10
  %s13 = scalar_select 0, %s12, %s10
  $region1: #{forward.1} parent=0
    #allocation2 [shape = 'u8[1024]{0}', space=vmem, size = 0x400, scoped, tag = 'output window, operand 0, single buffered']
    #allocation3 [shape = 's32[1]{0}', space=sflag, size = 0x4, scoped, tag = 'scoped memory for forward.1']
    %14 = vsyncpa [#allocation3], 0
    // Predicated region
    $region2: #{forward.1} parent=1 // pred_check
      _
    $region3: #{forward.1} parent=1 // pred_check_branch
      %16 = sbr.rel (0) target = $region5
    $region4: #{forward.1} parent=1 // pred_region
      _
    $region5: #{forward.1} parent=1 // pred_fallthru
      _
    // Predicated region
    $region6: #{forward.1} parent=1 // pred_check
      _
    $region7: #{forward.1} parent=1 // pred_check_branch
      %18 = sbr.rel (0) target = $region9
    $region8: #{forward.1} parent=1 // pred_region
      _
    $region9: #{forward.1} parent=1 // pred_fallthru
      _
    // Predicated region
    $region10: #{forward.1} parent=1 // pred_check
      _
    $region11: #{forward.1} parent=1 // pred_check_branch
      %20 = sbr.rel (0) target = $region13
    $region12: #{forward.1} parent=1 // pred_region
      _
    $region13: #{forward.1} parent=1 // pred_fallthru
      _
    // Predicated region
    $region14: #{forward.1} parent=1 // pred_check
      _
    $region15: #{forward.1} parent=1 // pred_check_branch
      %22 = sbr.rel (0) target = $region17
    $region16: #{forward.1} parent=1 // pred_region
      _
    $region17: #{forward.1} parent=1 // pred_fallthru
      _
    // Predicated region
    $region18: #{forward.1} parent=1 // pred_check
      _
    $region19: #{forward.1} parent=1 // pred_check_branch
      %24 = sbr.rel (0) target = $region21
    $region20: #{forward.1} parent=1 // pred_region
      _
    $region21: #{forward.1} parent=1 // pred_fallthru
      _
    // Predicated region
    $region22: #{forward.1} parent=1 // pred_check
      _
    $region23: #{forward.1} parent=1 // pred_check_branch
      %26 = sbr.rel (0) target = $region25
    $region24: #{forward.1} parent=1 // pred_region
      _
    $region25: #{forward.1} parent=1 // pred_fallthru
      _
    // Predicated region
    $region26: #{forward.1} parent=1 // pred_check
      _
    $region27: #{forward.1} parent=1 // pred_check_branch
      %28 = sbr.rel (0) target = $region29
    $region28: #{forward.1} parent=1 // pred_region
      _
    $region29: #{forward.1} parent=1 // pred_fallthru
      _
    // Predicated region
    $region30: #{forward.1} parent=1 // pred_check
      _
    $region31: #{forward.1} parent=1 // pred_check_branch
      %30 = sbr.rel (0) target = $region33
    $region32: #{forward.1} parent=1 // pred_region
      _
    $region33: #{forward.1} parent=1 // pred_fallthru
      _
    // Predicated region
    $region34: #{forward.1} parent=1 // pred_check
      _
    $region35: #{forward.1} parent=1 // pred_check_branch
      %32 = sbr.rel (0) target = $region37
    $region36: #{forward.1} parent=1 // pred_region
      _
    $region37: #{forward.1} parent=1 // pred_fallthru
      _
    %v34 = vld [vmem:[%s3] sm:$0xf]
    %v35 = vld [vmem:[%s3 + $0x4] sm:$0xf]
    %v36 = vld [vmem:[%s3 + $0x8] sm:$0xf]
    %v37 = vld [vmem:[%s3 + $0xc] sm:$0xf]
    %v38 = vld [vmem:[%s0] sm:$0xff]
    %v39 = vld [vmem:[%s0 + $0x8] sm:$0xff]
    %v40 = vld [vmem:[%s0 + $0x10] sm:$0xff]
    %v41 = vld [vmem:[%s0 + $0x18] sm:$0xff]
    %v42 = vld [vmem:[%s0 + $0x20] sm:$0xff]
    %v43 = vld [vmem:[%s0 + $0x28] sm:$0xff]
    %v44 = vld [vmem:[%s0 + $0x30] sm:$0xff]
    %v45 = vld [vmem:[%s0 + $0x38] sm:$0xff]
    %v46 = vld [vmem:[%s0 + $0x40] sm:$0xff]
    %v47 = vld [vmem:[%s0 + $0x48] sm:$0xff]
    %v48 = vld [vmem:[%s0 + $0x50] sm:$0xff]
    %v49 = vld [vmem:[%s0 + $0x58] sm:$0xff]
    %v50 = vld [vmem:[%s0 + $0x60] sm:$0xff]
    %v51 = vld [vmem:[%s0 + $0x68] sm:$0xff]
    %v52 = vld [vmem:[%s0 + $0x70] sm:$0xff]
    %v53 = vld [vmem:[%s0 + $0x78] sm:$0xff]
    %v54 = vld [vmem:[%s0 + $0x80] sm:$0xff]
    %v55 = vld [vmem:[%s0 + $0x88] sm:$0xff]
    %v56 = vld [vmem:[%s0 + $0x90] sm:$0xff]
    %v57 = vld [vmem:[%s0 + $0x98] sm:$0xff]
    %v58 = vld [vmem:[%s0 + $0xa0] sm:$0xff]
    %v59 = vld [vmem:[%s0 + $0xa8] sm:$0xff]
    %v60 = vld [vmem:[%s0 + $0xb0] sm:$0xff]
    %v61 = vld [vmem:[%s0 + $0xb8] sm:$0xff]
    %v62 = vld [vmem:[%s0 + $0xc0] sm:$0xff]
    %v63 = vld [vmem:[%s0 + $0xc8] sm:$0xff]
    %v64 = vld [vmem:[%s0 + $0xd0] sm:$0xff]
    %v65 = vld [vmem:[%s0 + $0xd8] sm:$0xff]
    %v66 = vld [vmem:[%s0 + $0xe0] sm:$0xff]
    %v67 = vld [vmem:[%s0 + $0xe8] sm:$0xff]
    %v68 = vld [vmem:[%s0 + $0xf0] sm:$0xff]
    %v69 = vld [vmem:[%s0 + $0xf8] sm:$0xff]
    %v70 = vld [vmem:[%s0 + $0x100] sm:$0xff]
    %v71 = vld [vmem:[%s0 + $0x108] sm:$0xff]
    %v72 = vld [vmem:[%s0 + $0x110] sm:$0xff]
    %v73 = vld [vmem:[%s0 + $0x118] sm:$0xff]
    %v74 = vld [vmem:[%s0 + $0x120] sm:$0xff]
    %v75 = vld [vmem:[%s0 + $0x128] sm:$0xff]
    %v76 = vld [vmem:[%s0 + $0x130] sm:$0xff]
    %v77 = vld [vmem:[%s0 + $0x138] sm:$0xff]
    %v78 = vld [vmem:[%s0 + $0x140] sm:$0xff]
    %v79 = vld [vmem:[%s0 + $0x148] sm:$0xff]
    %v80 = vld [vmem:[%s0 + $0x150] sm:$0xff]
    %v81 = vld [vmem:[%s0 + $0x158] sm:$0xff]
    %v82 = vld [vmem:[%s0 + $0x160] sm:$0xff]
    %v83 = vld [vmem:[%s0 + $0x168] sm:$0xff]
    %v84 = vld [vmem:[%s0 + $0x170] sm:$0xff]
    %v85 = vld [vmem:[%s0 + $0x178] sm:$0xff]
    %v86 = vld [vmem:[%s0 + $0x180] sm:$0xff]
    %v87 = vld [vmem:[%s0 + $0x188] sm:$0xff]
    %v88 = vld [vmem:[%s0 + $0x190] sm:$0xff]
    %v89 = vld [vmem:[%s0 + $0x198] sm:$0xff]
    %v90 = vld [vmem:[%s0 + $0x1a0] sm:$0xff]
    %v91 = vld [vmem:[%s0 + $0x1a8] sm:$0xff]
    %v92 = vld [vmem:[%s0 + $0x1b0] sm:$0xff]
    %v93 = vld [vmem:[%s0 + $0x1b8] sm:$0xff]
    %v94 = vld [vmem:[%s0 + $0x1c0] sm:$0xff]
    %v95 = vld [vmem:[%s0 + $0x1c8] sm:$0xff]
    %v96 = vld [vmem:[%s0 + $0x1d0] sm:$0xff]
    %v97 = vld [vmem:[%s0 + $0x1d8] sm:$0xff]
    %v98 = vld [vmem:[%s0 + $0x1e0] sm:$0xff]
    %v99 = vld [vmem:[%s0 + $0x1e8] sm:$0xff]
    %v100 = vld [vmem:[%s0 + $0x1f0] sm:$0xff]
    %v101 = vld [vmem:[%s0 + $0x1f8] sm:$0xff]
    %v102 = vld [vmem:[%s0 + $0x200] sm:$0xff]
    %v103 = vld [vmem:[%s0 + $0x208] sm:$0xff]
    %v104 = vld [vmem:[%s0 + $0x210] sm:$0xff]
    %v105 = vld [vmem:[%s0 + $0x218] sm:$0xff]
    %v106 = vld [vmem:[%s0 + $0x220] sm:$0xff]
    %v107 = vld [vmem:[%s0 + $0x228] sm:$0xff]
    %v108 = vld [vmem:[%s0 + $0x230] sm:$0xff]
    %v109 = vld [vmem:[%s0 + $0x238] sm:$0xff]
    %v110 = vld [vmem:[%s0 + $0x240] sm:$0xff]
    %v111 = vld [vmem:[%s0 + $0x248] sm:$0xff]
    %v112 = vld [vmem:[%s0 + $0x250] sm:$0xff]
    %v113 = vld [vmem:[%s0 + $0x258] sm:$0xff]
    %v114 = vld [vmem:[%s0 + $0x260] sm:$0xff]
    %v115 = vld [vmem:[%s0 + $0x268] sm:$0xff]
    %v116 = vld [vmem:[%s0 + $0x270] sm:$0xff]
    %v117 = vld [vmem:[%s0 + $0x278] sm:$0xff]
    %v118 = vld [vmem:[%s0 + $0x280] sm:$0xff]
    %v119 = vld [vmem:[%s0 + $0x288] sm:$0xff]
    %v120 = vld [vmem:[%s0 + $0x290] sm:$0xff]
    %v121 = vld [vmem:[%s0 + $0x298] sm:$0xff]
    %v122 = vld [vmem:[%s0 + $0x2a0] sm:$0xff]
    %v123 = vld [vmem:[%s0 + $0x2a8] sm:$0xff]
    %v124 = vld [vmem:[%s0 + $0x2b0] sm:$0xff]
    %v125 = vld [vmem:[%s0 + $0x2b8] sm:$0xff]
    %v126 = vld [vmem:[%s0 + $0x2c0] sm:$0xff]
    %v127 = vld [vmem:[%s0 + $0x2c8] sm:$0xff]
    %v128 = vld [vmem:[%s0 + $0x2d0] sm:$0xff]
    %v129 = vld [vmem:[%s0 + $0x2d8] sm:$0xff]
    %v130 = vld [vmem:[%s0 + $0x2e0] sm:$0xff]
    %v131 = vld [vmem:[%s0 + $0x2e8] sm:$0xff]
    %v132 = vld [vmem:[%s0 + $0x2f0] sm:$0xff]
    %v133 = vld [vmem:[%s0 + $0x2f8] sm:$0xff]
    %v134 = vld [vmem:[%s0 + $0x300] sm:$0xff]
    %v135 = vld [vmem:[%s0 + $0x308] sm:$0xff]
    %v136 = vld [vmem:[%s0 + $0x310] sm:$0xff]
    %v137 = vld [vmem:[%s0 + $0x318] sm:$0xff]
    %v138 = vld [vmem:[%s0 + $0x320] sm:$0xff]
    %v139 = vld [vmem:[%s0 + $0x328] sm:$0xff]
    %v140 = vld [vmem:[%s0 + $0x330] sm:$0xff]
    %v141 = vld [vmem:[%s0 + $0x338] sm:$0xff]
    %v142 = vld [vmem:[%s0 + $0x340] sm:$0xff]
    %v143 = vld [vmem:[%s0 + $0x348] sm:$0xff]
    %v144 = vld [vmem:[%s0 + $0x350] sm:$0xff]
    %v145 = vld [vmem:[%s0 + $0x358] sm:$0xff]
    %v146 = vld [vmem:[%s0 + $0x360] sm:$0xff]
    %v147 = vld [vmem:[%s0 + $0x368] sm:$0xff]
    %v148 = vld [vmem:[%s0 + $0x370] sm:$0xff]
    %v149 = vld [vmem:[%s0 + $0x378] sm:$0xff]
    %v150 = vld [vmem:[%s0 + $0x380] sm:$0xff]
    %v151 = vld [vmem:[%s0 + $0x388] sm:$0xff]
    %v152 = vld [vmem:[%s0 + $0x390] sm:$0xff]
    %v153 = vld [vmem:[%s0 + $0x398] sm:$0xff]
    %v154 = vld [vmem:[%s0 + $0x3a0] sm:$0xff]
    %v155 = vld [vmem:[%s0 + $0x3a8] sm:$0xff]
    %v156 = vld [vmem:[%s0 + $0x3b0] sm:$0xff]
    %v157 = vld [vmem:[%s0 + $0x3b8] sm:$0xff]
    %v158 = vld [vmem:[%s0 + $0x3c0] sm:$0xff]
    %v159 = vld [vmem:[%s0 + $0x3c8] sm:$0xff]
    %v160 = vld [vmem:[%s0 + $0x3d0] sm:$0xff]
    %v161 = vld [vmem:[%s0 + $0x3d8] sm:$0xff]
    %v162 = vld [vmem:[%s0 + $0x3e0] sm:$0xff]
    %v163 = vld [vmem:[%s0 + $0x3e8] sm:$0xff]
    %v164 = vld [vmem:[%s0 + $0x3f0] sm:$0xff]
    %v165 = vld [vmem:[%s0 + $0x3f8] sm:$0xff]
    %v166 = vld [vmem:[%s4] sm:$0xff]
    %v167 = vld [vmem:[%s4 + $0x8] sm:$0xff]
    %v168 = vld [vmem:[%s4 + $0x10] sm:$0xff]
    %v169 = vld [vmem:[%s4 + $0x18] sm:$0xff]
    %171 = vset.pattern.permute.xlu0 0
    %172 = vperm.xlu0 %171, %v166
    %v173 = vpop.permute.xlu0 %172
    %176 = vset.pattern.permute.xlu0 0
    %177 = vperm.xlu0 %176, %v167
    %v178 = vpop.permute.xlu0 %177
    %181 = vset.pattern.permute.xlu0 0
    %182 = vperm.xlu0 %181, %v168
    %v183 = vpop.permute.xlu0 %182
    %186 = vset.pattern.permute.xlu0 0
    %187 = vperm.xlu0 %186, %v169
    %v188 = vpop.permute.xlu0 %187
    %v194 = vunpack.c.l.b16 %v34
    %v195 = vunpack.c.l.b16 %v35
    %v196 = vunpack.c.l.b16 %v36
    %v197 = vunpack.c.l.b16 %v37
    %v198 = vpack.c.b16 %v195, %v194
    %v199 = vpack.c.b16 %v197, %v196
    %v328 = vunpack.c.l.b16 %v38
    %v329 = vunpack.c.h.b16 %v38
    %v330 = vunpack.c.l.b16 %v39
    %v331 = vunpack.c.h.b16 %v39
    %v332 = vunpack.c.l.b16 %v40
    %v333 = vunpack.c.h.b16 %v40
    %v334 = vunpack.c.l.b16 %v41
    %v335 = vunpack.c.h.b16 %v41
    %v336 = vunpack.c.l.b16 %v42
    %v337 = vunpack.c.h.b16 %v42
    %v338 = vunpack.c.l.b16 %v43
    %v339 = vunpack.c.h.b16 %v43
    %v340 = vunpack.c.l.b16 %v44
    %v341 = vunpack.c.h.b16 %v44
    %v342 = vunpack.c.l.b16 %v45
    %v343 = vunpack.c.h.b16 %v45
    %v344 = vunpack.c.l.b16 %v46
    %v345 = vunpack.c.h.b16 %v46
    %v346 = vunpack.c.l.b16 %v47
    %v347 = vunpack.c.h.b16 %v47
    %v348 = vunpack.c.l.b16 %v48
    %v349 = vunpack.c.h.b16 %v48
    %v350 = vunpack.c.l.b16 %v49
    %v351 = vunpack.c.h.b16 %v49
    %v352 = vunpack.c.l.b16 %v50
    %v353 = vunpack.c.h.b16 %v50
    %v354 = vunpack.c.l.b16 %v51
    %v355 = vunpack.c.h.b16 %v51
    %v356 = vunpack.c.l.b16 %v52
    %v357 = vunpack.c.h.b16 %v52
    %v358 = vunpack.c.l.b16 %v53
    %v359 = vunpack.c.h.b16 %v53
    %v360 = vunpack.c.l.b16 %v54
    %v361 = vunpack.c.h.b16 %v54
    %v362 = vunpack.c.l.b16 %v55
    %v363 = vunpack.c.h.b16 %v55
    %v364 = vunpack.c.l.b16 %v56
    %v365 = vunpack.c.h.b16 %v56
    %v366 = vunpack.c.l.b16 %v57
    %v367 = vunpack.c.h.b16 %v57
    %v368 = vunpack.c.l.b16 %v58
    %v369 = vunpack.c.h.b16 %v58
    %v370 = vunpack.c.l.b16 %v59
    %v371 = vunpack.c.h.b16 %v59
    %v372 = vunpack.c.l.b16 %v60
    %v373 = vunpack.c.h.b16 %v60
    %v374 = vunpack.c.l.b16 %v61
    %v375 = vunpack.c.h.b16 %v61
    %v376 = vunpack.c.l.b16 %v62
    %v377 = vunpack.c.h.b16 %v62
    %v378 = vunpack.c.l.b16 %v63
    %v379 = vunpack.c.h.b16 %v63
    %v380 = vunpack.c.l.b16 %v64
    %v381 = vunpack.c.h.b16 %v64
    %v382 = vunpack.c.l.b16 %v65
    %v383 = vunpack.c.h.b16 %v65
    %v384 = vunpack.c.l.b16 %v66
    %v385 = vunpack.c.h.b16 %v66
    %v386 = vunpack.c.l.b16 %v67
    %v387 = vunpack.c.h.b16 %v67
    %v388 = vunpack.c.l.b16 %v68
    %v389 = vunpack.c.h.b16 %v68
    %v390 = vunpack.c.l.b16 %v69
    %v391 = vunpack.c.h.b16 %v69
    %v392 = vunpack.c.l.b16 %v70
    %v393 = vunpack.c.h.b16 %v70
    %v394 = vunpack.c.l.b16 %v71
    %v395 = vunpack.c.h.b16 %v71
    %v396 = vunpack.c.l.b16 %v72
    %v397 = vunpack.c.h.b16 %v72
    %v398 = vunpack.c.l.b16 %v73
    %v399 = vunpack.c.h.b16 %v73
    %v400 = vunpack.c.l.b16 %v74
    %v401 = vunpack.c.h.b16 %v74
    %v402 = vunpack.c.l.b16 %v75
    %v403 = vunpack.c.h.b16 %v75
    %v404 = vunpack.c.l.b16 %v76
    %v405 = vunpack.c.h.b16 %v76
    %v406 = vunpack.c.l.b16 %v77
    %v407 = vunpack.c.h.b16 %v77
    %v408 = vunpack.c.l.b16 %v78
    %v409 = vunpack.c.h.b16 %v78
    %v410 = vunpack.c.l.b16 %v79
    %v411 = vunpack.c.h.b16 %v79
    %v412 = vunpack.c.l.b16 %v80
    %v413 = vunpack.c.h.b16 %v80
    %v414 = vunpack.c.l.b16 %v81
    %v415 = vunpack.c.h.b16 %v81
    %v416 = vunpack.c.l.b16 %v82
    %v417 = vunpack.c.h.b16 %v82
    %v418 = vunpack.c.l.b16 %v83
    %v419 = vunpack.c.h.b16 %v83
    %v420 = vunpack.c.l.b16 %v84
    %v421 = vunpack.c.h.b16 %v84
    %v422 = vunpack.c.l.b16 %v85
    %v423 = vunpack.c.h.b16 %v85
    %v424 = vunpack.c.l.b16 %v86
    %v425 = vunpack.c.h.b16 %v86
    %v426 = vunpack.c.l.b16 %v87
    %v427 = vunpack.c.h.b16 %v87
    %v428 = vunpack.c.l.b16 %v88
    %v429 = vunpack.c.h.b16 %v88
    %v430 = vunpack.c.l.b16 %v89
    %v431 = vunpack.c.h.b16 %v89
    %v432 = vunpack.c.l.b16 %v90
    %v433 = vunpack.c.h.b16 %v90
    %v434 = vunpack.c.l.b16 %v91
    %v435 = vunpack.c.h.b16 %v91
    %v436 = vunpack.c.l.b16 %v92
    %v437 = vunpack.c.h.b16 %v92
    %v438 = vunpack.c.l.b16 %v93
    %v439 = vunpack.c.h.b16 %v93
    %v440 = vunpack.c.l.b16 %v94
    %v441 = vunpack.c.h.b16 %v94
    %v442 = vunpack.c.l.b16 %v95
    %v443 = vunpack.c.h.b16 %v95
    %v444 = vunpack.c.l.b16 %v96
    %v445 = vunpack.c.h.b16 %v96
    %v446 = vunpack.c.l.b16 %v97
    %v447 = vunpack.c.h.b16 %v97
    %v448 = vunpack.c.l.b16 %v98
    %v449 = vunpack.c.h.b16 %v98
    %v450 = vunpack.c.l.b16 %v99
    %v451 = vunpack.c.h.b16 %v99
    %v452 = vunpack.c.l.b16 %v100
    %v453 = vunpack.c.h.b16 %v100
    %v454 = vunpack.c.l.b16 %v101
    %v455 = vunpack.c.h.b16 %v101
    %v456 = vunpack.c.l.b16 %v102
    %v457 = vunpack.c.h.b16 %v102
    %v458 = vunpack.c.l.b16 %v103
    %v459 = vunpack.c.h.b16 %v103
    %v460 = vunpack.c.l.b16 %v104
    %v461 = vunpack.c.h.b16 %v104
    %v462 = vunpack.c.l.b16 %v105
    %v463 = vunpack.c.h.b16 %v105
    %v464 = vunpack.c.l.b16 %v106
    %v465 = vunpack.c.h.b16 %v106
    %v466 = vunpack.c.l.b16 %v107
    %v467 = vunpack.c.h.b16 %v107
    %v468 = vunpack.c.l.b16 %v108
    %v469 = vunpack.c.h.b16 %v108
    %v470 = vunpack.c.l.b16 %v109
    %v471 = vunpack.c.h.b16 %v109
    %v472 = vunpack.c.l.b16 %v110
    %v473 = vunpack.c.h.b16 %v110
    %v474 = vunpack.c.l.b16 %v111
    %v475 = vunpack.c.h.b16 %v111
    %v476 = vunpack.c.l.b16 %v112
    %v477 = vunpack.c.h.b16 %v112
    %v478 = vunpack.c.l.b16 %v113
    %v479 = vunpack.c.h.b16 %v113
    %v480 = vunpack.c.l.b16 %v114
    %v481 = vunpack.c.h.b16 %v114
    %v482 = vunpack.c.l.b16 %v115
    %v483 = vunpack.c.h.b16 %v115
    %v484 = vunpack.c.l.b16 %v116
    %v485 = vunpack.c.h.b16 %v116
    %v486 = vunpack.c.l.b16 %v117
    %v487 = vunpack.c.h.b16 %v117
    %v488 = vunpack.c.l.b16 %v118
    %v489 = vunpack.c.h.b16 %v118
    %v490 = vunpack.c.l.b16 %v119
    %v491 = vunpack.c.h.b16 %v119
    %v492 = vunpack.c.l.b16 %v120
    %v493 = vunpack.c.h.b16 %v120
    %v494 = vunpack.c.l.b16 %v121
    %v495 = vunpack.c.h.b16 %v121
    %v496 = vunpack.c.l.b16 %v122
    %v497 = vunpack.c.h.b16 %v122
    %v498 = vunpack.c.l.b16 %v123
    %v499 = vunpack.c.h.b16 %v123
    %v500 = vunpack.c.l.b16 %v124
    %v501 = vunpack.c.h.b16 %v124
    %v502 = vunpack.c.l.b16 %v125
    %v503 = vunpack.c.h.b16 %v125
    %v504 = vunpack.c.l.b16 %v126
    %v505 = vunpack.c.h.b16 %v126
    %v506 = vunpack.c.l.b16 %v127
    %v507 = vunpack.c.h.b16 %v127
    %v508 = vunpack.c.l.b16 %v128
    %v509 = vunpack.c.h.b16 %v128
    %v510 = vunpack.c.l.b16 %v129
    %v511 = vunpack.c.h.b16 %v129
    %v512 = vunpack.c.l.b16 %v130
    %v513 = vunpack.c.h.b16 %v130
    %v514 = vunpack.c.l.b16 %v131
    %v515 = vunpack.c.h.b16 %v131
    %v516 = vunpack.c.l.b16 %v132
    %v517 = vunpack.c.h.b16 %v132
    %v518 = vunpack.c.l.b16 %v133
    %v519 = vunpack.c.h.b16 %v133
    %v520 = vunpack.c.l.b16 %v134
    %v521 = vunpack.c.h.b16 %v134
    %v522 = vunpack.c.l.b16 %v135
    %v523 = vunpack.c.h.b16 %v135
    %v524 = vunpack.c.l.b16 %v136
    %v525 = vunpack.c.h.b16 %v136
    %v526 = vunpack.c.l.b16 %v137
    %v527 = vunpack.c.h.b16 %v137
    %v528 = vunpack.c.l.b16 %v138
    %v529 = vunpack.c.h.b16 %v138
    %v530 = vunpack.c.l.b16 %v139
    %v531 = vunpack.c.h.b16 %v139
    %v532 = vunpack.c.l.b16 %v140
    %v533 = vunpack.c.h.b16 %v140
    %v534 = vunpack.c.l.b16 %v141
    %v535 = vunpack.c.h.b16 %v141
    %v536 = vunpack.c.l.b16 %v142
    %v537 = vunpack.c.h.b16 %v142
    %v538 = vunpack.c.l.b16 %v143
    %v539 = vunpack.c.h.b16 %v143
    %v540 = vunpack.c.l.b16 %v144
    %v541 = vunpack.c.h.b16 %v144
    %v542 = vunpack.c.l.b16 %v145
    %v543 = vunpack.c.h.b16 %v145
    %v544 = vunpack.c.l.b16 %v146
    %v545 = vunpack.c.h.b16 %v146
    %v546 = vunpack.c.l.b16 %v147
    %v547 = vunpack.c.h.b16 %v147
    %v548 = vunpack.c.l.b16 %v148
    %v549 = vunpack.c.h.b16 %v148
    %v550 = vunpack.c.l.b16 %v149
    %v551 = vunpack.c.h.b16 %v149
    %v552 = vunpack.c.l.b16 %v150
    %v553 = vunpack.c.h.b16 %v150
    %v554 = vunpack.c.l.b16 %v151
    %v555 = vunpack.c.h.b16 %v151
    %v556 = vunpack.c.l.b16 %v152
    %v557 = vunpack.c.h.b16 %v152
    %v558 = vunpack.c.l.b16 %v153
    %v559 = vunpack.c.h.b16 %v153
    %v560 = vunpack.c.l.b16 %v154
    %v561 = vunpack.c.h.b16 %v154
    %v562 = vunpack.c.l.b16 %v155
    %v563 = vunpack.c.h.b16 %v155
    %v564 = vunpack.c.l.b16 %v156
    %v565 = vunpack.c.h.b16 %v156
    %v566 = vunpack.c.l.b16 %v157
    %v567 = vunpack.c.h.b16 %v157
    %v568 = vunpack.c.l.b16 %v158
    %v569 = vunpack.c.h.b16 %v158
    %v570 = vunpack.c.l.b16 %v159
    %v571 = vunpack.c.h.b16 %v159
    %v572 = vunpack.c.l.b16 %v160
    %v573 = vunpack.c.h.b16 %v160
    %v574 = vunpack.c.l.b16 %v161
    %v575 = vunpack.c.h.b16 %v161
    %v576 = vunpack.c.l.b16 %v162
    %v577 = vunpack.c.h.b16 %v162
    %v578 = vunpack.c.l.b16 %v163
    %v579 = vunpack.c.h.b16 %v163
    %v580 = vunpack.c.l.b16 %v164
    %v581 = vunpack.c.h.b16 %v164
    %v582 = vunpack.c.l.b16 %v165
    %v583 = vunpack.c.h.b16 %v165
    %v584 = vpack.c.b16 %v392, %v328
    %v585 = vpack.c.b16 %v393, %v329
    %v586 = vpack.c.b16 %v394, %v330
    %v587 = vpack.c.b16 %v395, %v331
    %v588 = vpack.c.b16 %v396, %v332
    %v589 = vpack.c.b16 %v397, %v333
    %v590 = vpack.c.b16 %v398, %v334
    %v591 = vpack.c.b16 %v399, %v335
    %v592 = vpack.c.b16 %v400, %v336
    %v593 = vpack.c.b16 %v401, %v337
    %v594 = vpack.c.b16 %v402, %v338
    %v595 = vpack.c.b16 %v403, %v339
    %v596 = vpack.c.b16 %v404, %v340
    %v597 = vpack.c.b16 %v405, %v341
    %v598 = vpack.c.b16 %v406, %v342
    %v599 = vpack.c.b16 %v407, %v343
    %v600 = vpack.c.b16 %v408, %v344
    %v601 = vpack.c.b16 %v409, %v345
    %v602 = vpack.c.b16 %v410, %v346
    %v603 = vpack.c.b16 %v411, %v347
    %v604 = vpack.c.b16 %v412, %v348
    %v605 = vpack.c.b16 %v413, %v349
    %v606 = vpack.c.b16 %v414, %v350
    %v607 = vpack.c.b16 %v415, %v351
    %v608 = vpack.c.b16 %v416, %v352
    %v609 = vpack.c.b16 %v417, %v353
    %v610 = vpack.c.b16 %v418, %v354
    %v611 = vpack.c.b16 %v419, %v355
    %v612 = vpack.c.b16 %v420, %v356
    %v613 = vpack.c.b16 %v421, %v357
    %v614 = vpack.c.b16 %v422, %v358
    %v615 = vpack.c.b16 %v423, %v359
    %v616 = vpack.c.b16 %v424, %v360
    %v617 = vpack.c.b16 %v425, %v361
    %v618 = vpack.c.b16 %v426, %v362
    %v619 = vpack.c.b16 %v427, %v363
    %v620 = vpack.c.b16 %v428, %v364
    %v621 = vpack.c.b16 %v429, %v365
    %v622 = vpack.c.b16 %v430, %v366
    %v623 = vpack.c.b16 %v431, %v367
    %v624 = vpack.c.b16 %v432, %v368
    %v625 = vpack.c.b16 %v433, %v369
    %v626 = vpack.c.b16 %v434, %v370
    %v627 = vpack.c.b16 %v435, %v371
    %v628 = vpack.c.b16 %v436, %v372
    %v629 = vpack.c.b16 %v437, %v373
    %v630 = vpack.c.b16 %v438, %v374
    %v631 = vpack.c.b16 %v439, %v375
    %v632 = vpack.c.b16 %v440, %v376
    %v633 = vpack.c.b16 %v441, %v377
    %v634 = vpack.c.b16 %v442, %v378
    %v635 = vpack.c.b16 %v443, %v379
    %v636 = vpack.c.b16 %v444, %v380
    %v637 = vpack.c.b16 %v445, %v381
    %v638 = vpack.c.b16 %v446, %v382
    %v639 = vpack.c.b16 %v447, %v383
    %v640 = vpack.c.b16 %v448, %v384
    %v641 = vpack.c.b16 %v449, %v385
    %v642 = vpack.c.b16 %v450, %v386
    %v643 = vpack.c.b16 %v451, %v387
    %v644 = vpack.c.b16 %v452, %v388
    %v645 = vpack.c.b16 %v453, %v389
    %v646 = vpack.c.b16 %v454, %v390
    %v647 = vpack.c.b16 %v455, %v391
    %v648 = vpack.c.b16 %v520, %v456
    %v649 = vpack.c.b16 %v521, %v457
    %v650 = vpack.c.b16 %v522, %v458
    %v651 = vpack.c.b16 %v523, %v459
    %v652 = vpack.c.b16 %v524, %v460
    %v653 = vpack.c.b16 %v525, %v461
    %v654 = vpack.c.b16 %v526, %v462
    %v655 = vpack.c.b16 %v527, %v463
    %v656 = vpack.c.b16 %v528, %v464
    %v657 = vpack.c.b16 %v529, %v465
    %v658 = vpack.c.b16 %v530, %v466
    %v659 = vpack.c.b16 %v531, %v467
    %v660 = vpack.c.b16 %v532, %v468
    %v661 = vpack.c.b16 %v533, %v469
    %v662 = vpack.c.b16 %v534, %v470
    %v663 = vpack.c.b16 %v535, %v471
    %v664 = vpack.c.b16 %v536, %v472
    %v665 = vpack.c.b16 %v537, %v473
    %v666 = vpack.c.b16 %v538, %v474
    %v667 = vpack.c.b16 %v539, %v475
    %v668 = vpack.c.b16 %v540, %v476
    %v669 = vpack.c.b16 %v541, %v477
    %v670 = vpack.c.b16 %v542, %v478
    %v671 = vpack.c.b16 %v543, %v479
    %v672 = vpack.c.b16 %v544, %v480
    %v673 = vpack.c.b16 %v545, %v481
    %v674 = vpack.c.b16 %v546, %v482
    %v675 = vpack.c.b16 %v547, %v483
    %v676 = vpack.c.b16 %v548, %v484
    %v677 = vpack.c.b16 %v549, %v485
    %v678 = vpack.c.b16 %v550, %v486
    %v679 = vpack.c.b16 %v551, %v487
    %v680 = vpack.c.b16 %v552, %v488
    %v681 = vpack.c.b16 %v553, %v489
    %v682 = vpack.c.b16 %v554, %v490
    %v683 = vpack.c.b16 %v555, %v491
    %v684 = vpack.c.b16 %v556, %v492
    %v685 = vpack.c.b16 %v557, %v493
    %v686 = vpack.c.b16 %v558, %v494
    %v687 = vpack.c.b16 %v559, %v495
    %v688 = vpack.c.b16 %v560, %v496
    %v689 = vpack.c.b16 %v561, %v497
    %v690 = vpack.c.b16 %v562, %v498
    %v691 = vpack.c.b16 %v563, %v499
    %v692 = vpack.c.b16 %v564, %v500
    %v693 = vpack.c.b16 %v565, %v501
    %v694 = vpack.c.b16 %v566, %v502
    %v695 = vpack.c.b16 %v567, %v503
    %v696 = vpack.c.b16 %v568, %v504
    %v697 = vpack.c.b16 %v569, %v505
    %v698 = vpack.c.b16 %v570, %v506
    %v699 = vpack.c.b16 %v571, %v507
    %v700 = vpack.c.b16 %v572, %v508
    %v701 = vpack.c.b16 %v573, %v509
    %v702 = vpack.c.b16 %v574, %v510
    %v703 = vpack.c.b16 %v575, %v511
    %v704 = vpack.c.b16 %v576, %v512
    %v705 = vpack.c.b16 %v577, %v513
    %v706 = vpack.c.b16 %v578, %v514
    %v707 = vpack.c.b16 %v579, %v515
    %v708 = vpack.c.b16 %v580, %v516
    %v709 = vpack.c.b16 %v581, %v517
    %v710 = vpack.c.b16 %v582, %v518
    %v711 = vpack.c.b16 %v583, %v519
    %vm840 = vcmask 261120
    %v842 = vsel %vm840, %v198, 0
    %v845 = vsel %vm840, %v199, 0
    %847 = vmatprep.subr.bf16.mxu0 %v585
    %848 = vmatpush1.bf16.msra.mxu0 %v584
    %849 = vmatprep.subr.bf16.mxu0 %v649
    %850 = vmatpush1.bf16.msra.mxu0 %v648
    %851 = vmatprep.subr.bf16.mxu0 0
    %852 = vmatpush1.bf16.msra.mxu0 0
    %853 = vmatprep.subr.bf16.mxu0 0
    %854 = vmatpush1.bf16.msra.mxu0 0
    %855 = vmatprep.subr.bf16.mxu0 0
    %856 = vmatpush1.bf16.msra.mxu0 0
    %857 = vmatprep.subr.bf16.mxu0 0
    %858 = vmatpush1.bf16.msra.mxu0 0
    %859 = vmatprep.subr.bf16.mxu0 0
    %860 = vmatpush1.bf16.msra.mxu0 0
    %861 = vmatprep.subr.bf16.mxu0 0
    %862 = vmatpush1.bf16.msra.mxu0 0
    %863 = vmatprep.subr.bf16.mxu0 0
    %864 = vmatpush1.bf16.msra.mxu0 0
    %865 = vmatprep.subr.bf16.mxu0 0
    %866 = vmatpush1.bf16.msra.mxu0 0
    %867 = vmatprep.subr.bf16.mxu0 0
    %868 = vmatpush1.bf16.msra.mxu0 0
    %869 = vmatprep.subr.bf16.mxu0 0
    %870 = vmatpush1.bf16.msra.mxu0 0
    %871 = vmatprep.subr.bf16.mxu0 0
    %872 = vmatpush1.bf16.msra.mxu0 0
    %873 = vmatprep.subr.bf16.mxu0 0
    %874 = vmatpush1.bf16.msra.mxu0 0
    %875 = vmatprep.subr.bf16.mxu0 0
    %876 = vmatpush1.bf16.msra.mxu0 0
    %877 = vmatprep.subr.bf16.mxu0 0
    %878 = vmatpush1.bf16.msra.mxu0 0
    %879 = vmatprep.mubr.bf16.mxu0 0
    %880 = vmatmul.mubr.bf16.gmra.mrb[0].mxu0 %v842
    %v881 = vpop.f32.mrb[0].mxu0
    %v882 = vadd.f32 %v173, %v881
    %v883 = vpop.f32.mrb[0].mxu0
    %v884 = vadd.f32 %v173, %v883
    %v885 = vpop.f32.mrb[0].mxu0
    %v886 = vadd.f32 %v178, %v885
    %v887 = vpop.f32.mrb[0].mxu0
    %v888 = vadd.f32 %v178, %v887
    %889 = vmatprep.mubr.bf16.mxu0 0
    %890 = vmatmul.mubr.bf16.gmra.mrb[0].mxu0 %v845
    %v891 = vpop.f32.mrb[0].mxu0
    %v892 = vadd.f32 %v183, %v891
    %v893 = vpop.f32.mrb[0].mxu0
    %v894 = vadd.f32 %v183, %v893
    %v895 = vpop.f32.mrb[0].mxu0
    %v896 = vadd.f32 %v188, %v895
    %v897 = vpop.f32.mrb[0].mxu0
    %v898 = vadd.f32 %v188, %v897
    %899 = vdwg.mxu0
    %900 = vmatprep.subr.bf16.mxu0 %v587
    %901 = vmatpush1.bf16.msra.mxu0 %v586
    %902 = vmatprep.subr.bf16.mxu0 %v651
    %903 = vmatpush1.bf16.msra.mxu0 %v650
    %904 = vmatprep.subr.bf16.mxu0 0
    %905 = vmatpush1.bf16.msra.mxu0 0
    %906 = vmatprep.subr.bf16.mxu0 0
    %907 = vmatpush1.bf16.msra.mxu0 0
    %908 = vmatprep.subr.bf16.mxu0 0
    %909 = vmatpush1.bf16.msra.mxu0 0
    %910 = vmatprep.subr.bf16.mxu0 0
    %911 = vmatpush1.bf16.msra.mxu0 0
    %912 = vmatprep.subr.bf16.mxu0 0
    %913 = vmatpush1.bf16.msra.mxu0 0
    %914 = vmatprep.subr.bf16.mxu0 0
    %915 = vmatpush1.bf16.msra.mxu0 0
    %916 = vmatprep.subr.bf16.mxu0 0
    %917 = vmatpush1.bf16.msra.mxu0 0
    %918 = vmatprep.subr.bf16.mxu0 0
    %919 = vmatpush1.bf16.msra.mxu0 0
    %920 = vmatprep.subr.bf16.mxu0 0
    %921 = vmatpush1.bf16.msra.mxu0 0
    %922 = vmatprep.subr.bf16.mxu0 0
    %923 = vmatpush1.bf16.msra.mxu0 0
    %924 = vmatprep.subr.bf16.mxu0 0
    %925 = vmatpush1.bf16.msra.mxu0 0
    %926 = vmatprep.subr.bf16.mxu0 0
    %927 = vmatpush1.bf16.msra.mxu0 0
    %928 = vmatprep.subr.bf16.mxu0 0
    %929 = vmatpush1.bf16.msra.mxu0 0
    %930 = vmatprep.subr.bf16.mxu0 0
    %931 = vmatpush1.bf16.msra.mxu0 0
    %932 = vmatprep.mubr.bf16.mxu0 0
    %933 = vmatmul.mubr.bf16.gmra.mrb[0].mxu0 %v842
    %v934 = vpop.f32.mrb[0].mxu0
    %v935 = vadd.f32 %v173, %v934
    %v936 = vpop.f32.mrb[0].mxu0
    %v937 = vadd.f32 %v173, %v936
    %v938 = vpop.f32.mrb[0].mxu0
    %v939 = vadd.f32 %v178, %v938
    %v940 = vpop.f32.mrb[0].mxu0
    %v941 = vadd.f32 %v178, %v940
    %942 = vmatprep.mubr.bf16.mxu0 0
    %943 = vmatmul.mubr.bf16.gmra.mrb[0].mxu0 %v845
    %v944 = vpop.f32.mrb[0].mxu0
    %v945 = vadd.f32 %v183, %v944
    %v946 = vpop.f32.mrb[0].mxu0
    %v947 = vadd.f32 %v183, %v946
    %v948 = vpop.f32.mrb[0].mxu0
    %v949 = vadd.f32 %v188, %v948
    %v950 = vpop.f32.mrb[0].mxu0
    %v951 = vadd.f32 %v188, %v950
    %952 = vdwg.mxu0
    %953 = vmatprep.subr.bf16.mxu0 %v589
    %954 = vmatpush1.bf16.msra.mxu0 %v588
    %955 = vmatprep.subr.bf16.mxu0 %v653
    %956 = vmatpush1.bf16.msra.mxu0 %v652
    %957 = vmatprep.subr.bf16.mxu0 0
    %958 = vmatpush1.bf16.msra.mxu0 0
    %959 = vmatprep.subr.bf16.mxu0 0
    %960 = vmatpush1.bf16.msra.mxu0 0
    %961 = vmatprep.subr.bf16.mxu0 0
    %962 = vmatpush1.bf16.msra.mxu0 0
    %963 = vmatprep.subr.bf16.mxu0 0
    %964 = vmatpush1.bf16.msra.mxu0 0
    %965 = vmatprep.subr.bf16.mxu0 0
    %966 = vmatpush1.bf16.msra.mxu0 0
    %967 = vmatprep.subr.bf16.mxu0 0
    %968 = vmatpush1.bf16.msra.mxu0 0
    %969 = vmatprep.subr.bf16.mxu0 0
    %970 = vmatpush1.bf16.msra.mxu0 0
    %971 = vmatprep.subr.bf16.mxu0 0
    %972 = vmatpush1.bf16.msra.mxu0 0
    %973 = vmatprep.subr.bf16.mxu0 0
    %974 = vmatpush1.bf16.msra.mxu0 0
    %975 = vmatprep.subr.bf16.mxu0 0
    %976 = vmatpush1.bf16.msra.mxu0 0
    %977 = vmatprep.subr.bf16.mxu0 0
    %978 = vmatpush1.bf16.msra.mxu0 0
    %979 = vmatprep.subr.bf16.mxu0 0
    %980 = vmatpush1.bf16.msra.mxu0 0
    %981 = vmatprep.subr.bf16.mxu0 0
    %982 = vmatpush1.bf16.msra.mxu0 0
    %983 = vmatprep.subr.bf16.mxu0 0
    %984 = vmatpush1.bf16.msra.mxu0 0
    %985 = vmatprep.mubr.bf16.mxu0 0
    %986 = vmatmul.mubr.bf16.gmra.mrb[0].mxu0 %v842
    %v987 = vpop.f32.mrb[0].mxu0
    %v988 = vadd.f32 %v173, %v987
    %v989 = vpop.f32.mrb[0].mxu0
    %v990 = vadd.f32 %v173, %v989
    %v991 = vpop.f32.mrb[0].mxu0
    %v992 = vadd.f32 %v178, %v991
    %v993 = vpop.f32.mrb[0].mxu0
    %v994 = vadd.f32 %v178, %v993
    %995 = vmatprep.mubr.bf16.mxu0 0
    %996 = vmatmul.mubr.bf16.gmra.mrb[0].mxu0 %v845
    %v997 = vpop.f32.mrb[0].mxu0
    %v998 = vadd.f32 %v183, %v997
    %v999 = vpop.f32.mrb[0].mxu0
    %v1000 = vadd.f32 %v183, %v999
    %v1001 = vpop.f32.mrb[0].mxu0
    %v1002 = vadd.f32 %v188, %v1001
    %v1003 = vpop.f32.mrb[0].mxu0
    %v1004 = vadd.f32 %v188, %v1003
    %1005 = vdwg.mxu0
    %1006 = vmatprep.subr.bf16.mxu0 %v591
    %1007 = vmatpush1.bf16.msra.mxu0 %v590
    %1008 = vmatprep.subr.bf16.mxu0 %v655
    %1009 = vmatpush1.bf16.msra.mxu0 %v654
    %1010 = vmatprep.subr.bf16.mxu0 0
    %1011 = vmatpush1.bf16.msra.mxu0 0
    %1012 = vmatprep.subr.bf16.mxu0 0
    %1013 = vmatpush1.bf16.msra.mxu0 0
    %1014 = vmatprep.subr.bf16.mxu0 0
    %1015 = vmatpush1.bf16.msra.mxu0 0
    %1016 = vmatprep.subr.bf16.mxu0 0
    %1017 = vmatpush1.bf16.msra.mxu0 0
    %1018 = vmatprep.subr.bf16.mxu0 0
    %1019 = vmatpush1.bf16.msra.mxu0 0
    %1020 = vmatprep.subr.bf16.mxu0 0
    %1021 = vmatpush1.bf16.msra.mxu0 0
    %1022 = vmatprep.subr.bf16.mxu0 0
    %1023 = vmatpush1.bf16.msra.mxu0 0
    %1024 = vmatprep.subr.bf16.mxu0 0
    %1025 = vmatpush1.bf16.msra.mxu0 0
    %1026 = vmatprep.subr.bf16.mxu0 0
    %1027 = vmatpush1.bf16.msra.mxu0 0
    %1028 = vmatprep.subr.bf16.mxu0 0
    %1029 = vmatpush1.bf16.msra.mxu0 0
    %1030 = vmatprep.subr.bf16.mxu0 0
    %1031 = vmatpush1.bf16.msra.mxu0 0
    %1032 = vmatprep.subr.bf16.mxu0 0
    %1033 = vmatpush1.bf16.msra.mxu0 0
    %1034 = vmatprep.subr.bf16.mxu0 0
    %1035 = vmatpush1.bf16.msra.mxu0 0
    %1036 = vmatprep.subr.bf16.mxu0 0
    %1037 = vmatpush1.bf16.msra.mxu0 0
    %1038 = vmatprep.mubr.bf16.mxu0 0
    %1039 = vmatmul.mubr.bf16.gmra.mrb[0].mxu0 %v842
    %v1040 = vpop.f32.mrb[0].mxu0
    %v1041 = vadd.f32 %v173, %v1040
    %v1042 = vpop.f32.mrb[0].mxu0
    %v1043 = vadd.f32 %v173, %v1042
    %v1044 = vpop.f32.mrb[0].mxu0
    %v1045 = vadd.f32 %v178, %v1044
    %v1046 = vpop.f32.mrb[0].mxu0
    %v1047 = vadd.f32 %v178, %v1046
    %1048 = vmatprep.mubr.bf16.mxu0 0
    %1049 = vmatmul.mubr.bf16.gmra.mrb[0].mxu0 %v845
    %v1050 = vpop.f32.mrb[0].mxu0
    %v1051 = vadd.f32 %v183, %v1050
    %v1052 = vpop.f32.mrb[0].mxu0
    %v1053 = vadd.f32 %v183, %v1052
    %v1054 = vpop.f32.mrb[0].mxu0
    %v1055 = vadd.f32 %v188, %v1054
    %v1056 = vpop.f32.mrb[0].mxu0
    %v1057 = vadd.f32 %v188, %v1056
    %1058 = vdwg.mxu0
    %1059 = vmatprep.subr.bf16.mxu0 %v593
    %1060 = vmatpush1.bf16.msra.mxu0 %v592
    %1061 = vmatprep.subr.bf16.mxu0 %v657
    %1062 = vmatpush1.bf16.msra.mxu0 %v656
    %1063 = vmatprep.subr.bf16.mxu0 0
    %1064 = vmatpush1.bf16.msra.mxu0 0
    %1065 = vmatprep.subr.bf16.mxu0 0
    %1066 = vmatpush1.bf16.msra.mxu0 0
    %1067 = vmatprep.subr.bf16.mxu0 0
    %1068 = vmatpush1.bf16.msra.mxu0 0
    %1069 = vmatprep.subr.bf16.mxu0 0
    %1070 = vmatpush1.bf16.msra.mxu0 0
    %1071 = vmatprep.subr.bf16.mxu0 0
    %1072 = vmatpush1.bf16.msra.mxu0 0
    %1073 = vmatprep.subr.bf16.mxu0 0
    %1074 = vmatpush1.bf16.msra.mxu0 0
    %1075 = vmatprep.subr.bf16.mxu0 0
    %1076 = vmatpush1.bf16.msra.mxu0 0
    %1077 = vmatprep.subr.bf16.mxu0 0
    %1078 = vmatpush1.bf16.msra.mxu0 0
    %1079 = vmatprep.subr.bf16.mxu0 0
    %1080 = vmatpush1.bf16.msra.mxu0 0
    %1081 = vmatprep.subr.bf16.mxu0 0
    %1082 = vmatpush1.bf16.msra.mxu0 0
    %1083 = vmatprep.subr.bf16.mxu0 0
    %1084 = vmatpush1.bf16.msra.mxu0 0
    %1085 = vmatprep.subr.bf16.mxu0 0
    %1086 = vmatpush1.bf16.msra.mxu0 0
    %1087 = vmatprep.subr.bf16.mxu0 0
    %1088 = vmatpush1.bf16.msra.mxu0 0
    %1089 = vmatprep.subr.bf16.mxu0 0
    %1090 = vmatpush1.bf16.msra.mxu0 0
    %1091 = vmatprep.mubr.bf16.mxu0 0
    %1092 = vmatmul.mubr.bf16.gmra.mrb[0].mxu0 %v842
    %v1093 = vpop.f32.mrb[0].mxu0
    %v1094 = vadd.f32 %v173, %v1093
    %v1095 = vpop.f32.mrb[0].mxu0
    %v1096 = vadd.f32 %v173, %v1095
    %v1097 = vpop.f32.mrb[0].mxu0
    %v1098 = vadd.f32 %v178, %v1097
    %v1099 = vpop.f32.mrb[0].mxu0
    %v1100 = vadd.f32 %v178, %v1099
    %1101 = vmatprep.mubr.bf16.mxu0 0
    %1102 = vmatmul.mubr.bf16.gmra.mrb[0].mxu0 %v845
    %v1103 = vpop.f32.mrb[0].mxu0
    %v1104 = vadd.f32 %v183, %v1103
    %v1105 = vpop.f32.mrb[0].mxu0
    %v1106 = vadd.f32 %v183, %v1105
    %v1107 = vpop.f32.mrb[0].mxu0
    %v1108 = vadd.f32 %v188, %v1107
    %v1109 = vpop.f32.mrb[0].mxu0
    %v1110 = vadd.f32 %v188, %v1109
    %1111 = vdwg.mxu0
    %1112 = vmatprep.subr.bf16.mxu0 %v595
    %1113 = vmatpush1.bf16.msra.mxu0 %v594
    %1114 = vmatprep.subr.bf16.mxu0 %v659
    %1115 = vmatpush1.bf16.msra.mxu0 %v658
    %1116 = vmatprep.subr.bf16.mxu0 0
    %1117 = vmatpush1.bf16.msra.mxu0 0
    %1118 = vmatprep.subr.bf16.mxu0 0
    %1119 = vmatpush1.bf16.msra.mxu0 0
    %1120 = vmatprep.subr.bf16.mxu0 0
    %1121 = vmatpush1.bf16.msra.mxu0 0
    %1122 = vmatprep.subr.bf16.mxu0 0
    %1123 = vmatpush1.bf16.msra.mxu0 0
    %1124 = vmatprep.subr.bf16.mxu0 0
    %1125 = vmatpush1.bf16.msra.mxu0 0
    %1126 = vmatprep.subr.bf16.mxu0 0
    %1127 = vmatpush1.bf16.msra.mxu0 0
    %1128 = vmatprep.subr.bf16.mxu0 0
    %1129 = vmatpush1.bf16.msra.mxu0 0
    %1130 = vmatprep.subr.bf16.mxu0 0
    %1131 = vmatpush1.bf16.msra.mxu0 0
    %1132 = vmatprep.subr.bf16.mxu0 0
    %1133 = vmatpush1.bf16.msra.mxu0 0
    %1134 = vmatprep.subr.bf16.mxu0 0
    %1135 = vmatpush1.bf16.msra.mxu0 0
    %1136 = vmatprep.subr.bf16.mxu0 0
    %1137 = vmatpush1.bf16.msra.mxu0 0
    %1138 = vmatprep.subr.bf16.mxu0 0
    %1139 = vmatpush1.bf16.msra.mxu0 0
    %1140 = vmatprep.subr.bf16.mxu0 0
    %1141 = vmatpush1.bf16.msra.mxu0 0
    %1142 = vmatprep.subr.bf16.mxu0 0
    %1143 = vmatpush1.bf16.msra.mxu0 0
    %1144 = vmatprep.mubr.bf16.mxu0 0
    %1145 = vmatmul.mubr.bf16.gmra.mrb[0].mxu0 %v842
    %v1146 = vpop.f32.mrb[0].mxu0
    %v1147 = vadd.f32 %v173, %v1146
    %v1148 = vpop.f32.mrb[0].mxu0
    %v1149 = vadd.f32 %v173, %v1148
    %v1150 = vpop.f32.mrb[0].mxu0
    %v1151 = vadd.f32 %v178, %v1150
    %v1152 = vpop.f32.mrb[0].mxu0
    %v1153 = vadd.f32 %v178, %v1152
    %1154 = vmatprep.mubr.bf16.mxu0 0
    %1155 = vmatmul.mubr.bf16.gmra.mrb[0].mxu0 %v845
    %v1156 = vpop.f32.mrb[0].mxu0
    %v1157 = vadd.f32 %v183, %v1156
    %v1158 = vpop.f32.mrb[0].mxu0
    %v1159 = vadd.f32 %v183, %v1158
    %v1160 = vpop.f32.mrb[0].mxu0
    %v1161 = vadd.f32 %v188, %v1160
    %v1162 = vpop.f32.mrb[0].mxu0
    %v1163 = vadd.f32 %v188, %v1162
    %1164 = vdwg.mxu0
    %1165 = vmatprep.subr.bf16.mxu0 %v597
    %1166 = vmatpush1.bf16.msra.mxu0 %v596
    %1167 = vmatprep.subr.bf16.mxu0 %v661
    %1168 = vmatpush1.bf16.msra.mxu0 %v660
    %1169 = vmatprep.subr.bf16.mxu0 0
    %1170 = vmatpush1.bf16.msra.mxu0 0
    %1171 = vmatprep.subr.bf16.mxu0 0
    %1172 = vmatpush1.bf16.msra.mxu0 0
    %1173 = vmatprep.subr.bf16.mxu0 0
    %1174 = vmatpush1.bf16.msra.mxu0 0
    %1175 = vmatprep.subr.bf16.mxu0 0
    %1176 = vmatpush1.bf16.msra.mxu0 0
    %1177 = vmatprep.subr.bf16.mxu0 0
    %1178 = vmatpush1.bf16.msra.mxu0 0
    %1179 = vmatprep.subr.bf16.mxu0 0
    %1180 = vmatpush1.bf16.msra.mxu0 0
    %1181 = vmatprep.subr.bf16.mxu0 0
    %1182 = vmatpush1.bf16.msra.mxu0 0
    %1183 = vmatprep.subr.bf16.mxu0 0
    %1184 = vmatpush1.bf16.msra.mxu0 0
    %1185 = vmatprep.subr.bf16.mxu0 0
    %1186 = vmatpush1.bf16.msra.mxu0 0
    %1187 = vmatprep.subr.bf16.mxu0 0
    %1188 = vmatpush1.bf16.msra.mxu0 0
    %1189 = vmatprep.subr.bf16.mxu0 0
    %1190 = vmatpush1.bf16.msra.mxu0 0
    %1191 = vmatprep.subr.bf16.mxu0 0
    %1192 = vmatpush1.bf16.msra.mxu0 0
    %1193 = vmatprep.subr.bf16.mxu0 0
    %1194 = vmatpush1.bf16.msra.mxu0 0
    %1195 = vmatprep.subr.bf16.mxu0 0
    %1196 = vmatpush1.bf16.msra.mxu0 0
    %1197 = vmatprep.mubr.bf16.mxu0 0
    %1198 = vmatmul.mubr.bf16.gmra.mrb[0].mxu0 %v842
    %v1199 = vpop.f32.mrb[0].mxu0
    %v1200 = vadd.f32 %v173, %v1199
    %v1201 = vpop.f32.mrb[0].mxu0
    %v1202 = vadd.f32 %v173, %v1201
    %v1203 = vpop.f32.mrb[0].mxu0
    %v1204 = vadd.f32 %v178, %v1203
    %v1205 = vpop.f32.mrb[0].mxu0
    %v1206 = vadd.f32 %v178, %v1205
    %1207 = vmatprep.mubr.bf16.mxu0 0
    %1208 = vmatmul.mubr.bf16.gmra.mrb[0].mxu0 %v845
    %v1209 = vpop.f32.mrb[0].mxu0
    %v1210 = vadd.f32 %v183, %v1209
    %v1211 = vpop.f32.mrb[0].mxu0
    %v1212 = vadd.f32 %v183, %v1211
    %v1213 = vpop.f32.mrb[0].mxu0
    %v1214 = vadd.f32 %v188, %v1213
    %v1215 = vpop.f32.mrb[0].mxu0
    %v1216 = vadd.f32 %v188, %v1215
    %1217 = vdwg.mxu0
    %1218 = vmatprep.subr.bf16.mxu0 %v599
    %1219 = vmatpush1.bf16.msra.mxu0 %v598
    %1220 = vmatprep.subr.bf16.mxu0 %v663
    %1221 = vmatpush1.bf16.msra.mxu0 %v662
    %1222 = vmatprep.subr.bf16.mxu0 0
    %1223 = vmatpush1.bf16.msra.mxu0 0
    %1224 = vmatprep.subr.bf16.mxu0 0
    %1225 = vmatpush1.bf16.msra.mxu0 0
    %1226 = vmatprep.subr.bf16.mxu0 0
    %1227 = vmatpush1.bf16.msra.mxu0 0
    %1228 = vmatprep.subr.bf16.mxu0 0
    %1229 = vmatpush1.bf16.msra.mxu0 0
    %1230 = vmatprep.subr.bf16.mxu0 0
    %1231 = vmatpush1.bf16.msra.mxu0 0
    %1232 = vmatprep.subr.bf16.mxu0 0
    %1233 = vmatpush1.bf16.msra.mxu0 0
    %1234 = vmatprep.subr.bf16.mxu0 0
    %1235 = vmatpush1.bf16.msra.mxu0 0
    %1236 = vmatprep.subr.bf16.mxu0 0
    %1237 = vmatpush1.bf16.msra.mxu0 0
    %1238 = vmatprep.subr.bf16.mxu0 0
    %1239 = vmatpush1.bf16.msra.mxu0 0
    %1240 = vmatprep.subr.bf16.mxu0 0
    %1241 = vmatpush1.bf16.msra.mxu0 0
    %1242 = vmatprep.subr.bf16.mxu0 0
    %1243 = vmatpush1.bf16.msra.mxu0 0
    %1244 = vmatprep.subr.bf16.mxu0 0
    %1245 = vmatpush1.bf16.msra.mxu0 0
    %1246 = vmatprep.subr.bf16.mxu0 0
    %1247 = vmatpush1.bf16.msra.mxu0 0
    %1248 = vmatprep.subr.bf16.mxu0 0
    %1249 = vmatpush1.bf16.msra.mxu0 0
    %1250 = vmatprep.mubr.bf16.mxu0 0
    %1251 = vmatmul.mubr.bf16.gmra.mrb[0].mxu0 %v842
    %v1252 = vpop.f32.mrb[0].mxu0
    %v1253 = vadd.f32 %v173, %v1252
    %v1254 = vpop.f32.mrb[0].mxu0
    %v1255 = vadd.f32 %v173, %v1254
    %v1256 = vpop.f32.mrb[0].mxu0
    %v1257 = vadd.f32 %v178, %v1256
    %v1258 = vpop.f32.mrb[0].mxu0
    %v1259 = vadd.f32 %v178, %v1258
    %1260 = vmatprep.mubr.bf16.mxu0 0
    %1261 = vmatmul.mubr.bf16.gmra.mrb[0].mxu0 %v845
    %v1262 = vpop.f32.mrb[0].mxu0
    %v1263 = vadd.f32 %v183, %v1262
    %v1264 = vpop.f32.mrb[0].mxu0
    %v1265 = vadd.f32 %v183, %v1264
    %v1266 = vpop.f32.mrb[0].mxu0
    %v1267 = vadd.f32 %v188, %v1266
    %v1268 = vpop.f32.mrb[0].mxu0
    %v1269 = vadd.f32 %v188, %v1268
    %1270 = vdwg.mxu0
    %1271 = vmatprep.subr.bf16.mxu0 %v601
    %1272 = vmatpush1.bf16.msra.mxu0 %v600
    %1273 = vmatprep.subr.bf16.mxu0 %v665
    %1274 = vmatpush1.bf16.msra.mxu0 %v664
    %1275 = vmatprep.subr.bf16.mxu0 0
    %1276 = vmatpush1.bf16.msra.mxu0 0
    %1277 = vmatprep.subr.bf16.mxu0 0
    %1278 = vmatpush1.bf16.msra.mxu0 0
    %1279 = vmatprep.subr.bf16.mxu0 0
    %1280 = vmatpush1.bf16.msra.mxu0 0
    %1281 = vmatprep.subr.bf16.mxu0 0
    %1282 = vmatpush1.bf16.msra.mxu0 0
    %1283 = vmatprep.subr.bf16.mxu0 0
    %1284 = vmatpush1.bf16.msra.mxu0 0
    %1285 = vmatprep.subr.bf16.mxu0 0
    %1286 = vmatpush1.bf16.msra.mxu0 0
    %1287 = vmatprep.subr.bf16.mxu0 0
    %1288 = vmatpush1.bf16.msra.mxu0 0
    %1289 = vmatprep.subr.bf16.mxu0 0
    %1290 = vmatpush1.bf16.msra.mxu0 0
    %1291 = vmatprep.subr.bf16.mxu0 0
    %1292 = vmatpush1.bf16.msra.mxu0 0
    %1293 = vmatprep.subr.bf16.mxu0 0
    %1294 = vmatpush1.bf16.msra.mxu0 0
    %1295 = vmatprep.subr.bf16.mxu0 0
    %1296 = vmatpush1.bf16.msra.mxu0 0
    %1297 = vmatprep.subr.bf16.mxu0 0
    %1298 = vmatpush1.bf16.msra.mxu0 0
    %1299 = vmatprep.subr.bf16.mxu0 0
    %1300 = vmatpush1.bf16.msra.mxu0 0
    %1301 = vmatprep.subr.bf16.mxu0 0
    %1302 = vmatpush1.bf16.msra.mxu0 0
    %1303 = vmatprep.mubr.bf16.mxu0 0
    %1304 = vmatmul.mubr.bf16.gmra.mrb[0].mxu0 %v842
    %v1305 = vpop.f32.mrb[0].mxu0
    %v1306 = vadd.f32 %v173, %v1305
    %v1307 = vpop.f32.mrb[0].mxu0
    %v1308 = vadd.f32 %v173, %v1307
    %v1309 = vpop.f32.mrb[0].mxu0
    %v1310 = vadd.f32 %v178, %v1309
    %v1311 = vpop.f32.mrb[0].mxu0
    %v1312 = vadd.f32 %v178, %v1311
    %1313 = vmatprep.mubr.bf16.mxu0 0
    %1314 = vmatmul.mubr.bf16.gmra.mrb[0].mxu0 %v845
    %v1315 = vpop.f32.mrb[0].mxu0
    %v1316 = vadd.f32 %v183, %v1315
    %v1317 = vpop.f32.mrb[0].mxu0
    %v1318 = vadd.f32 %v183, %v1317
    %v1319 = vpop.f32.mrb[0].mxu0
    %v1320 = vadd.f32 %v188, %v1319
    %v1321 = vpop.f32.mrb[0].mxu0
    %v1322 = vadd.f32 %v188, %v1321
    %1323 = vdwg.mxu0
    %1324 = vmatprep.subr.bf16.mxu0 %v603
    %1325 = vmatpush1.bf16.msra.mxu0 %v602
    %1326 = vmatprep.subr.bf16.mxu0 %v667
    %1327 = vmatpush1.bf16.msra.mxu0 %v666
    %1328 = vmatprep.subr.bf16.mxu0 0
    %1329 = vmatpush1.bf16.msra.mxu0 0
    %1330 = vmatprep.subr.bf16.mxu0 0
    %1331 = vmatpush1.bf16.msra.mxu0 0
    %1332 = vmatprep.subr.bf16.mxu0 0
    %1333 = vmatpush1.bf16.msra.mxu0 0
    %1334 = vmatprep.subr.bf16.mxu0 0
    %1335 = vmatpush1.bf16.msra.mxu0 0
    %1336 = vmatprep.subr.bf16.mxu0 0
    %1337 = vmatpush1.bf16.msra.mxu0 0
    %1338 = vmatprep.subr.bf16.mxu0 0
    %1339 = vmatpush1.bf16.msra.mxu0 0
    %1340 = vmatprep.subr.bf16.mxu0 0
    %1341 = vmatpush1.bf16.msra.mxu0 0
    %1342 = vmatprep.subr.bf16.mxu0 0
    %1343 = vmatpush1.bf16.msra.mxu0 0
    %1344 = vmatprep.subr.bf16.mxu0 0
    %1345 = vmatpush1.bf16.msra.mxu0 0
    %1346 = vmatprep.subr.bf16.mxu0 0
    %1347 = vmatpush1.bf16.msra.mxu0 0
    %1348 = vmatprep.subr.bf16.mxu0 0
    %1349 = vmatpush1.bf16.msra.mxu0 0
    %1350 = vmatprep.subr.bf16.mxu0 0
    %1351 = vmatpush1.bf16.msra.mxu0 0
    %1352 = vmatprep.subr.bf16.mxu0 0
    %1353 = vmatpush1.bf16.msra.mxu0 0
    %1354 = vmatprep.subr.bf16.mxu0 0
    %1355 = vmatpush1.bf16.msra.mxu0 0
    %1356 = vmatprep.mubr.bf16.mxu0 0
    %1357 = vmatmul.mubr.bf16.gmra.mrb[0].mxu0 %v842
    %v1358 = vpop.f32.mrb[0].mxu0
    %v1359 = vadd.f32 %v173, %v1358
    %v1360 = vpop.f32.mrb[0].mxu0
    %v1361 = vadd.f32 %v173, %v1360
    %v1362 = vpop.f32.mrb[0].mxu0
    %v1363 = vadd.f32 %v178, %v1362
    %v1364 = vpop.f32.mrb[0].mxu0
    %v1365 = vadd.f32 %v178, %v1364
    %1366 = vmatprep.mubr.bf16.mxu0 0
    %1367 = vmatmul.mubr.bf16.gmra.mrb[0].mxu0 %v845
    %v1368 = vpop.f32.mrb[0].mxu0
    %v1369 = vadd.f32 %v183, %v1368
    %v1370 = vpop.f32.mrb[0].mxu0
    %v1371 = vadd.f32 %v183, %v1370
    %v1372 = vpop.f32.mrb[0].mxu0
    %v1373 = vadd.f32 %v188, %v1372
    %v1374 = vpop.f32.mrb[0].mxu0
    %v1375 = vadd.f32 %v188, %v1374
    %1376 = vdwg.mxu0
    %1377 = vmatprep.subr.bf16.mxu0 %v605
    %1378 = vmatpush1.bf16.msra.mxu0 %v604
    %1379 = vmatprep.subr.bf16.mxu0 %v669
    %1380 = vmatpush1.bf16.msra.mxu0 %v668
    %1381 = vmatprep.subr.bf16.mxu0 0
    %1382 = vmatpush1.bf16.msra.mxu0 0
    %1383 = vmatprep.subr.bf16.mxu0 0
    %1384 = vmatpush1.bf16.msra.mxu0 0
    %1385 = vmatprep.subr.bf16.mxu0 0
    %1386 = vmatpush1.bf16.msra.mxu0 0
    %1387 = vmatprep.subr.bf16.mxu0 0
    %1388 = vmatpush1.bf16.msra.mxu0 0
    %1389 = vmatprep.subr.bf16.mxu0 0
    %1390 = vmatpush1.bf16.msra.mxu0 0
    %1391 = vmatprep.subr.bf16.mxu0 0
    %1392 = vmatpush1.bf16.msra.mxu0 0
    %1393 = vmatprep.subr.bf16.mxu0 0
    %1394 = vmatpush1.bf16.msra.mxu0 0
    %1395 = vmatprep.subr.bf16.mxu0 0
    %1396 = vmatpush1.bf16.msra.mxu0 0
    %1397 = vmatprep.subr.bf16.mxu0 0
    %1398 = vmatpush1.bf16.msra.mxu0 0
    %1399 = vmatprep.subr.bf16.mxu0 0
    %1400 = vmatpush1.bf16.msra.mxu0 0
    %1401 = vmatprep.subr.bf16.mxu0 0
    %1402 = vmatpush1.bf16.msra.mxu0 0
    %1403 = vmatprep.subr.bf16.mxu0 0
    %1404 = vmatpush1.bf16.msra.mxu0 0
    %1405 = vmatprep.subr.bf16.mxu0 0
    %1406 = vmatpush1.bf16.msra.mxu0 0
    %1407 = vmatprep.subr.bf16.mxu0 0
    %1408 = vmatpush1.bf16.msra.mxu0 0
    %1409 = vmatprep.mubr.bf16.mxu0 0
    %1410 = vmatmul.mubr.bf16.gmra.mrb[0].mxu0 %v842
    %v1411 = vpop.f32.mrb[0].mxu0
    %v1412 = vadd.f32 %v173, %v1411
    %v1413 = vpop.f32.mrb[0].mxu0
    %v1414 = vadd.f32 %v173, %v1413
    %v1415 = vpop.f32.mrb[0].mxu0
    %v1416 = vadd.f32 %v178, %v1415
    %v1417 = vpop.f32.mrb[0].mxu0
    %v1418 = vadd.f32 %v178, %v1417
    %1419 = vmatprep.mubr.bf16.mxu0 0
    %1420 = vmatmul.mubr.bf16.gmra.mrb[0].mxu0 %v845
    %v1421 = vpop.f32.mrb[0].mxu0
    %v1422 = vadd.f32 %v183, %v1421
    %v1423 = vpop.f32.mrb[0].mxu0
    %v1424 = vadd.f32 %v183, %v1423
    %v1425 = vpop.f32.mrb[0].mxu0
    %v1426 = vadd.f32 %v188, %v1425
    %v1427 = vpop.f32.mrb[0].mxu0
    %v1428 = vadd.f32 %v188, %v1427
    %1429 = vdwg.mxu0
    %1430 = vmatprep.subr.bf16.mxu0 %v607
    %1431 = vmatpush1.bf16.msra.mxu0 %v606
    %1432 = vmatprep.subr.bf16.mxu0 %v671
    %1433 = vmatpush1.bf16.msra.mxu0 %v670
    %1434 = vmatprep.subr.bf16.mxu0 0
    %1435 = vmatpush1.bf16.msra.mxu0 0
    %1436 = vmatprep.subr.bf16.mxu0 0
    %1437 = vmatpush1.bf16.msra.mxu0 0
    %1438 = vmatprep.subr.bf16.mxu0 0
    %1439 = vmatpush1.bf16.msra.mxu0 0
    %1440 = vmatprep.subr.bf16.mxu0 0
    %1441 = vmatpush1.bf16.msra.mxu0 0
    %1442 = vmatprep.subr.bf16.mxu0 0
    %1443 = vmatpush1.bf16.msra.mxu0 0
    %1444 = vmatprep.subr.bf16.mxu0 0
    %1445 = vmatpush1.bf16.msra.mxu0 0
    %1446 = vmatprep.subr.bf16.mxu0 0
    %1447 = vmatpush1.bf16.msra.mxu0 0
    %1448 = vmatprep.subr.bf16.mxu0 0
    %1449 = vmatpush1.bf16.msra.mxu0 0
    %1450 = vmatprep.subr.bf16.mxu0 0
    %1451 = vmatpush1.bf16.msra.mxu0 0
    %1452 = vmatprep.subr.bf16.mxu0 0
    %1453 = vmatpush1.bf16.msra.mxu0 0
    %1454 = vmatprep.subr.bf16.mxu0 0
    %1455 = vmatpush1.bf16.msra.mxu0 0
    %1456 = vmatprep.subr.bf16.mxu0 0
    %1457 = vmatpush1.bf16.msra.mxu0 0
    %1458 = vmatprep.subr.bf16.mxu0 0
    %1459 = vmatpush1.bf16.msra.mxu0 0
    %1460 = vmatprep.subr.bf16.mxu0 0
    %1461 = vmatpush1.bf16.msra.mxu0 0
    %1462 = vmatprep.mubr.bf16.mxu0 0
    %1463 = vmatmul.mubr.bf16.gmra.mrb[0].mxu0 %v842
    %v1464 = vpop.f32.mrb[0].mxu0
    %v1465 = vadd.f32 %v173, %v1464
    %v1466 = vpop.f32.mrb[0].mxu0
    %v1467 = vadd.f32 %v173, %v1466
    %v1468 = vpop.f32.mrb[0].mxu0
    %v1469 = vadd.f32 %v178, %v1468
    %v1470 = vpop.f32.mrb[0].mxu0
    %v1471 = vadd.f32 %v178, %v1470
    %1472 = vmatprep.mubr.bf16.mxu0 0
    %1473 = vmatmul.mubr.bf16.gmra.mrb[0].mxu0 %v845
    %v1474 = vpop.f32.mrb[0].mxu0
    %v1475 = vadd.f32 %v183, %v1474
    %v1476 = vpop.f32.mrb[0].mxu0
    %v1477 = vadd.f32 %v183, %v1476
    %v1478 = vpop.f32.mrb[0].mxu0
    %v1479 = vadd.f32 %v188, %v1478
    %v1480 = vpop.f32.mrb[0].mxu0
    %v1481 = vadd.f32 %v188, %v1480
    %1482 = vdwg.mxu0
    %1483 = vmatprep.subr.bf16.mxu0 %v609
    %1484 = vmatpush1.bf16.msra.mxu0 %v608
    %1485 = vmatprep.subr.bf16.mxu0 %v673
    %1486 = vmatpush1.bf16.msra.mxu0 %v672
    %1487 = vmatprep.subr.bf16.mxu0 0
    %1488 = vmatpush1.bf16.msra.mxu0 0
    %1489 = vmatprep.subr.bf16.mxu0 0
    %1490 = vmatpush1.bf16.msra.mxu0 0
    %1491 = vmatprep.subr.bf16.mxu0 0
    %1492 = vmatpush1.bf16.msra.mxu0 0
    %1493 = vmatprep.subr.bf16.mxu0 0
    %1494 = vmatpush1.bf16.msra.mxu0 0
    %1495 = vmatprep.subr.bf16.mxu0 0
    %1496 = vmatpush1.bf16.msra.mxu0 0
    %1497 = vmatprep.subr.bf16.mxu0 0
    %1498 = vmatpush1.bf16.msra.mxu0 0
    %1499 = vmatprep.subr.bf16.mxu0 0
    %1500 = vmatpush1.bf16.msra.mxu0 0
    %1501 = vmatprep.subr.bf16.mxu0 0
    %1502 = vmatpush1.bf16.msra.mxu0 0
    %1503 = vmatprep.subr.bf16.mxu0 0
    %1504 = vmatpush1.bf16.msra.mxu0 0
    %1505 = vmatprep.subr.bf16.mxu0 0
    %1506 = vmatpush1.bf16.msra.mxu0 0
    %1507 = vmatprep.subr.bf16.mxu0 0
    %1508 = vmatpush1.bf16.msra.mxu0 0
    %1509 = vmatprep.subr.bf16.mxu0 0
    %1510 = vmatpush1.bf16.msra.mxu0 0
    %1511 = vmatprep.subr.bf16.mxu0 0
    %1512 = vmatpush1.bf16.msra.mxu0 0
    %1513 = vmatprep.subr.bf16.mxu0 0
    %1514 = vmatpush1.bf16.msra.mxu0 0
    %1515 = vmatprep.mubr.bf16.mxu0 0
    %1516 = vmatmul.mubr.bf16.gmra.mrb[0].mxu0 %v842
    %v1517 = vpop.f32.mrb[0].mxu0
    %v1518 = vadd.f32 %v173, %v1517
    %v1519 = vpop.f32.mrb[0].mxu0
    %v1520 = vadd.f32 %v173, %v1519
    %v1521 = vpop.f32.mrb[0].mxu0
    %v1522 = vadd.f32 %v178, %v1521
    %v1523 = vpop.f32.mrb[0].mxu0
    %v1524 = vadd.f32 %v178, %v1523
    %1525 = vmatprep.mubr.bf16.mxu0 0
    %1526 = vmatmul.mubr.bf16.gmra.mrb[0].mxu0 %v845
    %v1527 = vpop.f32.mrb[0].mxu0
    %v1528 = vadd.f32 %v183, %v1527
    %v1529 = vpop.f32.mrb[0].mxu0
    %v1530 = vadd.f32 %v183, %v1529
    %v1531 = vpop.f32.mrb[0].mxu0
    %v1532 = vadd.f32 %v188, %v1531
    %v1533 = vpop.f32.mrb[0].mxu0
    %v1534 = vadd.f32 %v188, %v1533
    %1535 = vdwg.mxu0
    %1536 = vmatprep.subr.bf16.mxu0 %v611
    %1537 = vmatpush1.bf16.msra.mxu0 %v610
    %1538 = vmatprep.subr.bf16.mxu0 %v675
    %1539 = vmatpush1.bf16.msra.mxu0 %v674
    %1540 = vmatprep.subr.bf16.mxu0 0
    %1541 = vmatpush1.bf16.msra.mxu0 0
    %1542 = vmatprep.subr.bf16.mxu0 0
    %1543 = vmatpush1.bf16.msra.mxu0 0
    %1544 = vmatprep.subr.bf16.mxu0 0
    %1545 = vmatpush1.bf16.msra.mxu0 0
    %1546 = vmatprep.subr.bf16.mxu0 0
    %1547 = vmatpush1.bf16.msra.mxu0 0
    %1548 = vmatprep.subr.bf16.mxu0 0
    %1549 = vmatpush1.bf16.msra.mxu0 0
    %1550 = vmatprep.subr.bf16.mxu0 0
    %1551 = vmatpush1.bf16.msra.mxu0 0
    %1552 = vmatprep.subr.bf16.mxu0 0
    %1553 = vmatpush1.bf16.msra.mxu0 0
    %1554 = vmatprep.subr.bf16.mxu0 0
    %1555 = vmatpush1.bf16.msra.mxu0 0
    %1556 = vmatprep.subr.bf16.mxu0 0
    %1557 = vmatpush1.bf16.msra.mxu0 0
    %1558 = vmatprep.subr.bf16.mxu0 0
    %1559 = vmatpush1.bf16.msra.mxu0 0
    %1560 = vmatprep.subr.bf16.mxu0 0
    %1561 = vmatpush1.bf16.msra.mxu0 0
    %1562 = vmatprep.subr.bf16.mxu0 0
    %1563 = vmatpush1.bf16.msra.mxu0 0
    %1564 = vmatprep.subr.bf16.mxu0 0
    %1565 = vmatpush1.bf16.msra.mxu0 0
    %1566 = vmatprep.subr.bf16.mxu0 0
    %1567 = vmatpush1.bf16.msra.mxu0 0
    %1568 = vmatprep.mubr.bf16.mxu0 0
    %1569 = vmatmul.mubr.bf16.gmra.mrb[0].mxu0 %v842
    %v1570 = vpop.f32.mrb[0].mxu0
    %v1571 = vadd.f32 %v173, %v1570
    %v1572 = vpop.f32.mrb[0].mxu0
    %v1573 = vadd.f32 %v173, %v1572
    %v1574 = vpop.f32.mrb[0].mxu0
    %v1575 = vadd.f32 %v178, %v1574
    %v1576 = vpop.f32.mrb[0].mxu0
    %v1577 = vadd.f32 %v178, %v1576
    %1578 = vmatprep.mubr.bf16.mxu0 0
    %1579 = vmatmul.mubr.bf16.gmra.mrb[0].mxu0 %v845
    %v1580 = vpop.f32.mrb[0].mxu0
    %v1581 = vadd.f32 %v183, %v1580
    %v1582 = vpop.f32.mrb[0].mxu0
    %v1583 = vadd.f32 %v183, %v1582
    %v1584 = vpop.f32.mrb[0].mxu0
    %v1585 = vadd.f32 %v188, %v1584
    %v1586 = vpop.f32.mrb[0].mxu0
    %v1587 = vadd.f32 %v188, %v1586
    %1588 = vdwg.mxu0
    %1589 = vmatprep.subr.bf16.mxu0 %v613
    %1590 = vmatpush1.bf16.msra.mxu0 %v612
    %1591 = vmatprep.subr.bf16.mxu0 %v677
    %1592 = vmatpush1.bf16.msra.mxu0 %v676
    %1593 = vmatprep.subr.bf16.mxu0 0
    %1594 = vmatpush1.bf16.msra.mxu0 0
    %1595 = vmatprep.subr.bf16.mxu0 0
    %1596 = vmatpush1.bf16.msra.mxu0 0
    %1597 = vmatprep.subr.bf16.mxu0 0
    %1598 = vmatpush1.bf16.msra.mxu0 0
    %1599 = vmatprep.subr.bf16.mxu0 0
    %1600 = vmatpush1.bf16.msra.mxu0 0
    %1601 = vmatprep.subr.bf16.mxu0 0
    %1602 = vmatpush1.bf16.msra.mxu0 0
    %1603 = vmatprep.subr.bf16.mxu0 0
    %1604 = vmatpush1.bf16.msra.mxu0 0
    %1605 = vmatprep.subr.bf16.mxu0 0
    %1606 = vmatpush1.bf16.msra.mxu0 0
    %1607 = vmatprep.subr.bf16.mxu0 0
    %1608 = vmatpush1.bf16.msra.mxu0 0
    %1609 = vmatprep.subr.bf16.mxu0 0
    %1610 = vmatpush1.bf16.msra.mxu0 0
    %1611 = vmatprep.subr.bf16.mxu0 0
    %1612 = vmatpush1.bf16.msra.mxu0 0
    %1613 = vmatprep.subr.bf16.mxu0 0
    %1614 = vmatpush1.bf16.msra.mxu0 0
    %1615 = vmatprep.subr.bf16.mxu0 0
    %1616 = vmatpush1.bf16.msra.mxu0 0
    %1617 = vmatprep.subr.bf16.mxu0 0
    %1618 = vmatpush1.bf16.msra.mxu0 0
    %1619 = vmatprep.subr.bf16.mxu0 0
    %1620 = vmatpush1.bf16.msra.mxu0 0
    %1621 = vmatprep.mubr.bf16.mxu0 0
    %1622 = vmatmul.mubr.bf16.gmra.mrb[0].mxu0 %v842
    %v1623 = vpop.f32.mrb[0].mxu0
    %v1624 = vadd.f32 %v173, %v1623
    %v1625 = vpop.f32.mrb[0].mxu0
    %v1626 = vadd.f32 %v173, %v1625
    %v1627 = vpop.f32.mrb[0].mxu0
    %v1628 = vadd.f32 %v178, %v1627
    %v1629 = vpop.f32.mrb[0].mxu0
    %v1630 = vadd.f32 %v178, %v1629
    %1631 = vmatprep.mubr.bf16.mxu0 0
    %1632 = vmatmul.mubr.bf16.gmra.mrb[0].mxu0 %v845
    %v1633 = vpop.f32.mrb[0].mxu0
    %v1634 = vadd.f32 %v183, %v1633
    %v1635 = vpop.f32.mrb[0].mxu0
    %v1636 = vadd.f32 %v183, %v1635
    %v1637 = vpop.f32.mrb[0].mxu0
    %v1638 = vadd.f32 %v188, %v1637
    %v1639 = vpop.f32.mrb[0].mxu0
    %v1640 = vadd.f32 %v188, %v1639
    %1641 = vdwg.mxu0
    %1642 = vmatprep.subr.bf16.mxu0 %v615
    %1643 = vmatpush1.bf16.msra.mxu0 %v614
    %1644 = vmatprep.subr.bf16.mxu0 %v679
    %1645 = vmatpush1.bf16.msra.mxu0 %v678
    %1646 = vmatprep.subr.bf16.mxu0 0
    %1647 = vmatpush1.bf16.msra.mxu0 0
    %1648 = vmatprep.subr.bf16.mxu0 0
    %1649 = vmatpush1.bf16.msra.mxu0 0
    %1650 = vmatprep.subr.bf16.mxu0 0
    %1651 = vmatpush1.bf16.msra.mxu0 0
    %1652 = vmatprep.subr.bf16.mxu0 0
    %1653 = vmatpush1.bf16.msra.mxu0 0
    %1654 = vmatprep.subr.bf16.mxu0 0
    %1655 = vmatpush1.bf16.msra.mxu0 0
    %1656 = vmatprep.subr.bf16.mxu0 0
    %1657 = vmatpush1.bf16.msra.mxu0 0
    %1658 = vmatprep.subr.bf16.mxu0 0
    %1659 = vmatpush1.bf16.msra.mxu0 0
    %1660 = vmatprep.subr.bf16.mxu0 0
    %1661 = vmatpush1.bf16.msra.mxu0 0
    %1662 = vmatprep.subr.bf16.mxu0 0
    %1663 = vmatpush1.bf16.msra.mxu0 0
    %1664 = vmatprep.subr.bf16.mxu0 0
    %1665 = vmatpush1.bf16.msra.mxu0 0
    %1666 = vmatprep.subr.bf16.mxu0 0
    %1667 = vmatpush1.bf16.msra.mxu0 0
    %1668 = vmatprep.subr.bf16.mxu0 0
    %1669 = vmatpush1.bf16.msra.mxu0 0
    %1670 = vmatprep.subr.bf16.mxu0 0
    %1671 = vmatpush1.bf16.msra.mxu0 0
    %1672 = vmatprep.subr.bf16.mxu0 0
    %1673 = vmatpush1.bf16.msra.mxu0 0
    %1674 = vmatprep.mubr.bf16.mxu0 0
    %1675 = vmatmul.mubr.bf16.gmra.mrb[0].mxu0 %v842
    %v1676 = vpop.f32.mrb[0].mxu0
    %v1677 = vadd.f32 %v173, %v1676
    %v1678 = vpop.f32.mrb[0].mxu0
    %v1679 = vadd.f32 %v173, %v1678
    %v1680 = vpop.f32.mrb[0].mxu0
    %v1681 = vadd.f32 %v178, %v1680
    %v1682 = vpop.f32.mrb[0].mxu0
    %v1683 = vadd.f32 %v178, %v1682
    %1684 = vmatprep.mubr.bf16.mxu0 0
    %1685 = vmatmul.mubr.bf16.gmra.mrb[0].mxu0 %v845
    %v1686 = vpop.f32.mrb[0].mxu0
    %v1687 = vadd.f32 %v183, %v1686
    %v1688 = vpop.f32.mrb[0].mxu0
    %v1689 = vadd.f32 %v183, %v1688
    %v1690 = vpop.f32.mrb[0].mxu0
    %v1691 = vadd.f32 %v188, %v1690
    %v1692 = vpop.f32.mrb[0].mxu0
    %v1693 = vadd.f32 %v188, %v1692
    %1694 = vdwg.mxu0
    %1695 = vmatprep.subr.bf16.mxu0 %v617
    %1696 = vmatpush1.bf16.msra.mxu0 %v616
    %1697 = vmatprep.subr.bf16.mxu0 %v681
    %1698 = vmatpush1.bf16.msra.mxu0 %v680
    %1699 = vmatprep.subr.bf16.mxu0 0
    %1700 = vmatpush1.bf16.msra.mxu0 0
    %1701 = vmatprep.subr.bf16.mxu0 0
    %1702 = vmatpush1.bf16.msra.mxu0 0
    %1703 = vmatprep.subr.bf16.mxu0 0
    %1704 = vmatpush1.bf16.msra.mxu0 0
    %1705 = vmatprep.subr.bf16.mxu0 0
    %1706 = vmatpush1.bf16.msra.mxu0 0
    %1707 = vmatprep.subr.bf16.mxu0 0
    %1708 = vmatpush1.bf16.msra.mxu0 0
    %1709 = vmatprep.subr.bf16.mxu0 0
    %1710 = vmatpush1.bf16.msra.mxu0 0
    %1711 = vmatprep.subr.bf16.mxu0 0
    %1712 = vmatpush1.bf16.msra.mxu0 0
    %1713 = vmatprep.subr.bf16.mxu0 0
    %1714 = vmatpush1.bf16.msra.mxu0 0
    %1715 = vmatprep.subr.bf16.mxu0 0
    %1716 = vmatpush1.bf16.msra.mxu0 0
    %1717 = vmatprep.subr.bf16.mxu0 0
    %1718 = vmatpush1.bf16.msra.mxu0 0
    %1719 = vmatprep.subr.bf16.mxu0 0
    %1720 = vmatpush1.bf16.msra.mxu0 0
    %1721 = vmatprep.subr.bf16.mxu0 0
    %1722 = vmatpush1.bf16.msra.mxu0 0
    %1723 = vmatprep.subr.bf16.mxu0 0
    %1724 = vmatpush1.bf16.msra.mxu0 0
    %1725 = vmatprep.subr.bf16.mxu0 0
    %1726 = vmatpush1.bf16.msra.mxu0 0
    %1727 = vmatprep.mubr.bf16.mxu0 0
    %1728 = vmatmul.mubr.bf16.gmra.mrb[0].mxu0 %v842
    %v1729 = vpop.f32.mrb[0].mxu0
    %v1730 = vadd.f32 %v173, %v1729
    %v1731 = vpop.f32.mrb[0].mxu0
    %v1732 = vadd.f32 %v173, %v1731
    %v1733 = vpop.f32.mrb[0].mxu0
    %v1734 = vadd.f32 %v178, %v1733
    %v1735 = vpop.f32.mrb[0].mxu0
    %v1736 = vadd.f32 %v178, %v1735
    %1737 = vmatprep.mubr.bf16.mxu0 0
    %1738 = vmatmul.mubr.bf16.gmra.mrb[0].mxu0 %v845
    %v1739 = vpop.f32.mrb[0].mxu0
    %v1740 = vadd.f32 %v183, %v1739
    %v1741 = vpop.f32.mrb[0].mxu0
    %v1742 = vadd.f32 %v183, %v1741
    %v1743 = vpop.f32.mrb[0].mxu0
    %v1744 = vadd.f32 %v188, %v1743
    %v1745 = vpop.f32.mrb[0].mxu0
    %v1746 = vadd.f32 %v188, %v1745
    %1747 = vdwg.mxu0
    %1748 = vmatprep.subr.bf16.mxu0 %v619
    %1749 = vmatpush1.bf16.msra.mxu0 %v618
    %1750 = vmatprep.subr.bf16.mxu0 %v683
    %1751 = vmatpush1.bf16.msra.mxu0 %v682
    %1752 = vmatprep.subr.bf16.mxu0 0
    %1753 = vmatpush1.bf16.msra.mxu0 0
    %1754 = vmatprep.subr.bf16.mxu0 0
    %1755 = vmatpush1.bf16.msra.mxu0 0
    %1756 = vmatprep.subr.bf16.mxu0 0
    %1757 = vmatpush1.bf16.msra.mxu0 0
    %1758 = vmatprep.subr.bf16.mxu0 0
    %1759 = vmatpush1.bf16.msra.mxu0 0
    %1760 = vmatprep.subr.bf16.mxu0 0
    %1761 = vmatpush1.bf16.msra.mxu0 0
    %1762 = vmatprep.subr.bf16.mxu0 0
    %1763 = vmatpush1.bf16.msra.mxu0 0
    %1764 = vmatprep.subr.bf16.mxu0 0
    %1765 = vmatpush1.bf16.msra.mxu0 0
    %1766 = vmatprep.subr.bf16.mxu0 0
    %1767 = vmatpush1.bf16.msra.mxu0 0
    %1768 = vmatprep.subr.bf16.mxu0 0
    %1769 = vmatpush1.bf16.msra.mxu0 0
    %1770 = vmatprep.subr.bf16.mxu0 0
    %1771 = vmatpush1.bf16.msra.mxu0 0
    %1772 = vmatprep.subr.bf16.mxu0 0
    %1773 = vmatpush1.bf16.msra.mxu0 0
    %1774 = vmatprep.subr.bf16.mxu0 0
    %1775 = vmatpush1.bf16.msra.mxu0 0
    %1776 = vmatprep.subr.bf16.mxu0 0
    %1777 = vmatpush1.bf16.msra.mxu0 0
    %1778 = vmatprep.subr.bf16.mxu0 0
    %1779 = vmatpush1.bf16.msra.mxu0 0
    %1780 = vmatprep.mubr.bf16.mxu0 0
    %1781 = vmatmul.mubr.bf16.gmra.mrb[0].mxu0 %v842
    %v1782 = vpop.f32.mrb[0].mxu0
    %v1783 = vadd.f32 %v173, %v1782
    %v1784 = vpop.f32.mrb[0].mxu0
    %v1785 = vadd.f32 %v173, %v1784
    %v1786 = vpop.f32.mrb[0].mxu0
    %v1787 = vadd.f32 %v178, %v1786
    %v1788 = vpop.f32.mrb[0].mxu0
    %v1789 = vadd.f32 %v178, %v1788
    %1790 = vmatprep.mubr.bf16.mxu0 0
    %1791 = vmatmul.mubr.bf16.gmra.mrb[0].mxu0 %v845
    %v1792 = vpop.f32.mrb[0].mxu0
    %v1793 = vadd.f32 %v183, %v1792
    %v1794 = vpop.f32.mrb[0].mxu0
    %v1795 = vadd.f32 %v183, %v1794
    %v1796 = vpop.f32.mrb[0].mxu0
    %v1797 = vadd.f32 %v188, %v1796
    %v1798 = vpop.f32.mrb[0].mxu0
    %v1799 = vadd.f32 %v188, %v1798
    %1800 = vdwg.mxu0
    %1801 = vmatprep.subr.bf16.mxu0 %v621
    %1802 = vmatpush1.bf16.msra.mxu0 %v620
    %1803 = vmatprep.subr.bf16.mxu0 %v685
    %1804 = vmatpush1.bf16.msra.mxu0 %v684
    %1805 = vmatprep.subr.bf16.mxu0 0
    %1806 = vmatpush1.bf16.msra.mxu0 0
    %1807 = vmatprep.subr.bf16.mxu0 0
    %1808 = vmatpush1.bf16.msra.mxu0 0
    %1809 = vmatprep.subr.bf16.mxu0 0
    %1810 = vmatpush1.bf16.msra.mxu0 0
    %1811 = vmatprep.subr.bf16.mxu0 0
    %1812 = vmatpush1.bf16.msra.mxu0 0
    %1813 = vmatprep.subr.bf16.mxu0 0
    %1814 = vmatpush1.bf16.msra.mxu0 0
    %1815 = vmatprep.subr.bf16.mxu0 0
    %1816 = vmatpush1.bf16.msra.mxu0 0
    %1817 = vmatprep.subr.bf16.mxu0 0
    %1818 = vmatpush1.bf16.msra.mxu0 0
    %1819 = vmatprep.subr.bf16.mxu0 0
    %1820 = vmatpush1.bf16.msra.mxu0 0
    %1821 = vmatprep.subr.bf16.mxu0 0
    %1822 = vmatpush1.bf16.msra.mxu0 0
    %1823 = vmatprep.subr.bf16.mxu0 0
    %1824 = vmatpush1.bf16.msra.mxu0 0
    %1825 = vmatprep.subr.bf16.mxu0 0
    %1826 = vmatpush1.bf16.msra.mxu0 0
    %1827 = vmatprep.subr.bf16.mxu0 0
    %1828 = vmatpush1.bf16.msra.mxu0 0
    %1829 = vmatprep.subr.bf16.mxu0 0
    %1830 = vmatpush1.bf16.msra.mxu0 0
    %1831 = vmatprep.subr.bf16.mxu0 0
    %1832 = vmatpush1.bf16.msra.mxu0 0
    %1833 = vmatprep.mubr.bf16.mxu0 0
    %1834 = vmatmul.mubr.bf16.gmra.mrb[0].mxu0 %v842
    %v1835 = vpop.f32.mrb[0].mxu0
    %v1836 = vadd.f32 %v173, %v1835
    %v1837 = vpop.f32.mrb[0].mxu0
    %v1838 = vadd.f32 %v173, %v1837
    %v1839 = vpop.f32.mrb[0].mxu0
    %v1840 = vadd.f32 %v178, %v1839
    %v1841 = vpop.f32.mrb[0].mxu0
    %v1842 = vadd.f32 %v178, %v1841
    %1843 = vmatprep.mubr.bf16.mxu0 0
    %1844 = vmatmul.mubr.bf16.gmra.mrb[0].mxu0 %v845
    %v1845 = vpop.f32.mrb[0].mxu0
    %v1846 = vadd.f32 %v183, %v1845
    %v1847 = vpop.f32.mrb[0].mxu0
    %v1848 = vadd.f32 %v183, %v1847
    %v1849 = vpop.f32.mrb[0].mxu0
    %v1850 = vadd.f32 %v188, %v1849
    %v1851 = vpop.f32.mrb[0].mxu0
    %v1852 = vadd.f32 %v188, %v1851
    %1853 = vdwg.mxu0
    %1854 = vmatprep.subr.bf16.mxu0 %v623
    %1855 = vmatpush1.bf16.msra.mxu0 %v622
    %1856 = vmatprep.subr.bf16.mxu0 %v687
    %1857 = vmatpush1.bf16.msra.mxu0 %v686
    %1858 = vmatprep.subr.bf16.mxu0 0
    %1859 = vmatpush1.bf16.msra.mxu0 0
    %1860 = vmatprep.subr.bf16.mxu0 0
    %1861 = vmatpush1.bf16.msra.mxu0 0
    %1862 = vmatprep.subr.bf16.mxu0 0
    %1863 = vmatpush1.bf16.msra.mxu0 0
    %1864 = vmatprep.subr.bf16.mxu0 0
    %1865 = vmatpush1.bf16.msra.mxu0 0
    %1866 = vmatprep.subr.bf16.mxu0 0
    %1867 = vmatpush1.bf16.msra.mxu0 0
    %1868 = vmatprep.subr.bf16.mxu0 0
    %1869 = vmatpush1.bf16.msra.mxu0 0
    %1870 = vmatprep.subr.bf16.mxu0 0
    %1871 = vmatpush1.bf16.msra.mxu0 0
    %1872 = vmatprep.subr.bf16.mxu0 0
    %1873 = vmatpush1.bf16.msra.mxu0 0
    %1874 = vmatprep.subr.bf16.mxu0 0
    %1875 = vmatpush1.bf16.msra.mxu0 0
    %1876 = vmatprep.subr.bf16.mxu0 0
    %1877 = vmatpush1.bf16.msra.mxu0 0
    %1878 = vmatprep.subr.bf16.mxu0 0
    %1879 = vmatpush1.bf16.msra.mxu0 0
    %1880 = vmatprep.subr.bf16.mxu0 0
    %1881 = vmatpush1.bf16.msra.mxu0 0
    %1882 = vmatprep.subr.bf16.mxu0 0
    %1883 = vmatpush1.bf16.msra.mxu0 0
    %1884 = vmatprep.subr.bf16.mxu0 0
    %1885 = vmatpush1.bf16.msra.mxu0 0
    %1886 = vmatprep.mubr.bf16.mxu0 0
    %1887 = vmatmul.mubr.bf16.gmra.mrb[0].mxu0 %v842
    %v1888 = vpop.f32.mrb[0].mxu0
    %v1889 = vadd.f32 %v173, %v1888
    %v1890 = vpop.f32.mrb[0].mxu0
    %v1891 = vadd.f32 %v173, %v1890
    %v1892 = vpop.f32.mrb[0].mxu0
    %v1893 = vadd.f32 %v178, %v1892
    %v1894 = vpop.f32.mrb[0].mxu0
    %v1895 = vadd.f32 %v178, %v1894
    %1896 = vmatprep.mubr.bf16.mxu0 0
    %1897 = vmatmul.mubr.bf16.gmra.mrb[0].mxu0 %v845
    %v1898 = vpop.f32.mrb[0].mxu0
    %v1899 = vadd.f32 %v183, %v1898
    %v1900 = vpop.f32.mrb[0].mxu0
    %v1901 = vadd.f32 %v183, %v1900
    %v1902 = vpop.f32.mrb[0].mxu0
    %v1903 = vadd.f32 %v188, %v1902
    %v1904 = vpop.f32.mrb[0].mxu0
    %v1905 = vadd.f32 %v188, %v1904
    %1906 = vdwg.mxu0
    %1907 = vmatprep.subr.bf16.mxu0 %v625
    %1908 = vmatpush1.bf16.msra.mxu0 %v624
    %1909 = vmatprep.subr.bf16.mxu0 %v689
    %1910 = vmatpush1.bf16.msra.mxu0 %v688
    %1911 = vmatprep.subr.bf16.mxu0 0
    %1912 = vmatpush1.bf16.msra.mxu0 0
    %1913 = vmatprep.subr.bf16.mxu0 0
    %1914 = vmatpush1.bf16.msra.mxu0 0
    %1915 = vmatprep.subr.bf16.mxu0 0
    %1916 = vmatpush1.bf16.msra.mxu0 0
    %1917 = vmatprep.subr.bf16.mxu0 0
    %1918 = vmatpush1.bf16.msra.mxu0 0
    %1919 = vmatprep.subr.bf16.mxu0 0
    %1920 = vmatpush1.bf16.msra.mxu0 0
    %1921 = vmatprep.subr.bf16.mxu0 0
    %1922 = vmatpush1.bf16.msra.mxu0 0
    %1923 = vmatprep.subr.bf16.mxu0 0
    %1924 = vmatpush1.bf16.msra.mxu0 0
    %1925 = vmatprep.subr.bf16.mxu0 0
    %1926 = vmatpush1.bf16.msra.mxu0 0
    %1927 = vmatprep.subr.bf16.mxu0 0
    %1928 = vmatpush1.bf16.msra.mxu0 0
    %1929 = vmatprep.subr.bf16.mxu0 0
    %1930 = vmatpush1.bf16.msra.mxu0 0
    %1931 = vmatprep.subr.bf16.mxu0 0
    %1932 = vmatpush1.bf16.msra.mxu0 0
    %1933 = vmatprep.subr.bf16.mxu0 0
    %1934 = vmatpush1.bf16.msra.mxu0 0
    %1935 = vmatprep.subr.bf16.mxu0 0
    %1936 = vmatpush1.bf16.msra.mxu0 0
    %1937 = vmatprep.subr.bf16.mxu0 0
    %1938 = vmatpush1.bf16.msra.mxu0 0
    %1939 = vmatprep.mubr.bf16.mxu0 0
    %1940 = vmatmul.mubr.bf16.gmra.mrb[0].mxu0 %v842
    %v1941 = vpop.f32.mrb[0].mxu0
    %v1942 = vadd.f32 %v173, %v1941
    %v1943 = vpop.f32.mrb[0].mxu0
    %v1944 = vadd.f32 %v173, %v1943
    %v1945 = vpop.f32.mrb[0].mxu0
    %v1946 = vadd.f32 %v178, %v1945
    %v1947 = vpop.f32.mrb[0].mxu0
    %v1948 = vadd.f32 %v178, %v1947
    %1949 = vmatprep.mubr.bf16.mxu0 0
    %1950 = vmatmul.mubr.bf16.gmra.mrb[0].mxu0 %v845
    %v1951 = vpop.f32.mrb[0].mxu0
    %v1952 = vadd.f32 %v183, %v1951
    %v1953 = vpop.f32.mrb[0].mxu0
    %v1954 = vadd.f32 %v183, %v1953
    %v1955 = vpop.f32.mrb[0].mxu0
    %v1956 = vadd.f32 %v188, %v1955
    %v1957 = vpop.f32.mrb[0].mxu0
    %v1958 = vadd.f32 %v188, %v1957
    %1959 = vdwg.mxu0
    %1960 = vmatprep.subr.bf16.mxu0 %v627
    %1961 = vmatpush1.bf16.msra.mxu0 %v626
    %1962 = vmatprep.subr.bf16.mxu0 %v691
    %1963 = vmatpush1.bf16.msra.mxu0 %v690
    %1964 = vmatprep.subr.bf16.mxu0 0
    %1965 = vmatpush1.bf16.msra.mxu0 0
    %1966 = vmatprep.subr.bf16.mxu0 0
    %1967 = vmatpush1.bf16.msra.mxu0 0
    %1968 = vmatprep.subr.bf16.mxu0 0
    %1969 = vmatpush1.bf16.msra.mxu0 0
    %1970 = vmatprep.subr.bf16.mxu0 0
    %1971 = vmatpush1.bf16.msra.mxu0 0
    %1972 = vmatprep.subr.bf16.mxu0 0
    %1973 = vmatpush1.bf16.msra.mxu0 0
    %1974 = vmatprep.subr.bf16.mxu0 0
    %1975 = vmatpush1.bf16.msra.mxu0 0
    %1976 = vmatprep.subr.bf16.mxu0 0
    %1977 = vmatpush1.bf16.msra.mxu0 0
    %1978 = vmatprep.subr.bf16.mxu0 0
    %1979 = vmatpush1.bf16.msra.mxu0 0
    %1980 = vmatprep.subr.bf16.mxu0 0
    %1981 = vmatpush1.bf16.msra.mxu0 0
    %1982 = vmatprep.subr.bf16.mxu0 0
    %1983 = vmatpush1.bf16.msra.mxu0 0
    %1984 = vmatprep.subr.bf16.mxu0 0
    %1985 = vmatpush1.bf16.msra.mxu0 0
    %1986 = vmatprep.subr.bf16.mxu0 0
    %1987 = vmatpush1.bf16.msra.mxu0 0
    %1988 = vmatprep.subr.bf16.mxu0 0
    %1989 = vmatpush1.bf16.msra.mxu0 0
    %1990 = vmatprep.subr.bf16.mxu0 0
    %1991 = vmatpush1.bf16.msra.mxu0 0
    %1992 = vmatprep.mubr.bf16.mxu0 0
    %1993 = vmatmul.mubr.bf16.gmra.mrb[0].mxu0 %v842
    %v1994 = vpop.f32.mrb[0].mxu0
    %v1995 = vadd.f32 %v173, %v1994
    %v1996 = vpop.f32.mrb[0].mxu0
    %v1997 = vadd.f32 %v173, %v1996
    %v1998 = vpop.f32.mrb[0].mxu0
    %v1999 = vadd.f32 %v178, %v1998
    %v2000 = vpop.f32.mrb[0].mxu0
    %v2001 = vadd.f32 %v178, %v2000
    %2002 = vmatprep.mubr.bf16.mxu0 0
    %2003 = vmatmul.mubr.bf16.gmra.mrb[0].mxu0 %v845
    %v2004 = vpop.f32.mrb[0].mxu0
    %v2005 = vadd.f32 %v183, %v2004
    %v2006 = vpop.f32.mrb[0].mxu0
    %v2007 = vadd.f32 %v183, %v2006
    %v2008 = vpop.f32.mrb[0].mxu0
    %v2009 = vadd.f32 %v188, %v2008
    %v2010 = vpop.f32.mrb[0].mxu0
    %v2011 = vadd.f32 %v188, %v2010
    %2012 = vdwg.mxu0
    %2013 = vmatprep.subr.bf16.mxu0 %v629
    %2014 = vmatpush1.bf16.msra.mxu0 %v628
    %2015 = vmatprep.subr.bf16.mxu0 %v693
    %2016 = vmatpush1.bf16.msra.mxu0 %v692
    %2017 = vmatprep.subr.bf16.mxu0 0
    %2018 = vmatpush1.bf16.msra.mxu0 0
    %2019 = vmatprep.subr.bf16.mxu0 0
    %2020 = vmatpush1.bf16.msra.mxu0 0
    %2021 = vmatprep.subr.bf16.mxu0 0
    %2022 = vmatpush1.bf16.msra.mxu0 0
    %2023 = vmatprep.subr.bf16.mxu0 0
    %2024 = vmatpush1.bf16.msra.mxu0 0
    %2025 = vmatprep.subr.bf16.mxu0 0
    %2026 = vmatpush1.bf16.msra.mxu0 0
    %2027 = vmatprep.subr.bf16.mxu0 0
    %2028 = vmatpush1.bf16.msra.mxu0 0
    %2029 = vmatprep.subr.bf16.mxu0 0
    %2030 = vmatpush1.bf16.msra.mxu0 0
    %2031 = vmatprep.subr.bf16.mxu0 0
    %2032 = vmatpush1.bf16.msra.mxu0 0
    %2033 = vmatprep.subr.bf16.mxu0 0
    %2034 = vmatpush1.bf16.msra.mxu0 0
    %2035 = vmatprep.subr.bf16.mxu0 0
    %2036 = vmatpush1.bf16.msra.mxu0 0
    %2037 = vmatprep.subr.bf16.mxu0 0
    %2038 = vmatpush1.bf16.msra.mxu0 0
    %2039 = vmatprep.subr.bf16.mxu0 0
    %2040 = vmatpush1.bf16.msra.mxu0 0
    %2041 = vmatprep.subr.bf16.mxu0 0
    %2042 = vmatpush1.bf16.msra.mxu0 0
    %2043 = vmatprep.subr.bf16.mxu0 0
    %2044 = vmatpush1.bf16.msra.mxu0 0
    %2045 = vmatprep.mubr.bf16.mxu0 0
    %2046 = vmatmul.mubr.bf16.gmra.mrb[0].mxu0 %v842
    %v2047 = vpop.f32.mrb[0].mxu0
    %v2048 = vadd.f32 %v173, %v2047
    %v2049 = vpop.f32.mrb[0].mxu0
    %v2050 = vadd.f32 %v173, %v2049
    %v2051 = vpop.f32.mrb[0].mxu0
    %v2052 = vadd.f32 %v178, %v2051
    %v2053 = vpop.f32.mrb[0].mxu0
    %v2054 = vadd.f32 %v178, %v2053
    %2055 = vmatprep.mubr.bf16.mxu0 0
    %2056 = vmatmul.mubr.bf16.gmra.mrb[0].mxu0 %v845
    %v2057 = vpop.f32.mrb[0].mxu0
    %v2058 = vadd.f32 %v183, %v2057
    %v2059 = vpop.f32.mrb[0].mxu0
    %v2060 = vadd.f32 %v183, %v2059
    %v2061 = vpop.f32.mrb[0].mxu0
    %v2062 = vadd.f32 %v188, %v2061
    %v2063 = vpop.f32.mrb[0].mxu0
    %v2064 = vadd.f32 %v188, %v2063
    %2065 = vdwg.mxu0
    %2066 = vmatprep.subr.bf16.mxu0 %v631
    %2067 = vmatpush1.bf16.msra.mxu0 %v630
    %2068 = vmatprep.subr.bf16.mxu0 %v695
    %2069 = vmatpush1.bf16.msra.mxu0 %v694
    %2070 = vmatprep.subr.bf16.mxu0 0
    %2071 = vmatpush1.bf16.msra.mxu0 0
    %2072 = vmatprep.subr.bf16.mxu0 0
    %2073 = vmatpush1.bf16.msra.mxu0 0
    %2074 = vmatprep.subr.bf16.mxu0 0
    %2075 = vmatpush1.bf16.msra.mxu0 0
    %2076 = vmatprep.subr.bf16.mxu0 0
    %2077 = vmatpush1.bf16.msra.mxu0 0
    %2078 = vmatprep.subr.bf16.mxu0 0
    %2079 = vmatpush1.bf16.msra.mxu0 0
    %2080 = vmatprep.subr.bf16.mxu0 0
    %2081 = vmatpush1.bf16.msra.mxu0 0
    %2082 = vmatprep.subr.bf16.mxu0 0
    %2083 = vmatpush1.bf16.msra.mxu0 0
    %2084 = vmatprep.subr.bf16.mxu0 0
    %2085 = vmatpush1.bf16.msra.mxu0 0
    %2086 = vmatprep.subr.bf16.mxu0 0
    %2087 = vmatpush1.bf16.msra.mxu0 0
    %2088 = vmatprep.subr.bf16.mxu0 0
    %2089 = vmatpush1.bf16.msra.mxu0 0
    %2090 = vmatprep.subr.bf16.mxu0 0
    %2091 = vmatpush1.bf16.msra.mxu0 0
    %2092 = vmatprep.subr.bf16.mxu0 0
    %2093 = vmatpush1.bf16.msra.mxu0 0
    %2094 = vmatprep.subr.bf16.mxu0 0
    %2095 = vmatpush1.bf16.msra.mxu0 0
    %2096 = vmatprep.subr.bf16.mxu0 0
    %2097 = vmatpush1.bf16.msra.mxu0 0
    %2098 = vmatprep.mubr.bf16.mxu0 0
    %2099 = vmatmul.mubr.bf16.gmra.mrb[0].mxu0 %v842
    %v2100 = vpop.f32.mrb[0].mxu0
    %v2101 = vadd.f32 %v173, %v2100
    %v2102 = vpop.f32.mrb[0].mxu0
    %v2103 = vadd.f32 %v173, %v2102
    %v2104 = vpop.f32.mrb[0].mxu0
    %v2105 = vadd.f32 %v178, %v2104
    %v2106 = vpop.f32.mrb[0].mxu0
    %v2107 = vadd.f32 %v178, %v2106
    %2108 = vmatprep.mubr.bf16.mxu0 0
    %2109 = vmatmul.mubr.bf16.gmra.mrb[0].mxu0 %v845
    %v2110 = vpop.f32.mrb[0].mxu0
    %v2111 = vadd.f32 %v183, %v2110
    %v2112 = vpop.f32.mrb[0].mxu0
    %v2113 = vadd.f32 %v183, %v2112
    %v2114 = vpop.f32.mrb[0].mxu0
    %v2115 = vadd.f32 %v188, %v2114
    %v2116 = vpop.f32.mrb[0].mxu0
    %v2117 = vadd.f32 %v188, %v2116
    %2118 = vdwg.mxu0
    %2119 = vmatprep.subr.bf16.mxu0 %v633
    %2120 = vmatpush1.bf16.msra.mxu0 %v632
    %2121 = vmatprep.subr.bf16.mxu0 %v697
    %2122 = vmatpush1.bf16.msra.mxu0 %v696
    %2123 = vmatprep.subr.bf16.mxu0 0
    %2124 = vmatpush1.bf16.msra.mxu0 0
    %2125 = vmatprep.subr.bf16.mxu0 0
    %2126 = vmatpush1.bf16.msra.mxu0 0
    %2127 = vmatprep.subr.bf16.mxu0 0
    %2128 = vmatpush1.bf16.msra.mxu0 0
    %2129 = vmatprep.subr.bf16.mxu0 0
    %2130 = vmatpush1.bf16.msra.mxu0 0
    %2131 = vmatprep.subr.bf16.mxu0 0
    %2132 = vmatpush1.bf16.msra.mxu0 0
    %2133 = vmatprep.subr.bf16.mxu0 0
    %2134 = vmatpush1.bf16.msra.mxu0 0
    %2135 = vmatprep.subr.bf16.mxu0 0
    %2136 = vmatpush1.bf16.msra.mxu0 0
    %2137 = vmatprep.subr.bf16.mxu0 0
    %2138 = vmatpush1.bf16.msra.mxu0 0
    %2139 = vmatprep.subr.bf16.mxu0 0
    %2140 = vmatpush1.bf16.msra.mxu0 0
    %2141 = vmatprep.subr.bf16.mxu0 0
    %2142 = vmatpush1.bf16.msra.mxu0 0
    %2143 = vmatprep.subr.bf16.mxu0 0
    %2144 = vmatpush1.bf16.msra.mxu0 0
    %2145 = vmatprep.subr.bf16.mxu0 0
    %2146 = vmatpush1.bf16.msra.mxu0 0
    %2147 = vmatprep.subr.bf16.mxu0 0
    %2148 = vmatpush1.bf16.msra.mxu0 0
    %2149 = vmatprep.subr.bf16.mxu0 0
    %2150 = vmatpush1.bf16.msra.mxu0 0
    %2151 = vmatprep.mubr.bf16.mxu0 0
    %2152 = vmatmul.mubr.bf16.gmra.mrb[0].mxu0 %v842
    %v2153 = vpop.f32.mrb[0].mxu0
    %v2154 = vadd.f32 %v173, %v2153
    %v2155 = vpop.f32.mrb[0].mxu0
    %v2156 = vadd.f32 %v173, %v2155
    %v2157 = vpop.f32.mrb[0].mxu0
    %v2158 = vadd.f32 %v178, %v2157
    %v2159 = vpop.f32.mrb[0].mxu0
    %v2160 = vadd.f32 %v178, %v2159
    %2161 = vmatprep.mubr.bf16.mxu0 0
    %2162 = vmatmul.mubr.bf16.gmra.mrb[0].mxu0 %v845
    %v2163 = vpop.f32.mrb[0].mxu0
    %v2164 = vadd.f32 %v183, %v2163
    %v2165 = vpop.f32.mrb[0].mxu0
    %v2166 = vadd.f32 %v183, %v2165
    %v2167 = vpop.f32.mrb[0].mxu0
    %v2168 = vadd.f32 %v188, %v2167
    %v2169 = vpop.f32.mrb[0].mxu0
    %v2170 = vadd.f32 %v188, %v2169
    %2171 = vdwg.mxu0
    %2172 = vmatprep.subr.bf16.mxu0 %v635
    %2173 = vmatpush1.bf16.msra.mxu0 %v634
    %2174 = vmatprep.subr.bf16.mxu0 %v699
    %2175 = vmatpush1.bf16.msra.mxu0 %v698
    %2176 = vmatprep.subr.bf16.mxu0 0
    %2177 = vmatpush1.bf16.msra.mxu0 0
    %2178 = vmatprep.subr.bf16.mxu0 0
    %2179 = vmatpush1.bf16.msra.mxu0 0
    %2180 = vmatprep.subr.bf16.mxu0 0
    %2181 = vmatpush1.bf16.msra.mxu0 0
    %2182 = vmatprep.subr.bf16.mxu0 0
    %2183 = vmatpush1.bf16.msra.mxu0 0
    %2184 = vmatprep.subr.bf16.mxu0 0
    %2185 = vmatpush1.bf16.msra.mxu0 0
    %2186 = vmatprep.subr.bf16.mxu0 0
    %2187 = vmatpush1.bf16.msra.mxu0 0
    %2188 = vmatprep.subr.bf16.mxu0 0
    %2189 = vmatpush1.bf16.msra.mxu0 0
    %2190 = vmatprep.subr.bf16.mxu0 0
    %2191 = vmatpush1.bf16.msra.mxu0 0
    %2192 = vmatprep.subr.bf16.mxu0 0
    %2193 = vmatpush1.bf16.msra.mxu0 0
    %2194 = vmatprep.subr.bf16.mxu0 0
    %2195 = vmatpush1.bf16.msra.mxu0 0
    %2196 = vmatprep.subr.bf16.mxu0 0
    %2197 = vmatpush1.bf16.msra.mxu0 0
    %2198 = vmatprep.subr.bf16.mxu0 0
    %2199 = vmatpush1.bf16.msra.mxu0 0
    %2200 = vmatprep.subr.bf16.mxu0 0
    %2201 = vmatpush1.bf16.msra.mxu0 0
    %2202 = vmatprep.subr.bf16.mxu0 0
    %2203 = vmatpush1.bf16.msra.mxu0 0
    %2204 = vmatprep.mubr.bf16.mxu0 0
    %2205 = vmatmul.mubr.bf16.gmra.mrb[0].mxu0 %v842
    %v2206 = vpop.f32.mrb[0].mxu0
    %v2207 = vadd.f32 %v173, %v2206
    %v2208 = vpop.f32.mrb[0].mxu0
    %v2209 = vadd.f32 %v173, %v2208
    %v2210 = vpop.f32.mrb[0].mxu0
    %v2211 = vadd.f32 %v178, %v2210
    %v2212 = vpop.f32.mrb[0].mxu0
    %v2213 = vadd.f32 %v178, %v2212
    %2214 = vmatprep.mubr.bf16.mxu0 0
    %2215 = vmatmul.mubr.bf16.gmra.mrb[0].mxu0 %v845
    %v2216 = vpop.f32.mrb[0].mxu0
    %v2217 = vadd.f32 %v183, %v2216
    %v2218 = vpop.f32.mrb[0].mxu0
    %v2219 = vadd.f32 %v183, %v2218
    %v2220 = vpop.f32.mrb[0].mxu0
    %v2221 = vadd.f32 %v188, %v2220
    %v2222 = vpop.f32.mrb[0].mxu0
    %v2223 = vadd.f32 %v188, %v2222
    %2224 = vdwg.mxu0
    %2225 = vmatprep.subr.bf16.mxu0 %v637
    %2226 = vmatpush1.bf16.msra.mxu0 %v636
    %2227 = vmatprep.subr.bf16.mxu0 %v701
    %2228 = vmatpush1.bf16.msra.mxu0 %v700
    %2229 = vmatprep.subr.bf16.mxu0 0
    %2230 = vmatpush1.bf16.msra.mxu0 0
    %2231 = vmatprep.subr.bf16.mxu0 0
    %2232 = vmatpush1.bf16.msra.mxu0 0
    %2233 = vmatprep.subr.bf16.mxu0 0
    %2234 = vmatpush1.bf16.msra.mxu0 0
    %2235 = vmatprep.subr.bf16.mxu0 0
    %2236 = vmatpush1.bf16.msra.mxu0 0
    %2237 = vmatprep.subr.bf16.mxu0 0
    %2238 = vmatpush1.bf16.msra.mxu0 0
    %2239 = vmatprep.subr.bf16.mxu0 0
    %2240 = vmatpush1.bf16.msra.mxu0 0
    %2241 = vmatprep.subr.bf16.mxu0 0
    %2242 = vmatpush1.bf16.msra.mxu0 0
    %2243 = vmatprep.subr.bf16.mxu0 0
    %2244 = vmatpush1.bf16.msra.mxu0 0
    %2245 = vmatprep.subr.bf16.mxu0 0
    %2246 = vmatpush1.bf16.msra.mxu0 0
    %2247 = vmatprep.subr.bf16.mxu0 0
    %2248 = vmatpush1.bf16.msra.mxu0 0
    %2249 = vmatprep.subr.bf16.mxu0 0
    %2250 = vmatpush1.bf16.msra.mxu0 0
    %2251 = vmatprep.subr.bf16.mxu0 0
    %2252 = vmatpush1.bf16.msra.mxu0 0
    %2253 = vmatprep.subr.bf16.mxu0 0
    %2254 = vmatpush1.bf16.msra.mxu0 0
    %2255 = vmatprep.subr.bf16.mxu0 0
    %2256 = vmatpush1.bf16.msra.mxu0 0
    %2257 = vmatprep.mubr.bf16.mxu0 0
    %2258 = vmatmul.mubr.bf16.gmra.mrb[0].mxu0 %v842
    %v2259 = vpop.f32.mrb[0].mxu0
    %v2260 = vadd.f32 %v173, %v2259
    %v2261 = vpop.f32.mrb[0].mxu0
    %v2262 = vadd.f32 %v173, %v2261
    %v2263 = vpop.f32.mrb[0].mxu0
    %v2264 = vadd.f32 %v178, %v2263
    %v2265 = vpop.f32.mrb[0].mxu0
    %v2266 = vadd.f32 %v178, %v2265
    %2267 = vmatprep.mubr.bf16.mxu0 0
    %2268 = vmatmul.mubr.bf16.gmra.mrb[0].mxu0 %v845
    %v2269 = vpop.f32.mrb[0].mxu0
    %v2270 = vadd.f32 %v183, %v2269
    %v2271 = vpop.f32.mrb[0].mxu0
    %v2272 = vadd.f32 %v183, %v2271
    %v2273 = vpop.f32.mrb[0].mxu0
    %v2274 = vadd.f32 %v188, %v2273
    %v2275 = vpop.f32.mrb[0].mxu0
    %v2276 = vadd.f32 %v188, %v2275
    %2277 = vdwg.mxu0
    %2278 = vmatprep.subr.bf16.mxu0 %v639
    %2279 = vmatpush1.bf16.msra.mxu0 %v638
    %2280 = vmatprep.subr.bf16.mxu0 %v703
    %2281 = vmatpush1.bf16.msra.mxu0 %v702
    %2282 = vmatprep.subr.bf16.mxu0 0
    %2283 = vmatpush1.bf16.msra.mxu0 0
    %2284 = vmatprep.subr.bf16.mxu0 0
    %2285 = vmatpush1.bf16.msra.mxu0 0
    %2286 = vmatprep.subr.bf16.mxu0 0
    %2287 = vmatpush1.bf16.msra.mxu0 0
    %2288 = vmatprep.subr.bf16.mxu0 0
    %2289 = vmatpush1.bf16.msra.mxu0 0
    %2290 = vmatprep.subr.bf16.mxu0 0
    %2291 = vmatpush1.bf16.msra.mxu0 0
    %2292 = vmatprep.subr.bf16.mxu0 0
    %2293 = vmatpush1.bf16.msra.mxu0 0
    %2294 = vmatprep.subr.bf16.mxu0 0
    %2295 = vmatpush1.bf16.msra.mxu0 0
    %2296 = vmatprep.subr.bf16.mxu0 0
    %2297 = vmatpush1.bf16.msra.mxu0 0
    %2298 = vmatprep.subr.bf16.mxu0 0
    %2299 = vmatpush1.bf16.msra.mxu0 0
    %2300 = vmatprep.subr.bf16.mxu0 0
    %2301 = vmatpush1.bf16.msra.mxu0 0
    %2302 = vmatprep.subr.bf16.mxu0 0
    %2303 = vmatpush1.bf16.msra.mxu0 0
    %2304 = vmatprep.subr.bf16.mxu0 0
    %2305 = vmatpush1.bf16.msra.mxu0 0
    %2306 = vmatprep.subr.bf16.mxu0 0
    %2307 = vmatpush1.bf16.msra.mxu0 0
    %2308 = vmatprep.subr.bf16.mxu0 0
    %2309 = vmatpush1.bf16.msra.mxu0 0
    %2310 = vmatprep.mubr.bf16.mxu0 0
    %2311 = vmatmul.mubr.bf16.gmra.mrb[0].mxu0 %v842
    %v2312 = vpop.f32.mrb[0].mxu0
    %v2313 = vadd.f32 %v173, %v2312
    %v2314 = vpop.f32.mrb[0].mxu0
    %v2315 = vadd.f32 %v173, %v2314
    %v2316 = vpop.f32.mrb[0].mxu0
    %v2317 = vadd.f32 %v178, %v2316
    %v2318 = vpop.f32.mrb[0].mxu0
    %v2319 = vadd.f32 %v178, %v2318
    %2320 = vmatprep.mubr.bf16.mxu0 0
    %2321 = vmatmul.mubr.bf16.gmra.mrb[0].mxu0 %v845
    %v2322 = vpop.f32.mrb[0].mxu0
    %v2323 = vadd.f32 %v183, %v2322
    %v2324 = vpop.f32.mrb[0].mxu0
    %v2325 = vadd.f32 %v183, %v2324
    %v2326 = vpop.f32.mrb[0].mxu0
    %v2327 = vadd.f32 %v188, %v2326
    %v2328 = vpop.f32.mrb[0].mxu0
    %v2329 = vadd.f32 %v188, %v2328
    %2330 = vdwg.mxu0
    %2331 = vmatprep.subr.bf16.mxu0 %v641
    %2332 = vmatpush1.bf16.msra.mxu0 %v640
    %2333 = vmatprep.subr.bf16.mxu0 %v705
    %2334 = vmatpush1.bf16.msra.mxu0 %v704
    %2335 = vmatprep.subr.bf16.mxu0 0
    %2336 = vmatpush1.bf16.msra.mxu0 0
    %2337 = vmatprep.subr.bf16.mxu0 0
    %2338 = vmatpush1.bf16.msra.mxu0 0
    %2339 = vmatprep.subr.bf16.mxu0 0
    %2340 = vmatpush1.bf16.msra.mxu0 0
    %2341 = vmatprep.subr.bf16.mxu0 0
    %2342 = vmatpush1.bf16.msra.mxu0 0
    %2343 = vmatprep.subr.bf16.mxu0 0
    %2344 = vmatpush1.bf16.msra.mxu0 0
    %2345 = vmatprep.subr.bf16.mxu0 0
    %2346 = vmatpush1.bf16.msra.mxu0 0
    %2347 = vmatprep.subr.bf16.mxu0 0
    %2348 = vmatpush1.bf16.msra.mxu0 0
    %2349 = vmatprep.subr.bf16.mxu0 0
    %2350 = vmatpush1.bf16.msra.mxu0 0
    %2351 = vmatprep.subr.bf16.mxu0 0
    %2352 = vmatpush1.bf16.msra.mxu0 0
    %2353 = vmatprep.subr.bf16.mxu0 0
    %2354 = vmatpush1.bf16.msra.mxu0 0
    %2355 = vmatprep.subr.bf16.mxu0 0
    %2356 = vmatpush1.bf16.msra.mxu0 0
    %2357 = vmatprep.subr.bf16.mxu0 0
    %2358 = vmatpush1.bf16.msra.mxu0 0
    %2359 = vmatprep.subr.bf16.mxu0 0
    %2360 = vmatpush1.bf16.msra.mxu0 0
    %2361 = vmatprep.subr.bf16.mxu0 0
    %2362 = vmatpush1.bf16.msra.mxu0 0
    %2363 = vmatprep.mubr.bf16.mxu0 0
    %2364 = vmatmul.mubr.bf16.gmra.mrb[0].mxu0 %v842
    %v2365 = vpop.f32.mrb[0].mxu0
    %v2366 = vadd.f32 %v173, %v2365
    %v2367 = vpop.f32.mrb[0].mxu0
    %v2368 = vadd.f32 %v173, %v2367
    %v2369 = vpop.f32.mrb[0].mxu0
    %v2370 = vadd.f32 %v178, %v2369
    %v2371 = vpop.f32.mrb[0].mxu0
    %v2372 = vadd.f32 %v178, %v2371
    %2373 = vmatprep.mubr.bf16.mxu0 0
    %2374 = vmatmul.mubr.bf16.gmra.mrb[0].mxu0 %v845
    %v2375 = vpop.f32.mrb[0].mxu0
    %v2376 = vadd.f32 %v183, %v2375
    %v2377 = vpop.f32.mrb[0].mxu0
    %v2378 = vadd.f32 %v183, %v2377
    %v2379 = vpop.f32.mrb[0].mxu0
    %v2380 = vadd.f32 %v188, %v2379
    %v2381 = vpop.f32.mrb[0].mxu0
    %v2382 = vadd.f32 %v188, %v2381
    %2383 = vdwg.mxu0
    %2384 = vmatprep.subr.bf16.mxu0 %v643
    %2385 = vmatpush1.bf16.msra.mxu0 %v642
    %2386 = vmatprep.subr.bf16.mxu0 %v707
    %2387 = vmatpush1.bf16.msra.mxu0 %v706
    %2388 = vmatprep.subr.bf16.mxu0 0
    %2389 = vmatpush1.bf16.msra.mxu0 0
    %2390 = vmatprep.subr.bf16.mxu0 0
    %2391 = vmatpush1.bf16.msra.mxu0 0
    %2392 = vmatprep.subr.bf16.mxu0 0
    %2393 = vmatpush1.bf16.msra.mxu0 0
    %2394 = vmatprep.subr.bf16.mxu0 0
    %2395 = vmatpush1.bf16.msra.mxu0 0
    %2396 = vmatprep.subr.bf16.mxu0 0
    %2397 = vmatpush1.bf16.msra.mxu0 0
    %2398 = vmatprep.subr.bf16.mxu0 0
    %2399 = vmatpush1.bf16.msra.mxu0 0
    %2400 = vmatprep.subr.bf16.mxu0 0
    %2401 = vmatpush1.bf16.msra.mxu0 0
    %2402 = vmatprep.subr.bf16.mxu0 0
    %2403 = vmatpush1.bf16.msra.mxu0 0
    %2404 = vmatprep.subr.bf16.mxu0 0
    %2405 = vmatpush1.bf16.msra.mxu0 0
    %2406 = vmatprep.subr.bf16.mxu0 0
    %2407 = vmatpush1.bf16.msra.mxu0 0
    %2408 = vmatprep.subr.bf16.mxu0 0
    %2409 = vmatpush1.bf16.msra.mxu0 0
    %2410 = vmatprep.subr.bf16.mxu0 0
    %2411 = vmatpush1.bf16.msra.mxu0 0
    %2412 = vmatprep.subr.bf16.mxu0 0
    %2413 = vmatpush1.bf16.msra.mxu0 0
    %2414 = vmatprep.subr.bf16.mxu0 0
    %2415 = vmatpush1.bf16.msra.mxu0 0
    %2416 = vmatprep.mubr.bf16.mxu0 0
    %2417 = vmatmul.mubr.bf16.gmra.mrb[0].mxu0 %v842
    %v2418 = vpop.f32.mrb[0].mxu0
    %v2419 = vadd.f32 %v173, %v2418
    %v2420 = vpop.f32.mrb[0].mxu0
    %v2421 = vadd.f32 %v173, %v2420
    %v2422 = vpop.f32.mrb[0].mxu0
    %v2423 = vadd.f32 %v178, %v2422
    %v2424 = vpop.f32.mrb[0].mxu0
    %v2425 = vadd.f32 %v178, %v2424
    %2426 = vmatprep.mubr.bf16.mxu0 0
    %2427 = vmatmul.mubr.bf16.gmra.mrb[0].mxu0 %v845
    %v2428 = vpop.f32.mrb[0].mxu0
    %v2429 = vadd.f32 %v183, %v2428
    %v2430 = vpop.f32.mrb[0].mxu0
    %v2431 = vadd.f32 %v183, %v2430
    %v2432 = vpop.f32.mrb[0].mxu0
    %v2433 = vadd.f32 %v188, %v2432
    %v2434 = vpop.f32.mrb[0].mxu0
    %v2435 = vadd.f32 %v188, %v2434
    %2436 = vdwg.mxu0
    %2437 = vmatprep.subr.bf16.mxu0 %v645
    %2438 = vmatpush1.bf16.msra.mxu0 %v644
    %2439 = vmatprep.subr.bf16.mxu0 %v709
    %2440 = vmatpush1.bf16.msra.mxu0 %v708
    %2441 = vmatprep.subr.bf16.mxu0 0
    %2442 = vmatpush1.bf16.msra.mxu0 0
    %2443 = vmatprep.subr.bf16.mxu0 0
    %2444 = vmatpush1.bf16.msra.mxu0 0
    %2445 = vmatprep.subr.bf16.mxu0 0
    %2446 = vmatpush1.bf16.msra.mxu0 0
    %2447 = vmatprep.subr.bf16.mxu0 0
    %2448 = vmatpush1.bf16.msra.mxu0 0
    %2449 = vmatprep.subr.bf16.mxu0 0
    %2450 = vmatpush1.bf16.msra.mxu0 0
    %2451 = vmatprep.subr.bf16.mxu0 0
    %2452 = vmatpush1.bf16.msra.mxu0 0
    %2453 = vmatprep.subr.bf16.mxu0 0
    %2454 = vmatpush1.bf16.msra.mxu0 0
    %2455 = vmatprep.subr.bf16.mxu0 0
    %2456 = vmatpush1.bf16.msra.mxu0 0
    %2457 = vmatprep.subr.bf16.mxu0 0
    %2458 = vmatpush1.bf16.msra.mxu0 0
    %2459 = vmatprep.subr.bf16.mxu0 0
    %2460 = vmatpush1.bf16.msra.mxu0 0
    %2461 = vmatprep.subr.bf16.mxu0 0
    %2462 = vmatpush1.bf16.msra.mxu0 0
    %2463 = vmatprep.subr.bf16.mxu0 0
    %2464 = vmatpush1.bf16.msra.mxu0 0
    %2465 = vmatprep.subr.bf16.mxu0 0
    %2466 = vmatpush1.bf16.msra.mxu0 0
    %2467 = vmatprep.subr.bf16.mxu0 0
    %2468 = vmatpush1.bf16.msra.mxu0 0
    %2469 = vmatprep.mubr.bf16.mxu0 0
    %2470 = vmatmul.mubr.bf16.gmra.mrb[0].mxu0 %v842
    %v2471 = vpop.f32.mrb[0].mxu0
    %v2472 = vadd.f32 %v173, %v2471
    %v2473 = vpop.f32.mrb[0].mxu0
    %v2474 = vadd.f32 %v173, %v2473
    %v2475 = vpop.f32.mrb[0].mxu0
    %v2476 = vadd.f32 %v178, %v2475
    %v2477 = vpop.f32.mrb[0].mxu0
    %v2478 = vadd.f32 %v178, %v2477
    %2479 = vmatprep.mubr.bf16.mxu0 0
    %2480 = vmatmul.mubr.bf16.gmra.mrb[0].mxu0 %v845
    %v2481 = vpop.f32.mrb[0].mxu0
    %v2482 = vadd.f32 %v183, %v2481
    %v2483 = vpop.f32.mrb[0].mxu0
    %v2484 = vadd.f32 %v183, %v2483
    %v2485 = vpop.f32.mrb[0].mxu0
    %v2486 = vadd.f32 %v188, %v2485
    %v2487 = vpop.f32.mrb[0].mxu0
    %v2488 = vadd.f32 %v188, %v2487
    %2489 = vdwg.mxu0
    %2490 = vmatprep.subr.bf16.mxu0 %v647
    %2491 = vmatpush1.bf16.msra.mxu0 %v646
    %2492 = vmatprep.subr.bf16.mxu0 %v711
    %2493 = vmatpush1.bf16.msra.mxu0 %v710
    %2494 = vmatprep.subr.bf16.mxu0 0
    %2495 = vmatpush1.bf16.msra.mxu0 0
    %2496 = vmatprep.subr.bf16.mxu0 0
    %2497 = vmatpush1.bf16.msra.mxu0 0
    %2498 = vmatprep.subr.bf16.mxu0 0
    %2499 = vmatpush1.bf16.msra.mxu0 0
    %2500 = vmatprep.subr.bf16.mxu0 0
    %2501 = vmatpush1.bf16.msra.mxu0 0
    %2502 = vmatprep.subr.bf16.mxu0 0
    %2503 = vmatpush1.bf16.msra.mxu0 0
    %2504 = vmatprep.subr.bf16.mxu0 0
    %2505 = vmatpush1.bf16.msra.mxu0 0
    %2506 = vmatprep.subr.bf16.mxu0 0
    %2507 = vmatpush1.bf16.msra.mxu0 0
    %2508 = vmatprep.subr.bf16.mxu0 0
    %2509 = vmatpush1.bf16.msra.mxu0 0
    %2510 = vmatprep.subr.bf16.mxu0 0
    %2511 = vmatpush1.bf16.msra.mxu0 0
    %2512 = vmatprep.subr.bf16.mxu0 0
    %2513 = vmatpush1.bf16.msra.mxu0 0
    %2514 = vmatprep.subr.bf16.mxu0 0
    %2515 = vmatpush1.bf16.msra.mxu0 0
    %2516 = vmatprep.subr.bf16.mxu0 0
    %2517 = vmatpush1.bf16.msra.mxu0 0
    %2518 = vmatprep.subr.bf16.mxu0 0
    %2519 = vmatpush1.bf16.msra.mxu0 0
    %2520 = vmatprep.subr.bf16.mxu0 0
    %2521 = vmatpush1.bf16.msra.mxu0 0
    %2522 = vmatprep.mubr.bf16.mxu0 0
    %2523 = vmatmul.mubr.bf16.gmra.mrb[0].mxu0 %v842
    %v2524 = vpop.f32.mrb[0].mxu0
    %v2525 = vadd.f32 %v173, %v2524
    %v2526 = vpop.f32.mrb[0].mxu0
    %v2527 = vadd.f32 %v173, %v2526
    %v2528 = vpop.f32.mrb[0].mxu0
    %v2529 = vadd.f32 %v178, %v2528
    %v2530 = vpop.f32.mrb[0].mxu0
    %v2531 = vadd.f32 %v178, %v2530
    %2532 = vmatprep.mubr.bf16.mxu0 0
    %2533 = vmatmul.mubr.bf16.gmra.mrb[0].mxu0 %v845
    %v2534 = vpop.f32.mrb[0].mxu0
    %v2535 = vadd.f32 %v183, %v2534
    %v2536 = vpop.f32.mrb[0].mxu0
    %v2537 = vadd.f32 %v183, %v2536
    %v2538 = vpop.f32.mrb[0].mxu0
    %v2539 = vadd.f32 %v188, %v2538
    %v2540 = vpop.f32.mrb[0].mxu0
    %v2541 = vadd.f32 %v188, %v2540
    %2542 = vdwg.mxu0
    %v2543 = vmax.f32 %v882, 0.0
    %v2544 = vmax.f32 %v884, 0.0
    %v2545 = vmax.f32 %v935, 0.0
    %v2546 = vmax.f32 %v937, 0.0
    %v2547 = vmax.f32 %v988, 0.0
    %v2548 = vmax.f32 %v990, 0.0
    %v2549 = vmax.f32 %v1041, 0.0
    %v2550 = vmax.f32 %v1043, 0.0
    %v2551 = vmax.f32 %v1094, 0.0
    %v2552 = vmax.f32 %v1096, 0.0
    %v2553 = vmax.f32 %v1147, 0.0
    %v2554 = vmax.f32 %v1149, 0.0
    %v2555 = vmax.f32 %v1200, 0.0
    %v2556 = vmax.f32 %v1202, 0.0
    %v2557 = vmax.f32 %v1253, 0.0
    %v2558 = vmax.f32 %v1255, 0.0
    %v2559 = vmax.f32 %v1306, 0.0
    %v2560 = vmax.f32 %v1308, 0.0
    %v2561 = vmax.f32 %v1359, 0.0
    %v2562 = vmax.f32 %v1361, 0.0
    %v2563 = vmax.f32 %v1412, 0.0
    %v2564 = vmax.f32 %v1414, 0.0
    %v2565 = vmax.f32 %v1465, 0.0
    %v2566 = vmax.f32 %v1467, 0.0
    %v2567 = vmax.f32 %v1518, 0.0
    %v2568 = vmax.f32 %v1520, 0.0
    %v2569 = vmax.f32 %v1571, 0.0
    %v2570 = vmax.f32 %v1573, 0.0
    %v2571 = vmax.f32 %v1624, 0.0
    %v2572 = vmax.f32 %v1626, 0.0
    %v2573 = vmax.f32 %v1677, 0.0
    %v2574 = vmax.f32 %v1679, 0.0
    %v2575 = vmax.f32 %v1730, 0.0
    %v2576 = vmax.f32 %v1732, 0.0
    %v2577 = vmax.f32 %v1783, 0.0
    %v2578 = vmax.f32 %v1785, 0.0
    %v2579 = vmax.f32 %v1836, 0.0
    %v2580 = vmax.f32 %v1838, 0.0
    %v2581 = vmax.f32 %v1889, 0.0
    %v2582 = vmax.f32 %v1891, 0.0
    %v2583 = vmax.f32 %v1942, 0.0
    %v2584 = vmax.f32 %v1944, 0.0
    %v2585 = vmax.f32 %v1995, 0.0
    %v2586 = vmax.f32 %v1997, 0.0
    %v2587 = vmax.f32 %v2048, 0.0
    %v2588 = vmax.f32 %v2050, 0.0
    %v2589 = vmax.f32 %v2101, 0.0
    %v2590 = vmax.f32 %v2103, 0.0
    %v2591 = vmax.f32 %v2154, 0.0
    %v2592 = vmax.f32 %v2156, 0.0
    %v2593 = vmax.f32 %v2207, 0.0
    %v2594 = vmax.f32 %v2209, 0.0
    %v2595 = vmax.f32 %v2260, 0.0
    %v2596 = vmax.f32 %v2262, 0.0
    %v2597 = vmax.f32 %v2313, 0.0
    %v2598 = vmax.f32 %v2315, 0.0
    %v2599 = vmax.f32 %v2366, 0.0
    %v2600 = vmax.f32 %v2368, 0.0
    %v2601 = vmax.f32 %v2419, 0.0
    %v2602 = vmax.f32 %v2421, 0.0
    %v2603 = vmax.f32 %v2472, 0.0
    %v2604 = vmax.f32 %v2474, 0.0
    %v2605 = vmax.f32 %v2525, 0.0
    %v2606 = vmax.f32 %v2527, 0.0
    %v2607 = vmax.f32 %v886, 0.0
    %v2608 = vmax.f32 %v888, 0.0
    %v2609 = vmax.f32 %v939, 0.0
    %v2610 = vmax.f32 %v941, 0.0
    %v2611 = vmax.f32 %v992, 0.0
    %v2612 = vmax.f32 %v994, 0.0
    %v2613 = vmax.f32 %v1045, 0.0
    %v2614 = vmax.f32 %v1047, 0.0
    %v2615 = vmax.f32 %v1098, 0.0
    %v2616 = vmax.f32 %v1100, 0.0
    %v2617 = vmax.f32 %v1151, 0.0
    %v2618 = vmax.f32 %v1153, 0.0
    %v2619 = vmax.f32 %v1204, 0.0
    %v2620 = vmax.f32 %v1206, 0.0
    %v2621 = vmax.f32 %v1257, 0.0
    %v2622 = vmax.f32 %v1259, 0.0
    %v2623 = vmax.f32 %v1310, 0.0
    %v2624 = vmax.f32 %v1312, 0.0
    %v2625 = vmax.f32 %v1363, 0.0
    %v2626 = vmax.f32 %v1365, 0.0
    %v2627 = vmax.f32 %v1416, 0.0
    %v2628 = vmax.f32 %v1418, 0.0
    %v2629 = vmax.f32 %v1469, 0.0
    %v2630 = vmax.f32 %v1471, 0.0
    %v2631 = vmax.f32 %v1522, 0.0
    %v2632 = vmax.f32 %v1524, 0.0
    %v2633 = vmax.f32 %v1575, 0.0
    %v2634 = vmax.f32 %v1577, 0.0
    %v2635 = vmax.f32 %v1628, 0.0
    %v2636 = vmax.f32 %v1630, 0.0
    %v2637 = vmax.f32 %v1681, 0.0
    %v2638 = vmax.f32 %v1683, 0.0
    %v2639 = vmax.f32 %v1734, 0.0
    %v2640 = vmax.f32 %v1736, 0.0
    %v2641 = vmax.f32 %v1787, 0.0
    %v2642 = vmax.f32 %v1789, 0.0
    %v2643 = vmax.f32 %v1840, 0.0
    %v2644 = vmax.f32 %v1842, 0.0
    %v2645 = vmax.f32 %v1893, 0.0
    %v2646 = vmax.f32 %v1895, 0.0
    %v2647 = vmax.f32 %v1946, 0.0
    %v2648 = vmax.f32 %v1948, 0.0
    %v2649 = vmax.f32 %v1999, 0.0
    %v2650 = vmax.f32 %v2001, 0.0
    %v2651 = vmax.f32 %v2052, 0.0
    %v2652 = vmax.f32 %v2054, 0.0
    %v2653 = vmax.f32 %v2105, 0.0
    %v2654 = vmax.f32 %v2107, 0.0
    %v2655 = vmax.f32 %v2158, 0.0
    %v2656 = vmax.f32 %v2160, 0.0
    %v2657 = vmax.f32 %v2211, 0.0
    %v2658 = vmax.f32 %v2213, 0.0
    %v2659 = vmax.f32 %v2264, 0.0
    %v2660 = vmax.f32 %v2266, 0.0
    %v2661 = vmax.f32 %v2317, 0.0
    %v2662 = vmax.f32 %v2319, 0.0
    %v2663 = vmax.f32 %v2370, 0.0
    %v2664 = vmax.f32 %v2372, 0.0
    %v2665 = vmax.f32 %v2423, 0.0
    %v2666 = vmax.f32 %v2425, 0.0
    %v2667 = vmax.f32 %v2476, 0.0
    %v2668 = vmax.f32 %v2478, 0.0
    %v2669 = vmax.f32 %v2529, 0.0
    %v2670 = vmax.f32 %v2531, 0.0
    %v2671 = vmax.f32 %v892, 0.0
    %v2672 = vmax.f32 %v894, 0.0
    %v2673 = vmax.f32 %v945, 0.0
    %v2674 = vmax.f32 %v947, 0.0
    %v2675 = vmax.f32 %v998, 0.0
    %v2676 = vmax.f32 %v1000, 0.0
    %v2677 = vmax.f32 %v1051, 0.0
    %v2678 = vmax.f32 %v1053, 0.0
    %v2679 = vmax.f32 %v1104, 0.0
    %v2680 = vmax.f32 %v1106, 0.0
    %v2681 = vmax.f32 %v1157, 0.0
    %v2682 = vmax.f32 %v1159, 0.0
    %v2683 = vmax.f32 %v1210, 0.0
    %v2684 = vmax.f32 %v1212, 0.0
    %v2685 = vmax.f32 %v1263, 0.0
    %v2686 = vmax.f32 %v1265, 0.0
    %v2687 = vmax.f32 %v1316, 0.0
    %v2688 = vmax.f32 %v1318, 0.0
    %v2689 = vmax.f32 %v1369, 0.0
    %v2690 = vmax.f32 %v1371, 0.0
    %v2691 = vmax.f32 %v1422, 0.0
    %v2692 = vmax.f32 %v1424, 0.0
    %v2693 = vmax.f32 %v1475, 0.0
    %v2694 = vmax.f32 %v1477, 0.0
    %v2695 = vmax.f32 %v1528, 0.0
    %v2696 = vmax.f32 %v1530, 0.0
    %v2697 = vmax.f32 %v1581, 0.0
    %v2698 = vmax.f32 %v1583, 0.0
    %v2699 = vmax.f32 %v1634, 0.0
    %v2700 = vmax.f32 %v1636, 0.0
    %v2701 = vmax.f32 %v1687, 0.0
    %v2702 = vmax.f32 %v1689, 0.0
    %v2703 = vmax.f32 %v1740, 0.0
    %v2704 = vmax.f32 %v1742, 0.0
    %v2705 = vmax.f32 %v1793, 0.0
    %v2706 = vmax.f32 %v1795, 0.0
    %v2707 = vmax.f32 %v1846, 0.0
    %v2708 = vmax.f32 %v1848, 0.0
    %v2709 = vmax.f32 %v1899, 0.0
    %v2710 = vmax.f32 %v1901, 0.0
    %v2711 = vmax.f32 %v1952, 0.0
    %v2712 = vmax.f32 %v1954, 0.0
    %v2713 = vmax.f32 %v2005, 0.0
    %v2714 = vmax.f32 %v2007, 0.0
    %v2715 = vmax.f32 %v2058, 0.0
    %v2716 = vmax.f32 %v2060, 0.0
    %v2717 = vmax.f32 %v2111, 0.0
    %v2718 = vmax.f32 %v2113, 0.0
    %v2719 = vmax.f32 %v2164, 0.0
    %v2720 = vmax.f32 %v2166, 0.0
    %v2721 = vmax.f32 %v2217, 0.0
    %v2722 = vmax.f32 %v2219, 0.0
    %v2723 = vmax.f32 %v2270, 0.0
    %v2724 = vmax.f32 %v2272, 0.0
    %v2725 = vmax.f32 %v2323, 0.0
    %v2726 = vmax.f32 %v2325, 0.0
    %v2727 = vmax.f32 %v2376, 0.0
    %v2728 = vmax.f32 %v2378, 0.0
    %v2729 = vmax.f32 %v2429, 0.0
    %v2730 = vmax.f32 %v2431, 0.0
    %v2731 = vmax.f32 %v2482, 0.0
    %v2732 = vmax.f32 %v2484, 0.0
    %v2733 = vmax.f32 %v2535, 0.0
    %v2734 = vmax.f32 %v2537, 0.0
    %v2735 = vmax.f32 %v896, 0.0
    %v2736 = vmax.f32 %v898, 0.0
    %v2737 = vmax.f32 %v949, 0.0
    %v2738 = vmax.f32 %v951, 0.0
    %v2739 = vmax.f32 %v1002, 0.0
    %v2740 = vmax.f32 %v1004, 0.0
    %v2741 = vmax.f32 %v1055, 0.0
    %v2742 = vmax.f32 %v1057, 0.0
    %v2743 = vmax.f32 %v1108, 0.0
    %v2744 = vmax.f32 %v1110, 0.0
    %v2745 = vmax.f32 %v1161, 0.0
    %v2746 = vmax.f32 %v1163, 0.0
    %v2747 = vmax.f32 %v1214, 0.0
    %v2748 = vmax.f32 %v1216, 0.0
    %v2749 = vmax.f32 %v1267, 0.0
    %v2750 = vmax.f32 %v1269, 0.0
    %v2751 = vmax.f32 %v1320, 0.0
    %v2752 = vmax.f32 %v1322, 0.0
    %v2753 = vmax.f32 %v1373, 0.0
    %v2754 = vmax.f32 %v1375, 0.0
    %v2755 = vmax.f32 %v1426, 0.0
    %v2756 = vmax.f32 %v1428, 0.0
    %v2757 = vmax.f32 %v1479, 0.0
    %v2758 = vmax.f32 %v1481, 0.0
    %v2759 = vmax.f32 %v1532, 0.0
    %v2760 = vmax.f32 %v1534, 0.0
    %v2761 = vmax.f32 %v1585, 0.0
    %v2762 = vmax.f32 %v1587, 0.0
    %v2763 = vmax.f32 %v1638, 0.0
    %v2764 = vmax.f32 %v1640, 0.0
    %v2765 = vmax.f32 %v1691, 0.0
    %v2766 = vmax.f32 %v1693, 0.0
    %v2767 = vmax.f32 %v1744, 0.0
    %v2768 = vmax.f32 %v1746, 0.0
    %v2769 = vmax.f32 %v1797, 0.0
    %v2770 = vmax.f32 %v1799, 0.0
    %v2771 = vmax.f32 %v1850, 0.0
    %v2772 = vmax.f32 %v1852, 0.0
    %v2773 = vmax.f32 %v1903, 0.0
    %v2774 = vmax.f32 %v1905, 0.0
    %v2775 = vmax.f32 %v1956, 0.0
    %v2776 = vmax.f32 %v1958, 0.0
    %v2777 = vmax.f32 %v2009, 0.0
    %v2778 = vmax.f32 %v2011, 0.0
    %v2779 = vmax.f32 %v2062, 0.0
    %v2780 = vmax.f32 %v2064, 0.0
    %v2781 = vmax.f32 %v2115, 0.0
    %v2782 = vmax.f32 %v2117, 0.0
    %v2783 = vmax.f32 %v2168, 0.0
    %v2784 = vmax.f32 %v2170, 0.0
    %v2785 = vmax.f32 %v2221, 0.0
    %v2786 = vmax.f32 %v2223, 0.0
    %v2787 = vmax.f32 %v2274, 0.0
    %v2788 = vmax.f32 %v2276, 0.0
    %v2789 = vmax.f32 %v2327, 0.0
    %v2790 = vmax.f32 %v2329, 0.0
    %v2791 = vmax.f32 %v2380, 0.0
    %v2792 = vmax.f32 %v2382, 0.0
    %v2793 = vmax.f32 %v2433, 0.0
    %v2794 = vmax.f32 %v2435, 0.0
    %v2795 = vmax.f32 %v2486, 0.0
    %v2796 = vmax.f32 %v2488, 0.0
    %v2797 = vmax.f32 %v2539, 0.0
    %v2798 = vmax.f32 %v2541, 0.0
    %v2799 = vpack.c.bf16 %v2607, %v2543
    %v2800 = vpack.c.bf16 %v2608, %v2544
    %v2801 = vpack.c.bf16 %v2609, %v2545
    %v2802 = vpack.c.bf16 %v2610, %v2546
    %v2803 = vpack.c.bf16 %v2611, %v2547
    %v2804 = vpack.c.bf16 %v2612, %v2548
    %v2805 = vpack.c.bf16 %v2613, %v2549
    %v2806 = vpack.c.bf16 %v2614, %v2550
    %v2807 = vpack.c.bf16 %v2615, %v2551
    %v2808 = vpack.c.bf16 %v2616, %v2552
    %v2809 = vpack.c.bf16 %v2617, %v2553
    %v2810 = vpack.c.bf16 %v2618, %v2554
    %v2811 = vpack.c.bf16 %v2619, %v2555
    %v2812 = vpack.c.bf16 %v2620, %v2556
    %v2813 = vpack.c.bf16 %v2621, %v2557
    %v2814 = vpack.c.bf16 %v2622, %v2558
    %v2815 = vpack.c.bf16 %v2623, %v2559
    %v2816 = vpack.c.bf16 %v2624, %v2560
    %v2817 = vpack.c.bf16 %v2625, %v2561
    %v2818 = vpack.c.bf16 %v2626, %v2562
    %v2819 = vpack.c.bf16 %v2627, %v2563
    %v2820 = vpack.c.bf16 %v2628, %v2564
    %v2821 = vpack.c.bf16 %v2629, %v2565
    %v2822 = vpack.c.bf16 %v2630, %v2566
    %v2823 = vpack.c.bf16 %v2631, %v2567
    %v2824 = vpack.c.bf16 %v2632, %v2568
    %v2825 = vpack.c.bf16 %v2633, %v2569
    %v2826 = vpack.c.bf16 %v2634, %v2570
    %v2827 = vpack.c.bf16 %v2635, %v2571
    %v2828 = vpack.c.bf16 %v2636, %v2572
    %v2829 = vpack.c.bf16 %v2637, %v2573
    %v2830 = vpack.c.bf16 %v2638, %v2574
    %v2831 = vpack.c.bf16 %v2639, %v2575
    %v2832 = vpack.c.bf16 %v2640, %v2576
    %v2833 = vpack.c.bf16 %v2641, %v2577
    %v2834 = vpack.c.bf16 %v2642, %v2578
    %v2835 = vpack.c.bf16 %v2643, %v2579
    %v2836 = vpack.c.bf16 %v2644, %v2580
    %v2837 = vpack.c.bf16 %v2645, %v2581
    %v2838 = vpack.c.bf16 %v2646, %v2582
    %v2839 = vpack.c.bf16 %v2647, %v2583
    %v2840 = vpack.c.bf16 %v2648, %v2584
    %v2841 = vpack.c.bf16 %v2649, %v2585
    %v2842 = vpack.c.bf16 %v2650, %v2586
    %v2843 = vpack.c.bf16 %v2651, %v2587
    %v2844 = vpack.c.bf16 %v2652, %v2588
    %v2845 = vpack.c.bf16 %v2653, %v2589
    %v2846 = vpack.c.bf16 %v2654, %v2590
    %v2847 = vpack.c.bf16 %v2655, %v2591
    %v2848 = vpack.c.bf16 %v2656, %v2592
    %v2849 = vpack.c.bf16 %v2657, %v2593
    %v2850 = vpack.c.bf16 %v2658, %v2594
    %v2851 = vpack.c.bf16 %v2659, %v2595
    %v2852 = vpack.c.bf16 %v2660, %v2596
    %v2853 = vpack.c.bf16 %v2661, %v2597
    %v2854 = vpack.c.bf16 %v2662, %v2598
    %v2855 = vpack.c.bf16 %v2663, %v2599
    %v2856 = vpack.c.bf16 %v2664, %v2600
    %v2857 = vpack.c.bf16 %v2665, %v2601
    %v2858 = vpack.c.bf16 %v2666, %v2602
    %v2859 = vpack.c.bf16 %v2667, %v2603
    %v2860 = vpack.c.bf16 %v2668, %v2604
    %v2861 = vpack.c.bf16 %v2669, %v2605
    %v2862 = vpack.c.bf16 %v2670, %v2606
    %v2863 = vpack.c.bf16 %v2735, %v2671
    %v2864 = vpack.c.bf16 %v2736, %v2672
    %v2865 = vpack.c.bf16 %v2737, %v2673
    %v2866 = vpack.c.bf16 %v2738, %v2674
    %v2867 = vpack.c.bf16 %v2739, %v2675
    %v2868 = vpack.c.bf16 %v2740, %v2676
    %v2869 = vpack.c.bf16 %v2741, %v2677
    %v2870 = vpack.c.bf16 %v2742, %v2678
    %v2871 = vpack.c.bf16 %v2743, %v2679
    %v2872 = vpack.c.bf16 %v2744, %v2680
    %v2873 = vpack.c.bf16 %v2745, %v2681
    %v2874 = vpack.c.bf16 %v2746, %v2682
    %v2875 = vpack.c.bf16 %v2747, %v2683
    %v2876 = vpack.c.bf16 %v2748, %v2684
    %v2877 = vpack.c.bf16 %v2749, %v2685
    %v2878 = vpack.c.bf16 %v2750, %v2686
    %v2879 = vpack.c.bf16 %v2751, %v2687
    %v2880 = vpack.c.bf16 %v2752, %v2688
    %v2881 = vpack.c.bf16 %v2753, %v2689
    %v2882 = vpack.c.bf16 %v2754, %v2690
    %v2883 = vpack.c.bf16 %v2755, %v2691
    %v2884 = vpack.c.bf16 %v2756, %v2692
    %v2885 = vpack.c.bf16 %v2757, %v2693
    %v2886 = vpack.c.bf16 %v2758, %v2694
    %v2887 = vpack.c.bf16 %v2759, %v2695
    %v2888 = vpack.c.bf16 %v2760, %v2696
    %v2889 = vpack.c.bf16 %v2761, %v2697
    %v2890 = vpack.c.bf16 %v2762, %v2698
    %v2891 = vpack.c.bf16 %v2763, %v2699
    %v2892 = vpack.c.bf16 %v2764, %v2700
    %v2893 = vpack.c.bf16 %v2765, %v2701
    %v2894 = vpack.c.bf16 %v2766, %v2702
    %v2895 = vpack.c.bf16 %v2767, %v2703
    %v2896 = vpack.c.bf16 %v2768, %v2704
    %v2897 = vpack.c.bf16 %v2769, %v2705
    %v2898 = vpack.c.bf16 %v2770, %v2706
    %v2899 = vpack.c.bf16 %v2771, %v2707
    %v2900 = vpack.c.bf16 %v2772, %v2708
    %v2901 = vpack.c.bf16 %v2773, %v2709
    %v2902 = vpack.c.bf16 %v2774, %v2710
    %v2903 = vpack.c.bf16 %v2775, %v2711
    %v2904 = vpack.c.bf16 %v2776, %v2712
    %v2905 = vpack.c.bf16 %v2777, %v2713
    %v2906 = vpack.c.bf16 %v2778, %v2714
    %v2907 = vpack.c.bf16 %v2779, %v2715
    %v2908 = vpack.c.bf16 %v2780, %v2716
    %v2909 = vpack.c.bf16 %v2781, %v2717
    %v2910 = vpack.c.bf16 %v2782, %v2718
    %v2911 = vpack.c.bf16 %v2783, %v2719
    %v2912 = vpack.c.bf16 %v2784, %v2720
    %v2913 = vpack.c.bf16 %v2785, %v2721
    %v2914 = vpack.c.bf16 %v2786, %v2722
    %v2915 = vpack.c.bf16 %v2787, %v2723
    %v2916 = vpack.c.bf16 %v2788, %v2724
    %v2917 = vpack.c.bf16 %v2789, %v2725
    %v2918 = vpack.c.bf16 %v2790, %v2726
    %v2919 = vpack.c.bf16 %v2791, %v2727
    %v2920 = vpack.c.bf16 %v2792, %v2728
    %v2921 = vpack.c.bf16 %v2793, %v2729
    %v2922 = vpack.c.bf16 %v2794, %v2730
    %v2923 = vpack.c.bf16 %v2795, %v2731
    %v2924 = vpack.c.bf16 %v2796, %v2732
    %v2925 = vpack.c.bf16 %v2797, %v2733
    %v2926 = vpack.c.bf16 %v2798, %v2734
    %v2927 = vld [vmem:[%s1] sm:$0xff]
    %v2928 = vld [vmem:[%s1 + $0x8] sm:$0xff]
    %v2929 = vld [vmem:[%s1 + $0x10] sm:$0xff]
    %v2930 = vld [vmem:[%s1 + $0x18] sm:$0xff]
    %v2931 = vld [vmem:[%s1 + $0x20] sm:$0xff]
    %v2932 = vld [vmem:[%s1 + $0x28] sm:$0xff]
    %v2933 = vld [vmem:[%s1 + $0x30] sm:$0xff]
    %v2934 = vld [vmem:[%s1 + $0x38] sm:$0xff]
    %v2935 = vld [vmem:[%s1 + $0x40] sm:$0xff]
    %v2936 = vld [vmem:[%s1 + $0x48] sm:$0xff]
    %v2937 = vld [vmem:[%s1 + $0x50] sm:$0xff]
    %v2938 = vld [vmem:[%s1 + $0x58] sm:$0xff]
    %v2939 = vld [vmem:[%s1 + $0x60] sm:$0xff]
    %v2940 = vld [vmem:[%s1 + $0x68] sm:$0xff]
    %v2941 = vld [vmem:[%s1 + $0x70] sm:$0xff]
    %v2942 = vld [vmem:[%s1 + $0x78] sm:$0xff]
    %v2943 = vld [vmem:[%s1 + $0x80] sm:$0xff]
    %v2944 = vld [vmem:[%s1 + $0x88] sm:$0xff]
    %v2945 = vld [vmem:[%s1 + $0x90] sm:$0xff]
    %v2946 = vld [vmem:[%s1 + $0x98] sm:$0xff]
    %v2947 = vld [vmem:[%s1 + $0xa0] sm:$0xff]
    %v2948 = vld [vmem:[%s1 + $0xa8] sm:$0xff]
    %v2949 = vld [vmem:[%s1 + $0xb0] sm:$0xff]
    %v2950 = vld [vmem:[%s1 + $0xb8] sm:$0xff]
    %v2951 = vld [vmem:[%s1 + $0xc0] sm:$0xff]
    %v2952 = vld [vmem:[%s1 + $0xc8] sm:$0xff]
    %v2953 = vld [vmem:[%s1 + $0xd0] sm:$0xff]
    %v2954 = vld [vmem:[%s1 + $0xd8] sm:$0xff]
    %v2955 = vld [vmem:[%s1 + $0xe0] sm:$0xff]
    %v2956 = vld [vmem:[%s1 + $0xe8] sm:$0xff]
    %v2957 = vld [vmem:[%s1 + $0xf0] sm:$0xff]
    %v2958 = vld [vmem:[%s1 + $0xf8] sm:$0xff]
    %v2959 = vld [vmem:[%s1 + $0x100] sm:$0xff]
    %v2960 = vld [vmem:[%s1 + $0x108] sm:$0xff]
    %v2961 = vld [vmem:[%s1 + $0x110] sm:$0xff]
    %v2962 = vld [vmem:[%s1 + $0x118] sm:$0xff]
    %v2963 = vld [vmem:[%s1 + $0x120] sm:$0xff]
    %v2964 = vld [vmem:[%s1 + $0x128] sm:$0xff]
    %v2965 = vld [vmem:[%s1 + $0x130] sm:$0xff]
    %v2966 = vld [vmem:[%s1 + $0x138] sm:$0xff]
    %v2967 = vld [vmem:[%s1 + $0x140] sm:$0xff]
    %v2968 = vld [vmem:[%s1 + $0x148] sm:$0xff]
    %v2969 = vld [vmem:[%s1 + $0x150] sm:$0xff]
    %v2970 = vld [vmem:[%s1 + $0x158] sm:$0xff]
    %v2971 = vld [vmem:[%s1 + $0x160] sm:$0xff]
    %v2972 = vld [vmem:[%s1 + $0x168] sm:$0xff]
    %v2973 = vld [vmem:[%s1 + $0x170] sm:$0xff]
    %v2974 = vld [vmem:[%s1 + $0x178] sm:$0xff]
    %v2975 = vld [vmem:[%s1 + $0x180] sm:$0xff]
    %v2976 = vld [vmem:[%s1 + $0x188] sm:$0xff]
    %v2977 = vld [vmem:[%s1 + $0x190] sm:$0xff]
    %v2978 = vld [vmem:[%s1 + $0x198] sm:$0xff]
    %v2979 = vld [vmem:[%s1 + $0x1a0] sm:$0xff]
    %v2980 = vld [vmem:[%s1 + $0x1a8] sm:$0xff]
    %v2981 = vld [vmem:[%s1 + $0x1b0] sm:$0xff]
    %v2982 = vld [vmem:[%s1 + $0x1b8] sm:$0xff]
    %v2983 = vld [vmem:[%s1 + $0x1c0] sm:$0xff]
    %v2984 = vld [vmem:[%s1 + $0x1c8] sm:$0xff]
    %v2985 = vld [vmem:[%s1 + $0x1d0] sm:$0xff]
    %v2986 = vld [vmem:[%s1 + $0x1d8] sm:$0xff]
    %v2987 = vld [vmem:[%s1 + $0x1e0] sm:$0xff]
    %v2988 = vld [vmem:[%s1 + $0x1e8] sm:$0xff]
    %v2989 = vld [vmem:[%s1 + $0x1f0] sm:$0xff]
    %v2990 = vld [vmem:[%s1 + $0x1f8] sm:$0xff]
    %v2991 = vld [vmem:[%s1 + $0x200] sm:$0x11]
    %v2992 = vld [vmem:[%s1 + $0x208] sm:$0x11]
    %v2993 = vld [vmem:[%s1 + $0x210] sm:$0x11]
    %v2994 = vld [vmem:[%s1 + $0x218] sm:$0x11]
    %v2995 = vld [vmem:[%s1 + $0x220] sm:$0x11]
    %v2996 = vld [vmem:[%s1 + $0x228] sm:$0x11]
    %v2997 = vld [vmem:[%s1 + $0x230] sm:$0x11]
    %v2998 = vld [vmem:[%s1 + $0x238] sm:$0x11]
    %v2999 = vld [vmem:[%s1 + $0x240] sm:$0x11]
    %v3000 = vld [vmem:[%s1 + $0x248] sm:$0x11]
    %v3001 = vld [vmem:[%s1 + $0x250] sm:$0x11]
    %v3002 = vld [vmem:[%s1 + $0x258] sm:$0x11]
    %v3003 = vld [vmem:[%s1 + $0x260] sm:$0x11]
    %v3004 = vld [vmem:[%s1 + $0x268] sm:$0x11]
    %v3005 = vld [vmem:[%s1 + $0x270] sm:$0x11]
    %v3006 = vld [vmem:[%s1 + $0x278] sm:$0x11]
    %v3007 = vld [vmem:[%s1 + $0x280] sm:$0x11]
    %v3008 = vld [vmem:[%s1 + $0x288] sm:$0x11]
    %v3009 = vld [vmem:[%s1 + $0x290] sm:$0x11]
    %v3010 = vld [vmem:[%s1 + $0x298] sm:$0x11]
    %v3011 = vld [vmem:[%s1 + $0x2a0] sm:$0x11]
    %v3012 = vld [vmem:[%s1 + $0x2a8] sm:$0x11]
    %v3013 = vld [vmem:[%s1 + $0x2b0] sm:$0x11]
    %v3014 = vld [vmem:[%s1 + $0x2b8] sm:$0x11]
    %v3015 = vld [vmem:[%s1 + $0x2c0] sm:$0x11]
    %v3016 = vld [vmem:[%s1 + $0x2c8] sm:$0x11]
    %v3017 = vld [vmem:[%s1 + $0x2d0] sm:$0x11]
    %v3018 = vld [vmem:[%s1 + $0x2d8] sm:$0x11]
    %v3019 = vld [vmem:[%s1 + $0x2e0] sm:$0x11]
    %v3020 = vld [vmem:[%s1 + $0x2e8] sm:$0x11]
    %v3021 = vld [vmem:[%s1 + $0x2f0] sm:$0x11]
    %v3022 = vld [vmem:[%s1 + $0x2f8] sm:$0x11]
    %v3023 = vld [vmem:[%s2] sm:$0xff]
    %v3024 = vld [vmem:[%s2 + $0x8] sm:$0xff]
    %v3025 = vld [vmem:[%s2 + $0x10] sm:$0x3]
    %v3122 = vunpack.c.l.b16 %v2927
    %v3123 = vunpack.c.h.b16 %v2927
    %v3124 = vunpack.c.l.b16 %v2928
    %v3125 = vunpack.c.h.b16 %v2928
    %v3126 = vunpack.c.l.b16 %v2929
    %v3127 = vunpack.c.h.b16 %v2929
    %v3128 = vunpack.c.l.b16 %v2930
    %v3129 = vunpack.c.h.b16 %v2930
    %v3130 = vunpack.c.l.b16 %v2931
    %v3131 = vunpack.c.h.b16 %v2931
    %v3132 = vunpack.c.l.b16 %v2932
    %v3133 = vunpack.c.h.b16 %v2932
    %v3134 = vunpack.c.l.b16 %v2933
    %v3135 = vunpack.c.h.b16 %v2933
    %v3136 = vunpack.c.l.b16 %v2934
    %v3137 = vunpack.c.h.b16 %v2934
    %v3138 = vunpack.c.l.b16 %v2935
    %v3139 = vunpack.c.h.b16 %v2935
    %v3140 = vunpack.c.l.b16 %v2936
    %v3141 = vunpack.c.h.b16 %v2936
    %v3142 = vunpack.c.l.b16 %v2937
    %v3143 = vunpack.c.h.b16 %v2937
    %v3144 = vunpack.c.l.b16 %v2938
    %v3145 = vunpack.c.h.b16 %v2938
    %v3146 = vunpack.c.l.b16 %v2939
    %v3147 = vunpack.c.h.b16 %v2939
    %v3148 = vunpack.c.l.b16 %v2940
    %v3149 = vunpack.c.h.b16 %v2940
    %v3150 = vunpack.c.l.b16 %v2941
    %v3151 = vunpack.c.h.b16 %v2941
    %v3152 = vunpack.c.l.b16 %v2942
    %v3153 = vunpack.c.h.b16 %v2942
    %v3154 = vunpack.c.l.b16 %v2943
    %v3155 = vunpack.c.h.b16 %v2943
    %v3156 = vunpack.c.l.b16 %v2944
    %v3157 = vunpack.c.h.b16 %v2944
    %v3158 = vunpack.c.l.b16 %v2945
    %v3159 = vunpack.c.h.b16 %v2945
    %v3160 = vunpack.c.l.b16 %v2946
    %v3161 = vunpack.c.h.b16 %v2946
    %v3162 = vunpack.c.l.b16 %v2947
    %v3163 = vunpack.c.h.b16 %v2947
    %v3164 = vunpack.c.l.b16 %v2948
    %v3165 = vunpack.c.h.b16 %v2948
    %v3166 = vunpack.c.l.b16 %v2949
    %v3167 = vunpack.c.h.b16 %v2949
    %v3168 = vunpack.c.l.b16 %v2950
    %v3169 = vunpack.c.h.b16 %v2950
    %v3170 = vunpack.c.l.b16 %v2951
    %v3171 = vunpack.c.h.b16 %v2951
    %v3172 = vunpack.c.l.b16 %v2952
    %v3173 = vunpack.c.h.b16 %v2952
    %v3174 = vunpack.c.l.b16 %v2953
    %v3175 = vunpack.c.h.b16 %v2953
    %v3176 = vunpack.c.l.b16 %v2954
    %v3177 = vunpack.c.h.b16 %v2954
    %v3178 = vunpack.c.l.b16 %v2955
    %v3179 = vunpack.c.h.b16 %v2955
    %v3180 = vunpack.c.l.b16 %v2956
    %v3181 = vunpack.c.h.b16 %v2956
    %v3182 = vunpack.c.l.b16 %v2957
    %v3183 = vunpack.c.h.b16 %v2957
    %v3184 = vunpack.c.l.b16 %v2958
    %v3185 = vunpack.c.h.b16 %v2958
    %v3186 = vunpack.c.l.b16 %v2959
    %v3187 = vunpack.c.h.b16 %v2959
    %v3188 = vunpack.c.l.b16 %v2960
    %v3189 = vunpack.c.h.b16 %v2960
    %v3190 = vunpack.c.l.b16 %v2961
    %v3191 = vunpack.c.h.b16 %v2961
    %v3192 = vunpack.c.l.b16 %v2962
    %v3193 = vunpack.c.h.b16 %v2962
    %v3194 = vunpack.c.l.b16 %v2963
    %v3195 = vunpack.c.h.b16 %v2963
    %v3196 = vunpack.c.l.b16 %v2964
    %v3197 = vunpack.c.h.b16 %v2964
    %v3198 = vunpack.c.l.b16 %v2965
    %v3199 = vunpack.c.h.b16 %v2965
    %v3200 = vunpack.c.l.b16 %v2966
    %v3201 = vunpack.c.h.b16 %v2966
    %v3202 = vunpack.c.l.b16 %v2967
    %v3203 = vunpack.c.h.b16 %v2967
    %v3204 = vunpack.c.l.b16 %v2968
    %v3205 = vunpack.c.h.b16 %v2968
    %v3206 = vunpack.c.l.b16 %v2969
    %v3207 = vunpack.c.h.b16 %v2969
    %v3208 = vunpack.c.l.b16 %v2970
    %v3209 = vunpack.c.h.b16 %v2970
    %v3210 = vunpack.c.l.b16 %v2971
    %v3211 = vunpack.c.h.b16 %v2971
    %v3212 = vunpack.c.l.b16 %v2972
    %v3213 = vunpack.c.h.b16 %v2972
    %v3214 = vunpack.c.l.b16 %v2973
    %v3215 = vunpack.c.h.b16 %v2973
    %v3216 = vunpack.c.l.b16 %v2974
    %v3217 = vunpack.c.h.b16 %v2974
    %v3218 = vunpack.c.l.b16 %v2975
    %v3219 = vunpack.c.h.b16 %v2975
    %v3220 = vunpack.c.l.b16 %v2976
    %v3221 = vunpack.c.h.b16 %v2976
    %v3222 = vunpack.c.l.b16 %v2977
    %v3223 = vunpack.c.h.b16 %v2977
    %v3224 = vunpack.c.l.b16 %v2978
    %v3225 = vunpack.c.h.b16 %v2978
    %v3226 = vunpack.c.l.b16 %v2979
    %v3227 = vunpack.c.h.b16 %v2979
    %v3228 = vunpack.c.l.b16 %v2980
    %v3229 = vunpack.c.h.b16 %v2980
    %v3230 = vunpack.c.l.b16 %v2981
    %v3231 = vunpack.c.h.b16 %v2981
    %v3232 = vunpack.c.l.b16 %v2982
    %v3233 = vunpack.c.h.b16 %v2982
    %v3234 = vunpack.c.l.b16 %v2983
    %v3235 = vunpack.c.h.b16 %v2983
    %v3236 = vunpack.c.l.b16 %v2984
    %v3237 = vunpack.c.h.b16 %v2984
    %v3238 = vunpack.c.l.b16 %v2985
    %v3239 = vunpack.c.h.b16 %v2985
    %v3240 = vunpack.c.l.b16 %v2986
    %v3241 = vunpack.c.h.b16 %v2986
    %v3242 = vunpack.c.l.b16 %v2987
    %v3243 = vunpack.c.h.b16 %v2987
    %v3244 = vunpack.c.l.b16 %v2988
    %v3245 = vunpack.c.h.b16 %v2988
    %v3246 = vunpack.c.l.b16 %v2989
    %v3247 = vunpack.c.h.b16 %v2989
    %v3248 = vunpack.c.l.b16 %v2990
    %v3249 = vunpack.c.h.b16 %v2990
    %v3250 = vunpack.c.l.b16 %v2991
    %v3251 = vunpack.c.h.b16 %v2991
    %v3252 = vunpack.c.l.b16 %v2992
    %v3253 = vunpack.c.h.b16 %v2992
    %v3254 = vunpack.c.l.b16 %v2993
    %v3255 = vunpack.c.h.b16 %v2993
    %v3256 = vunpack.c.l.b16 %v2994
    %v3257 = vunpack.c.h.b16 %v2994
    %v3258 = vunpack.c.l.b16 %v2995
    %v3259 = vunpack.c.h.b16 %v2995
    %v3260 = vunpack.c.l.b16 %v2996
    %v3261 = vunpack.c.h.b16 %v2996
    %v3262 = vunpack.c.l.b16 %v2997
    %v3263 = vunpack.c.h.b16 %v2997
    %v3264 = vunpack.c.l.b16 %v2998
    %v3265 = vunpack.c.h.b16 %v2998
    %v3266 = vunpack.c.l.b16 %v2999
    %v3267 = vunpack.c.h.b16 %v2999
    %v3268 = vunpack.c.l.b16 %v3000
    %v3269 = vunpack.c.h.b16 %v3000
    %v3270 = vunpack.c.l.b16 %v3001
    %v3271 = vunpack.c.h.b16 %v3001
    %v3272 = vunpack.c.l.b16 %v3002
    %v3273 = vunpack.c.h.b16 %v3002
    %v3274 = vunpack.c.l.b16 %v3003
    %v3275 = vunpack.c.h.b16 %v3003
    %v3276 = vunpack.c.l.b16 %v3004
    %v3277 = vunpack.c.h.b16 %v3004
    %v3278 = vunpack.c.l.b16 %v3005
    %v3279 = vunpack.c.h.b16 %v3005
    %v3280 = vunpack.c.l.b16 %v3006
    %v3281 = vunpack.c.h.b16 %v3006
    %v3282 = vunpack.c.l.b16 %v3007
    %v3283 = vunpack.c.h.b16 %v3007
    %v3284 = vunpack.c.l.b16 %v3008
    %v3285 = vunpack.c.h.b16 %v3008
    %v3286 = vunpack.c.l.b16 %v3009
    %v3287 = vunpack.c.h.b16 %v3009
    %v3288 = vunpack.c.l.b16 %v3010
    %v3289 = vunpack.c.h.b16 %v3010
    %v3290 = vunpack.c.l.b16 %v3011
    %v3291 = vunpack.c.h.b16 %v3011
    %v3292 = vunpack.c.l.b16 %v3012
    %v3293 = vunpack.c.h.b16 %v3012
    %v3294 = vunpack.c.l.b16 %v3013
    %v3295 = vunpack.c.h.b16 %v3013
    %v3296 = vunpack.c.l.b16 %v3014
    %v3297 = vunpack.c.h.b16 %v3014
    %v3298 = vunpack.c.l.b16 %v3015
    %v3299 = vunpack.c.h.b16 %v3015
    %v3300 = vunpack.c.l.b16 %v3016
    %v3301 = vunpack.c.h.b16 %v3016
    %v3302 = vunpack.c.l.b16 %v3017
    %v3303 = vunpack.c.h.b16 %v3017
    %v3304 = vunpack.c.l.b16 %v3018
    %v3305 = vunpack.c.h.b16 %v3018
    %v3306 = vunpack.c.l.b16 %v3019
    %v3307 = vunpack.c.h.b16 %v3019
    %v3308 = vunpack.c.l.b16 %v3020
    %v3309 = vunpack.c.h.b16 %v3020
    %v3310 = vunpack.c.l.b16 %v3021
    %v3311 = vunpack.c.h.b16 %v3021
    %v3312 = vunpack.c.l.b16 %v3022
    %v3313 = vunpack.c.h.b16 %v3022
    %v3314 = vpack.c.b16 %v3186, %v3122
    %v3315 = vpack.c.b16 %v3187, %v3123
    %v3316 = vpack.c.b16 %v3188, %v3124
    %v3317 = vpack.c.b16 %v3189, %v3125
    %v3318 = vpack.c.b16 %v3190, %v3126
    %v3319 = vpack.c.b16 %v3191, %v3127
    %v3320 = vpack.c.b16 %v3192, %v3128
    %v3321 = vpack.c.b16 %v3193, %v3129
    %v3322 = vpack.c.b16 %v3194, %v3130
    %v3323 = vpack.c.b16 %v3195, %v3131
    %v3324 = vpack.c.b16 %v3196, %v3132
    %v3325 = vpack.c.b16 %v3197, %v3133
    %v3326 = vpack.c.b16 %v3198, %v3134
    %v3327 = vpack.c.b16 %v3199, %v3135
    %v3328 = vpack.c.b16 %v3200, %v3136
    %v3329 = vpack.c.b16 %v3201, %v3137
    %v3330 = vpack.c.b16 %v3202, %v3138
    %v3331 = vpack.c.b16 %v3203, %v3139
    %v3332 = vpack.c.b16 %v3204, %v3140
    %v3333 = vpack.c.b16 %v3205, %v3141
    %v3334 = vpack.c.b16 %v3206, %v3142
    %v3335 = vpack.c.b16 %v3207, %v3143
    %v3336 = vpack.c.b16 %v3208, %v3144
    %v3337 = vpack.c.b16 %v3209, %v3145
    %v3338 = vpack.c.b16 %v3210, %v3146
    %v3339 = vpack.c.b16 %v3211, %v3147
    %v3340 = vpack.c.b16 %v3212, %v3148
    %v3341 = vpack.c.b16 %v3213, %v3149
    %v3342 = vpack.c.b16 %v3214, %v3150
    %v3343 = vpack.c.b16 %v3215, %v3151
    %v3344 = vpack.c.b16 %v3216, %v3152
    %v3345 = vpack.c.b16 %v3217, %v3153
    %v3346 = vpack.c.b16 %v3218, %v3154
    %v3347 = vpack.c.b16 %v3219, %v3155
    %v3348 = vpack.c.b16 %v3220, %v3156
    %v3349 = vpack.c.b16 %v3221, %v3157
    %v3350 = vpack.c.b16 %v3222, %v3158
    %v3351 = vpack.c.b16 %v3223, %v3159
    %v3352 = vpack.c.b16 %v3224, %v3160
    %v3353 = vpack.c.b16 %v3225, %v3161
    %v3354 = vpack.c.b16 %v3226, %v3162
    %v3355 = vpack.c.b16 %v3227, %v3163
    %v3356 = vpack.c.b16 %v3228, %v3164
    %v3357 = vpack.c.b16 %v3229, %v3165
    %v3358 = vpack.c.b16 %v3230, %v3166
    %v3359 = vpack.c.b16 %v3231, %v3167
    %v3360 = vpack.c.b16 %v3232, %v3168
    %v3361 = vpack.c.b16 %v3233, %v3169
    %v3362 = vpack.c.b16 %v3234, %v3170
    %v3363 = vpack.c.b16 %v3235, %v3171
    %v3364 = vpack.c.b16 %v3236, %v3172
    %v3365 = vpack.c.b16 %v3237, %v3173
    %v3366 = vpack.c.b16 %v3238, %v3174
    %v3367 = vpack.c.b16 %v3239, %v3175
    %v3368 = vpack.c.b16 %v3240, %v3176
    %v3369 = vpack.c.b16 %v3241, %v3177
    %v3370 = vpack.c.b16 %v3242, %v3178
    %v3371 = vpack.c.b16 %v3243, %v3179
    %v3372 = vpack.c.b16 %v3244, %v3180
    %v3373 = vpack.c.b16 %v3245, %v3181
    %v3374 = vpack.c.b16 %v3246, %v3182
    %v3375 = vpack.c.b16 %v3247, %v3183
    %v3376 = vpack.c.b16 %v3248, %v3184
    %v3377 = vpack.c.b16 %v3249, %v3185
    %v3378 = vpack.c.b16 %v3250, %v3250
    %v3379 = vpack.c.b16 %v3251, %v3251
    %v3380 = vpack.c.b16 %v3252, %v3252
    %v3381 = vpack.c.b16 %v3253, %v3253
    %v3382 = vpack.c.b16 %v3254, %v3254
    %v3383 = vpack.c.b16 %v3255, %v3255
    %v3384 = vpack.c.b16 %v3256, %v3256
    %v3385 = vpack.c.b16 %v3257, %v3257
    %v3386 = vpack.c.b16 %v3258, %v3258
    %v3387 = vpack.c.b16 %v3259, %v3259
    %v3388 = vpack.c.b16 %v3260, %v3260
    %v3389 = vpack.c.b16 %v3261, %v3261
    %v3390 = vpack.c.b16 %v3262, %v3262
    %v3391 = vpack.c.b16 %v3263, %v3263
    %v3392 = vpack.c.b16 %v3264, %v3264
    %v3393 = vpack.c.b16 %v3265, %v3265
    %v3394 = vpack.c.b16 %v3266, %v3266
    %v3395 = vpack.c.b16 %v3267, %v3267
    %v3396 = vpack.c.b16 %v3268, %v3268
    %v3397 = vpack.c.b16 %v3269, %v3269
    %v3398 = vpack.c.b16 %v3270, %v3270
    %v3399 = vpack.c.b16 %v3271, %v3271
    %v3400 = vpack.c.b16 %v3272, %v3272
    %v3401 = vpack.c.b16 %v3273, %v3273
    %v3402 = vpack.c.b16 %v3274, %v3274
    %v3403 = vpack.c.b16 %v3275, %v3275
    %v3404 = vpack.c.b16 %v3276, %v3276
    %v3405 = vpack.c.b16 %v3277, %v3277
    %v3406 = vpack.c.b16 %v3278, %v3278
    %v3407 = vpack.c.b16 %v3279, %v3279
    %v3408 = vpack.c.b16 %v3280, %v3280
    %v3409 = vpack.c.b16 %v3281, %v3281
    %v3410 = vpack.c.b16 %v3282, %v3282
    %v3411 = vpack.c.b16 %v3283, %v3283
    %v3412 = vpack.c.b16 %v3284, %v3284
    %v3413 = vpack.c.b16 %v3285, %v3285
    %v3414 = vpack.c.b16 %v3286, %v3286
    %v3415 = vpack.c.b16 %v3287, %v3287
    %v3416 = vpack.c.b16 %v3288, %v3288
    %v3417 = vpack.c.b16 %v3289, %v3289
    %v3418 = vpack.c.b16 %v3290, %v3290
    %v3419 = vpack.c.b16 %v3291, %v3291
    %v3420 = vpack.c.b16 %v3292, %v3292
    %v3421 = vpack.c.b16 %v3293, %v3293
    %v3422 = vpack.c.b16 %v3294, %v3294
    %v3423 = vpack.c.b16 %v3295, %v3295
    %v3424 = vpack.c.b16 %v3296, %v3296
    %v3425 = vpack.c.b16 %v3297, %v3297
    %v3426 = vpack.c.b16 %v3298, %v3298
    %v3427 = vpack.c.b16 %v3299, %v3299
    %v3428 = vpack.c.b16 %v3300, %v3300
    %v3429 = vpack.c.b16 %v3301, %v3301
    %v3430 = vpack.c.b16 %v3302, %v3302
    %v3431 = vpack.c.b16 %v3303, %v3303
    %v3432 = vpack.c.b16 %v3304, %v3304
    %v3433 = vpack.c.b16 %v3305, %v3305
    %v3434 = vpack.c.b16 %v3306, %v3306
    %v3435 = vpack.c.b16 %v3307, %v3307
    %v3436 = vpack.c.b16 %v3308, %v3308
    %v3437 = vpack.c.b16 %v3309, %v3309
    %v3438 = vpack.c.b16 %v3310, %v3310
    %v3439 = vpack.c.b16 %v3311, %v3311
    %v3440 = vpack.c.b16 %v3312, %v3312
    %v3441 = vpack.c.b16 %v3313, %v3313
    %3570 = vmatprep.subr.bf16.mxu0 %v2800
    %3571 = vmatpush1.bf16.xpose.msra.mxu0 %v2799
    %3572 = vmatprep.subr.bf16.mxu0 %v2864
    %3573 = vmatpush1.bf16.xpose.msra.mxu0 %v2863
    %3574 = vmatprep.subr.bf16.mxu0 0
    %3575 = vmatpush1.bf16.xpose.msra.mxu0 0
    %3576 = vmatprep.subr.bf16.mxu0 0
    %3577 = vmatpush1.bf16.xpose.msra.mxu0 0
    %3578 = vmatprep.subr.bf16.mxu0 0
    %3579 = vmatpush1.bf16.xpose.msra.mxu0 0
    %3580 = vmatprep.subr.bf16.mxu0 0
    %3581 = vmatpush1.bf16.xpose.msra.mxu0 0
    %3582 = vmatprep.subr.bf16.mxu0 0
    %3583 = vmatpush1.bf16.xpose.msra.mxu0 0
    %3584 = vmatprep.subr.bf16.mxu0 0
    %3585 = vmatpush1.bf16.xpose.msra.mxu0 0
    %3586 = vmatprep.subr.bf16.mxu0 0
    %3587 = vmatpush1.bf16.xpose.msra.mxu0 0
    %3588 = vmatprep.subr.bf16.mxu0 0
    %3589 = vmatpush1.bf16.xpose.msra.mxu0 0
    %3590 = vmatprep.subr.bf16.mxu0 0
    %3591 = vmatpush1.bf16.xpose.msra.mxu0 0
    %3592 = vmatprep.subr.bf16.mxu0 0
    %3593 = vmatpush1.bf16.xpose.msra.mxu0 0
    %3594 = vmatprep.subr.bf16.mxu0 0
    %3595 = vmatpush1.bf16.xpose.msra.mxu0 0
    %3596 = vmatprep.subr.bf16.mxu0 0
    %3597 = vmatpush1.bf16.xpose.msra.mxu0 0
    %3598 = vmatprep.subr.bf16.mxu0 0
    %3599 = vmatpush1.bf16.xpose.msra.mxu0 0
    %3600 = vmatprep.subr.bf16.mxu0 0
    %3601 = vmatpush1.bf16.xpose.msra.mxu0 0
    %3602 = vmatprep.mubr.bf16.mxu0 %v3315
    %3603 = vmatmul.mubr.bf16.gmra.mrb[0].mxu0 %v3314
    %v3604 = vpop.f32.mrb[0].mxu0
    %v3605 = vadd.f32 %v3023, %v3604
    %v3606 = vpop.f32.mrb[0].mxu0
    %v3607 = vpop.f32.mrb[0].mxu0
    %v3608 = vadd.f32 %v3024, %v3607
    %v3609 = vpop.f32.mrb[0].mxu0
    %3610 = vmatprep.mubr.bf16.mxu0 %v3379
    %3611 = vmatmul.mubr.bf16.gmra.mrb[0].mxu0 %v3378
    %v3612 = vpop.f32.mrb[0].mxu0
    %v3613 = vadd.f32 %v3025, %v3612
    %v3614 = vpop.f32.mrb[0].mxu0
    %v3615 = vpop.f32.mrb[0].mxu0
    %v3616 = vpop.f32.mrb[0].mxu0
    %3617 = vdwg.mxu0
    %3618 = vmatprep.subr.bf16.mxu0 %v2802
    %3619 = vmatpush1.bf16.xpose.msra.mxu0 %v2801
    %3620 = vmatprep.subr.bf16.mxu0 %v2866
    %3621 = vmatpush1.bf16.xpose.msra.mxu0 %v2865
    %3622 = vmatprep.subr.bf16.mxu0 0
    %3623 = vmatpush1.bf16.xpose.msra.mxu0 0
    %3624 = vmatprep.subr.bf16.mxu0 0
    %3625 = vmatpush1.bf16.xpose.msra.mxu0 0
    %3626 = vmatprep.subr.bf16.mxu0 0
    %3627 = vmatpush1.bf16.xpose.msra.mxu0 0
    %3628 = vmatprep.subr.bf16.mxu0 0
    %3629 = vmatpush1.bf16.xpose.msra.mxu0 0
    %3630 = vmatprep.subr.bf16.mxu0 0
    %3631 = vmatpush1.bf16.xpose.msra.mxu0 0
    %3632 = vmatprep.subr.bf16.mxu0 0
    %3633 = vmatpush1.bf16.xpose.msra.mxu0 0
    %3634 = vmatprep.subr.bf16.mxu0 0
    %3635 = vmatpush1.bf16.xpose.msra.mxu0 0
    %3636 = vmatprep.subr.bf16.mxu0 0
    %3637 = vmatpush1.bf16.xpose.msra.mxu0 0
    %3638 = vmatprep.subr.bf16.mxu0 0
    %3639 = vmatpush1.bf16.xpose.msra.mxu0 0
    %3640 = vmatprep.subr.bf16.mxu0 0
    %3641 = vmatpush1.bf16.xpose.msra.mxu0 0
    %3642 = vmatprep.subr.bf16.mxu0 0
    %3643 = vmatpush1.bf16.xpose.msra.mxu0 0
    %3644 = vmatprep.subr.bf16.mxu0 0
    %3645 = vmatpush1.bf16.xpose.msra.mxu0 0
    %3646 = vmatprep.subr.bf16.mxu0 0
    %3647 = vmatpush1.bf16.xpose.msra.mxu0 0
    %3648 = vmatprep.subr.bf16.mxu0 0
    %3649 = vmatpush1.bf16.xpose.msra.mxu0 0
    %3650 = vmatprep.mubr.bf16.mxu0 %v3317
    %3651 = vmatmul.mubr.bf16.gmra.mrb[0].mxu0 %v3316
    %v3652 = vpop.f32.mrb[0].mxu0
    %v3653 = vadd.f32 %v3605, %v3652
    %v3654 = vpop.f32.mrb[0].mxu0
    %v3655 = vpop.f32.mrb[0].mxu0
    %v3656 = vadd.f32 %v3608, %v3655
    %v3657 = vpop.f32.mrb[0].mxu0
    %3658 = vmatprep.mubr.bf16.mxu0 %v3381
    %3659 = vmatmul.mubr.bf16.gmra.mrb[0].mxu0 %v3380
    %v3660 = vpop.f32.mrb[0].mxu0
    %v3661 = vadd.f32 %v3613, %v3660
    %v3662 = vpop.f32.mrb[0].mxu0
    %v3663 = vpop.f32.mrb[0].mxu0
    %v3664 = vpop.f32.mrb[0].mxu0
    %3665 = vdwg.mxu0
    %3666 = vmatprep.subr.bf16.mxu0 %v2804
    %3667 = vmatpush1.bf16.xpose.msra.mxu0 %v2803
    %3668 = vmatprep.subr.bf16.mxu0 %v2868
    %3669 = vmatpush1.bf16.xpose.msra.mxu0 %v2867
    %3670 = vmatprep.subr.bf16.mxu0 0
    %3671 = vmatpush1.bf16.xpose.msra.mxu0 0
    %3672 = vmatprep.subr.bf16.mxu0 0
    %3673 = vmatpush1.bf16.xpose.msra.mxu0 0
    %3674 = vmatprep.subr.bf16.mxu0 0
    %3675 = vmatpush1.bf16.xpose.msra.mxu0 0
    %3676 = vmatprep.subr.bf16.mxu0 0
    %3677 = vmatpush1.bf16.xpose.msra.mxu0 0
    %3678 = vmatprep.subr.bf16.mxu0 0
    %3679 = vmatpush1.bf16.xpose.msra.mxu0 0
    %3680 = vmatprep.subr.bf16.mxu0 0
    %3681 = vmatpush1.bf16.xpose.msra.mxu0 0
    %3682 = vmatprep.subr.bf16.mxu0 0
    %3683 = vmatpush1.bf16.xpose.msra.mxu0 0
    %3684 = vmatprep.subr.bf16.mxu0 0
    %3685 = vmatpush1.bf16.xpose.msra.mxu0 0
    %3686 = vmatprep.subr.bf16.mxu0 0
    %3687 = vmatpush1.bf16.xpose.msra.mxu0 0
    %3688 = vmatprep.subr.bf16.mxu0 0
    %3689 = vmatpush1.bf16.xpose.msra.mxu0 0
    %3690 = vmatprep.subr.bf16.mxu0 0
    %3691 = vmatpush1.bf16.xpose.msra.mxu0 0
    %3692 = vmatprep.subr.bf16.mxu0 0
    %3693 = vmatpush1.bf16.xpose.msra.mxu0 0
    %3694 = vmatprep.subr.bf16.mxu0 0
    %3695 = vmatpush1.bf16.xpose.msra.mxu0 0
    %3696 = vmatprep.subr.bf16.mxu0 0
    %3697 = vmatpush1.bf16.xpose.msra.mxu0 0
    %3698 = vmatprep.mubr.bf16.mxu0 %v3319
    %3699 = vmatmul.mubr.bf16.gmra.mrb[0].mxu0 %v3318
    %v3700 = vpop.f32.mrb[0].mxu0
    %v3701 = vadd.f32 %v3653, %v3700
    %v3702 = vpop.f32.mrb[0].mxu0
    %v3703 = vpop.f32.mrb[0].mxu0
    %v3704 = vadd.f32 %v3656, %v3703
    %v3705 = vpop.f32.mrb[0].mxu0
    %3706 = vmatprep.mubr.bf16.mxu0 %v3383
    %3707 = vmatmul.mubr.bf16.gmra.mrb[0].mxu0 %v3382
    %v3708 = vpop.f32.mrb[0].mxu0
    %v3709 = vadd.f32 %v3661, %v3708
    %v3710 = vpop.f32.mrb[0].mxu0
    %v3711 = vpop.f32.mrb[0].mxu0
    %v3712 = vpop.f32.mrb[0].mxu0
    %3713 = vdwg.mxu0
    %3714 = vmatprep.subr.bf16.mxu0 %v2806
    %3715 = vmatpush1.bf16.xpose.msra.mxu0 %v2805
    %3716 = vmatprep.subr.bf16.mxu0 %v2870
    %3717 = vmatpush1.bf16.xpose.msra.mxu0 %v2869
    %3718 = vmatprep.subr.bf16.mxu0 0
    %3719 = vmatpush1.bf16.xpose.msra.mxu0 0
    %3720 = vmatprep.subr.bf16.mxu0 0
    %3721 = vmatpush1.bf16.xpose.msra.mxu0 0
    %3722 = vmatprep.subr.bf16.mxu0 0
    %3723 = vmatpush1.bf16.xpose.msra.mxu0 0
    %3724 = vmatprep.subr.bf16.mxu0 0
    %3725 = vmatpush1.bf16.xpose.msra.mxu0 0
    %3726 = vmatprep.subr.bf16.mxu0 0
    %3727 = vmatpush1.bf16.xpose.msra.mxu0 0
    %3728 = vmatprep.subr.bf16.mxu0 0
    %3729 = vmatpush1.bf16.xpose.msra.mxu0 0
    %3730 = vmatprep.subr.bf16.mxu0 0
    %3731 = vmatpush1.bf16.xpose.msra.mxu0 0
    %3732 = vmatprep.subr.bf16.mxu0 0
    %3733 = vmatpush1.bf16.xpose.msra.mxu0 0
    %3734 = vmatprep.subr.bf16.mxu0 0
    %3735 = vmatpush1.bf16.xpose.msra.mxu0 0
    %3736 = vmatprep.subr.bf16.mxu0 0
    %3737 = vmatpush1.bf16.xpose.msra.mxu0 0
    %3738 = vmatprep.subr.bf16.mxu0 0
    %3739 = vmatpush1.bf16.xpose.msra.mxu0 0
    %3740 = vmatprep.subr.bf16.mxu0 0
    %3741 = vmatpush1.bf16.xpose.msra.mxu0 0
    %3742 = vmatprep.subr.bf16.mxu0 0
    %3743 = vmatpush1.bf16.xpose.msra.mxu0 0
    %3744 = vmatprep.subr.bf16.mxu0 0
    %3745 = vmatpush1.bf16.xpose.msra.mxu0 0
    %3746 = vmatprep.mubr.bf16.mxu0 %v3321
    %3747 = vmatmul.mubr.bf16.gmra.mrb[0].mxu0 %v3320
    %v3748 = vpop.f32.mrb[0].mxu0
    %v3749 = vadd.f32 %v3701, %v3748
    %v3750 = vpop.f32.mrb[0].mxu0
    %v3751 = vpop.f32.mrb[0].mxu0
    %v3752 = vadd.f32 %v3704, %v3751
    %v3753 = vpop.f32.mrb[0].mxu0
    %3754 = vmatprep.mubr.bf16.mxu0 %v3385
    %3755 = vmatmul.mubr.bf16.gmra.mrb[0].mxu0 %v3384
    %v3756 = vpop.f32.mrb[0].mxu0
    %v3757 = vadd.f32 %v3709, %v3756
    %v3758 = vpop.f32.mrb[0].mxu0
    %v3759 = vpop.f32.mrb[0].mxu0
    %v3760 = vpop.f32.mrb[0].mxu0
    %3761 = vdwg.mxu0
    %3762 = vmatprep.subr.bf16.mxu0 %v2808
    %3763 = vmatpush1.bf16.xpose.msra.mxu0 %v2807
    %3764 = vmatprep.subr.bf16.mxu0 %v2872
    %3765 = vmatpush1.bf16.xpose.msra.mxu0 %v2871
    %3766 = vmatprep.subr.bf16.mxu0 0
    %3767 = vmatpush1.bf16.xpose.msra.mxu0 0
    %3768 = vmatprep.subr.bf16.mxu0 0
    %3769 = vmatpush1.bf16.xpose.msra.mxu0 0
    %3770 = vmatprep.subr.bf16.mxu0 0
    %3771 = vmatpush1.bf16.xpose.msra.mxu0 0
    %3772 = vmatprep.subr.bf16.mxu0 0
    %3773 = vmatpush1.bf16.xpose.msra.mxu0 0
    %3774 = vmatprep.subr.bf16.mxu0 0
    %3775 = vmatpush1.bf16.xpose.msra.mxu0 0
    %3776 = vmatprep.subr.bf16.mxu0 0
    %3777 = vmatpush1.bf16.xpose.msra.mxu0 0
    %3778 = vmatprep.subr.bf16.mxu0 0
    %3779 = vmatpush1.bf16.xpose.msra.mxu0 0
    %3780 = vmatprep.subr.bf16.mxu0 0
    %3781 = vmatpush1.bf16.xpose.msra.mxu0 0
    %3782 = vmatprep.subr.bf16.mxu0 0
    %3783 = vmatpush1.bf16.xpose.msra.mxu0 0
    %3784 = vmatprep.subr.bf16.mxu0 0
    %3785 = vmatpush1.bf16.xpose.msra.mxu0 0
    %3786 = vmatprep.subr.bf16.mxu0 0
    %3787 = vmatpush1.bf16.xpose.msra.mxu0 0
    %3788 = vmatprep.subr.bf16.mxu0 0
    %3789 = vmatpush1.bf16.xpose.msra.mxu0 0
    %3790 = vmatprep.subr.bf16.mxu0 0
    %3791 = vmatpush1.bf16.xpose.msra.mxu0 0
    %3792 = vmatprep.subr.bf16.mxu0 0
    %3793 = vmatpush1.bf16.xpose.msra.mxu0 0
    %3794 = vmatprep.mubr.bf16.mxu0 %v3323
    %3795 = vmatmul.mubr.bf16.gmra.mrb[0].mxu0 %v3322
    %v3796 = vpop.f32.mrb[0].mxu0
    %v3797 = vadd.f32 %v3749, %v3796
    %v3798 = vpop.f32.mrb[0].mxu0
    %v3799 = vpop.f32.mrb[0].mxu0
    %v3800 = vadd.f32 %v3752, %v3799
    %v3801 = vpop.f32.mrb[0].mxu0
    %3802 = vmatprep.mubr.bf16.mxu0 %v3387
    %3803 = vmatmul.mubr.bf16.gmra.mrb[0].mxu0 %v3386
    %v3804 = vpop.f32.mrb[0].mxu0
    %v3805 = vadd.f32 %v3757, %v3804
    %v3806 = vpop.f32.mrb[0].mxu0
    %v3807 = vpop.f32.mrb[0].mxu0
    %v3808 = vpop.f32.mrb[0].mxu0
    %3809 = vdwg.mxu0
    %3810 = vmatprep.subr.bf16.mxu0 %v2810
    %3811 = vmatpush1.bf16.xpose.msra.mxu0 %v2809
    %3812 = vmatprep.subr.bf16.mxu0 %v2874
    %3813 = vmatpush1.bf16.xpose.msra.mxu0 %v2873
    %3814 = vmatprep.subr.bf16.mxu0 0
    %3815 = vmatpush1.bf16.xpose.msra.mxu0 0
    %3816 = vmatprep.subr.bf16.mxu0 0
    %3817 = vmatpush1.bf16.xpose.msra.mxu0 0
    %3818 = vmatprep.subr.bf16.mxu0 0
    %3819 = vmatpush1.bf16.xpose.msra.mxu0 0
    %3820 = vmatprep.subr.bf16.mxu0 0
    %3821 = vmatpush1.bf16.xpose.msra.mxu0 0
    %3822 = vmatprep.subr.bf16.mxu0 0
    %3823 = vmatpush1.bf16.xpose.msra.mxu0 0
    %3824 = vmatprep.subr.bf16.mxu0 0
    %3825 = vmatpush1.bf16.xpose.msra.mxu0 0
    %3826 = vmatprep.subr.bf16.mxu0 0
    %3827 = vmatpush1.bf16.xpose.msra.mxu0 0
    %3828 = vmatprep.subr.bf16.mxu0 0
    %3829 = vmatpush1.bf16.xpose.msra.mxu0 0
    %3830 = vmatprep.subr.bf16.mxu0 0
    %3831 = vmatpush1.bf16.xpose.msra.mxu0 0
    %3832 = vmatprep.subr.bf16.mxu0 0
    %3833 = vmatpush1.bf16.xpose.msra.mxu0 0
    %3834 = vmatprep.subr.bf16.mxu0 0
    %3835 = vmatpush1.bf16.xpose.msra.mxu0 0
    %3836 = vmatprep.subr.bf16.mxu0 0
    %3837 = vmatpush1.bf16.xpose.msra.mxu0 0
    %3838 = vmatprep.subr.bf16.mxu0 0
    %3839 = vmatpush1.bf16.xpose.msra.mxu0 0
    %3840 = vmatprep.subr.bf16.mxu0 0
    %3841 = vmatpush1.bf16.xpose.msra.mxu0 0
    %3842 = vmatprep.mubr.bf16.mxu0 %v3325
    %3843 = vmatmul.mubr.bf16.gmra.mrb[0].mxu0 %v3324
    %v3844 = vpop.f32.mrb[0].mxu0
    %v3845 = vadd.f32 %v3797, %v3844
    %v3846 = vpop.f32.mrb[0].mxu0
    %v3847 = vpop.f32.mrb[0].mxu0
    %v3848 = vadd.f32 %v3800, %v3847
    %v3849 = vpop.f32.mrb[0].mxu0
    %3850 = vmatprep.mubr.bf16.mxu0 %v3389
    %3851 = vmatmul.mubr.bf16.gmra.mrb[0].mxu0 %v3388
    %v3852 = vpop.f32.mrb[0].mxu0
    %v3853 = vadd.f32 %v3805, %v3852
    %v3854 = vpop.f32.mrb[0].mxu0
    %v3855 = vpop.f32.mrb[0].mxu0
    %v3856 = vpop.f32.mrb[0].mxu0
    %3857 = vdwg.mxu0
    %3858 = vmatprep.subr.bf16.mxu0 %v2812
    %3859 = vmatpush1.bf16.xpose.msra.mxu0 %v2811
    %3860 = vmatprep.subr.bf16.mxu0 %v2876
    %3861 = vmatpush1.bf16.xpose.msra.mxu0 %v2875
    %3862 = vmatprep.subr.bf16.mxu0 0
    %3863 = vmatpush1.bf16.xpose.msra.mxu0 0
    %3864 = vmatprep.subr.bf16.mxu0 0
    %3865 = vmatpush1.bf16.xpose.msra.mxu0 0
    %3866 = vmatprep.subr.bf16.mxu0 0
    %3867 = vmatpush1.bf16.xpose.msra.mxu0 0
    %3868 = vmatprep.subr.bf16.mxu0 0
    %3869 = vmatpush1.bf16.xpose.msra.mxu0 0
    %3870 = vmatprep.subr.bf16.mxu0 0
    %3871 = vmatpush1.bf16.xpose.msra.mxu0 0
    %3872 = vmatprep.subr.bf16.mxu0 0
    %3873 = vmatpush1.bf16.xpose.msra.mxu0 0
    %3874 = vmatprep.subr.bf16.mxu0 0
    %3875 = vmatpush1.bf16.xpose.msra.mxu0 0
    %3876 = vmatprep.subr.bf16.mxu0 0
    %3877 = vmatpush1.bf16.xpose.msra.mxu0 0
    %3878 = vmatprep.subr.bf16.mxu0 0
    %3879 = vmatpush1.bf16.xpose.msra.mxu0 0
    %3880 = vmatprep.subr.bf16.mxu0 0
    %3881 = vmatpush1.bf16.xpose.msra.mxu0 0
    %3882 = vmatprep.subr.bf16.mxu0 0
    %3883 = vmatpush1.bf16.xpose.msra.mxu0 0
    %3884 = vmatprep.subr.bf16.mxu0 0
    %3885 = vmatpush1.bf16.xpose.msra.mxu0 0
    %3886 = vmatprep.subr.bf16.mxu0 0
    %3887 = vmatpush1.bf16.xpose.msra.mxu0 0
    %3888 = vmatprep.subr.bf16.mxu0 0
    %3889 = vmatpush1.bf16.xpose.msra.mxu0 0
    %3890 = vmatprep.mubr.bf16.mxu0 %v3327
    %3891 = vmatmul.mubr.bf16.gmra.mrb[0].mxu0 %v3326
    %v3892 = vpop.f32.mrb[0].mxu0
    %v3893 = vadd.f32 %v3845, %v3892
    %v3894 = vpop.f32.mrb[0].mxu0
    %v3895 = vpop.f32.mrb[0].mxu0
    %v3896 = vadd.f32 %v3848, %v3895
    %v3897 = vpop.f32.mrb[0].mxu0
    %3898 = vmatprep.mubr.bf16.mxu0 %v3391
    %3899 = vmatmul.mubr.bf16.gmra.mrb[0].mxu0 %v3390
    %v3900 = vpop.f32.mrb[0].mxu0
    %v3901 = vadd.f32 %v3853, %v3900
    %v3902 = vpop.f32.mrb[0].mxu0
    %v3903 = vpop.f32.mrb[0].mxu0
    %v3904 = vpop.f32.mrb[0].mxu0
    %3905 = vdwg.mxu0
    %3906 = vmatprep.subr.bf16.mxu0 %v2814
    %3907 = vmatpush1.bf16.xpose.msra.mxu0 %v2813
    %3908 = vmatprep.subr.bf16.mxu0 %v2878
    %3909 = vmatpush1.bf16.xpose.msra.mxu0 %v2877
    %3910 = vmatprep.subr.bf16.mxu0 0
    %3911 = vmatpush1.bf16.xpose.msra.mxu0 0
    %3912 = vmatprep.subr.bf16.mxu0 0
    %3913 = vmatpush1.bf16.xpose.msra.mxu0 0
    %3914 = vmatprep.subr.bf16.mxu0 0
    %3915 = vmatpush1.bf16.xpose.msra.mxu0 0
    %3916 = vmatprep.subr.bf16.mxu0 0
    %3917 = vmatpush1.bf16.xpose.msra.mxu0 0
    %3918 = vmatprep.subr.bf16.mxu0 0
    %3919 = vmatpush1.bf16.xpose.msra.mxu0 0
    %3920 = vmatprep.subr.bf16.mxu0 0
    %3921 = vmatpush1.bf16.xpose.msra.mxu0 0
    %3922 = vmatprep.subr.bf16.mxu0 0
    %3923 = vmatpush1.bf16.xpose.msra.mxu0 0
    %3924 = vmatprep.subr.bf16.mxu0 0
    %3925 = vmatpush1.bf16.xpose.msra.mxu0 0
    %3926 = vmatprep.subr.bf16.mxu0 0
    %3927 = vmatpush1.bf16.xpose.msra.mxu0 0
    %3928 = vmatprep.subr.bf16.mxu0 0
    %3929 = vmatpush1.bf16.xpose.msra.mxu0 0
    %3930 = vmatprep.subr.bf16.mxu0 0
    %3931 = vmatpush1.bf16.xpose.msra.mxu0 0
    %3932 = vmatprep.subr.bf16.mxu0 0
    %3933 = vmatpush1.bf16.xpose.msra.mxu0 0
    %3934 = vmatprep.subr.bf16.mxu0 0
    %3935 = vmatpush1.bf16.xpose.msra.mxu0 0
    %3936 = vmatprep.subr.bf16.mxu0 0
    %3937 = vmatpush1.bf16.xpose.msra.mxu0 0
    %3938 = vmatprep.mubr.bf16.mxu0 %v3329
    %3939 = vmatmul.mubr.bf16.gmra.mrb[0].mxu0 %v3328
    %v3940 = vpop.f32.mrb[0].mxu0
    %v3941 = vadd.f32 %v3893, %v3940
    %v3942 = vpop.f32.mrb[0].mxu0
    %v3943 = vpop.f32.mrb[0].mxu0
    %v3944 = vadd.f32 %v3896, %v3943
    %v3945 = vpop.f32.mrb[0].mxu0
    %3946 = vmatprep.mubr.bf16.mxu0 %v3393
    %3947 = vmatmul.mubr.bf16.gmra.mrb[0].mxu0 %v3392
    %v3948 = vpop.f32.mrb[0].mxu0
    %v3949 = vadd.f32 %v3901, %v3948
    %v3950 = vpop.f32.mrb[0].mxu0
    %v3951 = vpop.f32.mrb[0].mxu0
    %v3952 = vpop.f32.mrb[0].mxu0
    %3953 = vdwg.mxu0
    %3954 = vmatprep.subr.bf16.mxu0 %v2816
    %3955 = vmatpush1.bf16.xpose.msra.mxu0 %v2815
    %3956 = vmatprep.subr.bf16.mxu0 %v2880
    %3957 = vmatpush1.bf16.xpose.msra.mxu0 %v2879
    %3958 = vmatprep.subr.bf16.mxu0 0
    %3959 = vmatpush1.bf16.xpose.msra.mxu0 0
    %3960 = vmatprep.subr.bf16.mxu0 0
    %3961 = vmatpush1.bf16.xpose.msra.mxu0 0
    %3962 = vmatprep.subr.bf16.mxu0 0
    %3963 = vmatpush1.bf16.xpose.msra.mxu0 0
    %3964 = vmatprep.subr.bf16.mxu0 0
    %3965 = vmatpush1.bf16.xpose.msra.mxu0 0
    %3966 = vmatprep.subr.bf16.mxu0 0
    %3967 = vmatpush1.bf16.xpose.msra.mxu0 0
    %3968 = vmatprep.subr.bf16.mxu0 0
    %3969 = vmatpush1.bf16.xpose.msra.mxu0 0
    %3970 = vmatprep.subr.bf16.mxu0 0
    %3971 = vmatpush1.bf16.xpose.msra.mxu0 0
    %3972 = vmatprep.subr.bf16.mxu0 0
    %3973 = vmatpush1.bf16.xpose.msra.mxu0 0
    %3974 = vmatprep.subr.bf16.mxu0 0
    %3975 = vmatpush1.bf16.xpose.msra.mxu0 0
    %3976 = vmatprep.subr.bf16.mxu0 0
    %3977 = vmatpush1.bf16.xpose.msra.mxu0 0
    %3978 = vmatprep.subr.bf16.mxu0 0
    %3979 = vmatpush1.bf16.xpose.msra.mxu0 0
    %3980 = vmatprep.subr.bf16.mxu0 0
    %3981 = vmatpush1.bf16.xpose.msra.mxu0 0
    %3982 = vmatprep.subr.bf16.mxu0 0
    %3983 = vmatpush1.bf16.xpose.msra.mxu0 0
    %3984 = vmatprep.subr.bf16.mxu0 0
    %3985 = vmatpush1.bf16.xpose.msra.mxu0 0
    %3986 = vmatprep.mubr.bf16.mxu0 %v3331
    %3987 = vmatmul.mubr.bf16.gmra.mrb[0].mxu0 %v3330
    %v3988 = vpop.f32.mrb[0].mxu0
    %v3989 = vadd.f32 %v3941, %v3988
    %v3990 = vpop.f32.mrb[0].mxu0
    %v3991 = vpop.f32.mrb[0].mxu0
    %v3992 = vadd.f32 %v3944, %v3991
    %v3993 = vpop.f32.mrb[0].mxu0
    %3994 = vmatprep.mubr.bf16.mxu0 %v3395
    %3995 = vmatmul.mubr.bf16.gmra.mrb[0].mxu0 %v3394
    %v3996 = vpop.f32.mrb[0].mxu0
    %v3997 = vadd.f32 %v3949, %v3996
    %v3998 = vpop.f32.mrb[0].mxu0
    %v3999 = vpop.f32.mrb[0].mxu0
    %v4000 = vpop.f32.mrb[0].mxu0
    %4001 = vdwg.mxu0
    %4002 = vmatprep.subr.bf16.mxu0 %v2818
    %4003 = vmatpush1.bf16.xpose.msra.mxu0 %v2817
    %4004 = vmatprep.subr.bf16.mxu0 %v2882
    %4005 = vmatpush1.bf16.xpose.msra.mxu0 %v2881
    %4006 = vmatprep.subr.bf16.mxu0 0
    %4007 = vmatpush1.bf16.xpose.msra.mxu0 0
    %4008 = vmatprep.subr.bf16.mxu0 0
    %4009 = vmatpush1.bf16.xpose.msra.mxu0 0
    %4010 = vmatprep.subr.bf16.mxu0 0
    %4011 = vmatpush1.bf16.xpose.msra.mxu0 0
    %4012 = vmatprep.subr.bf16.mxu0 0
    %4013 = vmatpush1.bf16.xpose.msra.mxu0 0
    %4014 = vmatprep.subr.bf16.mxu0 0
    %4015 = vmatpush1.bf16.xpose.msra.mxu0 0
    %4016 = vmatprep.subr.bf16.mxu0 0
    %4017 = vmatpush1.bf16.xpose.msra.mxu0 0
    %4018 = vmatprep.subr.bf16.mxu0 0
    %4019 = vmatpush1.bf16.xpose.msra.mxu0 0
    %4020 = vmatprep.subr.bf16.mxu0 0
    %4021 = vmatpush1.bf16.xpose.msra.mxu0 0
    %4022 = vmatprep.subr.bf16.mxu0 0
    %4023 = vmatpush1.bf16.xpose.msra.mxu0 0
    %4024 = vmatprep.subr.bf16.mxu0 0
    %4025 = vmatpush1.bf16.xpose.msra.mxu0 0
    %4026 = vmatprep.subr.bf16.mxu0 0
    %4027 = vmatpush1.bf16.xpose.msra.mxu0 0
    %4028 = vmatprep.subr.bf16.mxu0 0
    %4029 = vmatpush1.bf16.xpose.msra.mxu0 0
    %4030 = vmatprep.subr.bf16.mxu0 0
    %4031 = vmatpush1.bf16.xpose.msra.mxu0 0
    %4032 = vmatprep.subr.bf16.mxu0 0
    %4033 = vmatpush1.bf16.xpose.msra.mxu0 0
    %4034 = vmatprep.mubr.bf16.mxu0 %v3333
    %4035 = vmatmul.mubr.bf16.gmra.mrb[0].mxu0 %v3332
    %v4036 = vpop.f32.mrb[0].mxu0
    %v4037 = vadd.f32 %v3989, %v4036
    %v4038 = vpop.f32.mrb[0].mxu0
    %v4039 = vpop.f32.mrb[0].mxu0
    %v4040 = vadd.f32 %v3992, %v4039
    %v4041 = vpop.f32.mrb[0].mxu0
    %4042 = vmatprep.mubr.bf16.mxu0 %v3397
    %4043 = vmatmul.mubr.bf16.gmra.mrb[0].mxu0 %v3396
    %v4044 = vpop.f32.mrb[0].mxu0
    %v4045 = vadd.f32 %v3997, %v4044
    %v4046 = vpop.f32.mrb[0].mxu0
    %v4047 = vpop.f32.mrb[0].mxu0
    %v4048 = vpop.f32.mrb[0].mxu0
    %4049 = vdwg.mxu0
    %4050 = vmatprep.subr.bf16.mxu0 %v2820
    %4051 = vmatpush1.bf16.xpose.msra.mxu0 %v2819
    %4052 = vmatprep.subr.bf16.mxu0 %v2884
    %4053 = vmatpush1.bf16.xpose.msra.mxu0 %v2883
    %4054 = vmatprep.subr.bf16.mxu0 0
    %4055 = vmatpush1.bf16.xpose.msra.mxu0 0
    %4056 = vmatprep.subr.bf16.mxu0 0
    %4057 = vmatpush1.bf16.xpose.msra.mxu0 0
    %4058 = vmatprep.subr.bf16.mxu0 0
    %4059 = vmatpush1.bf16.xpose.msra.mxu0 0
    %4060 = vmatprep.subr.bf16.mxu0 0
    %4061 = vmatpush1.bf16.xpose.msra.mxu0 0
    %4062 = vmatprep.subr.bf16.mxu0 0
    %4063 = vmatpush1.bf16.xpose.msra.mxu0 0
    %4064 = vmatprep.subr.bf16.mxu0 0
    %4065 = vmatpush1.bf16.xpose.msra.mxu0 0
    %4066 = vmatprep.subr.bf16.mxu0 0
    %4067 = vmatpush1.bf16.xpose.msra.mxu0 0
    %4068 = vmatprep.subr.bf16.mxu0 0
    %4069 = vmatpush1.bf16.xpose.msra.mxu0 0
    %4070 = vmatprep.subr.bf16.mxu0 0
    %4071 = vmatpush1.bf16.xpose.msra.mxu0 0
    %4072 = vmatprep.subr.bf16.mxu0 0
    %4073 = vmatpush1.bf16.xpose.msra.mxu0 0
    %4074 = vmatprep.subr.bf16.mxu0 0
    %4075 = vmatpush1.bf16.xpose.msra.mxu0 0
    %4076 = vmatprep.subr.bf16.mxu0 0
    %4077 = vmatpush1.bf16.xpose.msra.mxu0 0
    %4078 = vmatprep.subr.bf16.mxu0 0
    %4079 = vmatpush1.bf16.xpose.msra.mxu0 0
    %4080 = vmatprep.subr.bf16.mxu0 0
    %4081 = vmatpush1.bf16.xpose.msra.mxu0 0
    %4082 = vmatprep.mubr.bf16.mxu0 %v3335
    %4083 = vmatmul.mubr.bf16.gmra.mrb[0].mxu0 %v3334
    %v4084 = vpop.f32.mrb[0].mxu0
    %v4085 = vadd.f32 %v4037, %v4084
    %v4086 = vpop.f32.mrb[0].mxu0
    %v4087 = vpop.f32.mrb[0].mxu0
    %v4088 = vadd.f32 %v4040, %v4087
    %v4089 = vpop.f32.mrb[0].mxu0
    %4090 = vmatprep.mubr.bf16.mxu0 %v3399
    %4091 = vmatmul.mubr.bf16.gmra.mrb[0].mxu0 %v3398
    %v4092 = vpop.f32.mrb[0].mxu0
    %v4093 = vadd.f32 %v4045, %v4092
    %v4094 = vpop.f32.mrb[0].mxu0
    %v4095 = vpop.f32.mrb[0].mxu0
    %v4096 = vpop.f32.mrb[0].mxu0
    %4097 = vdwg.mxu0
    %4098 = vmatprep.subr.bf16.mxu0 %v2822
    %4099 = vmatpush1.bf16.xpose.msra.mxu0 %v2821
    %4100 = vmatprep.subr.bf16.mxu0 %v2886
    %4101 = vmatpush1.bf16.xpose.msra.mxu0 %v2885
    %4102 = vmatprep.subr.bf16.mxu0 0
    %4103 = vmatpush1.bf16.xpose.msra.mxu0 0
    %4104 = vmatprep.subr.bf16.mxu0 0
    %4105 = vmatpush1.bf16.xpose.msra.mxu0 0
    %4106 = vmatprep.subr.bf16.mxu0 0
    %4107 = vmatpush1.bf16.xpose.msra.mxu0 0
    %4108 = vmatprep.subr.bf16.mxu0 0
    %4109 = vmatpush1.bf16.xpose.msra.mxu0 0
    %4110 = vmatprep.subr.bf16.mxu0 0
    %4111 = vmatpush1.bf16.xpose.msra.mxu0 0
    %4112 = vmatprep.subr.bf16.mxu0 0
    %4113 = vmatpush1.bf16.xpose.msra.mxu0 0
    %4114 = vmatprep.subr.bf16.mxu0 0
    %4115 = vmatpush1.bf16.xpose.msra.mxu0 0
    %4116 = vmatprep.subr.bf16.mxu0 0
    %4117 = vmatpush1.bf16.xpose.msra.mxu0 0
    %4118 = vmatprep.subr.bf16.mxu0 0
    %4119 = vmatpush1.bf16.xpose.msra.mxu0 0
    %4120 = vmatprep.subr.bf16.mxu0 0
    %4121 = vmatpush1.bf16.xpose.msra.mxu0 0
    %4122 = vmatprep.subr.bf16.mxu0 0
    %4123 = vmatpush1.bf16.xpose.msra.mxu0 0
    %4124 = vmatprep.subr.bf16.mxu0 0
    %4125 = vmatpush1.bf16.xpose.msra.mxu0 0
    %4126 = vmatprep.subr.bf16.mxu0 0
    %4127 = vmatpush1.bf16.xpose.msra.mxu0 0
    %4128 = vmatprep.subr.bf16.mxu0 0
    %4129 = vmatpush1.bf16.xpose.msra.mxu0 0
    %4130 = vmatprep.mubr.bf16.mxu0 %v3337
    %4131 = vmatmul.mubr.bf16.gmra.mrb[0].mxu0 %v3336
    %v4132 = vpop.f32.mrb[0].mxu0
    %v4133 = vadd.f32 %v4085, %v4132
    %v4134 = vpop.f32.mrb[0].mxu0
    %v4135 = vpop.f32.mrb[0].mxu0
    %v4136 = vadd.f32 %v4088, %v4135
    %v4137 = vpop.f32.mrb[0].mxu0
    %4138 = vmatprep.mubr.bf16.mxu0 %v3401
    %4139 = vmatmul.mubr.bf16.gmra.mrb[0].mxu0 %v3400
    %v4140 = vpop.f32.mrb[0].mxu0
    %v4141 = vadd.f32 %v4093, %v4140
    %v4142 = vpop.f32.mrb[0].mxu0
    %v4143 = vpop.f32.mrb[0].mxu0
    %v4144 = vpop.f32.mrb[0].mxu0
    %4145 = vdwg.mxu0
    %4146 = vmatprep.subr.bf16.mxu0 %v2824
    %4147 = vmatpush1.bf16.xpose.msra.mxu0 %v2823
    %4148 = vmatprep.subr.bf16.mxu0 %v2888
    %4149 = vmatpush1.bf16.xpose.msra.mxu0 %v2887
    %4150 = vmatprep.subr.bf16.mxu0 0
    %4151 = vmatpush1.bf16.xpose.msra.mxu0 0
    %4152 = vmatprep.subr.bf16.mxu0 0
    %4153 = vmatpush1.bf16.xpose.msra.mxu0 0
    %4154 = vmatprep.subr.bf16.mxu0 0
    %4155 = vmatpush1.bf16.xpose.msra.mxu0 0
    %4156 = vmatprep.subr.bf16.mxu0 0
    %4157 = vmatpush1.bf16.xpose.msra.mxu0 0
    %4158 = vmatprep.subr.bf16.mxu0 0
    %4159 = vmatpush1.bf16.xpose.msra.mxu0 0
    %4160 = vmatprep.subr.bf16.mxu0 0
    %4161 = vmatpush1.bf16.xpose.msra.mxu0 0
    %4162 = vmatprep.subr.bf16.mxu0 0
    %4163 = vmatpush1.bf16.xpose.msra.mxu0 0
    %4164 = vmatprep.subr.bf16.mxu0 0
    %4165 = vmatpush1.bf16.xpose.msra.mxu0 0
    %4166 = vmatprep.subr.bf16.mxu0 0
    %4167 = vmatpush1.bf16.xpose.msra.mxu0 0
    %4168 = vmatprep.subr.bf16.mxu0 0
    %4169 = vmatpush1.bf16.xpose.msra.mxu0 0
    %4170 = vmatprep.subr.bf16.mxu0 0
    %4171 = vmatpush1.bf16.xpose.msra.mxu0 0
    %4172 = vmatprep.subr.bf16.mxu0 0
    %4173 = vmatpush1.bf16.xpose.msra.mxu0 0
    %4174 = vmatprep.subr.bf16.mxu0 0
    %4175 = vmatpush1.bf16.xpose.msra.mxu0 0
    %4176 = vmatprep.subr.bf16.mxu0 0
    %4177 = vmatpush1.bf16.xpose.msra.mxu0 0
    %4178 = vmatprep.mubr.bf16.mxu0 %v3339
    %4179 = vmatmul.mubr.bf16.gmra.mrb[0].mxu0 %v3338
    %v4180 = vpop.f32.mrb[0].mxu0
    %v4181 = vadd.f32 %v4133, %v4180
    %v4182 = vpop.f32.mrb[0].mxu0
    %v4183 = vpop.f32.mrb[0].mxu0
    %v4184 = vadd.f32 %v4136, %v4183
    %v4185 = vpop.f32.mrb[0].mxu0
    %4186 = vmatprep.mubr.bf16.mxu0 %v3403
    %4187 = vmatmul.mubr.bf16.gmra.mrb[0].mxu0 %v3402
    %v4188 = vpop.f32.mrb[0].mxu0
    %v4189 = vadd.f32 %v4141, %v4188
    %v4190 = vpop.f32.mrb[0].mxu0
    %v4191 = vpop.f32.mrb[0].mxu0
    %v4192 = vpop.f32.mrb[0].mxu0
    %4193 = vdwg.mxu0
    %4194 = vmatprep.subr.bf16.mxu0 %v2826
    %4195 = vmatpush1.bf16.xpose.msra.mxu0 %v2825
    %4196 = vmatprep.subr.bf16.mxu0 %v2890
    %4197 = vmatpush1.bf16.xpose.msra.mxu0 %v2889
    %4198 = vmatprep.subr.bf16.mxu0 0
    %4199 = vmatpush1.bf16.xpose.msra.mxu0 0
    %4200 = vmatprep.subr.bf16.mxu0 0
    %4201 = vmatpush1.bf16.xpose.msra.mxu0 0
    %4202 = vmatprep.subr.bf16.mxu0 0
    %4203 = vmatpush1.bf16.xpose.msra.mxu0 0
    %4204 = vmatprep.subr.bf16.mxu0 0
    %4205 = vmatpush1.bf16.xpose.msra.mxu0 0
    %4206 = vmatprep.subr.bf16.mxu0 0
    %4207 = vmatpush1.bf16.xpose.msra.mxu0 0
    %4208 = vmatprep.subr.bf16.mxu0 0
    %4209 = vmatpush1.bf16.xpose.msra.mxu0 0
    %4210 = vmatprep.subr.bf16.mxu0 0
    %4211 = vmatpush1.bf16.xpose.msra.mxu0 0
    %4212 = vmatprep.subr.bf16.mxu0 0
    %4213 = vmatpush1.bf16.xpose.msra.mxu0 0
    %4214 = vmatprep.subr.bf16.mxu0 0
    %4215 = vmatpush1.bf16.xpose.msra.mxu0 0
    %4216 = vmatprep.subr.bf16.mxu0 0
    %4217 = vmatpush1.bf16.xpose.msra.mxu0 0
    %4218 = vmatprep.subr.bf16.mxu0 0
    %4219 = vmatpush1.bf16.xpose.msra.mxu0 0
    %4220 = vmatprep.subr.bf16.mxu0 0
    %4221 = vmatpush1.bf16.xpose.msra.mxu0 0
    %4222 = vmatprep.subr.bf16.mxu0 0
    %4223 = vmatpush1.bf16.xpose.msra.mxu0 0
    %4224 = vmatprep.subr.bf16.mxu0 0
    %4225 = vmatpush1.bf16.xpose.msra.mxu0 0
    %4226 = vmatprep.mubr.bf16.mxu0 %v3341
    %4227 = vmatmul.mubr.bf16.gmra.mrb[0].mxu0 %v3340
    %v4228 = vpop.f32.mrb[0].mxu0
    %v4229 = vadd.f32 %v4181, %v4228
    %v4230 = vpop.f32.mrb[0].mxu0
    %v4231 = vpop.f32.mrb[0].mxu0
    %v4232 = vadd.f32 %v4184, %v4231
    %v4233 = vpop.f32.mrb[0].mxu0
    %4234 = vmatprep.mubr.bf16.mxu0 %v3405
    %4235 = vmatmul.mubr.bf16.gmra.mrb[0].mxu0 %v3404
    %v4236 = vpop.f32.mrb[0].mxu0
    %v4237 = vadd.f32 %v4189, %v4236
    %v4238 = vpop.f32.mrb[0].mxu0
    %v4239 = vpop.f32.mrb[0].mxu0
    %v4240 = vpop.f32.mrb[0].mxu0
    %4241 = vdwg.mxu0
    %4242 = vmatprep.subr.bf16.mxu0 %v2828
    %4243 = vmatpush1.bf16.xpose.msra.mxu0 %v2827
    %4244 = vmatprep.subr.bf16.mxu0 %v2892
    %4245 = vmatpush1.bf16.xpose.msra.mxu0 %v2891
    %4246 = vmatprep.subr.bf16.mxu0 0
    %4247 = vmatpush1.bf16.xpose.msra.mxu0 0
    %4248 = vmatprep.subr.bf16.mxu0 0
    %4249 = vmatpush1.bf16.xpose.msra.mxu0 0
    %4250 = vmatprep.subr.bf16.mxu0 0
    %4251 = vmatpush1.bf16.xpose.msra.mxu0 0
    %4252 = vmatprep.subr.bf16.mxu0 0
    %4253 = vmatpush1.bf16.xpose.msra.mxu0 0
    %4254 = vmatprep.subr.bf16.mxu0 0
    %4255 = vmatpush1.bf16.xpose.msra.mxu0 0
    %4256 = vmatprep.subr.bf16.mxu0 0
    %4257 = vmatpush1.bf16.xpose.msra.mxu0 0
    %4258 = vmatprep.subr.bf16.mxu0 0
    %4259 = vmatpush1.bf16.xpose.msra.mxu0 0
    %4260 = vmatprep.subr.bf16.mxu0 0
    %4261 = vmatpush1.bf16.xpose.msra.mxu0 0
    %4262 = vmatprep.subr.bf16.mxu0 0
    %4263 = vmatpush1.bf16.xpose.msra.mxu0 0
    %4264 = vmatprep.subr.bf16.mxu0 0
    %4265 = vmatpush1.bf16.xpose.msra.mxu0 0
    %4266 = vmatprep.subr.bf16.mxu0 0
    %4267 = vmatpush1.bf16.xpose.msra.mxu0 0
    %4268 = vmatprep.subr.bf16.mxu0 0
    %4269 = vmatpush1.bf16.xpose.msra.mxu0 0
    %4270 = vmatprep.subr.bf16.mxu0 0
    %4271 = vmatpush1.bf16.xpose.msra.mxu0 0
    %4272 = vmatprep.subr.bf16.mxu0 0
    %4273 = vmatpush1.bf16.xpose.msra.mxu0 0
    %4274 = vmatprep.mubr.bf16.mxu0 %v3343
    %4275 = vmatmul.mubr.bf16.gmra.mrb[0].mxu0 %v3342
    %v4276 = vpop.f32.mrb[0].mxu0
    %v4277 = vadd.f32 %v4229, %v4276
    %v4278 = vpop.f32.mrb[0].mxu0
    %v4279 = vpop.f32.mrb[0].mxu0
    %v4280 = vadd.f32 %v4232, %v4279
    %v4281 = vpop.f32.mrb[0].mxu0
    %4282 = vmatprep.mubr.bf16.mxu0 %v3407
    %4283 = vmatmul.mubr.bf16.gmra.mrb[0].mxu0 %v3406
    %v4284 = vpop.f32.mrb[0].mxu0
    %v4285 = vadd.f32 %v4237, %v4284
    %v4286 = vpop.f32.mrb[0].mxu0
    %v4287 = vpop.f32.mrb[0].mxu0
    %v4288 = vpop.f32.mrb[0].mxu0
    %4289 = vdwg.mxu0
    %4290 = vmatprep.subr.bf16.mxu0 %v2830
    %4291 = vmatpush1.bf16.xpose.msra.mxu0 %v2829
    %4292 = vmatprep.subr.bf16.mxu0 %v2894
    %4293 = vmatpush1.bf16.xpose.msra.mxu0 %v2893
    %4294 = vmatprep.subr.bf16.mxu0 0
    %4295 = vmatpush1.bf16.xpose.msra.mxu0 0
    %4296 = vmatprep.subr.bf16.mxu0 0
    %4297 = vmatpush1.bf16.xpose.msra.mxu0 0
    %4298 = vmatprep.subr.bf16.mxu0 0
    %4299 = vmatpush1.bf16.xpose.msra.mxu0 0
    %4300 = vmatprep.subr.bf16.mxu0 0
    %4301 = vmatpush1.bf16.xpose.msra.mxu0 0
    %4302 = vmatprep.subr.bf16.mxu0 0
    %4303 = vmatpush1.bf16.xpose.msra.mxu0 0
    %4304 = vmatprep.subr.bf16.mxu0 0
    %4305 = vmatpush1.bf16.xpose.msra.mxu0 0
    %4306 = vmatprep.subr.bf16.mxu0 0
    %4307 = vmatpush1.bf16.xpose.msra.mxu0 0
    %4308 = vmatprep.subr.bf16.mxu0 0
    %4309 = vmatpush1.bf16.xpose.msra.mxu0 0
    %4310 = vmatprep.subr.bf16.mxu0 0
    %4311 = vmatpush1.bf16.xpose.msra.mxu0 0
    %4312 = vmatprep.subr.bf16.mxu0 0
    %4313 = vmatpush1.bf16.xpose.msra.mxu0 0
    %4314 = vmatprep.subr.bf16.mxu0 0
    %4315 = vmatpush1.bf16.xpose.msra.mxu0 0
    %4316 = vmatprep.subr.bf16.mxu0 0
    %4317 = vmatpush1.bf16.xpose.msra.mxu0 0
    %4318 = vmatprep.subr.bf16.mxu0 0
    %4319 = vmatpush1.bf16.xpose.msra.mxu0 0
    %4320 = vmatprep.subr.bf16.mxu0 0
    %4321 = vmatpush1.bf16.xpose.msra.mxu0 0
    %4322 = vmatprep.mubr.bf16.mxu0 %v3345
    %4323 = vmatmul.mubr.bf16.gmra.mrb[0].mxu0 %v3344
    %v4324 = vpop.f32.mrb[0].mxu0
    %v4325 = vadd.f32 %v4277, %v4324
    %v4326 = vpop.f32.mrb[0].mxu0
    %v4327 = vpop.f32.mrb[0].mxu0
    %v4328 = vadd.f32 %v4280, %v4327
    %v4329 = vpop.f32.mrb[0].mxu0
    %4330 = vmatprep.mubr.bf16.mxu0 %v3409
    %4331 = vmatmul.mubr.bf16.gmra.mrb[0].mxu0 %v3408
    %v4332 = vpop.f32.mrb[0].mxu0
    %v4333 = vadd.f32 %v4285, %v4332
    %v4334 = vpop.f32.mrb[0].mxu0
    %v4335 = vpop.f32.mrb[0].mxu0
    %v4336 = vpop.f32.mrb[0].mxu0
    %4337 = vdwg.mxu0
    %4338 = vmatprep.subr.bf16.mxu0 %v2832
    %4339 = vmatpush1.bf16.xpose.msra.mxu0 %v2831
    %4340 = vmatprep.subr.bf16.mxu0 %v2896
    %4341 = vmatpush1.bf16.xpose.msra.mxu0 %v2895
    %4342 = vmatprep.subr.bf16.mxu0 0
    %4343 = vmatpush1.bf16.xpose.msra.mxu0 0
    %4344 = vmatprep.subr.bf16.mxu0 0
    %4345 = vmatpush1.bf16.xpose.msra.mxu0 0
    %4346 = vmatprep.subr.bf16.mxu0 0
    %4347 = vmatpush1.bf16.xpose.msra.mxu0 0
    %4348 = vmatprep.subr.bf16.mxu0 0
    %4349 = vmatpush1.bf16.xpose.msra.mxu0 0
    %4350 = vmatprep.subr.bf16.mxu0 0
    %4351 = vmatpush1.bf16.xpose.msra.mxu0 0
    %4352 = vmatprep.subr.bf16.mxu0 0
    %4353 = vmatpush1.bf16.xpose.msra.mxu0 0
    %4354 = vmatprep.subr.bf16.mxu0 0
    %4355 = vmatpush1.bf16.xpose.msra.mxu0 0
    %4356 = vmatprep.subr.bf16.mxu0 0
    %4357 = vmatpush1.bf16.xpose.msra.mxu0 0
    %4358 = vmatprep.subr.bf16.mxu0 0
    %4359 = vmatpush1.bf16.xpose.msra.mxu0 0
    %4360 = vmatprep.subr.bf16.mxu0 0
    %4361 = vmatpush1.bf16.xpose.msra.mxu0 0
    %4362 = vmatprep.subr.bf16.mxu0 0
    %4363 = vmatpush1.bf16.xpose.msra.mxu0 0
    %4364 = vmatprep.subr.bf16.mxu0 0
    %4365 = vmatpush1.bf16.xpose.msra.mxu0 0
    %4366 = vmatprep.subr.bf16.mxu0 0
    %4367 = vmatpush1.bf16.xpose.msra.mxu0 0
    %4368 = vmatprep.subr.bf16.mxu0 0
    %4369 = vmatpush1.bf16.xpose.msra.mxu0 0
    %4370 = vmatprep.mubr.bf16.mxu0 %v3347
    %4371 = vmatmul.mubr.bf16.gmra.mrb[0].mxu0 %v3346
    %v4372 = vpop.f32.mrb[0].mxu0
    %v4373 = vadd.f32 %v4325, %v4372
    %v4374 = vpop.f32.mrb[0].mxu0
    %v4375 = vpop.f32.mrb[0].mxu0
    %v4376 = vadd.f32 %v4328, %v4375
    %v4377 = vpop.f32.mrb[0].mxu0
    %4378 = vmatprep.mubr.bf16.mxu0 %v3411
    %4379 = vmatmul.mubr.bf16.gmra.mrb[0].mxu0 %v3410
    %v4380 = vpop.f32.mrb[0].mxu0
    %v4381 = vadd.f32 %v4333, %v4380
    %v4382 = vpop.f32.mrb[0].mxu0
    %v4383 = vpop.f32.mrb[0].mxu0
    %v4384 = vpop.f32.mrb[0].mxu0
    %4385 = vdwg.mxu0
    %4386 = vmatprep.subr.bf16.mxu0 %v2834
    %4387 = vmatpush1.bf16.xpose.msra.mxu0 %v2833
    %4388 = vmatprep.subr.bf16.mxu0 %v2898
    %4389 = vmatpush1.bf16.xpose.msra.mxu0 %v2897
    %4390 = vmatprep.subr.bf16.mxu0 0
    %4391 = vmatpush1.bf16.xpose.msra.mxu0 0
    %4392 = vmatprep.subr.bf16.mxu0 0
    %4393 = vmatpush1.bf16.xpose.msra.mxu0 0
    %4394 = vmatprep.subr.bf16.mxu0 0
    %4395 = vmatpush1.bf16.xpose.msra.mxu0 0
    %4396 = vmatprep.subr.bf16.mxu0 0
    %4397 = vmatpush1.bf16.xpose.msra.mxu0 0
    %4398 = vmatprep.subr.bf16.mxu0 0
    %4399 = vmatpush1.bf16.xpose.msra.mxu0 0
    %4400 = vmatprep.subr.bf16.mxu0 0
    %4401 = vmatpush1.bf16.xpose.msra.mxu0 0
    %4402 = vmatprep.subr.bf16.mxu0 0
    %4403 = vmatpush1.bf16.xpose.msra.mxu0 0
    %4404 = vmatprep.subr.bf16.mxu0 0
    %4405 = vmatpush1.bf16.xpose.msra.mxu0 0
    %4406 = vmatprep.subr.bf16.mxu0 0
    %4407 = vmatpush1.bf16.xpose.msra.mxu0 0
    %4408 = vmatprep.subr.bf16.mxu0 0
    %4409 = vmatpush1.bf16.xpose.msra.mxu0 0
    %4410 = vmatprep.subr.bf16.mxu0 0
    %4411 = vmatpush1.bf16.xpose.msra.mxu0 0
    %4412 = vmatprep.subr.bf16.mxu0 0
    %4413 = vmatpush1.bf16.xpose.msra.mxu0 0
    %4414 = vmatprep.subr.bf16.mxu0 0
    %4415 = vmatpush1.bf16.xpose.msra.mxu0 0
    %4416 = vmatprep.subr.bf16.mxu0 0
    %4417 = vmatpush1.bf16.xpose.msra.mxu0 0
    %4418 = vmatprep.mubr.bf16.mxu0 %v3349
    %4419 = vmatmul.mubr.bf16.gmra.mrb[0].mxu0 %v3348
    %v4420 = vpop.f32.mrb[0].mxu0
    %v4421 = vadd.f32 %v4373, %v4420
    %v4422 = vpop.f32.mrb[0].mxu0
    %v4423 = vpop.f32.mrb[0].mxu0
    %v4424 = vadd.f32 %v4376, %v4423
    %v4425 = vpop.f32.mrb[0].mxu0
    %4426 = vmatprep.mubr.bf16.mxu0 %v3413
    %4427 = vmatmul.mubr.bf16.gmra.mrb[0].mxu0 %v3412
    %v4428 = vpop.f32.mrb[0].mxu0
    %v4429 = vadd.f32 %v4381, %v4428
    %v4430 = vpop.f32.mrb[0].mxu0
    %v4431 = vpop.f32.mrb[0].mxu0
    %v4432 = vpop.f32.mrb[0].mxu0
    %4433 = vdwg.mxu0
    %4434 = vmatprep.subr.bf16.mxu0 %v2836
    %4435 = vmatpush1.bf16.xpose.msra.mxu0 %v2835
    %4436 = vmatprep.subr.bf16.mxu0 %v2900
    %4437 = vmatpush1.bf16.xpose.msra.mxu0 %v2899
    %4438 = vmatprep.subr.bf16.mxu0 0
    %4439 = vmatpush1.bf16.xpose.msra.mxu0 0
    %4440 = vmatprep.subr.bf16.mxu0 0
    %4441 = vmatpush1.bf16.xpose.msra.mxu0 0
    %4442 = vmatprep.subr.bf16.mxu0 0
    %4443 = vmatpush1.bf16.xpose.msra.mxu0 0
    %4444 = vmatprep.subr.bf16.mxu0 0
    %4445 = vmatpush1.bf16.xpose.msra.mxu0 0
    %4446 = vmatprep.subr.bf16.mxu0 0
    %4447 = vmatpush1.bf16.xpose.msra.mxu0 0
    %4448 = vmatprep.subr.bf16.mxu0 0
    %4449 = vmatpush1.bf16.xpose.msra.mxu0 0
    %4450 = vmatprep.subr.bf16.mxu0 0
    %4451 = vmatpush1.bf16.xpose.msra.mxu0 0
    %4452 = vmatprep.subr.bf16.mxu0 0
    %4453 = vmatpush1.bf16.xpose.msra.mxu0 0
    %4454 = vmatprep.subr.bf16.mxu0 0
    %4455 = vmatpush1.bf16.xpose.msra.mxu0 0
    %4456 = vmatprep.subr.bf16.mxu0 0
    %4457 = vmatpush1.bf16.xpose.msra.mxu0 0
    %4458 = vmatprep.subr.bf16.mxu0 0
    %4459 = vmatpush1.bf16.xpose.msra.mxu0 0
    %4460 = vmatprep.subr.bf16.mxu0 0
    %4461 = vmatpush1.bf16.xpose.msra.mxu0 0
    %4462 = vmatprep.subr.bf16.mxu0 0
    %4463 = vmatpush1.bf16.xpose.msra.mxu0 0
    %4464 = vmatprep.subr.bf16.mxu0 0
    %4465 = vmatpush1.bf16.xpose.msra.mxu0 0
    %4466 = vmatprep.mubr.bf16.mxu0 %v3351
    %4467 = vmatmul.mubr.bf16.gmra.mrb[0].mxu0 %v3350
    %v4468 = vpop.f32.mrb[0].mxu0
    %v4469 = vadd.f32 %v4421, %v4468
    %v4470 = vpop.f32.mrb[0].mxu0
    %v4471 = vpop.f32.mrb[0].mxu0
    %v4472 = vadd.f32 %v4424, %v4471
    %v4473 = vpop.f32.mrb[0].mxu0
    %4474 = vmatprep.mubr.bf16.mxu0 %v3415
    %4475 = vmatmul.mubr.bf16.gmra.mrb[0].mxu0 %v3414
    %v4476 = vpop.f32.mrb[0].mxu0
    %v4477 = vadd.f32 %v4429, %v4476
    %v4478 = vpop.f32.mrb[0].mxu0
    %v4479 = vpop.f32.mrb[0].mxu0
    %v4480 = vpop.f32.mrb[0].mxu0
    %4481 = vdwg.mxu0
    %4482 = vmatprep.subr.bf16.mxu0 %v2838
    %4483 = vmatpush1.bf16.xpose.msra.mxu0 %v2837
    %4484 = vmatprep.subr.bf16.mxu0 %v2902
    %4485 = vmatpush1.bf16.xpose.msra.mxu0 %v2901
    %4486 = vmatprep.subr.bf16.mxu0 0
    %4487 = vmatpush1.bf16.xpose.msra.mxu0 0
    %4488 = vmatprep.subr.bf16.mxu0 0
    %4489 = vmatpush1.bf16.xpose.msra.mxu0 0
    %4490 = vmatprep.subr.bf16.mxu0 0
    %4491 = vmatpush1.bf16.xpose.msra.mxu0 0
    %4492 = vmatprep.subr.bf16.mxu0 0
    %4493 = vmatpush1.bf16.xpose.msra.mxu0 0
    %4494 = vmatprep.subr.bf16.mxu0 0
    %4495 = vmatpush1.bf16.xpose.msra.mxu0 0
    %4496 = vmatprep.subr.bf16.mxu0 0
    %4497 = vmatpush1.bf16.xpose.msra.mxu0 0
    %4498 = vmatprep.subr.bf16.mxu0 0
    %4499 = vmatpush1.bf16.xpose.msra.mxu0 0
    %4500 = vmatprep.subr.bf16.mxu0 0
    %4501 = vmatpush1.bf16.xpose.msra.mxu0 0
    %4502 = vmatprep.subr.bf16.mxu0 0
    %4503 = vmatpush1.bf16.xpose.msra.mxu0 0
    %4504 = vmatprep.subr.bf16.mxu0 0
    %4505 = vmatpush1.bf16.xpose.msra.mxu0 0
    %4506 = vmatprep.subr.bf16.mxu0 0
    %4507 = vmatpush1.bf16.xpose.msra.mxu0 0
    %4508 = vmatprep.subr.bf16.mxu0 0
    %4509 = vmatpush1.bf16.xpose.msra.mxu0 0
    %4510 = vmatprep.subr.bf16.mxu0 0
    %4511 = vmatpush1.bf16.xpose.msra.mxu0 0
    %4512 = vmatprep.subr.bf16.mxu0 0
    %4513 = vmatpush1.bf16.xpose.msra.mxu0 0
    %4514 = vmatprep.mubr.bf16.mxu0 %v3353
    %4515 = vmatmul.mubr.bf16.gmra.mrb[0].mxu0 %v3352
    %v4516 = vpop.f32.mrb[0].mxu0
    %v4517 = vadd.f32 %v4469, %v4516
    %v4518 = vpop.f32.mrb[0].mxu0
    %v4519 = vpop.f32.mrb[0].mxu0
    %v4520 = vadd.f32 %v4472, %v4519
    %v4521 = vpop.f32.mrb[0].mxu0
    %4522 = vmatprep.mubr.bf16.mxu0 %v3417
    %4523 = vmatmul.mubr.bf16.gmra.mrb[0].mxu0 %v3416
    %v4524 = vpop.f32.mrb[0].mxu0
    %v4525 = vadd.f32 %v4477, %v4524
    %v4526 = vpop.f32.mrb[0].mxu0
    %v4527 = vpop.f32.mrb[0].mxu0
    %v4528 = vpop.f32.mrb[0].mxu0
    %4529 = vdwg.mxu0
    %4530 = vmatprep.subr.bf16.mxu0 %v2840
    %4531 = vmatpush1.bf16.xpose.msra.mxu0 %v2839
    %4532 = vmatprep.subr.bf16.mxu0 %v2904
    %4533 = vmatpush1.bf16.xpose.msra.mxu0 %v2903
    %4534 = vmatprep.subr.bf16.mxu0 0
    %4535 = vmatpush1.bf16.xpose.msra.mxu0 0
    %4536 = vmatprep.subr.bf16.mxu0 0
    %4537 = vmatpush1.bf16.xpose.msra.mxu0 0
    %4538 = vmatprep.subr.bf16.mxu0 0
    %4539 = vmatpush1.bf16.xpose.msra.mxu0 0
    %4540 = vmatprep.subr.bf16.mxu0 0
    %4541 = vmatpush1.bf16.xpose.msra.mxu0 0
    %4542 = vmatprep.subr.bf16.mxu0 0
    %4543 = vmatpush1.bf16.xpose.msra.mxu0 0
    %4544 = vmatprep.subr.bf16.mxu0 0
    %4545 = vmatpush1.bf16.xpose.msra.mxu0 0
    %4546 = vmatprep.subr.bf16.mxu0 0
    %4547 = vmatpush1.bf16.xpose.msra.mxu0 0
    %4548 = vmatprep.subr.bf16.mxu0 0
    %4549 = vmatpush1.bf16.xpose.msra.mxu0 0
    %4550 = vmatprep.subr.bf16.mxu0 0
    %4551 = vmatpush1.bf16.xpose.msra.mxu0 0
    %4552 = vmatprep.subr.bf16.mxu0 0
    %4553 = vmatpush1.bf16.xpose.msra.mxu0 0
    %4554 = vmatprep.subr.bf16.mxu0 0
    %4555 = vmatpush1.bf16.xpose.msra.mxu0 0
    %4556 = vmatprep.subr.bf16.mxu0 0
    %4557 = vmatpush1.bf16.xpose.msra.mxu0 0
    %4558 = vmatprep.subr.bf16.mxu0 0
    %4559 = vmatpush1.bf16.xpose.msra.mxu0 0
    %4560 = vmatprep.subr.bf16.mxu0 0
    %4561 = vmatpush1.bf16.xpose.msra.mxu0 0
    %4562 = vmatprep.mubr.bf16.mxu0 %v3355
    %4563 = vmatmul.mubr.bf16.gmra.mrb[0].mxu0 %v3354
    %v4564 = vpop.f32.mrb[0].mxu0
    %v4565 = vadd.f32 %v4517, %v4564
    %v4566 = vpop.f32.mrb[0].mxu0
    %v4567 = vpop.f32.mrb[0].mxu0
    %v4568 = vadd.f32 %v4520, %v4567
    %v4569 = vpop.f32.mrb[0].mxu0
    %4570 = vmatprep.mubr.bf16.mxu0 %v3419
    %4571 = vmatmul.mubr.bf16.gmra.mrb[0].mxu0 %v3418
    %v4572 = vpop.f32.mrb[0].mxu0
    %v4573 = vadd.f32 %v4525, %v4572
    %v4574 = vpop.f32.mrb[0].mxu0
    %v4575 = vpop.f32.mrb[0].mxu0
    %v4576 = vpop.f32.mrb[0].mxu0
    %4577 = vdwg.mxu0
    %4578 = vmatprep.subr.bf16.mxu0 %v2842
    %4579 = vmatpush1.bf16.xpose.msra.mxu0 %v2841
    %4580 = vmatprep.subr.bf16.mxu0 %v2906
    %4581 = vmatpush1.bf16.xpose.msra.mxu0 %v2905
    %4582 = vmatprep.subr.bf16.mxu0 0
    %4583 = vmatpush1.bf16.xpose.msra.mxu0 0
    %4584 = vmatprep.subr.bf16.mxu0 0
    %4585 = vmatpush1.bf16.xpose.msra.mxu0 0
    %4586 = vmatprep.subr.bf16.mxu0 0
    %4587 = vmatpush1.bf16.xpose.msra.mxu0 0
    %4588 = vmatprep.subr.bf16.mxu0 0
    %4589 = vmatpush1.bf16.xpose.msra.mxu0 0
    %4590 = vmatprep.subr.bf16.mxu0 0
    %4591 = vmatpush1.bf16.xpose.msra.mxu0 0
    %4592 = vmatprep.subr.bf16.mxu0 0
    %4593 = vmatpush1.bf16.xpose.msra.mxu0 0
    %4594 = vmatprep.subr.bf16.mxu0 0
    %4595 = vmatpush1.bf16.xpose.msra.mxu0 0
    %4596 = vmatprep.subr.bf16.mxu0 0
    %4597 = vmatpush1.bf16.xpose.msra.mxu0 0
    %4598 = vmatprep.subr.bf16.mxu0 0
    %4599 = vmatpush1.bf16.xpose.msra.mxu0 0
    %4600 = vmatprep.subr.bf16.mxu0 0
    %4601 = vmatpush1.bf16.xpose.msra.mxu0 0
    %4602 = vmatprep.subr.bf16.mxu0 0
    %4603 = vmatpush1.bf16.xpose.msra.mxu0 0
    %4604 = vmatprep.subr.bf16.mxu0 0
    %4605 = vmatpush1.bf16.xpose.msra.mxu0 0
    %4606 = vmatprep.subr.bf16.mxu0 0
    %4607 = vmatpush1.bf16.xpose.msra.mxu0 0
    %4608 = vmatprep.subr.bf16.mxu0 0
    %4609 = vmatpush1.bf16.xpose.msra.mxu0 0
    %4610 = vmatprep.mubr.bf16.mxu0 %v3357
    %4611 = vmatmul.mubr.bf16.gmra.mrb[0].mxu0 %v3356
    %v4612 = vpop.f32.mrb[0].mxu0
    %v4613 = vadd.f32 %v4565, %v4612
    %v4614 = vpop.f32.mrb[0].mxu0
    %v4615 = vpop.f32.mrb[0].mxu0
    %v4616 = vadd.f32 %v4568, %v4615
    %v4617 = vpop.f32.mrb[0].mxu0
    %4618 = vmatprep.mubr.bf16.mxu0 %v3421
    %4619 = vmatmul.mubr.bf16.gmra.mrb[0].mxu0 %v3420
    %v4620 = vpop.f32.mrb[0].mxu0
    %v4621 = vadd.f32 %v4573, %v4620
    %v4622 = vpop.f32.mrb[0].mxu0
    %v4623 = vpop.f32.mrb[0].mxu0
    %v4624 = vpop.f32.mrb[0].mxu0
    %4625 = vdwg.mxu0
    %4626 = vmatprep.subr.bf16.mxu0 %v2844
    %4627 = vmatpush1.bf16.xpose.msra.mxu0 %v2843
    %4628 = vmatprep.subr.bf16.mxu0 %v2908
    %4629 = vmatpush1.bf16.xpose.msra.mxu0 %v2907
    %4630 = vmatprep.subr.bf16.mxu0 0
    %4631 = vmatpush1.bf16.xpose.msra.mxu0 0
    %4632 = vmatprep.subr.bf16.mxu0 0
    %4633 = vmatpush1.bf16.xpose.msra.mxu0 0
    %4634 = vmatprep.subr.bf16.mxu0 0
    %4635 = vmatpush1.bf16.xpose.msra.mxu0 0
    %4636 = vmatprep.subr.bf16.mxu0 0
    %4637 = vmatpush1.bf16.xpose.msra.mxu0 0
    %4638 = vmatprep.subr.bf16.mxu0 0
    %4639 = vmatpush1.bf16.xpose.msra.mxu0 0
    %4640 = vmatprep.subr.bf16.mxu0 0
    %4641 = vmatpush1.bf16.xpose.msra.mxu0 0
    %4642 = vmatprep.subr.bf16.mxu0 0
    %4643 = vmatpush1.bf16.xpose.msra.mxu0 0
    %4644 = vmatprep.subr.bf16.mxu0 0
    %4645 = vmatpush1.bf16.xpose.msra.mxu0 0
    %4646 = vmatprep.subr.bf16.mxu0 0
    %4647 = vmatpush1.bf16.xpose.msra.mxu0 0
    %4648 = vmatprep.subr.bf16.mxu0 0
    %4649 = vmatpush1.bf16.xpose.msra.mxu0 0
    %4650 = vmatprep.subr.bf16.mxu0 0
    %4651 = vmatpush1.bf16.xpose.msra.mxu0 0
    %4652 = vmatprep.subr.bf16.mxu0 0
    %4653 = vmatpush1.bf16.xpose.msra.mxu0 0
    %4654 = vmatprep.subr.bf16.mxu0 0
    %4655 = vmatpush1.bf16.xpose.msra.mxu0 0
    %4656 = vmatprep.subr.bf16.mxu0 0
    %4657 = vmatpush1.bf16.xpose.msra.mxu0 0
    %4658 = vmatprep.mubr.bf16.mxu0 %v3359
    %4659 = vmatmul.mubr.bf16.gmra.mrb[0].mxu0 %v3358
    %v4660 = vpop.f32.mrb[0].mxu0
    %v4661 = vadd.f32 %v4613, %v4660
    %v4662 = vpop.f32.mrb[0].mxu0
    %v4663 = vpop.f32.mrb[0].mxu0
    %v4664 = vadd.f32 %v4616, %v4663
    %v4665 = vpop.f32.mrb[0].mxu0
    %4666 = vmatprep.mubr.bf16.mxu0 %v3423
    %4667 = vmatmul.mubr.bf16.gmra.mrb[0].mxu0 %v3422
    %v4668 = vpop.f32.mrb[0].mxu0
    %v4669 = vadd.f32 %v4621, %v4668
    %v4670 = vpop.f32.mrb[0].mxu0
    %v4671 = vpop.f32.mrb[0].mxu0
    %v4672 = vpop.f32.mrb[0].mxu0
    %4673 = vdwg.mxu0
    %4674 = vmatprep.subr.bf16.mxu0 %v2846
    %4675 = vmatpush1.bf16.xpose.msra.mxu0 %v2845
    %4676 = vmatprep.subr.bf16.mxu0 %v2910
    %4677 = vmatpush1.bf16.xpose.msra.mxu0 %v2909
    %4678 = vmatprep.subr.bf16.mxu0 0
    %4679 = vmatpush1.bf16.xpose.msra.mxu0 0
    %4680 = vmatprep.subr.bf16.mxu0 0
    %4681 = vmatpush1.bf16.xpose.msra.mxu0 0
    %4682 = vmatprep.subr.bf16.mxu0 0
    %4683 = vmatpush1.bf16.xpose.msra.mxu0 0
    %4684 = vmatprep.subr.bf16.mxu0 0
    %4685 = vmatpush1.bf16.xpose.msra.mxu0 0
    %4686 = vmatprep.subr.bf16.mxu0 0
    %4687 = vmatpush1.bf16.xpose.msra.mxu0 0
    %4688 = vmatprep.subr.bf16.mxu0 0
    %4689 = vmatpush1.bf16.xpose.msra.mxu0 0
    %4690 = vmatprep.subr.bf16.mxu0 0
    %4691 = vmatpush1.bf16.xpose.msra.mxu0 0
    %4692 = vmatprep.subr.bf16.mxu0 0
    %4693 = vmatpush1.bf16.xpose.msra.mxu0 0
    %4694 = vmatprep.subr.bf16.mxu0 0
    %4695 = vmatpush1.bf16.xpose.msra.mxu0 0
    %4696 = vmatprep.subr.bf16.mxu0 0
    %4697 = vmatpush1.bf16.xpose.msra.mxu0 0
    %4698 = vmatprep.subr.bf16.mxu0 0
    %4699 = vmatpush1.bf16.xpose.msra.mxu0 0
    %4700 = vmatprep.subr.bf16.mxu0 0
    %4701 = vmatpush1.bf16.xpose.msra.mxu0 0
    %4702 = vmatprep.subr.bf16.mxu0 0
    %4703 = vmatpush1.bf16.xpose.msra.mxu0 0
    %4704 = vmatprep.subr.bf16.mxu0 0
    %4705 = vmatpush1.bf16.xpose.msra.mxu0 0
    %4706 = vmatprep.mubr.bf16.mxu0 %v3361
    %4707 = vmatmul.mubr.bf16.gmra.mrb[0].mxu0 %v3360
    %v4708 = vpop.f32.mrb[0].mxu0
    %v4709 = vadd.f32 %v4661, %v4708
    %v4710 = vpop.f32.mrb[0].mxu0
    %v4711 = vpop.f32.mrb[0].mxu0
    %v4712 = vadd.f32 %v4664, %v4711
    %v4713 = vpop.f32.mrb[0].mxu0
    %4714 = vmatprep.mubr.bf16.mxu0 %v3425
    %4715 = vmatmul.mubr.bf16.gmra.mrb[0].mxu0 %v3424
    %v4716 = vpop.f32.mrb[0].mxu0
    %v4717 = vadd.f32 %v4669, %v4716
    %v4718 = vpop.f32.mrb[0].mxu0
    %v4719 = vpop.f32.mrb[0].mxu0
    %v4720 = vpop.f32.mrb[0].mxu0
    %4721 = vdwg.mxu0
    %4722 = vmatprep.subr.bf16.mxu0 %v2848
    %4723 = vmatpush1.bf16.xpose.msra.mxu0 %v2847
    %4724 = vmatprep.subr.bf16.mxu0 %v2912
    %4725 = vmatpush1.bf16.xpose.msra.mxu0 %v2911
    %4726 = vmatprep.subr.bf16.mxu0 0
    %4727 = vmatpush1.bf16.xpose.msra.mxu0 0
    %4728 = vmatprep.subr.bf16.mxu0 0
    %4729 = vmatpush1.bf16.xpose.msra.mxu0 0
    %4730 = vmatprep.subr.bf16.mxu0 0
    %4731 = vmatpush1.bf16.xpose.msra.mxu0 0
    %4732 = vmatprep.subr.bf16.mxu0 0
    %4733 = vmatpush1.bf16.xpose.msra.mxu0 0
    %4734 = vmatprep.subr.bf16.mxu0 0
    %4735 = vmatpush1.bf16.xpose.msra.mxu0 0
    %4736 = vmatprep.subr.bf16.mxu0 0
    %4737 = vmatpush1.bf16.xpose.msra.mxu0 0
    %4738 = vmatprep.subr.bf16.mxu0 0
    %4739 = vmatpush1.bf16.xpose.msra.mxu0 0
    %4740 = vmatprep.subr.bf16.mxu0 0
    %4741 = vmatpush1.bf16.xpose.msra.mxu0 0
    %4742 = vmatprep.subr.bf16.mxu0 0
    %4743 = vmatpush1.bf16.xpose.msra.mxu0 0
    %4744 = vmatprep.subr.bf16.mxu0 0
    %4745 = vmatpush1.bf16.xpose.msra.mxu0 0
    %4746 = vmatprep.subr.bf16.mxu0 0
    %4747 = vmatpush1.bf16.xpose.msra.mxu0 0
    %4748 = vmatprep.subr.bf16.mxu0 0
    %4749 = vmatpush1.bf16.xpose.msra.mxu0 0
    %4750 = vmatprep.subr.bf16.mxu0 0
    %4751 = vmatpush1.bf16.xpose.msra.mxu0 0
    %4752 = vmatprep.subr.bf16.mxu0 0
    %4753 = vmatpush1.bf16.xpose.msra.mxu0 0
    %4754 = vmatprep.mubr.bf16.mxu0 %v3363
    %4755 = vmatmul.mubr.bf16.gmra.mrb[0].mxu0 %v3362
    %v4756 = vpop.f32.mrb[0].mxu0
    %v4757 = vadd.f32 %v4709, %v4756
    %v4758 = vpop.f32.mrb[0].mxu0
    %v4759 = vpop.f32.mrb[0].mxu0
    %v4760 = vadd.f32 %v4712, %v4759
    %v4761 = vpop.f32.mrb[0].mxu0
    %4762 = vmatprep.mubr.bf16.mxu0 %v3427
    %4763 = vmatmul.mubr.bf16.gmra.mrb[0].mxu0 %v3426
    %v4764 = vpop.f32.mrb[0].mxu0
    %v4765 = vadd.f32 %v4717, %v4764
    %v4766 = vpop.f32.mrb[0].mxu0
    %v4767 = vpop.f32.mrb[0].mxu0
    %v4768 = vpop.f32.mrb[0].mxu0
    %4769 = vdwg.mxu0
    %4770 = vmatprep.subr.bf16.mxu0 %v2850
    %4771 = vmatpush1.bf16.xpose.msra.mxu0 %v2849
    %4772 = vmatprep.subr.bf16.mxu0 %v2914
    %4773 = vmatpush1.bf16.xpose.msra.mxu0 %v2913
    %4774 = vmatprep.subr.bf16.mxu0 0
    %4775 = vmatpush1.bf16.xpose.msra.mxu0 0
    %4776 = vmatprep.subr.bf16.mxu0 0
    %4777 = vmatpush1.bf16.xpose.msra.mxu0 0
    %4778 = vmatprep.subr.bf16.mxu0 0
    %4779 = vmatpush1.bf16.xpose.msra.mxu0 0
    %4780 = vmatprep.subr.bf16.mxu0 0
    %4781 = vmatpush1.bf16.xpose.msra.mxu0 0
    %4782 = vmatprep.subr.bf16.mxu0 0
    %4783 = vmatpush1.bf16.xpose.msra.mxu0 0
    %4784 = vmatprep.subr.bf16.mxu0 0
    %4785 = vmatpush1.bf16.xpose.msra.mxu0 0
    %4786 = vmatprep.subr.bf16.mxu0 0
    %4787 = vmatpush1.bf16.xpose.msra.mxu0 0
    %4788 = vmatprep.subr.bf16.mxu0 0
    %4789 = vmatpush1.bf16.xpose.msra.mxu0 0
    %4790 = vmatprep.subr.bf16.mxu0 0
    %4791 = vmatpush1.bf16.xpose.msra.mxu0 0
    %4792 = vmatprep.subr.bf16.mxu0 0
    %4793 = vmatpush1.bf16.xpose.msra.mxu0 0
    %4794 = vmatprep.subr.bf16.mxu0 0
    %4795 = vmatpush1.bf16.xpose.msra.mxu0 0
    %4796 = vmatprep.subr.bf16.mxu0 0
    %4797 = vmatpush1.bf16.xpose.msra.mxu0 0
    %4798 = vmatprep.subr.bf16.mxu0 0
    %4799 = vmatpush1.bf16.xpose.msra.mxu0 0
    %4800 = vmatprep.subr.bf16.mxu0 0
    %4801 = vmatpush1.bf16.xpose.msra.mxu0 0
    %4802 = vmatprep.mubr.bf16.mxu0 %v3365
    %4803 = vmatmul.mubr.bf16.gmra.mrb[0].mxu0 %v3364
    %v4804 = vpop.f32.mrb[0].mxu0
    %v4805 = vadd.f32 %v4757, %v4804
    %v4806 = vpop.f32.mrb[0].mxu0
    %v4807 = vpop.f32.mrb[0].mxu0
    %v4808 = vadd.f32 %v4760, %v4807
    %v4809 = vpop.f32.mrb[0].mxu0
    %4810 = vmatprep.mubr.bf16.mxu0 %v3429
    %4811 = vmatmul.mubr.bf16.gmra.mrb[0].mxu0 %v3428
    %v4812 = vpop.f32.mrb[0].mxu0
    %v4813 = vadd.f32 %v4765, %v4812
    %v4814 = vpop.f32.mrb[0].mxu0
    %v4815 = vpop.f32.mrb[0].mxu0
    %v4816 = vpop.f32.mrb[0].mxu0
    %4817 = vdwg.mxu0
    %4818 = vmatprep.subr.bf16.mxu0 %v2852
    %4819 = vmatpush1.bf16.xpose.msra.mxu0 %v2851
    %4820 = vmatprep.subr.bf16.mxu0 %v2916
    %4821 = vmatpush1.bf16.xpose.msra.mxu0 %v2915
    %4822 = vmatprep.subr.bf16.mxu0 0
    %4823 = vmatpush1.bf16.xpose.msra.mxu0 0
    %4824 = vmatprep.subr.bf16.mxu0 0
    %4825 = vmatpush1.bf16.xpose.msra.mxu0 0
    %4826 = vmatprep.subr.bf16.mxu0 0
    %4827 = vmatpush1.bf16.xpose.msra.mxu0 0
    %4828 = vmatprep.subr.bf16.mxu0 0
    %4829 = vmatpush1.bf16.xpose.msra.mxu0 0
    %4830 = vmatprep.subr.bf16.mxu0 0
    %4831 = vmatpush1.bf16.xpose.msra.mxu0 0
    %4832 = vmatprep.subr.bf16.mxu0 0
    %4833 = vmatpush1.bf16.xpose.msra.mxu0 0
    %4834 = vmatprep.subr.bf16.mxu0 0
    %4835 = vmatpush1.bf16.xpose.msra.mxu0 0
    %4836 = vmatprep.subr.bf16.mxu0 0
    %4837 = vmatpush1.bf16.xpose.msra.mxu0 0
    %4838 = vmatprep.subr.bf16.mxu0 0
    %4839 = vmatpush1.bf16.xpose.msra.mxu0 0
    %4840 = vmatprep.subr.bf16.mxu0 0
    %4841 = vmatpush1.bf16.xpose.msra.mxu0 0
    %4842 = vmatprep.subr.bf16.mxu0 0
    %4843 = vmatpush1.bf16.xpose.msra.mxu0 0
    %4844 = vmatprep.subr.bf16.mxu0 0
    %4845 = vmatpush1.bf16.xpose.msra.mxu0 0
    %4846 = vmatprep.subr.bf16.mxu0 0
    %4847 = vmatpush1.bf16.xpose.msra.mxu0 0
    %4848 = vmatprep.subr.bf16.mxu0 0
    %4849 = vmatpush1.bf16.xpose.msra.mxu0 0
    %4850 = vmatprep.mubr.bf16.mxu0 %v3367
    %4851 = vmatmul.mubr.bf16.gmra.mrb[0].mxu0 %v3366
    %v4852 = vpop.f32.mrb[0].mxu0
    %v4853 = vadd.f32 %v4805, %v4852
    %v4854 = vpop.f32.mrb[0].mxu0
    %v4855 = vpop.f32.mrb[0].mxu0
    %v4856 = vadd.f32 %v4808, %v4855
    %v4857 = vpop.f32.mrb[0].mxu0
    %4858 = vmatprep.mubr.bf16.mxu0 %v3431
    %4859 = vmatmul.mubr.bf16.gmra.mrb[0].mxu0 %v3430
    %v4860 = vpop.f32.mrb[0].mxu0
    %v4861 = vadd.f32 %v4813, %v4860
    %v4862 = vpop.f32.mrb[0].mxu0
    %v4863 = vpop.f32.mrb[0].mxu0
    %v4864 = vpop.f32.mrb[0].mxu0
    %4865 = vdwg.mxu0
    %4866 = vmatprep.subr.bf16.mxu0 %v2854
    %4867 = vmatpush1.bf16.xpose.msra.mxu0 %v2853
    %4868 = vmatprep.subr.bf16.mxu0 %v2918
    %4869 = vmatpush1.bf16.xpose.msra.mxu0 %v2917
    %4870 = vmatprep.subr.bf16.mxu0 0
    %4871 = vmatpush1.bf16.xpose.msra.mxu0 0
    %4872 = vmatprep.subr.bf16.mxu0 0
    %4873 = vmatpush1.bf16.xpose.msra.mxu0 0
    %4874 = vmatprep.subr.bf16.mxu0 0
    %4875 = vmatpush1.bf16.xpose.msra.mxu0 0
    %4876 = vmatprep.subr.bf16.mxu0 0
    %4877 = vmatpush1.bf16.xpose.msra.mxu0 0
    %4878 = vmatprep.subr.bf16.mxu0 0
    %4879 = vmatpush1.bf16.xpose.msra.mxu0 0
    %4880 = vmatprep.subr.bf16.mxu0 0
    %4881 = vmatpush1.bf16.xpose.msra.mxu0 0
    %4882 = vmatprep.subr.bf16.mxu0 0
    %4883 = vmatpush1.bf16.xpose.msra.mxu0 0
    %4884 = vmatprep.subr.bf16.mxu0 0
    %4885 = vmatpush1.bf16.xpose.msra.mxu0 0
    %4886 = vmatprep.subr.bf16.mxu0 0
    %4887 = vmatpush1.bf16.xpose.msra.mxu0 0
    %4888 = vmatprep.subr.bf16.mxu0 0
    %4889 = vmatpush1.bf16.xpose.msra.mxu0 0
    %4890 = vmatprep.subr.bf16.mxu0 0
    %4891 = vmatpush1.bf16.xpose.msra.mxu0 0
    %4892 = vmatprep.subr.bf16.mxu0 0
    %4893 = vmatpush1.bf16.xpose.msra.mxu0 0
    %4894 = vmatprep.subr.bf16.mxu0 0
    %4895 = vmatpush1.bf16.xpose.msra.mxu0 0
    %4896 = vmatprep.subr.bf16.mxu0 0
    %4897 = vmatpush1.bf16.xpose.msra.mxu0 0
    %4898 = vmatprep.mubr.bf16.mxu0 %v3369
    %4899 = vmatmul.mubr.bf16.gmra.mrb[0].mxu0 %v3368
    %v4900 = vpop.f32.mrb[0].mxu0
    %v4901 = vadd.f32 %v4853, %v4900
    %v4902 = vpop.f32.mrb[0].mxu0
    %v4903 = vpop.f32.mrb[0].mxu0
    %v4904 = vadd.f32 %v4856, %v4903
    %v4905 = vpop.f32.mrb[0].mxu0
    %4906 = vmatprep.mubr.bf16.mxu0 %v3433
    %4907 = vmatmul.mubr.bf16.gmra.mrb[0].mxu0 %v3432
    %v4908 = vpop.f32.mrb[0].mxu0
    %v4909 = vadd.f32 %v4861, %v4908
    %v4910 = vpop.f32.mrb[0].mxu0
    %v4911 = vpop.f32.mrb[0].mxu0
    %v4912 = vpop.f32.mrb[0].mxu0
    %4913 = vdwg.mxu0
    %4914 = vmatprep.subr.bf16.mxu0 %v2856
    %4915 = vmatpush1.bf16.xpose.msra.mxu0 %v2855
    %4916 = vmatprep.subr.bf16.mxu0 %v2920
    %4917 = vmatpush1.bf16.xpose.msra.mxu0 %v2919
    %4918 = vmatprep.subr.bf16.mxu0 0
    %4919 = vmatpush1.bf16.xpose.msra.mxu0 0
    %4920 = vmatprep.subr.bf16.mxu0 0
    %4921 = vmatpush1.bf16.xpose.msra.mxu0 0
    %4922 = vmatprep.subr.bf16.mxu0 0
    %4923 = vmatpush1.bf16.xpose.msra.mxu0 0
    %4924 = vmatprep.subr.bf16.mxu0 0
    %4925 = vmatpush1.bf16.xpose.msra.mxu0 0
    %4926 = vmatprep.subr.bf16.mxu0 0
    %4927 = vmatpush1.bf16.xpose.msra.mxu0 0
    %4928 = vmatprep.subr.bf16.mxu0 0
    %4929 = vmatpush1.bf16.xpose.msra.mxu0 0
    %4930 = vmatprep.subr.bf16.mxu0 0
    %4931 = vmatpush1.bf16.xpose.msra.mxu0 0
    %4932 = vmatprep.subr.bf16.mxu0 0
    %4933 = vmatpush1.bf16.xpose.msra.mxu0 0
    %4934 = vmatprep.subr.bf16.mxu0 0
    %4935 = vmatpush1.bf16.xpose.msra.mxu0 0
    %4936 = vmatprep.subr.bf16.mxu0 0
    %4937 = vmatpush1.bf16.xpose.msra.mxu0 0
    %4938 = vmatprep.subr.bf16.mxu0 0
    %4939 = vmatpush1.bf16.xpose.msra.mxu0 0
    %4940 = vmatprep.subr.bf16.mxu0 0
    %4941 = vmatpush1.bf16.xpose.msra.mxu0 0
    %4942 = vmatprep.subr.bf16.mxu0 0
    %4943 = vmatpush1.bf16.xpose.msra.mxu0 0
    %4944 = vmatprep.subr.bf16.mxu0 0
    %4945 = vmatpush1.bf16.xpose.msra.mxu0 0
    %4946 = vmatprep.mubr.bf16.mxu0 %v3371
    %4947 = vmatmul.mubr.bf16.gmra.mrb[0].mxu0 %v3370
    %v4948 = vpop.f32.mrb[0].mxu0
    %v4949 = vadd.f32 %v4901, %v4948
    %v4950 = vpop.f32.mrb[0].mxu0
    %v4951 = vpop.f32.mrb[0].mxu0
    %v4952 = vadd.f32 %v4904, %v4951
    %v4953 = vpop.f32.mrb[0].mxu0
    %4954 = vmatprep.mubr.bf16.mxu0 %v3435
    %4955 = vmatmul.mubr.bf16.gmra.mrb[0].mxu0 %v3434
    %v4956 = vpop.f32.mrb[0].mxu0
    %v4957 = vadd.f32 %v4909, %v4956
    %v4958 = vpop.f32.mrb[0].mxu0
    %v4959 = vpop.f32.mrb[0].mxu0
    %v4960 = vpop.f32.mrb[0].mxu0
    %4961 = vdwg.mxu0
    %4962 = vmatprep.subr.bf16.mxu0 %v2858
    %4963 = vmatpush1.bf16.xpose.msra.mxu0 %v2857
    %4964 = vmatprep.subr.bf16.mxu0 %v2922
    %4965 = vmatpush1.bf16.xpose.msra.mxu0 %v2921
    %4966 = vmatprep.subr.bf16.mxu0 0
    %4967 = vmatpush1.bf16.xpose.msra.mxu0 0
    %4968 = vmatprep.subr.bf16.mxu0 0
    %4969 = vmatpush1.bf16.xpose.msra.mxu0 0
    %4970 = vmatprep.subr.bf16.mxu0 0
    %4971 = vmatpush1.bf16.xpose.msra.mxu0 0
    %4972 = vmatprep.subr.bf16.mxu0 0
    %4973 = vmatpush1.bf16.xpose.msra.mxu0 0
    %4974 = vmatprep.subr.bf16.mxu0 0
    %4975 = vmatpush1.bf16.xpose.msra.mxu0 0
    %4976 = vmatprep.subr.bf16.mxu0 0
    %4977 = vmatpush1.bf16.xpose.msra.mxu0 0
    %4978 = vmatprep.subr.bf16.mxu0 0
    %4979 = vmatpush1.bf16.xpose.msra.mxu0 0
    %4980 = vmatprep.subr.bf16.mxu0 0
    %4981 = vmatpush1.bf16.xpose.msra.mxu0 0
    %4982 = vmatprep.subr.bf16.mxu0 0
    %4983 = vmatpush1.bf16.xpose.msra.mxu0 0
    %4984 = vmatprep.subr.bf16.mxu0 0
    %4985 = vmatpush1.bf16.xpose.msra.mxu0 0
    %4986 = vmatprep.subr.bf16.mxu0 0
    %4987 = vmatpush1.bf16.xpose.msra.mxu0 0
    %4988 = vmatprep.subr.bf16.mxu0 0
    %4989 = vmatpush1.bf16.xpose.msra.mxu0 0
    %4990 = vmatprep.subr.bf16.mxu0 0
    %4991 = vmatpush1.bf16.xpose.msra.mxu0 0
    %4992 = vmatprep.subr.bf16.mxu0 0
    %4993 = vmatpush1.bf16.xpose.msra.mxu0 0
    %4994 = vmatprep.mubr.bf16.mxu0 %v3373
    %4995 = vmatmul.mubr.bf16.gmra.mrb[0].mxu0 %v3372
    %v4996 = vpop.f32.mrb[0].mxu0
    %v4997 = vadd.f32 %v4949, %v4996
    %v4998 = vpop.f32.mrb[0].mxu0
    %v4999 = vpop.f32.mrb[0].mxu0
    %v5000 = vadd.f32 %v4952, %v4999
    %v5001 = vpop.f32.mrb[0].mxu0
    %5002 = vmatprep.mubr.bf16.mxu0 %v3437
    %5003 = vmatmul.mubr.bf16.gmra.mrb[0].mxu0 %v3436
    %v5004 = vpop.f32.mrb[0].mxu0
    %v5005 = vadd.f32 %v4957, %v5004
    %v5006 = vpop.f32.mrb[0].mxu0
    %v5007 = vpop.f32.mrb[0].mxu0
    %v5008 = vpop.f32.mrb[0].mxu0
    %5009 = vdwg.mxu0
    %5010 = vmatprep.subr.bf16.mxu0 %v2860
    %5011 = vmatpush1.bf16.xpose.msra.mxu0 %v2859
    %5012 = vmatprep.subr.bf16.mxu0 %v2924
    %5013 = vmatpush1.bf16.xpose.msra.mxu0 %v2923
    %5014 = vmatprep.subr.bf16.mxu0 0
    %5015 = vmatpush1.bf16.xpose.msra.mxu0 0
    %5016 = vmatprep.subr.bf16.mxu0 0
    %5017 = vmatpush1.bf16.xpose.msra.mxu0 0
    %5018 = vmatprep.subr.bf16.mxu0 0
    %5019 = vmatpush1.bf16.xpose.msra.mxu0 0
    %5020 = vmatprep.subr.bf16.mxu0 0
    %5021 = vmatpush1.bf16.xpose.msra.mxu0 0
    %5022 = vmatprep.subr.bf16.mxu0 0
    %5023 = vmatpush1.bf16.xpose.msra.mxu0 0
    %5024 = vmatprep.subr.bf16.mxu0 0
    %5025 = vmatpush1.bf16.xpose.msra.mxu0 0
    %5026 = vmatprep.subr.bf16.mxu0 0
    %5027 = vmatpush1.bf16.xpose.msra.mxu0 0
    %5028 = vmatprep.subr.bf16.mxu0 0
    %5029 = vmatpush1.bf16.xpose.msra.mxu0 0
    %5030 = vmatprep.subr.bf16.mxu0 0
    %5031 = vmatpush1.bf16.xpose.msra.mxu0 0
    %5032 = vmatprep.subr.bf16.mxu0 0
    %5033 = vmatpush1.bf16.xpose.msra.mxu0 0
    %5034 = vmatprep.subr.bf16.mxu0 0
    %5035 = vmatpush1.bf16.xpose.msra.mxu0 0
    %5036 = vmatprep.subr.bf16.mxu0 0
    %5037 = vmatpush1.bf16.xpose.msra.mxu0 0
    %5038 = vmatprep.subr.bf16.mxu0 0
    %5039 = vmatpush1.bf16.xpose.msra.mxu0 0
    %5040 = vmatprep.subr.bf16.mxu0 0
    %5041 = vmatpush1.bf16.xpose.msra.mxu0 0
    %5042 = vmatprep.mubr.bf16.mxu0 %v3375
    %5043 = vmatmul.mubr.bf16.gmra.mrb[0].mxu0 %v3374
    %v5044 = vpop.f32.mrb[0].mxu0
    %v5045 = vadd.f32 %v4997, %v5044
    %v5046 = vpop.f32.mrb[0].mxu0
    %v5047 = vpop.f32.mrb[0].mxu0
    %v5048 = vadd.f32 %v5000, %v5047
    %v5049 = vpop.f32.mrb[0].mxu0
    %5050 = vmatprep.mubr.bf16.mxu0 %v3439
    %5051 = vmatmul.mubr.bf16.gmra.mrb[0].mxu0 %v3438
    %v5052 = vpop.f32.mrb[0].mxu0
    %v5053 = vadd.f32 %v5005, %v5052
    %v5054 = vpop.f32.mrb[0].mxu0
    %v5055 = vpop.f32.mrb[0].mxu0
    %v5056 = vpop.f32.mrb[0].mxu0
    %5057 = vdwg.mxu0
    %5058 = vmatprep.subr.bf16.mxu0 %v2862
    %5059 = vmatpush1.bf16.xpose.msra.mxu0 %v2861
    %5060 = vmatprep.subr.bf16.mxu0 %v2926
    %5061 = vmatpush1.bf16.xpose.msra.mxu0 %v2925
    %5062 = vmatprep.subr.bf16.mxu0 0
    %5063 = vmatpush1.bf16.xpose.msra.mxu0 0
    %5064 = vmatprep.subr.bf16.mxu0 0
    %5065 = vmatpush1.bf16.xpose.msra.mxu0 0
    %5066 = vmatprep.subr.bf16.mxu0 0
    %5067 = vmatpush1.bf16.xpose.msra.mxu0 0
    %5068 = vmatprep.subr.bf16.mxu0 0
    %5069 = vmatpush1.bf16.xpose.msra.mxu0 0
    %5070 = vmatprep.subr.bf16.mxu0 0
    %5071 = vmatpush1.bf16.xpose.msra.mxu0 0
    %5072 = vmatprep.subr.bf16.mxu0 0
    %5073 = vmatpush1.bf16.xpose.msra.mxu0 0
    %5074 = vmatprep.subr.bf16.mxu0 0
    %5075 = vmatpush1.bf16.xpose.msra.mxu0 0
    %5076 = vmatprep.subr.bf16.mxu0 0
    %5077 = vmatpush1.bf16.xpose.msra.mxu0 0
    %5078 = vmatprep.subr.bf16.mxu0 0
    %5079 = vmatpush1.bf16.xpose.msra.mxu0 0
    %5080 = vmatprep.subr.bf16.mxu0 0
    %5081 = vmatpush1.bf16.xpose.msra.mxu0 0
    %5082 = vmatprep.subr.bf16.mxu0 0
    %5083 = vmatpush1.bf16.xpose.msra.mxu0 0
    %5084 = vmatprep.subr.bf16.mxu0 0
    %5085 = vmatpush1.bf16.xpose.msra.mxu0 0
    %5086 = vmatprep.subr.bf16.mxu0 0
    %5087 = vmatpush1.bf16.xpose.msra.mxu0 0
    %5088 = vmatprep.subr.bf16.mxu0 0
    %5089 = vmatpush1.bf16.xpose.msra.mxu0 0
    %5090 = vmatprep.mubr.bf16.mxu0 %v3377
    %5091 = vmatmul.mubr.bf16.gmra.mrb[0].mxu0 %v3376
    %v5092 = vpop.f32.mrb[0].mxu0
    %v5093 = vadd.f32 %v5045, %v5092
    %v5094 = vpop.f32.mrb[0].mxu0
    %v5095 = vpop.f32.mrb[0].mxu0
    %v5096 = vadd.f32 %v5048, %v5095
    %v5097 = vpop.f32.mrb[0].mxu0
    %5098 = vmatprep.mubr.bf16.mxu0 %v3441
    %5099 = vmatmul.mubr.bf16.gmra.mrb[0].mxu0 %v3440
    %v5100 = vpop.f32.mrb[0].mxu0
    %v5101 = vadd.f32 %v5053, %v5100
    %v5102 = vpop.f32.mrb[0].mxu0
    %v5103 = vpop.f32.mrb[0].mxu0
    %v5104 = vpop.f32.mrb[0].mxu0
    %5105 = vdwg.mxu0
    %v5106 = vld [vmem:[%s5] sm:$0xf]
    %v5107 = vld [vmem:[%s5 + $0x4] sm:$0xf]
    %v5108 = vld [vmem:[%s5 + $0x8] sm:$0xf]
    %v5109 = vld [vmem:[%s5 + $0xc] sm:$0xf]
    %v5110 = vld [vmem:[%s5 + $0x10] sm:$0xf]
    %v5111 = vld [vmem:[%s5 + $0x14] sm:$0xf]
    %v5112 = vld [vmem:[%s5 + $0x18] sm:$0xf]
    %v5113 = vld [vmem:[%s5 + $0x1c] sm:$0xf]
    %v5114 = vld [vmem:[%s5 + $0x20] sm:$0xf]
    %v5115 = vld [vmem:[%s5 + $0x24] sm:$0xf]
    %v5116 = vld [vmem:[%s5 + $0x28] sm:$0xf]
    %v5117 = vld [vmem:[%s5 + $0x2c] sm:$0xf]
    %v5118 = vld [vmem:[%s5 + $0x30] sm:$0xf]
    %v5119 = vld [vmem:[%s5 + $0x34] sm:$0xf]
    %v5120 = vld [vmem:[%s5 + $0x38] sm:$0xf]
    %v5121 = vld [vmem:[%s5 + $0x3c] sm:$0xf]
    %v5122 = vld [vmem:[%s6] sm:$0xff]
    %v5123 = vpack.c.bf16 %v5096, %v5093
    %v5124 = vpack.c.bf16 %v5101, %v5101
    %v5125 = vlaneseq
    %v5126 = vshrl.u32 %v5125, 7
    %v5127 = vsub.s32 0, %v5126
    %v5128 = vrot.slane %v5122, %v5127
    %v5133 = vunpack.c.l.b16 %v5106
    %v5134 = vunpack.c.l.b16 %v5107
    %v5135 = vunpack.c.l.b16 %v5108
    %v5136 = vunpack.c.l.b16 %v5109
    %v5137 = vpack.c.b16 %v5134, %v5133
    %v5138 = vpack.c.b16 %v5136, %v5135
    %v5142 = vsel %vm840, %v5123, 0
    %v5145 = vsel %vm840, %v5124, 0
    %5147 = vmatprep.subr.bf16.mxu0 0
    %5148 = vmatpush1.bf16.msra.mxu0 %v5137
    %5149 = vmatprep.subr.bf16.mxu0 0
    %5150 = vmatpush1.bf16.msra.mxu0 %v5138
    %5151 = vmatprep.subr.bf16.mxu0 0
    %5152 = vmatpush1.bf16.msra.mxu0 0
    %5153 = vmatprep.subr.bf16.mxu0 0
    %5154 = vmatpush1.bf16.msra.mxu0 0
    %5155 = vmatprep.subr.bf16.mxu0 0
    %5156 = vmatpush1.bf16.msra.mxu0 0
    %5157 = vmatprep.subr.bf16.mxu0 0
    %5158 = vmatpush1.bf16.msra.mxu0 0
    %5159 = vmatprep.subr.bf16.mxu0 0
    %5160 = vmatpush1.bf16.msra.mxu0 0
    %5161 = vmatprep.subr.bf16.mxu0 0
    %5162 = vmatpush1.bf16.msra.mxu0 0
    %5163 = vmatprep.subr.bf16.mxu0 0
    %5164 = vmatpush1.bf16.msra.mxu0 0
    %5165 = vmatprep.subr.bf16.mxu0 0
    %5166 = vmatpush1.bf16.msra.mxu0 0
    %5167 = vmatprep.subr.bf16.mxu0 0
    %5168 = vmatpush1.bf16.msra.mxu0 0
    %5169 = vmatprep.subr.bf16.mxu0 0
    %5170 = vmatpush1.bf16.msra.mxu0 0
    %5171 = vmatprep.subr.bf16.mxu0 0
    %5172 = vmatpush1.bf16.msra.mxu0 0
    %5173 = vmatprep.subr.bf16.mxu0 0
    %5174 = vmatpush1.bf16.msra.mxu0 0
    %5175 = vmatprep.subr.bf16.mxu0 0
    %5176 = vmatpush1.bf16.msra.mxu0 0
    %5177 = vmatprep.subr.bf16.mxu0 0
    %5178 = vmatpush1.bf16.msra.mxu0 0
    %5179 = vmatprep.mubr.bf16.mxu0 0
    %5180 = vmatmul.mubr.bf16.gmra.mrb[0].mxu0 %v5142
    %v5181 = vpop.f32.mrb[0].mxu0
    %v5182 = vadd.f32 %v5128, %v5181
    %v5183 = vpop.f32.mrb[0].mxu0
    %v5184 = vpop.f32.mrb[0].mxu0
    %v5185 = vadd.f32 %v5128, %v5184
    %v5186 = vpop.f32.mrb[0].mxu0
    %5187 = vmatprep.mubr.bf16.mxu0 0
    %5188 = vmatmul.mubr.bf16.gmra.mrb[0].mxu0 %v5145
    %v5189 = vpop.f32.mrb[0].mxu0
    %v5190 = vadd.f32 %v5128, %v5189
    %v5191 = vpop.f32.mrb[0].mxu0
    %v5192 = vpop.f32.mrb[0].mxu0
    %v5193 = vpop.f32.mrb[0].mxu0
    %5194 = vdwg.mxu0
    %v5195 = vpack.c.bf16 %v5185, %v5182
    %5197 = vrot.lane.b32.xlu0 %v5195, 96
    %v5198 = vpop.permute.xlu0 %5197
    %vm5199 = vcmask 64512
    %v5201 = vsel %vm5199, %v5195, 0
    %v5204 = vsel %vm5199, %v5198, 0
    %5206 = vmatprep.subr.bf16.mxu0 0
    %5207 = vmatpush1.bf16.xpose.msra.mxu0 %v5204
    %5208 = vmatprep.subr.bf16.mxu0 0
    %5209 = vmatpush1.bf16.xpose.msra.mxu0 0
    %5210 = vmatprep.subr.bf16.mxu0 0
    %5211 = vmatpush1.bf16.xpose.msra.mxu0 0
    %5212 = vmatprep.subr.bf16.mxu0 0
    %5213 = vmatpush1.bf16.xpose.msra.mxu0 0
    %5214 = vmatprep.subr.bf16.mxu0 0
    %5215 = vmatpush1.bf16.xpose.msra.mxu0 0
    %5216 = vmatprep.subr.bf16.mxu0 0
    %5217 = vmatpush1.bf16.xpose.msra.mxu0 0
    %5218 = vmatprep.subr.bf16.mxu0 0
    %5219 = vmatpush1.bf16.xpose.msra.mxu0 0
    %5220 = vmatprep.subr.bf16.mxu0 0
    %5221 = vmatpush1.bf16.xpose.msra.mxu0 0
    %5222 = vmatprep.subr.bf16.mxu0 0
    %5223 = vmatpush1.bf16.xpose.msra.mxu0 0
    %5224 = vmatprep.subr.bf16.mxu0 0
    %5225 = vmatpush1.bf16.xpose.msra.mxu0 0
    %5226 = vmatprep.subr.bf16.mxu0 0
    %5227 = vmatpush1.bf16.xpose.msra.mxu0 0
    %5228 = vmatprep.subr.bf16.mxu0 0
    %5229 = vmatpush1.bf16.xpose.msra.mxu0 0
    %5230 = vmatprep.subr.bf16.mxu0 0
    %5231 = vmatpush1.bf16.xpose.msra.mxu0 0
    %5232 = vmatprep.subr.bf16.mxu0 0
    %5233 = vmatpush1.bf16.xpose.msra.mxu0 0
    %5234 = vmatprep.subr.bf16.mxu0 0
    %5235 = vmatpush1.bf16.xpose.msra.mxu0 0
    %5236 = vmatprep.subr.bf16.mxu0 0
    %5237 = vmatpush1.bf16.xpose.msra.mxu0 0
    %5238 = vmatprep.mubr.bf16.mxu0 0
    %5239 = vmatmul.mubr.bf16.gmra.mrb[0].mxu0 %v5201
    %v5240 = vpop.f32.mrb[0].mxu0
    %v5241 = vadd.f32 0.0, %v5240
    %v5242 = vpop.f32.mrb[0].mxu0
    %v5243 = vpop.f32.mrb[0].mxu0
    %v5244 = vadd.f32 0.0, %v5243
    %v5245 = vpop.f32.mrb[0].mxu0
    %5246 = vdwg.mxu0
    %v5247 = vmul.f32 %v5241, 0.35355338
    %v5248 = vmul.f32 %v5244, 0.35355338
    %vm5249 = vcmask 72704
    %v5250 = vsel %vm5249, %v5247, -inf
    %5251 = vmax.xlane.f32.xlu0 %v5250
    %v5252 = vpop.xlane.xlu0 %5251
    %vm5253 = vcmask 65536
    %v5254 = vsel %vm5253, %v5248, -inf
    %5255 = vmax.xlane.f32.xlu0 %v5254
    %v5256 = vpop.xlane.xlu0 %5255
    %v5257 = vsub.f32 %v5247, %v5252
    %v5258 = vsub.f32 %v5248, %v5256
    %v5259 = vmul.f32 %v5257, 1.442695
    %v5260 = vpow.pop %v5259
    %v5261 = vmul.f32 %v5258, 1.442695
    %v5262 = vpow.pop %v5261
    %v5263 = vsel %vm5249, %v5260, 0.0
    %5264 = vadd.xlane.f32.xlu0 %v5263
    %v5265 = vpop.xlane.xlu0 %5264
    %v5266 = vsel %vm5253, %v5262, 0.0
    %5267 = vadd.xlane.f32.xlu0 %v5266
    %v5268 = vpop.xlane.xlu0 %5267
    %v5269 = vrcp.pop %v5265
    %v5270 = vmul.f32 %v5260, %v5269
    %v5271 = vrcp.pop %v5268
    %v5272 = vmul.f32 %v5262, %v5271
    %v5273 = vpack.c.bf16 %v5272, %v5270
    %5274 = vrot.lane.b32.xlu0 %v5195, 64
    %v5275 = vpop.permute.xlu0 %5274
    %v5277 = vsel %vm5249, %v5273, 0
    %vm5279 = vcmask 1043456
    %vm5280 = vcmask 1044480
    %v5281 = vsel %vm5279, 4294967295, 65535
    %v5282 = vsel %vm5280, %v5281, 0
    %v5284 = vand.u32 %v5275, %v5282
    %5286 = vmatprep.subr.bf16.mxu0 0
    %5287 = vmatpush1.bf16.msra.mxu0 %v5284
    %5288 = vmatprep.subr.bf16.mxu0 0
    %5289 = vmatpush1.bf16.msra.mxu0 0
    %5290 = vmatprep.subr.bf16.mxu0 0
    %5291 = vmatpush1.bf16.msra.mxu0 0
    %5292 = vmatprep.subr.bf16.mxu0 0
    %5293 = vmatpush1.bf16.msra.mxu0 0
    %5294 = vmatprep.subr.bf16.mxu0 0
    %5295 = vmatpush1.bf16.msra.mxu0 0
    %5296 = vmatprep.subr.bf16.mxu0 0
    %5297 = vmatpush1.bf16.msra.mxu0 0
    %5298 = vmatprep.subr.bf16.mxu0 0
    %5299 = vmatpush1.bf16.msra.mxu0 0
    %5300 = vmatprep.subr.bf16.mxu0 0
    %5301 = vmatpush1.bf16.msra.mxu0 0
    %5302 = vmatprep.subr.bf16.mxu0 0
    %5303 = vmatpush1.bf16.msra.mxu0 0
    %5304 = vmatprep.subr.bf16.mxu0 0
    %5305 = vmatpush1.bf16.msra.mxu0 0
    %5306 = vmatprep.subr.bf16.mxu0 0
    %5307 = vmatpush1.bf16.msra.mxu0 0
    %5308 = vmatprep.subr.bf16.mxu0 0
    %5309 = vmatpush1.bf16.msra.mxu0 0
    %5310 = vmatprep.subr.bf16.mxu0 0
    %5311 = vmatpush1.bf16.msra.mxu0 0
    %5312 = vmatprep.subr.bf16.mxu0 0
    %5313 = vmatpush1.bf16.msra.mxu0 0
    %5314 = vmatprep.subr.bf16.mxu0 0
    %5315 = vmatpush1.bf16.msra.mxu0 0
    %5316 = vmatprep.subr.bf16.mxu0 0
    %5317 = vmatpush1.bf16.msra.mxu0 0
    %5318 = vmatprep.mubr.bf16.mxu0 0
    %5319 = vmatmul.mubr.bf16.gmra.mrb[0].mxu0 %v5277
    %v5320 = vpop.f32.mrb[0].mxu0
    %v5321 = vadd.f32 0.0, %v5320
    %v5322 = vpop.f32.mrb[0].mxu0
    %v5323 = vpop.f32.mrb[0].mxu0
    %v5324 = vadd.f32 0.0, %v5323
    %v5325 = vpop.f32.mrb[0].mxu0
    %5326 = vdwg.mxu0
    %v5327 = vpack.c.bf16 %v5324, %v5321
    %5328 = vrot.lane.b32.xlu0 %v5195, 120
    %v5329 = vpop.permute.xlu0 %5328
    %5330 = vrot.lane.b32.xlu0 %v5195, 88
    %v5331 = vpop.permute.xlu0 %5330
    %v5333 = vsel %vm5199, %v5329, 0
    %v5336 = vsel %vm5199, %v5331, 0
    %5338 = vmatprep.subr.bf16.mxu0 0
    %5339 = vmatpush1.bf16.xpose.msra.mxu0 %v5336
    %5340 = vmatprep.subr.bf16.mxu0 0
    %5341 = vmatpush1.bf16.xpose.msra.mxu0 0
    %5342 = vmatprep.subr.bf16.mxu0 0
    %5343 = vmatpush1.bf16.xpose.msra.mxu0 0
    %5344 = vmatprep.subr.bf16.mxu0 0
    %5345 = vmatpush1.bf16.xpose.msra.mxu0 0
    %5346 = vmatprep.subr.bf16.mxu0 0
    %5347 = vmatpush1.bf16.xpose.msra.mxu0 0
    %5348 = vmatprep.subr.bf16.mxu0 0
    %5349 = vmatpush1.bf16.xpose.msra.mxu0 0
    %5350 = vmatprep.subr.bf16.mxu0 0
    %5351 = vmatpush1.bf16.xpose.msra.mxu0 0
    %5352 = vmatprep.subr.bf16.mxu0 0
    %5353 = vmatpush1.bf16.xpose.msra.mxu0 0
    %5354 = vmatprep.subr.bf16.mxu0 0
    %5355 = vmatpush1.bf16.xpose.msra.mxu0 0
    %5356 = vmatprep.subr.bf16.mxu0 0
    %5357 = vmatpush1.bf16.xpose.msra.mxu0 0
    %5358 = vmatprep.subr.bf16.mxu0 0
    %5359 = vmatpush1.bf16.xpose.msra.mxu0 0
    %5360 = vmatprep.subr.bf16.mxu0 0
    %5361 = vmatpush1.bf16.xpose.msra.mxu0 0
    %5362 = vmatprep.subr.bf16.mxu0 0
    %5363 = vmatpush1.bf16.xpose.msra.mxu0 0
    %5364 = vmatprep.subr.bf16.mxu0 0
    %5365 = vmatpush1.bf16.xpose.msra.mxu0 0
    %5366 = vmatprep.subr.bf16.mxu0 0
    %5367 = vmatpush1.bf16.xpose.msra.mxu0 0
    %5368 = vmatprep.subr.bf16.mxu0 0
    %5369 = vmatpush1.bf16.xpose.msra.mxu0 0
    %5370 = vmatprep.mubr.bf16.mxu0 0
    %5371 = vmatmul.mubr.bf16.gmra.mrb[0].mxu0 %v5333
    %v5372 = vpop.f32.mrb[0].mxu0
    %v5373 = vadd.f32 0.0, %v5372
    %v5374 = vpop.f32.mrb[0].mxu0
    %v5375 = vpop.f32.mrb[0].mxu0
    %v5376 = vadd.f32 0.0, %v5375
    %v5377 = vpop.f32.mrb[0].mxu0
    %5378 = vdwg.mxu0
    %v5379 = vmul.f32 %v5373, 0.35355338
    %v5380 = vmul.f32 %v5376, 0.35355338
    %v5381 = vsel %vm5249, %v5379, -inf
    %5382 = vmax.xlane.f32.xlu0 %v5381
    %v5383 = vpop.xlane.xlu0 %5382
    %v5384 = vsel %vm5253, %v5380, -inf
    %5385 = vmax.xlane.f32.xlu0 %v5384
    %v5386 = vpop.xlane.xlu0 %5385
    %v5387 = vsub.f32 %v5379, %v5383
    %v5388 = vsub.f32 %v5380, %v5386
    %v5389 = vmul.f32 %v5387, 1.442695
    %v5390 = vpow.pop %v5389
    %v5391 = vmul.f32 %v5388, 1.442695
    %v5392 = vpow.pop %v5391
    %v5393 = vsel %vm5249, %v5390, 0.0
    %5394 = vadd.xlane.f32.xlu0 %v5393
    %v5395 = vpop.xlane.xlu0 %5394
    %v5396 = vsel %vm5253, %v5392, 0.0
    %5397 = vadd.xlane.f32.xlu0 %v5396
    %v5398 = vpop.xlane.xlu0 %5397
    %v5399 = vrcp.pop %v5395
    %v5400 = vmul.f32 %v5390, %v5399
    %v5401 = vrcp.pop %v5398
    %v5402 = vmul.f32 %v5392, %v5401
    %v5403 = vpack.c.bf16 %v5402, %v5400
    %5404 = vrot.lane.b32.xlu0 %v5195, 56
    %v5405 = vpop.permute.xlu0 %5404
    %v5407 = vsel %vm5249, %v5403, 0
    %v5410 = vand.u32 %v5405, %v5282
    %5412 = vmatprep.subr.bf16.mxu0 0
    %5413 = vmatpush1.bf16.msra.mxu0 %v5410
    %5414 = vmatprep.subr.bf16.mxu0 0
    %5415 = vmatpush1.bf16.msra.mxu0 0
    %5416 = vmatprep.subr.bf16.mxu0 0
    %5417 = vmatpush1.bf16.msra.mxu0 0
    %5418 = vmatprep.subr.bf16.mxu0 0
    %5419 = vmatpush1.bf16.msra.mxu0 0
    %5420 = vmatprep.subr.bf16.mxu0 0
    %5421 = vmatpush1.bf16.msra.mxu0 0
    %5422 = vmatprep.subr.bf16.mxu0 0
    %5423 = vmatpush1.bf16.msra.mxu0 0
    %5424 = vmatprep.subr.bf16.mxu0 0
    %5425 = vmatpush1.bf16.msra.mxu0 0
    %5426 = vmatprep.subr.bf16.mxu0 0
    %5427 = vmatpush1.bf16.msra.mxu0 0
    %5428 = vmatprep.subr.bf16.mxu0 0
    %5429 = vmatpush1.bf16.msra.mxu0 0
    %5430 = vmatprep.subr.bf16.mxu0 0
    %5431 = vmatpush1.bf16.msra.mxu0 0
    %5432 = vmatprep.subr.bf16.mxu0 0
    %5433 = vmatpush1.bf16.msra.mxu0 0
    %5434 = vmatprep.subr.bf16.mxu0 0
    %5435 = vmatpush1.bf16.msra.mxu0 0
    %5436 = vmatprep.subr.bf16.mxu0 0
    %5437 = vmatpush1.bf16.msra.mxu0 0
    %5438 = vmatprep.subr.bf16.mxu0 0
    %5439 = vmatpush1.bf16.msra.mxu0 0
    %5440 = vmatprep.subr.bf16.mxu0 0
    %5441 = vmatpush1.bf16.msra.mxu0 0
    %5442 = vmatprep.subr.bf16.mxu0 0
    %5443 = vmatpush1.bf16.msra.mxu0 0
    %5444 = vmatprep.mubr.bf16.mxu0 0
    %5445 = vmatmul.mubr.bf16.gmra.mrb[0].mxu0 %v5407
    %v5446 = vpop.f32.mrb[0].mxu0
    %v5447 = vadd.f32 0.0, %v5446
    %v5448 = vpop.f32.mrb[0].mxu0
    %v5449 = vpop.f32.mrb[0].mxu0
    %v5450 = vadd.f32 0.0, %v5449
    %v5451 = vpop.f32.mrb[0].mxu0
    %5452 = vdwg.mxu0
    %v5453 = vpack.c.bf16 %v5450, %v5447
    %v5454 = vpack.c.b16 %v5134, %v5134
    %5455 = vrot.lane.b32.xlu0 %v5454, 32
    %v5456 = vpop.permute.xlu0 %5455
    %v5458 = vsel %vm5199, %v5453, 0
    %v5461 = vsel %vm5279, %v5456, 0
    %5463 = vmatprep.subr.bf16.mxu0 0
    %5464 = vmatpush1.bf16.msra.mxu0 %v5461
    %5465 = vmatprep.subr.bf16.mxu0 0
    %5466 = vmatpush1.bf16.msra.mxu0 0
    %5467 = vmatprep.subr.bf16.mxu0 0
    %5468 = vmatpush1.bf16.msra.mxu0 0
    %5469 = vmatprep.subr.bf16.mxu0 0
    %5470 = vmatpush1.bf16.msra.mxu0 0
    %5471 = vmatprep.subr.bf16.mxu0 0
    %5472 = vmatpush1.bf16.msra.mxu0 0
    %5473 = vmatprep.subr.bf16.mxu0 0
    %5474 = vmatpush1.bf16.msra.mxu0 0
    %5475 = vmatprep.subr.bf16.mxu0 0
    %5476 = vmatpush1.bf16.msra.mxu0 0
    %5477 = vmatprep.subr.bf16.mxu0 0
    %5478 = vmatpush1.bf16.msra.mxu0 0
    %5479 = vmatprep.subr.bf16.mxu0 0
    %5480 = vmatpush1.bf16.msra.mxu0 0
    %5481 = vmatprep.subr.bf16.mxu0 0
    %5482 = vmatpush1.bf16.msra.mxu0 0
    %5483 = vmatprep.subr.bf16.mxu0 0
    %5484 = vmatpush1.bf16.msra.mxu0 0
    %5485 = vmatprep.subr.bf16.mxu0 0
    %5486 = vmatpush1.bf16.msra.mxu0 0
    %5487 = vmatprep.subr.bf16.mxu0 0
    %5488 = vmatpush1.bf16.msra.mxu0 0
    %5489 = vmatprep.subr.bf16.mxu0 0
    %5490 = vmatpush1.bf16.msra.mxu0 0
    %5491 = vmatprep.subr.bf16.mxu0 0
    %5492 = vmatpush1.bf16.msra.mxu0 0
    %5493 = vmatprep.subr.bf16.mxu0 0
    %5494 = vmatpush1.bf16.msra.mxu0 0
    %5495 = vmatprep.mubr.bf16.mxu0 0
    %5496 = vmatmul.mubr.bf16.gmra.mrb[0].mxu0 %v5458
    %v5497 = vpop.f32.mrb[0].mxu0
    %v5498 = vadd.f32 0.0, %v5497
    %v5499 = vpop.f32.mrb[0].mxu0
    %v5500 = vpop.f32.mrb[0].mxu0
    %v5501 = vadd.f32 0.0, %v5500
    %v5502 = vpop.f32.mrb[0].mxu0
    %5503 = vdwg.mxu0
    %v5504 = vpack.c.b16 %v5133, %v5133
    %5505 = vrot.lane.b32.xlu0 %v5504, 32
    %v5506 = vpop.permute.xlu0 %5505
    %v5508 = vsel %vm5199, %v5327, 0
    %v5511 = vsel %vm5279, %v5506, 0
    %5513 = vmatprep.subr.bf16.mxu0 0
    %5514 = vmatpush1.bf16.msra.mxu0 %v5511
    %5515 = vmatprep.subr.bf16.mxu0 0
    %5516 = vmatpush1.bf16.msra.mxu0 0
    %5517 = vmatprep.subr.bf16.mxu0 0
    %5518 = vmatpush1.bf16.msra.mxu0 0
    %5519 = vmatprep.subr.bf16.mxu0 0
    %5520 = vmatpush1.bf16.msra.mxu0 0
    %5521 = vmatprep.subr.bf16.mxu0 0
    %5522 = vmatpush1.bf16.msra.mxu0 0
    %5523 = vmatprep.subr.bf16.mxu0 0
    %5524 = vmatpush1.bf16.msra.mxu0 0
    %5525 = vmatprep.subr.bf16.mxu0 0
    %5526 = vmatpush1.bf16.msra.mxu0 0
    %5527 = vmatprep.subr.bf16.mxu0 0
    %5528 = vmatpush1.bf16.msra.mxu0 0
    %5529 = vmatprep.subr.bf16.mxu0 0
    %5530 = vmatpush1.bf16.msra.mxu0 0
    %5531 = vmatprep.subr.bf16.mxu0 0
    %5532 = vmatpush1.bf16.msra.mxu0 0
    %5533 = vmatprep.subr.bf16.mxu0 0
    %5534 = vmatpush1.bf16.msra.mxu0 0
    %5535 = vmatprep.subr.bf16.mxu0 0
    %5536 = vmatpush1.bf16.msra.mxu0 0
    %5537 = vmatprep.subr.bf16.mxu0 0
    %5538 = vmatpush1.bf16.msra.mxu0 0
    %5539 = vmatprep.subr.bf16.mxu0 0
    %5540 = vmatpush1.bf16.msra.mxu0 0
    %5541 = vmatprep.subr.bf16.mxu0 0
    %5542 = vmatpush1.bf16.msra.mxu0 0
    %5543 = vmatprep.subr.bf16.mxu0 0
    %5544 = vmatpush1.bf16.msra.mxu0 0
    %5545 = vmatprep.mubr.bf16.mxu0 0
    %5546 = vmatmul.mubr.bf16.gmra.mrb[0].mxu0 %v5508
    %v5547 = vpop.f32.mrb[0].mxu0
    %v5548 = vadd.f32 %v5498, %v5547
    %v5549 = vpop.f32.mrb[0].mxu0
    %v5550 = vpop.f32.mrb[0].mxu0
    %v5551 = vadd.f32 %v5501, %v5550
    %v5552 = vpop.f32.mrb[0].mxu0
    %5553 = vdwg.mxu0
    %5554 = vrot.lane.b32.xlu0 %v5195, 112
    %v5555 = vpop.permute.xlu0 %5554
    %5556 = vrot.lane.b32.xlu0 %v5195, 80
    %v5557 = vpop.permute.xlu0 %5556
    %v5559 = vsel %vm5199, %v5555, 0
    %v5562 = vsel %vm5199, %v5557, 0
    %5564 = vmatprep.subr.bf16.mxu0 0
    %5565 = vmatpush1.bf16.xpose.msra.mxu0 %v5562
    %5566 = vmatprep.subr.bf16.mxu0 0
    %5567 = vmatpush1.bf16.xpose.msra.mxu0 0
    %5568 = vmatprep.subr.bf16.mxu0 0
    %5569 = vmatpush1.bf16.xpose.msra.mxu0 0
    %5570 = vmatprep.subr.bf16.mxu0 0
    %5571 = vmatpush1.bf16.xpose.msra.mxu0 0
    %5572 = vmatprep.subr.bf16.mxu0 0
    %5573 = vmatpush1.bf16.xpose.msra.mxu0 0
    %5574 = vmatprep.subr.bf16.mxu0 0
    %5575 = vmatpush1.bf16.xpose.msra.mxu0 0
    %5576 = vmatprep.subr.bf16.mxu0 0
    %5577 = vmatpush1.bf16.xpose.msra.mxu0 0
    %5578 = vmatprep.subr.bf16.mxu0 0
    %5579 = vmatpush1.bf16.xpose.msra.mxu0 0
    %5580 = vmatprep.subr.bf16.mxu0 0
    %5581 = vmatpush1.bf16.xpose.msra.mxu0 0
    %5582 = vmatprep.subr.bf16.mxu0 0
    %5583 = vmatpush1.bf16.xpose.msra.mxu0 0
    %5584 = vmatprep.subr.bf16.mxu0 0
    %5585 = vmatpush1.bf16.xpose.msra.mxu0 0
    %5586 = vmatprep.subr.bf16.mxu0 0
    %5587 = vmatpush1.bf16.xpose.msra.mxu0 0
    %5588 = vmatprep.subr.bf16.mxu0 0
    %5589 = vmatpush1.bf16.xpose.msra.mxu0 0
    %5590 = vmatprep.subr.bf16.mxu0 0
    %5591 = vmatpush1.bf16.xpose.msra.mxu0 0
    %5592 = vmatprep.subr.bf16.mxu0 0
    %5593 = vmatpush1.bf16.xpose.msra.mxu0 0
    %5594 = vmatprep.subr.bf16.mxu0 0
    %5595 = vmatpush1.bf16.xpose.msra.mxu0 0
    %5596 = vmatprep.mubr.bf16.mxu0 0
    %5597 = vmatmul.mubr.bf16.gmra.mrb[0].mxu0 %v5559
    %v5598 = vpop.f32.mrb[0].mxu0
    %v5599 = vadd.f32 0.0, %v5598
    %v5600 = vpop.f32.mrb[0].mxu0
    %v5601 = vpop.f32.mrb[0].mxu0
    %v5602 = vadd.f32 0.0, %v5601
    %v5603 = vpop.f32.mrb[0].mxu0
    %5604 = vdwg.mxu0
    %v5605 = vmul.f32 %v5599, 0.35355338
    %v5606 = vmul.f32 %v5602, 0.35355338
    %v5607 = vsel %vm5249, %v5605, -inf
    %5608 = vmax.xlane.f32.xlu0 %v5607
    %v5609 = vpop.xlane.xlu0 %5608
    %v5610 = vsel %vm5253, %v5606, -inf
    %5611 = vmax.xlane.f32.xlu0 %v5610
    %v5612 = vpop.xlane.xlu0 %5611
    %v5613 = vsub.f32 %v5605, %v5609
    %v5614 = vsub.f32 %v5606, %v5612
    %v5615 = vmul.f32 %v5613, 1.442695
    %v5616 = vpow.pop %v5615
    %v5617 = vmul.f32 %v5614, 1.442695
    %v5618 = vpow.pop %v5617
    %v5619 = vsel %vm5249, %v5616, 0.0
    %5620 = vadd.xlane.f32.xlu0 %v5619
    %v5621 = vpop.xlane.xlu0 %5620
    %v5622 = vsel %vm5253, %v5618, 0.0
    %5623 = vadd.xlane.f32.xlu0 %v5622
    %v5624 = vpop.xlane.xlu0 %5623
    %v5625 = vrcp.pop %v5621
    %v5626 = vmul.f32 %v5616, %v5625
    %v5627 = vrcp.pop %v5624
    %v5628 = vmul.f32 %v5618, %v5627
    %v5629 = vpack.c.bf16 %v5628, %v5626
    %5630 = vrot.lane.b32.xlu0 %v5195, 48
    %v5631 = vpop.permute.xlu0 %5630
    %v5633 = vsel %vm5249, %v5629, 0
    %v5636 = vand.u32 %v5631, %v5282
    %5638 = vmatprep.subr.bf16.mxu0 0
    %5639 = vmatpush1.bf16.msra.mxu0 %v5636
    %5640 = vmatprep.subr.bf16.mxu0 0
    %5641 = vmatpush1.bf16.msra.mxu0 0
    %5642 = vmatprep.subr.bf16.mxu0 0
    %5643 = vmatpush1.bf16.msra.mxu0 0
    %5644 = vmatprep.subr.bf16.mxu0 0
    %5645 = vmatpush1.bf16.msra.mxu0 0
    %5646 = vmatprep.subr.bf16.mxu0 0
    %5647 = vmatpush1.bf16.msra.mxu0 0
    %5648 = vmatprep.subr.bf16.mxu0 0
    %5649 = vmatpush1.bf16.msra.mxu0 0
    %5650 = vmatprep.subr.bf16.mxu0 0
    %5651 = vmatpush1.bf16.msra.mxu0 0
    %5652 = vmatprep.subr.bf16.mxu0 0
    %5653 = vmatpush1.bf16.msra.mxu0 0
    %5654 = vmatprep.subr.bf16.mxu0 0
    %5655 = vmatpush1.bf16.msra.mxu0 0
    %5656 = vmatprep.subr.bf16.mxu0 0
    %5657 = vmatpush1.bf16.msra.mxu0 0
    %5658 = vmatprep.subr.bf16.mxu0 0
    %5659 = vmatpush1.bf16.msra.mxu0 0
    %5660 = vmatprep.subr.bf16.mxu0 0
    %5661 = vmatpush1.bf16.msra.mxu0 0
    %5662 = vmatprep.subr.bf16.mxu0 0
    %5663 = vmatpush1.bf16.msra.mxu0 0
    %5664 = vmatprep.subr.bf16.mxu0 0
    %5665 = vmatpush1.bf16.msra.mxu0 0
    %5666 = vmatprep.subr.bf16.mxu0 0
    %5667 = vmatpush1.bf16.msra.mxu0 0
    %5668 = vmatprep.subr.bf16.mxu0 0
    %5669 = vmatpush1.bf16.msra.mxu0 0
    %5670 = vmatprep.mubr.bf16.mxu0 0
    %5671 = vmatmul.mubr.bf16.gmra.mrb[0].mxu0 %v5633
    %v5672 = vpop.f32.mrb[0].mxu0
    %v5673 = vadd.f32 0.0, %v5672
    %v5674 = vpop.f32.mrb[0].mxu0
    %v5675 = vpop.f32.mrb[0].mxu0
    %v5676 = vadd.f32 0.0, %v5675
    %v5677 = vpop.f32.mrb[0].mxu0
    %5678 = vdwg.mxu0
    %v5679 = vpack.c.bf16 %v5676, %v5673
    %v5680 = vpack.c.b16 %v5135, %v5135
    %5681 = vrot.lane.b32.xlu0 %v5680, 32
    %v5682 = vpop.permute.xlu0 %5681
    %v5684 = vsel %vm5199, %v5679, 0
    %v5687 = vsel %vm5279, %v5682, 0
    %5689 = vmatprep.subr.bf16.mxu0 0
    %5690 = vmatpush1.bf16.msra.mxu0 %v5687
    %5691 = vmatprep.subr.bf16.mxu0 0
    %5692 = vmatpush1.bf16.msra.mxu0 0
    %5693 = vmatprep.subr.bf16.mxu0 0
    %5694 = vmatpush1.bf16.msra.mxu0 0
    %5695 = vmatprep.subr.bf16.mxu0 0
    %5696 = vmatpush1.bf16.msra.mxu0 0
    %5697 = vmatprep.subr.bf16.mxu0 0
    %5698 = vmatpush1.bf16.msra.mxu0 0
    %5699 = vmatprep.subr.bf16.mxu0 0
    %5700 = vmatpush1.bf16.msra.mxu0 0
    %5701 = vmatprep.subr.bf16.mxu0 0
    %5702 = vmatpush1.bf16.msra.mxu0 0
    %5703 = vmatprep.subr.bf16.mxu0 0
    %5704 = vmatpush1.bf16.msra.mxu0 0
    %5705 = vmatprep.subr.bf16.mxu0 0
    %5706 = vmatpush1.bf16.msra.mxu0 0
    %5707 = vmatprep.subr.bf16.mxu0 0
    %5708 = vmatpush1.bf16.msra.mxu0 0
    %5709 = vmatprep.subr.bf16.mxu0 0
    %5710 = vmatpush1.bf16.msra.mxu0 0
    %5711 = vmatprep.subr.bf16.mxu0 0
    %5712 = vmatpush1.bf16.msra.mxu0 0
    %5713 = vmatprep.subr.bf16.mxu0 0
    %5714 = vmatpush1.bf16.msra.mxu0 0
    %5715 = vmatprep.subr.bf16.mxu0 0
    %5716 = vmatpush1.bf16.msra.mxu0 0
    %5717 = vmatprep.subr.bf16.mxu0 0
    %5718 = vmatpush1.bf16.msra.mxu0 0
    %5719 = vmatprep.subr.bf16.mxu0 0
    %5720 = vmatpush1.bf16.msra.mxu0 0
    %5721 = vmatprep.mubr.bf16.mxu0 0
    %5722 = vmatmul.mubr.bf16.gmra.mrb[0].mxu0 %v5684
    %v5723 = vpop.f32.mrb[0].mxu0
    %v5724 = vadd.f32 0.0, %v5723
    %v5725 = vpop.f32.mrb[0].mxu0
    %v5726 = vpop.f32.mrb[0].mxu0
    %v5727 = vadd.f32 0.0, %v5726
    %v5728 = vpop.f32.mrb[0].mxu0
    %5729 = vdwg.mxu0
    %v5730 = vadd.f32 %v5548, %v5724
    %v5731 = vadd.f32 %v5551, %v5727
    %5732 = vrot.lane.b32.xlu0 %v5195, 104
    %v5733 = vpop.permute.xlu0 %5732
    %5734 = vrot.lane.b32.xlu0 %v5195, 72
    %v5735 = vpop.permute.xlu0 %5734
    %v5737 = vsel %vm5199, %v5733, 0
    %v5740 = vsel %vm5199, %v5735, 0
    %5742 = vmatprep.subr.bf16.mxu0 0
    %5743 = vmatpush1.bf16.xpose.msra.mxu0 %v5740
    %5744 = vmatprep.subr.bf16.mxu0 0
    %5745 = vmatpush1.bf16.xpose.msra.mxu0 0
    %5746 = vmatprep.subr.bf16.mxu0 0
    %5747 = vmatpush1.bf16.xpose.msra.mxu0 0
    %5748 = vmatprep.subr.bf16.mxu0 0
    %5749 = vmatpush1.bf16.xpose.msra.mxu0 0
    %5750 = vmatprep.subr.bf16.mxu0 0
    %5751 = vmatpush1.bf16.xpose.msra.mxu0 0
    %5752 = vmatprep.subr.bf16.mxu0 0
    %5753 = vmatpush1.bf16.xpose.msra.mxu0 0
    %5754 = vmatprep.subr.bf16.mxu0 0
    %5755 = vmatpush1.bf16.xpose.msra.mxu0 0
    %5756 = vmatprep.subr.bf16.mxu0 0
    %5757 = vmatpush1.bf16.xpose.msra.mxu0 0
    %5758 = vmatprep.subr.bf16.mxu0 0
    %5759 = vmatpush1.bf16.xpose.msra.mxu0 0
    %5760 = vmatprep.subr.bf16.mxu0 0
    %5761 = vmatpush1.bf16.xpose.msra.mxu0 0
    %5762 = vmatprep.subr.bf16.mxu0 0
    %5763 = vmatpush1.bf16.xpose.msra.mxu0 0
    %5764 = vmatprep.subr.bf16.mxu0 0
    %5765 = vmatpush1.bf16.xpose.msra.mxu0 0
    %5766 = vmatprep.subr.bf16.mxu0 0
    %5767 = vmatpush1.bf16.xpose.msra.mxu0 0
    %5768 = vmatprep.subr.bf16.mxu0 0
    %5769 = vmatpush1.bf16.xpose.msra.mxu0 0
    %5770 = vmatprep.subr.bf16.mxu0 0
    %5771 = vmatpush1.bf16.xpose.msra.mxu0 0
    %5772 = vmatprep.subr.bf16.mxu0 0
    %5773 = vmatpush1.bf16.xpose.msra.mxu0 0
    %5774 = vmatprep.mubr.bf16.mxu0 0
    %5775 = vmatmul.mubr.bf16.gmra.mrb[0].mxu0 %v5737
    %v5776 = vpop.f32.mrb[0].mxu0
    %v5777 = vadd.f32 0.0, %v5776
    %v5778 = vpop.f32.mrb[0].mxu0
    %v5779 = vpop.f32.mrb[0].mxu0
    %v5780 = vadd.f32 0.0, %v5779
    %v5781 = vpop.f32.mrb[0].mxu0
    %5782 = vdwg.mxu0
    %v5783 = vmul.f32 %v5777, 0.35355338
    %v5784 = vmul.f32 %v5780, 0.35355338
    %v5785 = vsel %vm5249, %v5783, -inf
    %5786 = vmax.xlane.f32.xlu0 %v5785
    %v5787 = vpop.xlane.xlu0 %5786
    %v5788 = vsel %vm5253, %v5784, -inf
    %5789 = vmax.xlane.f32.xlu0 %v5788
    %v5790 = vpop.xlane.xlu0 %5789
    %v5791 = vsub.f32 %v5783, %v5787
    %v5792 = vsub.f32 %v5784, %v5790
    %v5793 = vmul.f32 %v5791, 1.442695
    %v5794 = vpow.pop %v5793
    %v5795 = vmul.f32 %v5792, 1.442695
    %v5796 = vpow.pop %v5795
    %v5797 = vsel %vm5249, %v5794, 0.0
    %5798 = vadd.xlane.f32.xlu0 %v5797
    %v5799 = vpop.xlane.xlu0 %5798
    %v5800 = vsel %vm5253, %v5796, 0.0
    %5801 = vadd.xlane.f32.xlu0 %v5800
    %v5802 = vpop.xlane.xlu0 %5801
    %v5803 = vrcp.pop %v5799
    %v5804 = vmul.f32 %v5794, %v5803
    %v5805 = vrcp.pop %v5802
    %v5806 = vmul.f32 %v5796, %v5805
    %v5807 = vpack.c.bf16 %v5806, %v5804
    %5808 = vrot.lane.b32.xlu0 %v5195, 40
    %v5809 = vpop.permute.xlu0 %5808
    %v5811 = vsel %vm5249, %v5807, 0
    %v5814 = vand.u32 %v5809, %v5282
    %5816 = vmatprep.subr.bf16.mxu0 0
    %5817 = vmatpush1.bf16.msra.mxu0 %v5814
    %5818 = vmatprep.subr.bf16.mxu0 0
    %5819 = vmatpush1.bf16.msra.mxu0 0
    %5820 = vmatprep.subr.bf16.mxu0 0
    %5821 = vmatpush1.bf16.msra.mxu0 0
    %5822 = vmatprep.subr.bf16.mxu0 0
    %5823 = vmatpush1.bf16.msra.mxu0 0
    %5824 = vmatprep.subr.bf16.mxu0 0
    %5825 = vmatpush1.bf16.msra.mxu0 0
    %5826 = vmatprep.subr.bf16.mxu0 0
    %5827 = vmatpush1.bf16.msra.mxu0 0
    %5828 = vmatprep.subr.bf16.mxu0 0
    %5829 = vmatpush1.bf16.msra.mxu0 0
    %5830 = vmatprep.subr.bf16.mxu0 0
    %5831 = vmatpush1.bf16.msra.mxu0 0
    %5832 = vmatprep.subr.bf16.mxu0 0
    %5833 = vmatpush1.bf16.msra.mxu0 0
    %5834 = vmatprep.subr.bf16.mxu0 0
    %5835 = vmatpush1.bf16.msra.mxu0 0
    %5836 = vmatprep.subr.bf16.mxu0 0
    %5837 = vmatpush1.bf16.msra.mxu0 0
    %5838 = vmatprep.subr.bf16.mxu0 0
    %5839 = vmatpush1.bf16.msra.mxu0 0
    %5840 = vmatprep.subr.bf16.mxu0 0
    %5841 = vmatpush1.bf16.msra.mxu0 0
    %5842 = vmatprep.subr.bf16.mxu0 0
    %5843 = vmatpush1.bf16.msra.mxu0 0
    %5844 = vmatprep.subr.bf16.mxu0 0
    %5845 = vmatpush1.bf16.msra.mxu0 0
    %5846 = vmatprep.subr.bf16.mxu0 0
    %5847 = vmatpush1.bf16.msra.mxu0 0
    %5848 = vmatprep.mubr.bf16.mxu0 0
    %5849 = vmatmul.mubr.bf16.gmra.mrb[0].mxu0 %v5811
    %v5850 = vpop.f32.mrb[0].mxu0
    %v5851 = vadd.f32 0.0, %v5850
    %v5852 = vpop.f32.mrb[0].mxu0
    %v5853 = vpop.f32.mrb[0].mxu0
    %v5854 = vadd.f32 0.0, %v5853
    %v5855 = vpop.f32.mrb[0].mxu0
    %5856 = vdwg.mxu0
    %v5857 = vpack.c.bf16 %v5854, %v5851
    %v5858 = vpack.c.b16 %v5136, %v5136
    %5859 = vrot.lane.b32.xlu0 %v5858, 32
    %v5860 = vpop.permute.xlu0 %5859
    %v5862 = vsel %vm5199, %v5857, 0
    %v5865 = vsel %vm5279, %v5860, 0
    %5867 = vmatprep.subr.bf16.mxu0 0
    %5868 = vmatpush1.bf16.msra.mxu0 %v5865
    %5869 = vmatprep.subr.bf16.mxu0 0
    %5870 = vmatpush1.bf16.msra.mxu0 0
    %5871 = vmatprep.subr.bf16.mxu0 0
    %5872 = vmatpush1.bf16.msra.mxu0 0
    %5873 = vmatprep.subr.bf16.mxu0 0
    %5874 = vmatpush1.bf16.msra.mxu0 0
    %5875 = vmatprep.subr.bf16.mxu0 0
    %5876 = vmatpush1.bf16.msra.mxu0 0
    %5877 = vmatprep.subr.bf16.mxu0 0
    %5878 = vmatpush1.bf16.msra.mxu0 0
    %5879 = vmatprep.subr.bf16.mxu0 0
    %5880 = vmatpush1.bf16.msra.mxu0 0
    %5881 = vmatprep.subr.bf16.mxu0 0
    %5882 = vmatpush1.bf16.msra.mxu0 0
    %5883 = vmatprep.subr.bf16.mxu0 0
    %5884 = vmatpush1.bf16.msra.mxu0 0
    %5885 = vmatprep.subr.bf16.mxu0 0
    %5886 = vmatpush1.bf16.msra.mxu0 0
    %5887 = vmatprep.subr.bf16.mxu0 0
    %5888 = vmatpush1.bf16.msra.mxu0 0
    %5889 = vmatprep.subr.bf16.mxu0 0
    %5890 = vmatpush1.bf16.msra.mxu0 0
    %5891 = vmatprep.subr.bf16.mxu0 0
    %5892 = vmatpush1.bf16.msra.mxu0 0
    %5893 = vmatprep.subr.bf16.mxu0 0
    %5894 = vmatpush1.bf16.msra.mxu0 0
    %5895 = vmatprep.subr.bf16.mxu0 0
    %5896 = vmatpush1.bf16.msra.mxu0 0
    %5897 = vmatprep.subr.bf16.mxu0 0
    %5898 = vmatpush1.bf16.msra.mxu0 0
    %5899 = vmatprep.mubr.bf16.mxu0 0
    %5900 = vmatmul.mubr.bf16.gmra.mrb[0].mxu0 %v5862
    %v5901 = vpop.f32.mrb[0].mxu0
    %v5902 = vadd.f32 0.0, %v5901
    %v5903 = vpop.f32.mrb[0].mxu0
    %v5904 = vpop.f32.mrb[0].mxu0
    %v5905 = vadd.f32 0.0, %v5904
    %v5906 = vpop.f32.mrb[0].mxu0
    %5907 = vdwg.mxu0
    %v5908 = vadd.f32 %v5730, %v5902
    %v5909 = vadd.f32 %v5731, %v5905
    %v5910 = vpack.c.bf16 %v5190, %v5185
    %v5912 = vshrl.u32 %v5910, 16
    %v5914 = vshll.u32 %v5910, 16
    %v5916 = vrot.slane %v5914, 1
    %v5917 = vor.u32 %v5912, %v5916
    %5918 = vrot.lane.b32.xlu0 %v5917, 96
    %v5919 = vpop.permute.xlu0 %5918
    %v5921 = vsel %vm5199, %v5917, 0
    %v5924 = vsel %vm5199, %v5919, 0
    %5926 = vmatprep.subr.bf16.mxu0 0
    %5927 = vmatpush1.bf16.xpose.msra.mxu0 %v5924
    %5928 = vmatprep.subr.bf16.mxu0 0
    %5929 = vmatpush1.bf16.xpose.msra.mxu0 0
    %5930 = vmatprep.subr.bf16.mxu0 0
    %5931 = vmatpush1.bf16.xpose.msra.mxu0 0
    %5932 = vmatprep.subr.bf16.mxu0 0
    %5933 = vmatpush1.bf16.xpose.msra.mxu0 0
    %5934 = vmatprep.subr.bf16.mxu0 0
    %5935 = vmatpush1.bf16.xpose.msra.mxu0 0
    %5936 = vmatprep.subr.bf16.mxu0 0
    %5937 = vmatpush1.bf16.xpose.msra.mxu0 0
    %5938 = vmatprep.subr.bf16.mxu0 0
    %5939 = vmatpush1.bf16.xpose.msra.mxu0 0
    %5940 = vmatprep.subr.bf16.mxu0 0
    %5941 = vmatpush1.bf16.xpose.msra.mxu0 0
    %5942 = vmatprep.subr.bf16.mxu0 0
    %5943 = vmatpush1.bf16.xpose.msra.mxu0 0
    %5944 = vmatprep.subr.bf16.mxu0 0
    %5945 = vmatpush1.bf16.xpose.msra.mxu0 0
    %5946 = vmatprep.subr.bf16.mxu0 0
    %5947 = vmatpush1.bf16.xpose.msra.mxu0 0
    %5948 = vmatprep.subr.bf16.mxu0 0
    %5949 = vmatpush1.bf16.xpose.msra.mxu0 0
    %5950 = vmatprep.subr.bf16.mxu0 0
    %5951 = vmatpush1.bf16.xpose.msra.mxu0 0
    %5952 = vmatprep.subr.bf16.mxu0 0
    %5953 = vmatpush1.bf16.xpose.msra.mxu0 0
    %5954 = vmatprep.subr.bf16.mxu0 0
    %5955 = vmatpush1.bf16.xpose.msra.mxu0 0
    %5956 = vmatprep.subr.bf16.mxu0 0
    %5957 = vmatpush1.bf16.xpose.msra.mxu0 0
    %5958 = vmatprep.mubr.bf16.mxu0 0
    %5959 = vmatmul.mubr.bf16.gmra.mrb[0].mxu0 %v5921
    %v5960 = vpop.f32.mrb[0].mxu0
    %v5961 = vadd.f32 0.0, %v5960
    %v5962 = vpop.f32.mrb[0].mxu0
    %v5963 = vpop.f32.mrb[0].mxu0
    %v5964 = vadd.f32 0.0, %v5963
    %v5965 = vpop.f32.mrb[0].mxu0
    %5966 = vdwg.mxu0
    %v5967 = vmul.f32 %v5961, 0.35355338
    %v5968 = vmul.f32 %v5964, 0.35355338
    %v5969 = vsel %vm5249, %v5967, -inf
    %5970 = vmax.xlane.f32.xlu0 %v5969
    %v5971 = vpop.xlane.xlu0 %5970
    %v5972 = vsel %vm5253, %v5968, -inf
    %5973 = vmax.xlane.f32.xlu0 %v5972
    %v5974 = vpop.xlane.xlu0 %5973
    %v5975 = vsub.f32 %v5967, %v5971
    %v5976 = vsub.f32 %v5968, %v5974
    %v5977 = vmul.f32 %v5975, 1.442695
    %v5978 = vpow.pop %v5977
    %v5979 = vmul.f32 %v5976, 1.442695
    %v5980 = vpow.pop %v5979
    %v5981 = vsel %vm5249, %v5978, 0.0
    %5982 = vadd.xlane.f32.xlu0 %v5981
    %v5983 = vpop.xlane.xlu0 %5982
    %v5984 = vsel %vm5253, %v5980, 0.0
    %5985 = vadd.xlane.f32.xlu0 %v5984
    %v5986 = vpop.xlane.xlu0 %5985
    %v5987 = vrcp.pop %v5983
    %v5988 = vmul.f32 %v5978, %v5987
    %v5989 = vrcp.pop %v5986
    %v5990 = vmul.f32 %v5980, %v5989
    %v5991 = vpack.c.bf16 %v5990, %v5988
    %5992 = vrot.lane.b32.xlu0 %v5917, 64
    %v5993 = vpop.permute.xlu0 %5992
    %v5995 = vsel %vm5249, %v5991, 0
    %v5998 = vand.u32 %v5993, %v5282
    %6000 = vmatprep.subr.bf16.mxu0 0
    %6001 = vmatpush1.bf16.msra.mxu0 %v5998
    %6002 = vmatprep.subr.bf16.mxu0 0
    %6003 = vmatpush1.bf16.msra.mxu0 0
    %6004 = vmatprep.subr.bf16.mxu0 0
    %6005 = vmatpush1.bf16.msra.mxu0 0
    %6006 = vmatprep.subr.bf16.mxu0 0
    %6007 = vmatpush1.bf16.msra.mxu0 0
    %6008 = vmatprep.subr.bf16.mxu0 0
    %6009 = vmatpush1.bf16.msra.mxu0 0
    %6010 = vmatprep.subr.bf16.mxu0 0
    %6011 = vmatpush1.bf16.msra.mxu0 0
    %6012 = vmatprep.subr.bf16.mxu0 0
    %6013 = vmatpush1.bf16.msra.mxu0 0
    %6014 = vmatprep.subr.bf16.mxu0 0
    %6015 = vmatpush1.bf16.msra.mxu0 0
    %6016 = vmatprep.subr.bf16.mxu0 0
    %6017 = vmatpush1.bf16.msra.mxu0 0
    %6018 = vmatprep.subr.bf16.mxu0 0
    %6019 = vmatpush1.bf16.msra.mxu0 0
    %6020 = vmatprep.subr.bf16.mxu0 0
    %6021 = vmatpush1.bf16.msra.mxu0 0
    %6022 = vmatprep.subr.bf16.mxu0 0
    %6023 = vmatpush1.bf16.msra.mxu0 0
    %6024 = vmatprep.subr.bf16.mxu0 0
    %6025 = vmatpush1.bf16.msra.mxu0 0
    %6026 = vmatprep.subr.bf16.mxu0 0
    %6027 = vmatpush1.bf16.msra.mxu0 0
    %6028 = vmatprep.subr.bf16.mxu0 0
    %6029 = vmatpush1.bf16.msra.mxu0 0
    %6030 = vmatprep.subr.bf16.mxu0 0
    %6031 = vmatpush1.bf16.msra.mxu0 0
    %6032 = vmatprep.mubr.bf16.mxu0 0
    %6033 = vmatmul.mubr.bf16.gmra.mrb[0].mxu0 %v5995
    %v6034 = vpop.f32.mrb[0].mxu0
    %v6035 = vadd.f32 0.0, %v6034
    %v6036 = vpop.f32.mrb[0].mxu0
    %v6037 = vpop.f32.mrb[0].mxu0
    %v6038 = vadd.f32 0.0, %v6037
    %v6039 = vpop.f32.mrb[0].mxu0
    %6040 = vdwg.mxu0
    %v6041 = vpack.c.bf16 %v6038, %v6035
    %6042 = vrot.lane.b32.xlu0 %v5917, 120
    %v6043 = vpop.permute.xlu0 %6042
    %6044 = vrot.lane.b32.xlu0 %v5917, 88
    %v6045 = vpop.permute.xlu0 %6044
    %v6047 = vsel %vm5199, %v6043, 0
    %v6050 = vsel %vm5199, %v6045, 0
    %6052 = vmatprep.subr.bf16.mxu0 0
    %6053 = vmatpush1.bf16.xpose.msra.mxu0 %v6050
    %6054 = vmatprep.subr.bf16.mxu0 0
    %6055 = vmatpush1.bf16.xpose.msra.mxu0 0
    %6056 = vmatprep.subr.bf16.mxu0 0
    %6057 = vmatpush1.bf16.xpose.msra.mxu0 0
    %6058 = vmatprep.subr.bf16.mxu0 0
    %6059 = vmatpush1.bf16.xpose.msra.mxu0 0
    %6060 = vmatprep.subr.bf16.mxu0 0
    %6061 = vmatpush1.bf16.xpose.msra.mxu0 0
    %6062 = vmatprep.subr.bf16.mxu0 0
    %6063 = vmatpush1.bf16.xpose.msra.mxu0 0
    %6064 = vmatprep.subr.bf16.mxu0 0
    %6065 = vmatpush1.bf16.xpose.msra.mxu0 0
    %6066 = vmatprep.subr.bf16.mxu0 0
    %6067 = vmatpush1.bf16.xpose.msra.mxu0 0
    %6068 = vmatprep.subr.bf16.mxu0 0
    %6069 = vmatpush1.bf16.xpose.msra.mxu0 0
    %6070 = vmatprep.subr.bf16.mxu0 0
    %6071 = vmatpush1.bf16.xpose.msra.mxu0 0
    %6072 = vmatprep.subr.bf16.mxu0 0
    %6073 = vmatpush1.bf16.xpose.msra.mxu0 0
    %6074 = vmatprep.subr.bf16.mxu0 0
    %6075 = vmatpush1.bf16.xpose.msra.mxu0 0
    %6076 = vmatprep.subr.bf16.mxu0 0
    %6077 = vmatpush1.bf16.xpose.msra.mxu0 0
    %6078 = vmatprep.subr.bf16.mxu0 0
    %6079 = vmatpush1.bf16.xpose.msra.mxu0 0
    %6080 = vmatprep.subr.bf16.mxu0 0
    %6081 = vmatpush1.bf16.xpose.msra.mxu0 0
    %6082 = vmatprep.subr.bf16.mxu0 0
    %6083 = vmatpush1.bf16.xpose.msra.mxu0 0
    %6084 = vmatprep.mubr.bf16.mxu0 0
    %6085 = vmatmul.mubr.bf16.gmra.mrb[0].mxu0 %v6047
    %v6086 = vpop.f32.mrb[0].mxu0
    %v6087 = vadd.f32 0.0, %v6086
    %v6088 = vpop.f32.mrb[0].mxu0
    %v6089 = vpop.f32.mrb[0].mxu0
    %v6090 = vadd.f32 0.0, %v6089
    %v6091 = vpop.f32.mrb[0].mxu0
    %6092 = vdwg.mxu0
    %v6093 = vmul.f32 %v6087, 0.35355338
    %v6094 = vmul.f32 %v6090, 0.35355338
    %v6095 = vsel %vm5249, %v6093, -inf
    %6096 = vmax.xlane.f32.xlu0 %v6095
    %v6097 = vpop.xlane.xlu0 %6096
    %v6098 = vsel %vm5253, %v6094, -inf
    %6099 = vmax.xlane.f32.xlu0 %v6098
    %v6100 = vpop.xlane.xlu0 %6099
    %v6101 = vsub.f32 %v6093, %v6097
    %v6102 = vsub.f32 %v6094, %v6100
    %v6103 = vmul.f32 %v6101, 1.442695
    %v6104 = vpow.pop %v6103
    %v6105 = vmul.f32 %v6102, 1.442695
    %v6106 = vpow.pop %v6105
    %v6107 = vsel %vm5249, %v6104, 0.0
    %6108 = vadd.xlane.f32.xlu0 %v6107
    %v6109 = vpop.xlane.xlu0 %6108
    %v6110 = vsel %vm5253, %v6106, 0.0
    %6111 = vadd.xlane.f32.xlu0 %v6110
    %v6112 = vpop.xlane.xlu0 %6111
    %v6113 = vrcp.pop %v6109
    %v6114 = vmul.f32 %v6104, %v6113
    %v6115 = vrcp.pop %v6112
    %v6116 = vmul.f32 %v6106, %v6115
    %v6117 = vpack.c.bf16 %v6116, %v6114
    %6118 = vrot.lane.b32.xlu0 %v5917, 56
    %v6119 = vpop.permute.xlu0 %6118
    %v6121 = vsel %vm5249, %v6117, 0
    %v6124 = vand.u32 %v6119, %v5282
    %6126 = vmatprep.subr.bf16.mxu0 0
    %6127 = vmatpush1.bf16.msra.mxu0 %v6124
    %6128 = vmatprep.subr.bf16.mxu0 0
    %6129 = vmatpush1.bf16.msra.mxu0 0
    %6130 = vmatprep.subr.bf16.mxu0 0
    %6131 = vmatpush1.bf16.msra.mxu0 0
    %6132 = vmatprep.subr.bf16.mxu0 0
    %6133 = vmatpush1.bf16.msra.mxu0 0
    %6134 = vmatprep.subr.bf16.mxu0 0
    %6135 = vmatpush1.bf16.msra.mxu0 0
    %6136 = vmatprep.subr.bf16.mxu0 0
    %6137 = vmatpush1.bf16.msra.mxu0 0
    %6138 = vmatprep.subr.bf16.mxu0 0
    %6139 = vmatpush1.bf16.msra.mxu0 0
    %6140 = vmatprep.subr.bf16.mxu0 0
    %6141 = vmatpush1.bf16.msra.mxu0 0
    %6142 = vmatprep.subr.bf16.mxu0 0
    %6143 = vmatpush1.bf16.msra.mxu0 0
    %6144 = vmatprep.subr.bf16.mxu0 0
    %6145 = vmatpush1.bf16.msra.mxu0 0
    %6146 = vmatprep.subr.bf16.mxu0 0
    %6147 = vmatpush1.bf16.msra.mxu0 0
    %6148 = vmatprep.subr.bf16.mxu0 0
    %6149 = vmatpush1.bf16.msra.mxu0 0
    %6150 = vmatprep.subr.bf16.mxu0 0
    %6151 = vmatpush1.bf16.msra.mxu0 0
    %6152 = vmatprep.subr.bf16.mxu0 0
    %6153 = vmatpush1.bf16.msra.mxu0 0
    %6154 = vmatprep.subr.bf16.mxu0 0
    %6155 = vmatpush1.bf16.msra.mxu0 0
    %6156 = vmatprep.subr.bf16.mxu0 0
    %6157 = vmatpush1.bf16.msra.mxu0 0
    %6158 = vmatprep.mubr.bf16.mxu0 0
    %6159 = vmatmul.mubr.bf16.gmra.mrb[0].mxu0 %v6121
    %v6160 = vpop.f32.mrb[0].mxu0
    %v6161 = vadd.f32 0.0, %v6160
    %v6162 = vpop.f32.mrb[0].mxu0
    %v6163 = vpop.f32.mrb[0].mxu0
    %v6164 = vadd.f32 0.0, %v6163
    %v6165 = vpop.f32.mrb[0].mxu0
    %6166 = vdwg.mxu0
    %v6167 = vpack.c.bf16 %v6164, %v6161
    %v6169 = vsel %vm5199, %v6167, 0
    %6171 = vmatprep.subr.bf16.mxu0 0
    %6172 = vmatpush1.bf16.msra.mxu0 %v5461
    %6173 = vmatprep.subr.bf16.mxu0 0
    %6174 = vmatpush1.bf16.msra.mxu0 0
    %6175 = vmatprep.subr.bf16.mxu0 0
    %6176 = vmatpush1.bf16.msra.mxu0 0
    %6177 = vmatprep.subr.bf16.mxu0 0
    %6178 = vmatpush1.bf16.msra.mxu0 0
    %6179 = vmatprep.subr.bf16.mxu0 0
    %6180 = vmatpush1.bf16.msra.mxu0 0
    %6181 = vmatprep.subr.bf16.mxu0 0
    %6182 = vmatpush1.bf16.msra.mxu0 0
    %6183 = vmatprep.subr.bf16.mxu0 0
    %6184 = vmatpush1.bf16.msra.mxu0 0
    %6185 = vmatprep.subr.bf16.mxu0 0
    %6186 = vmatpush1.bf16.msra.mxu0 0
    %6187 = vmatprep.subr.bf16.mxu0 0
    %6188 = vmatpush1.bf16.msra.mxu0 0
    %6189 = vmatprep.subr.bf16.mxu0 0
    %6190 = vmatpush1.bf16.msra.mxu0 0
    %6191 = vmatprep.subr.bf16.mxu0 0
    %6192 = vmatpush1.bf16.msra.mxu0 0
    %6193 = vmatprep.subr.bf16.mxu0 0
    %6194 = vmatpush1.bf16.msra.mxu0 0
    %6195 = vmatprep.subr.bf16.mxu0 0
    %6196 = vmatpush1.bf16.msra.mxu0 0
    %6197 = vmatprep.subr.bf16.mxu0 0
    %6198 = vmatpush1.bf16.msra.mxu0 0
    %6199 = vmatprep.subr.bf16.mxu0 0
    %6200 = vmatpush1.bf16.msra.mxu0 0
    %6201 = vmatprep.subr.bf16.mxu0 0
    %6202 = vmatpush1.bf16.msra.mxu0 0
    %6203 = vmatprep.mubr.bf16.mxu0 0
    %6204 = vmatmul.mubr.bf16.gmra.mrb[0].mxu0 %v6169
    %v6205 = vpop.f32.mrb[0].mxu0
    %v6206 = vadd.f32 0.0, %v6205
    %v6207 = vpop.f32.mrb[0].mxu0
    %v6208 = vpop.f32.mrb[0].mxu0
    %v6209 = vadd.f32 0.0, %v6208
    %v6210 = vpop.f32.mrb[0].mxu0
    %6211 = vdwg.mxu0
    %v6213 = vsel %vm5199, %v6041, 0
    %6215 = vmatprep.subr.bf16.mxu0 0
    %6216 = vmatpush1.bf16.msra.mxu0 %v5511
    %6217 = vmatprep.subr.bf16.mxu0 0
    %6218 = vmatpush1.bf16.msra.mxu0 0
    %6219 = vmatprep.subr.bf16.mxu0 0
    %6220 = vmatpush1.bf16.msra.mxu0 0
    %6221 = vmatprep.subr.bf16.mxu0 0
    %6222 = vmatpush1.bf16.msra.mxu0 0
    %6223 = vmatprep.subr.bf16.mxu0 0
    %6224 = vmatpush1.bf16.msra.mxu0 0
    %6225 = vmatprep.subr.bf16.mxu0 0
    %6226 = vmatpush1.bf16.msra.mxu0 0
    %6227 = vmatprep.subr.bf16.mxu0 0
    %6228 = vmatpush1.bf16.msra.mxu0 0
    %6229 = vmatprep.subr.bf16.mxu0 0
    %6230 = vmatpush1.bf16.msra.mxu0 0
    %6231 = vmatprep.subr.bf16.mxu0 0
    %6232 = vmatpush1.bf16.msra.mxu0 0
    %6233 = vmatprep.subr.bf16.mxu0 0
    %6234 = vmatpush1.bf16.msra.mxu0 0
    %6235 = vmatprep.subr.bf16.mxu0 0
    %6236 = vmatpush1.bf16.msra.mxu0 0
    %6237 = vmatprep.subr.bf16.mxu0 0
    %6238 = vmatpush1.bf16.msra.mxu0 0
    %6239 = vmatprep.subr.bf16.mxu0 0
    %6240 = vmatpush1.bf16.msra.mxu0 0
    %6241 = vmatprep.subr.bf16.mxu0 0
    %6242 = vmatpush1.bf16.msra.mxu0 0
    %6243 = vmatprep.subr.bf16.mxu0 0
    %6244 = vmatpush1.bf16.msra.mxu0 0
    %6245 = vmatprep.subr.bf16.mxu0 0
    %6246 = vmatpush1.bf16.msra.mxu0 0
    %6247 = vmatprep.mubr.bf16.mxu0 0
    %6248 = vmatmul.mubr.bf16.gmra.mrb[0].mxu0 %v6213
    %v6249 = vpop.f32.mrb[0].mxu0
    %v6250 = vadd.f32 %v6206, %v6249
    %v6251 = vpop.f32.mrb[0].mxu0
    %v6252 = vpop.f32.mrb[0].mxu0
    %v6253 = vadd.f32 %v6209, %v6252
    %v6254 = vpop.f32.mrb[0].mxu0
    %6255 = vdwg.mxu0
    %6256 = vrot.lane.b32.xlu0 %v5917, 112
    %v6257 = vpop.permute.xlu0 %6256
    %6258 = vrot.lane.b32.xlu0 %v5917, 80
    %v6259 = vpop.permute.xlu0 %6258
    %v6261 = vsel %vm5199, %v6257, 0
    %v6264 = vsel %vm5199, %v6259, 0
    %6266 = vmatprep.subr.bf16.mxu0 0
    %6267 = vmatpush1.bf16.xpose.msra.mxu0 %v6264
    %6268 = vmatprep.subr.bf16.mxu0 0
    %6269 = vmatpush1.bf16.xpose.msra.mxu0 0
    %6270 = vmatprep.subr.bf16.mxu0 0
    %6271 = vmatpush1.bf16.xpose.msra.mxu0 0
    %6272 = vmatprep.subr.bf16.mxu0 0
    %6273 = vmatpush1.bf16.xpose.msra.mxu0 0
    %6274 = vmatprep.subr.bf16.mxu0 0
    %6275 = vmatpush1.bf16.xpose.msra.mxu0 0
    %6276 = vmatprep.subr.bf16.mxu0 0
    %6277 = vmatpush1.bf16.xpose.msra.mxu0 0
    %6278 = vmatprep.subr.bf16.mxu0 0
    %6279 = vmatpush1.bf16.xpose.msra.mxu0 0
    %6280 = vmatprep.subr.bf16.mxu0 0
    %6281 = vmatpush1.bf16.xpose.msra.mxu0 0
    %6282 = vmatprep.subr.bf16.mxu0 0
    %6283 = vmatpush1.bf16.xpose.msra.mxu0 0
    %6284 = vmatprep.subr.bf16.mxu0 0
    %6285 = vmatpush1.bf16.xpose.msra.mxu0 0
    %6286 = vmatprep.subr.bf16.mxu0 0
    %6287 = vmatpush1.bf16.xpose.msra.mxu0 0
    %6288 = vmatprep.subr.bf16.mxu0 0
    %6289 = vmatpush1.bf16.xpose.msra.mxu0 0
    %6290 = vmatprep.subr.bf16.mxu0 0
    %6291 = vmatpush1.bf16.xpose.msra.mxu0 0
    %6292 = vmatprep.subr.bf16.mxu0 0
    %6293 = vmatpush1.bf16.xpose.msra.mxu0 0
    %6294 = vmatprep.subr.bf16.mxu0 0
    %6295 = vmatpush1.bf16.xpose.msra.mxu0 0
    %6296 = vmatprep.subr.bf16.mxu0 0
    %6297 = vmatpush1.bf16.xpose.msra.mxu0 0
    %6298 = vmatprep.mubr.bf16.mxu0 0
    %6299 = vmatmul.mubr.bf16.gmra.mrb[0].mxu0 %v6261
    %v6300 = vpop.f32.mrb[0].mxu0
    %v6301 = vadd.f32 0.0, %v6300
    %v6302 = vpop.f32.mrb[0].mxu0
    %v6303 = vpop.f32.mrb[0].mxu0
    %v6304 = vadd.f32 0.0, %v6303
    %v6305 = vpop.f32.mrb[0].mxu0
    %6306 = vdwg.mxu0
    %v6307 = vmul.f32 %v6301, 0.35355338
    %v6308 = vmul.f32 %v6304, 0.35355338
    %v6309 = vsel %vm5249, %v6307, -inf
    %6310 = vmax.xlane.f32.xlu0 %v6309
    %v6311 = vpop.xlane.xlu0 %6310
    %v6312 = vsel %vm5253, %v6308, -inf
    %6313 = vmax.xlane.f32.xlu0 %v6312
    %v6314 = vpop.xlane.xlu0 %6313
    %v6315 = vsub.f32 %v6307, %v6311
    %v6316 = vsub.f32 %v6308, %v6314
    %v6317 = vmul.f32 %v6315, 1.442695
    %v6318 = vpow.pop %v6317
    %v6319 = vmul.f32 %v6316, 1.442695
    %v6320 = vpow.pop %v6319
    %v6321 = vsel %vm5249, %v6318, 0.0
    %6322 = vadd.xlane.f32.xlu0 %v6321
    %v6323 = vpop.xlane.xlu0 %6322
    %v6324 = vsel %vm5253, %v6320, 0.0
    %6325 = vadd.xlane.f32.xlu0 %v6324
    %v6326 = vpop.xlane.xlu0 %6325
    %v6327 = vrcp.pop %v6323
    %v6328 = vmul.f32 %v6318, %v6327
    %v6329 = vrcp.pop %v6326
    %v6330 = vmul.f32 %v6320, %v6329
    %v6331 = vpack.c.bf16 %v6330, %v6328
    %6332 = vrot.lane.b32.xlu0 %v5917, 48
    %v6333 = vpop.permute.xlu0 %6332
    %v6335 = vsel %vm5249, %v6331, 0
    %v6338 = vand.u32 %v6333, %v5282
    %6340 = vmatprep.subr.bf16.mxu0 0
    %6341 = vmatpush1.bf16.msra.mxu0 %v6338
    %6342 = vmatprep.subr.bf16.mxu0 0
    %6343 = vmatpush1.bf16.msra.mxu0 0
    %6344 = vmatprep.subr.bf16.mxu0 0
    %6345 = vmatpush1.bf16.msra.mxu0 0
    %6346 = vmatprep.subr.bf16.mxu0 0
    %6347 = vmatpush1.bf16.msra.mxu0 0
    %6348 = vmatprep.subr.bf16.mxu0 0
    %6349 = vmatpush1.bf16.msra.mxu0 0
    %6350 = vmatprep.subr.bf16.mxu0 0
    %6351 = vmatpush1.bf16.msra.mxu0 0
    %6352 = vmatprep.subr.bf16.mxu0 0
    %6353 = vmatpush1.bf16.msra.mxu0 0
    %6354 = vmatprep.subr.bf16.mxu0 0
    %6355 = vmatpush1.bf16.msra.mxu0 0
    %6356 = vmatprep.subr.bf16.mxu0 0
    %6357 = vmatpush1.bf16.msra.mxu0 0
    %6358 = vmatprep.subr.bf16.mxu0 0
    %6359 = vmatpush1.bf16.msra.mxu0 0
    %6360 = vmatprep.subr.bf16.mxu0 0
    %6361 = vmatpush1.bf16.msra.mxu0 0
    %6362 = vmatprep.subr.bf16.mxu0 0
    %6363 = vmatpush1.bf16.msra.mxu0 0
    %6364 = vmatprep.subr.bf16.mxu0 0
    %6365 = vmatpush1.bf16.msra.mxu0 0
    %6366 = vmatprep.subr.bf16.mxu0 0
    %6367 = vmatpush1.bf16.msra.mxu0 0
    %6368 = vmatprep.subr.bf16.mxu0 0
    %6369 = vmatpush1.bf16.msra.mxu0 0
    %6370 = vmatprep.subr.bf16.mxu0 0
    %6371 = vmatpush1.bf16.msra.mxu0 0
    %6372 = vmatprep.mubr.bf16.mxu0 0
    %6373 = vmatmul.mubr.bf16.gmra.mrb[0].mxu0 %v6335
    %v6374 = vpop.f32.mrb[0].mxu0
    %v6375 = vadd.f32 0.0, %v6374
    %v6376 = vpop.f32.mrb[0].mxu0
    %v6377 = vpop.f32.mrb[0].mxu0
    %v6378 = vadd.f32 0.0, %v6377
    %v6379 = vpop.f32.mrb[0].mxu0
    %6380 = vdwg.mxu0
    %v6381 = vpack.c.bf16 %v6378, %v6375
    %v6383 = vsel %vm5199, %v6381, 0
    %6385 = vmatprep.subr.bf16.mxu0 0
    %6386 = vmatpush1.bf16.msra.mxu0 %v5687
    %6387 = vmatprep.subr.bf16.mxu0 0
    %6388 = vmatpush1.bf16.msra.mxu0 0
    %6389 = vmatprep.subr.bf16.mxu0 0
    %6390 = vmatpush1.bf16.msra.mxu0 0
    %6391 = vmatprep.subr.bf16.mxu0 0
    %6392 = vmatpush1.bf16.msra.mxu0 0
    %6393 = vmatprep.subr.bf16.mxu0 0
    %6394 = vmatpush1.bf16.msra.mxu0 0
    %6395 = vmatprep.subr.bf16.mxu0 0
    %6396 = vmatpush1.bf16.msra.mxu0 0
    %6397 = vmatprep.subr.bf16.mxu0 0
    %6398 = vmatpush1.bf16.msra.mxu0 0
    %6399 = vmatprep.subr.bf16.mxu0 0
    %6400 = vmatpush1.bf16.msra.mxu0 0
    %6401 = vmatprep.subr.bf16.mxu0 0
    %6402 = vmatpush1.bf16.msra.mxu0 0
    %6403 = vmatprep.subr.bf16.mxu0 0
    %6404 = vmatpush1.bf16.msra.mxu0 0
    %6405 = vmatprep.subr.bf16.mxu0 0
    %6406 = vmatpush1.bf16.msra.mxu0 0
    %6407 = vmatprep.subr.bf16.mxu0 0
    %6408 = vmatpush1.bf16.msra.mxu0 0
    %6409 = vmatprep.subr.bf16.mxu0 0
    %6410 = vmatpush1.bf16.msra.mxu0 0
    %6411 = vmatprep.subr.bf16.mxu0 0
    %6412 = vmatpush1.bf16.msra.mxu0 0
    %6413 = vmatprep.subr.bf16.mxu0 0
    %6414 = vmatpush1.bf16.msra.mxu0 0
    %6415 = vmatprep.subr.bf16.mxu0 0
    %6416 = vmatpush1.bf16.msra.mxu0 0
    %6417 = vmatprep.mubr.bf16.mxu0 0
    %6418 = vmatmul.mubr.bf16.gmra.mrb[0].mxu0 %v6383
    %v6419 = vpop.f32.mrb[0].mxu0
    %v6420 = vadd.f32 0.0, %v6419
    %v6421 = vpop.f32.mrb[0].mxu0
    %v6422 = vpop.f32.mrb[0].mxu0
    %v6423 = vadd.f32 0.0, %v6422
    %v6424 = vpop.f32.mrb[0].mxu0
    %6425 = vdwg.mxu0
    %v6426 = vadd.f32 %v6250, %v6420
    %v6427 = vadd.f32 %v6253, %v6423
    %6428 = vrot.lane.b32.xlu0 %v5917, 104
    %v6429 = vpop.permute.xlu0 %6428
    %6430 = vrot.lane.b32.xlu0 %v5917, 72
    %v6431 = vpop.permute.xlu0 %6430
    %v6433 = vsel %vm5199, %v6429, 0
    %v6436 = vsel %vm5199, %v6431, 0
    %6438 = vmatprep.subr.bf16.mxu0 0
    %6439 = vmatpush1.bf16.xpose.msra.mxu0 %v6436
    %6440 = vmatprep.subr.bf16.mxu0 0
    %6441 = vmatpush1.bf16.xpose.msra.mxu0 0
    %6442 = vmatprep.subr.bf16.mxu0 0
    %6443 = vmatpush1.bf16.xpose.msra.mxu0 0
    %6444 = vmatprep.subr.bf16.mxu0 0
    %6445 = vmatpush1.bf16.xpose.msra.mxu0 0
    %6446 = vmatprep.subr.bf16.mxu0 0
    %6447 = vmatpush1.bf16.xpose.msra.mxu0 0
    %6448 = vmatprep.subr.bf16.mxu0 0
    %6449 = vmatpush1.bf16.xpose.msra.mxu0 0
    %6450 = vmatprep.subr.bf16.mxu0 0
    %6451 = vmatpush1.bf16.xpose.msra.mxu0 0
    %6452 = vmatprep.subr.bf16.mxu0 0
    %6453 = vmatpush1.bf16.xpose.msra.mxu0 0
    %6454 = vmatprep.subr.bf16.mxu0 0
    %6455 = vmatpush1.bf16.xpose.msra.mxu0 0
    %6456 = vmatprep.subr.bf16.mxu0 0
    %6457 = vmatpush1.bf16.xpose.msra.mxu0 0
    %6458 = vmatprep.subr.bf16.mxu0 0
    %6459 = vmatpush1.bf16.xpose.msra.mxu0 0
    %6460 = vmatprep.subr.bf16.mxu0 0
    %6461 = vmatpush1.bf16.xpose.msra.mxu0 0
    %6462 = vmatprep.subr.bf16.mxu0 0
    %6463 = vmatpush1.bf16.xpose.msra.mxu0 0
    %6464 = vmatprep.subr.bf16.mxu0 0
    %6465 = vmatpush1.bf16.xpose.msra.mxu0 0
    %6466 = vmatprep.subr.bf16.mxu0 0
    %6467 = vmatpush1.bf16.xpose.msra.mxu0 0
    %6468 = vmatprep.subr.bf16.mxu0 0
    %6469 = vmatpush1.bf16.xpose.msra.mxu0 0
    %6470 = vmatprep.mubr.bf16.mxu0 0
    %6471 = vmatmul.mubr.bf16.gmra.mrb[0].mxu0 %v6433
    %v6472 = vpop.f32.mrb[0].mxu0
    %v6473 = vadd.f32 0.0, %v6472
    %v6474 = vpop.f32.mrb[0].mxu0
    %v6475 = vpop.f32.mrb[0].mxu0
    %v6476 = vadd.f32 0.0, %v6475
    %v6477 = vpop.f32.mrb[0].mxu0
    %6478 = vdwg.mxu0
    %v6479 = vmul.f32 %v6473, 0.35355338
    %v6480 = vmul.f32 %v6476, 0.35355338
    %v6481 = vsel %vm5249, %v6479, -inf
    %6482 = vmax.xlane.f32.xlu0 %v6481
    %v6483 = vpop.xlane.xlu0 %6482
    %v6484 = vsel %vm5253, %v6480, -inf
    %6485 = vmax.xlane.f32.xlu0 %v6484
    %v6486 = vpop.xlane.xlu0 %6485
    %v6487 = vsub.f32 %v6479, %v6483
    %v6488 = vsub.f32 %v6480, %v6486
    %v6489 = vmul.f32 %v6487, 1.442695
    %v6490 = vpow.pop %v6489
    %v6491 = vmul.f32 %v6488, 1.442695
    %v6492 = vpow.pop %v6491
    %v6493 = vsel %vm5249, %v6490, 0.0
    %6494 = vadd.xlane.f32.xlu0 %v6493
    %v6495 = vpop.xlane.xlu0 %6494
    %v6496 = vsel %vm5253, %v6492, 0.0
    %6497 = vadd.xlane.f32.xlu0 %v6496
    %v6498 = vpop.xlane.xlu0 %6497
    %v6499 = vrcp.pop %v6495
    %v6500 = vmul.f32 %v6490, %v6499
    %v6501 = vrcp.pop %v6498
    %v6502 = vmul.f32 %v6492, %v6501
    %v6503 = vpack.c.bf16 %v6502, %v6500
    %6504 = vrot.lane.b32.xlu0 %v5917, 40
    %v6505 = vpop.permute.xlu0 %6504
    %v6507 = vsel %vm5249, %v6503, 0
    %v6510 = vand.u32 %v6505, %v5282
    %6512 = vmatprep.subr.bf16.mxu0 0
    %6513 = vmatpush1.bf16.msra.mxu0 %v6510
    %6514 = vmatprep.subr.bf16.mxu0 0
    %6515 = vmatpush1.bf16.msra.mxu0 0
    %6516 = vmatprep.subr.bf16.mxu0 0
    %6517 = vmatpush1.bf16.msra.mxu0 0
    %6518 = vmatprep.subr.bf16.mxu0 0
    %6519 = vmatpush1.bf16.msra.mxu0 0
    %6520 = vmatprep.subr.bf16.mxu0 0
    %6521 = vmatpush1.bf16.msra.mxu0 0
    %6522 = vmatprep.subr.bf16.mxu0 0
    %6523 = vmatpush1.bf16.msra.mxu0 0
    %6524 = vmatprep.subr.bf16.mxu0 0
    %6525 = vmatpush1.bf16.msra.mxu0 0
    %6526 = vmatprep.subr.bf16.mxu0 0
    %6527 = vmatpush1.bf16.msra.mxu0 0
    %6528 = vmatprep.subr.bf16.mxu0 0
    %6529 = vmatpush1.bf16.msra.mxu0 0
    %6530 = vmatprep.subr.bf16.mxu0 0
    %6531 = vmatpush1.bf16.msra.mxu0 0
    %6532 = vmatprep.subr.bf16.mxu0 0
    %6533 = vmatpush1.bf16.msra.mxu0 0
    %6534 = vmatprep.subr.bf16.mxu0 0
    %6535 = vmatpush1.bf16.msra.mxu0 0
    %6536 = vmatprep.subr.bf16.mxu0 0
    %6537 = vmatpush1.bf16.msra.mxu0 0
    %6538 = vmatprep.subr.bf16.mxu0 0
    %6539 = vmatpush1.bf16.msra.mxu0 0
    %6540 = vmatprep.subr.bf16.mxu0 0
    %6541 = vmatpush1.bf16.msra.mxu0 0
    %6542 = vmatprep.subr.bf16.mxu0 0
    %6543 = vmatpush1.bf16.msra.mxu0 0
    %6544 = vmatprep.mubr.bf16.mxu0 0
    %6545 = vmatmul.mubr.bf16.gmra.mrb[0].mxu0 %v6507
    %v6546 = vpop.f32.mrb[0].mxu0
    %v6547 = vadd.f32 0.0, %v6546
    %v6548 = vpop.f32.mrb[0].mxu0
    %v6549 = vpop.f32.mrb[0].mxu0
    %v6550 = vadd.f32 0.0, %v6549
    %v6551 = vpop.f32.mrb[0].mxu0
    %6552 = vdwg.mxu0
    %v6553 = vpack.c.bf16 %v6550, %v6547
    %v6555 = vsel %vm5199, %v6553, 0
    %6557 = vmatprep.subr.bf16.mxu0 0
    %6558 = vmatpush1.bf16.msra.mxu0 %v5865
    %6559 = vmatprep.subr.bf16.mxu0 0
    %6560 = vmatpush1.bf16.msra.mxu0 0
    %6561 = vmatprep.subr.bf16.mxu0 0
    %6562 = vmatpush1.bf16.msra.mxu0 0
    %6563 = vmatprep.subr.bf16.mxu0 0
    %6564 = vmatpush1.bf16.msra.mxu0 0
    %6565 = vmatprep.subr.bf16.mxu0 0
    %6566 = vmatpush1.bf16.msra.mxu0 0
    %6567 = vmatprep.subr.bf16.mxu0 0
    %6568 = vmatpush1.bf16.msra.mxu0 0
    %6569 = vmatprep.subr.bf16.mxu0 0
    %6570 = vmatpush1.bf16.msra.mxu0 0
    %6571 = vmatprep.subr.bf16.mxu0 0
    %6572 = vmatpush1.bf16.msra.mxu0 0
    %6573 = vmatprep.subr.bf16.mxu0 0
    %6574 = vmatpush1.bf16.msra.mxu0 0
    %6575 = vmatprep.subr.bf16.mxu0 0
    %6576 = vmatpush1.bf16.msra.mxu0 0
    %6577 = vmatprep.subr.bf16.mxu0 0
    %6578 = vmatpush1.bf16.msra.mxu0 0
    %6579 = vmatprep.subr.bf16.mxu0 0
    %6580 = vmatpush1.bf16.msra.mxu0 0
    %6581 = vmatprep.subr.bf16.mxu0 0
    %6582 = vmatpush1.bf16.msra.mxu0 0
    %6583 = vmatprep.subr.bf16.mxu0 0
    %6584 = vmatpush1.bf16.msra.mxu0 0
    %6585 = vmatprep.subr.bf16.mxu0 0
    %6586 = vmatpush1.bf16.msra.mxu0 0
    %6587 = vmatprep.subr.bf16.mxu0 0
    %6588 = vmatpush1.bf16.msra.mxu0 0
    %6589 = vmatprep.mubr.bf16.mxu0 0
    %6590 = vmatmul.mubr.bf16.gmra.mrb[0].mxu0 %v6555
    %v6591 = vpop.f32.mrb[0].mxu0
    %v6592 = vadd.f32 0.0, %v6591
    %v6593 = vpop.f32.mrb[0].mxu0
    %v6594 = vpop.f32.mrb[0].mxu0
    %v6595 = vadd.f32 0.0, %v6594
    %v6596 = vpop.f32.mrb[0].mxu0
    %6597 = vdwg.mxu0
    %v6598 = vadd.f32 %v6426, %v6592
    %v6599 = vadd.f32 %v6427, %v6595
    %vm6602 = vcmask 1040384
    %v6603 = vrot.slane %v6598, 7
    %v6604 = vrot.slane %v6599, 7
    %v6605 = vsel %vm6602, %v6603, %v6604
    %v6608 = vsel %vm6602, %v5909, %v6603
    %v6609 = vlaneseq
    %v6610 = vshrl.u32 %v6609, 7
    %v6611 = vsub.s32 1, %v6610
    %v6612 = vrot.slane %v5122, %v6611
    %v6613 = vadd.f32 %v5908, %v6612
    %v6614 = vadd.f32 %v6608, %v6612
    %v6615 = vadd.f32 %v6605, %v6612
    %v6616 = vadd.f32 %v6613, %v5093
    %v6617 = vadd.f32 %v6614, %v5096
    %v6618 = vadd.f32 %v6615, %v5101
    %v6619 = vsel %vm840, %v6616, 0.0
    %6620 = vadd.xlane.f32.xlu0 %v6619
    %v6621 = vpop.xlane.xlu0 %6620
    %v6622 = vsel %vm840, %v6617, 0.0
    %6623 = vadd.xlane.f32.xlu0 %v6622
    %v6624 = vpop.xlane.xlu0 %6623
    %vm6625 = vcmask 254976
    %v6626 = vsel %vm6625, %v6618, 0.0
    %6627 = vadd.xlane.f32.xlu0 %v6626
    %v6628 = vpop.xlane.xlu0 %6627
    %v6629 = vrcp.pop 32.0
    %v6630 = vmul.f32 %v6621, %v6629
    %v6631 = vmul.f32 %v6624, %v6629
    %v6632 = vmul.f32 %v6628, %v6629
    %v6633 = vsub.f32 %v6616, %v6630
    %v6634 = vsub.f32 %v6617, %v6631
    %v6635 = vsub.f32 %v6618, %v6632
    %v6636 = vmul.f32 %v6633, %v6633
    %v6637 = vmul.f32 %v6634, %v6634
    %v6638 = vmul.f32 %v6635, %v6635
    %v6639 = vsel %vm840, %v6636, 0.0
    %6640 = vadd.xlane.f32.xlu0 %v6639
    %v6641 = vpop.xlane.xlu0 %6640
    %v6642 = vsel %vm840, %v6637, 0.0
    %6643 = vadd.xlane.f32.xlu0 %v6642
    %v6644 = vpop.xlane.xlu0 %6643
    %v6645 = vsel %vm6625, %v6638, 0.0
    %6646 = vadd.xlane.f32.xlu0 %v6645
    %v6647 = vpop.xlane.xlu0 %6646
    %v6648 = vmul.f32 %v6641, %v6629
    %v6649 = vmul.f32 %v6644, %v6629
    %v6650 = vmul.f32 %v6647, %v6629
    %v6651 = vadd.f32 %v6648, 1e-12
    %v6652 = vadd.f32 %v6649, 1e-12
    %v6653 = vadd.f32 %v6650, 1e-12
    %v6654 = vrsqrt.pop %v6651
    %v6655 = vrsqrt.pop %v6652
    %v6656 = vrsqrt.pop %v6653
    %v6657 = vmul.f32 %v6633, %v6654
    %v6658 = vmul.f32 %v6634, %v6655
    %v6659 = vmul.f32 %v6635, %v6656
    %v6660 = vlaneseq
    %v6661 = vshrl.u32 %v6660, 7
    %v6662 = vsub.s32 2, %v6661
    %v6663 = vrot.slane %v5122, %v6662
    %v6664 = vmul.f32 %v6657, %v6663
    %v6665 = vmul.f32 %v6658, %v6663
    %v6666 = vmul.f32 %v6659, %v6663
    %v6667 = vlaneseq
    %v6668 = vshrl.u32 %v6667, 7
    %v6669 = vsub.s32 3, %v6668
    %v6670 = vrot.slane %v5122, %v6669
    %v6671 = vadd.f32 %v6664, %v6670
    %v6672 = vadd.f32 %v6665, %v6670
    %v6673 = vadd.f32 %v6666, %v6670
    %v6674 = vpack.c.bf16 %v6672, %v6671
    %v6675 = vpack.c.bf16 %v6673, %v6673
    %v6676 = vlaneseq
    %v6677 = vshrl.u32 %v6676, 7
    %v6678 = vsub.s32 4, %v6677
    %v6679 = vrot.slane %v5122, %v6678
    %v6684 = vunpack.c.l.b16 %v5110
    %v6685 = vunpack.c.l.b16 %v5111
    %v6686 = vunpack.c.l.b16 %v5112
    %v6687 = vunpack.c.l.b16 %v5113
    %v6688 = vpack.c.b16 %v6685, %v6684
    %v6689 = vpack.c.b16 %v6687, %v6686
    %v6693 = vsel %vm840, %v6674, 0
    %v6696 = vsel %vm840, %v6675, 0
    %6698 = vmatprep.subr.bf16.mxu0 0
    %6699 = vmatpush1.bf16.msra.mxu0 %v6688
    %6700 = vmatprep.subr.bf16.mxu0 0
    %6701 = vmatpush1.bf16.msra.mxu0 %v6689
    %6702 = vmatprep.subr.bf16.mxu0 0
    %6703 = vmatpush1.bf16.msra.mxu0 0
    %6704 = vmatprep.subr.bf16.mxu0 0
    %6705 = vmatpush1.bf16.msra.mxu0 0
    %6706 = vmatprep.subr.bf16.mxu0 0
    %6707 = vmatpush1.bf16.msra.mxu0 0
    %6708 = vmatprep.subr.bf16.mxu0 0
    %6709 = vmatpush1.bf16.msra.mxu0 0
    %6710 = vmatprep.subr.bf16.mxu0 0
    %6711 = vmatpush1.bf16.msra.mxu0 0
    %6712 = vmatprep.subr.bf16.mxu0 0
    %6713 = vmatpush1.bf16.msra.mxu0 0
    %6714 = vmatprep.subr.bf16.mxu0 0
    %6715 = vmatpush1.bf16.msra.mxu0 0
    %6716 = vmatprep.subr.bf16.mxu0 0
    %6717 = vmatpush1.bf16.msra.mxu0 0
    %6718 = vmatprep.subr.bf16.mxu0 0
    %6719 = vmatpush1.bf16.msra.mxu0 0
    %6720 = vmatprep.subr.bf16.mxu0 0
    %6721 = vmatpush1.bf16.msra.mxu0 0
    %6722 = vmatprep.subr.bf16.mxu0 0
    %6723 = vmatpush1.bf16.msra.mxu0 0
    %6724 = vmatprep.subr.bf16.mxu0 0
    %6725 = vmatpush1.bf16.msra.mxu0 0
    %6726 = vmatprep.subr.bf16.mxu0 0
    %6727 = vmatpush1.bf16.msra.mxu0 0
    %6728 = vmatprep.subr.bf16.mxu0 0
    %6729 = vmatpush1.bf16.msra.mxu0 0
    %6730 = vmatprep.mubr.bf16.mxu0 0
    %6731 = vmatmul.mubr.bf16.gmra.mrb[0].mxu0 %v6693
    %v6732 = vpop.f32.mrb[0].mxu0
    %v6733 = vadd.f32 %v6679, %v6732
    %v6734 = vpop.f32.mrb[0].mxu0
    %v6735 = vpop.f32.mrb[0].mxu0
    %v6736 = vadd.f32 %v6679, %v6735
    %v6737 = vpop.f32.mrb[0].mxu0
    %6738 = vmatprep.mubr.bf16.mxu0 0
    %6739 = vmatmul.mubr.bf16.gmra.mrb[0].mxu0 %v6696
    %v6740 = vpop.f32.mrb[0].mxu0
    %v6741 = vadd.f32 %v6679, %v6740
    %v6742 = vpop.f32.mrb[0].mxu0
    %v6743 = vpop.f32.mrb[0].mxu0
    %v6744 = vpop.f32.mrb[0].mxu0
    %6745 = vdwg.mxu0
    %v6746 = vmul.f32 %v6733, 0.5
    %v6747 = vmul.f32 %v6736, 0.5
    %v6748 = vmul.f32 %v6741, 0.5
    %v6749 = vmul.f32 %v6733, 0.044715
    %v6750 = vmul.f32 %v6736, 0.044715
    %v6751 = vmul.f32 %v6741, 0.044715
    %v6752 = vmul.f32 %v6749, %v6733
    %v6753 = vmul.f32 %v6750, %v6736
    %v6754 = vmul.f32 %v6751, %v6741
    %v6755 = vmul.f32 %v6752, %v6733
    %v6756 = vmul.f32 %v6753, %v6736
    %v6757 = vmul.f32 %v6754, %v6741
    %v6758 = vadd.f32 %v6733, %v6755
    %v6759 = vadd.f32 %v6736, %v6756
    %v6760 = vadd.f32 %v6741, %v6757
    %v6761 = vmul.f32 %v6758, 0.7978846
    %v6762 = vmul.f32 %v6759, 0.7978846
    %v6763 = vmul.f32 %v6760, 0.7978846
    %v6764 = vtanh.pop %v6761
    %v6765 = vtanh.pop %v6762
    %v6766 = vtanh.pop %v6763
    %v6767 = vadd.f32 %v6764, 1.0
    %v6768 = vadd.f32 %v6765, 1.0
    %v6769 = vadd.f32 %v6766, 1.0
    %v6770 = vmul.f32 %v6746, %v6767
    %v6771 = vmul.f32 %v6747, %v6768
    %v6772 = vmul.f32 %v6748, %v6769
    %v6773 = vpack.c.bf16 %v6771, %v6770
    %v6774 = vpack.c.bf16 %v6772, %v6772
    %v6775 = vlaneseq
    %v6776 = vshrl.u32 %v6775, 7
    %v6777 = vsub.s32 5, %v6776
    %v6778 = vrot.slane %v5122, %v6777
    %v6787 = vunpack.c.l.b16 %v5114
    %v6788 = vunpack.c.l.b16 %v5115
    %v6789 = vunpack.c.l.b16 %v5116
    %v6790 = vunpack.c.l.b16 %v5117
    %v6791 = vunpack.c.l.b16 %v5118
    %v6792 = vunpack.c.l.b16 %v5119
    %v6793 = vunpack.c.l.b16 %v5120
    %v6794 = vunpack.c.l.b16 %v5121
    %v6795 = vpack.c.b16 %v6788, %v6787
    %v6796 = vpack.c.b16 %v6790, %v6789
    %v6797 = vpack.c.b16 %v6792, %v6791
    %v6798 = vpack.c.b16 %v6794, %v6793
    %vm6803 = vcmask 523264
    %v6805 = vsel %vm6803, %v6773, 0
    %v6808 = vsel %vm6803, %v6774, 0
    %6810 = vmatprep.subr.bf16.mxu0 0
    %6811 = vmatpush1.bf16.msra.mxu0 %v6795
    %6812 = vmatprep.subr.bf16.mxu0 0
    %6813 = vmatpush1.bf16.msra.mxu0 %v6796
    %6814 = vmatprep.subr.bf16.mxu0 0
    %6815 = vmatpush1.bf16.msra.mxu0 %v6797
    %6816 = vmatprep.subr.bf16.mxu0 0
    %6817 = vmatpush1.bf16.msra.mxu0 %v6798
    %6818 = vmatprep.subr.bf16.mxu0 0
    %6819 = vmatpush1.bf16.msra.mxu0 0
    %6820 = vmatprep.subr.bf16.mxu0 0
    %6821 = vmatpush1.bf16.msra.mxu0 0
    %6822 = vmatprep.subr.bf16.mxu0 0
    %6823 = vmatpush1.bf16.msra.mxu0 0
    %6824 = vmatprep.subr.bf16.mxu0 0
    %6825 = vmatpush1.bf16.msra.mxu0 0
    %6826 = vmatprep.subr.bf16.mxu0 0
    %6827 = vmatpush1.bf16.msra.mxu0 0
    %6828 = vmatprep.subr.bf16.mxu0 0
    %6829 = vmatpush1.bf16.msra.mxu0 0
    %6830 = vmatprep.subr.bf16.mxu0 0
    %6831 = vmatpush1.bf16.msra.mxu0 0
    %6832 = vmatprep.subr.bf16.mxu0 0
    %6833 = vmatpush1.bf16.msra.mxu0 0
    %6834 = vmatprep.subr.bf16.mxu0 0
    %6835 = vmatpush1.bf16.msra.mxu0 0
    %6836 = vmatprep.subr.bf16.mxu0 0
    %6837 = vmatpush1.bf16.msra.mxu0 0
    %6838 = vmatprep.subr.bf16.mxu0 0
    %6839 = vmatpush1.bf16.msra.mxu0 0
    %6840 = vmatprep.subr.bf16.mxu0 0
    %6841 = vmatpush1.bf16.msra.mxu0 0
    %6842 = vmatprep.mubr.bf16.mxu0 0
    %6843 = vmatmul.mubr.bf16.gmra.mrb[0].mxu0 %v6805
    %v6844 = vpop.f32.mrb[0].mxu0
    %v6845 = vadd.f32 %v6778, %v6844
    %v6846 = vpop.f32.mrb[0].mxu0
    %v6847 = vpop.f32.mrb[0].mxu0
    %v6848 = vadd.f32 %v6778, %v6847
    %v6849 = vpop.f32.mrb[0].mxu0
    %6850 = vmatprep.mubr.bf16.mxu0 0
    %6851 = vmatmul.mubr.bf16.gmra.mrb[0].mxu0 %v6808
    %v6852 = vpop.f32.mrb[0].mxu0
    %v6853 = vadd.f32 %v6778, %v6852
    %v6854 = vpop.f32.mrb[0].mxu0
    %v6855 = vpop.f32.mrb[0].mxu0
    %v6856 = vpop.f32.mrb[0].mxu0
    %6857 = vdwg.mxu0
    %v6858 = vadd.f32 %v6845, %v6671
    %v6859 = vadd.f32 %v6848, %v6672
    %v6860 = vadd.f32 %v6853, %v6673
    %v6861 = vsel %vm840, %v6858, 0.0
    %6862 = vadd.xlane.f32.xlu0 %v6861
    %v6863 = vpop.xlane.xlu0 %6862
    %v6864 = vsel %vm840, %v6859, 0.0
    %6865 = vadd.xlane.f32.xlu0 %v6864
    %v6866 = vpop.xlane.xlu0 %6865
    %v6867 = vsel %vm6625, %v6860, 0.0
    %6868 = vadd.xlane.f32.xlu0 %v6867
    %v6869 = vpop.xlane.xlu0 %6868
    %v6870 = vmul.f32 %v6863, %v6629
    %v6871 = vmul.f32 %v6866, %v6629
    %v6872 = vmul.f32 %v6869, %v6629
    %v6873 = vsub.f32 %v6858, %v6870
    %v6874 = vsub.f32 %v6859, %v6871
    %v6875 = vsub.f32 %v6860, %v6872
    %v6876 = vmul.f32 %v6873, %v6873
    %v6877 = vmul.f32 %v6874, %v6874
    %v6878 = vmul.f32 %v6875, %v6875
    %v6879 = vsel %vm840, %v6876, 0.0
    %6880 = vadd.xlane.f32.xlu0 %v6879
    %v6881 = vpop.xlane.xlu0 %6880
    %v6882 = vsel %vm840, %v6877, 0.0
    %6883 = vadd.xlane.f32.xlu0 %v6882
    %v6884 = vpop.xlane.xlu0 %6883
    %v6885 = vsel %vm6625, %v6878, 0.0
    %6886 = vadd.xlane.f32.xlu0 %v6885
    %v6887 = vpop.xlane.xlu0 %6886
    %v6888 = vmul.f32 %v6881, %v6629
    %v6889 = vmul.f32 %v6884, %v6629
    %v6890 = vmul.f32 %v6887, %v6629
    %v6891 = vadd.f32 %v6888, 1e-12
    %v6892 = vadd.f32 %v6889, 1e-12
    %v6893 = vadd.f32 %v6890, 1e-12
    %v6894 = vrsqrt.pop %v6891
    %v6895 = vrsqrt.pop %v6892
    %v6896 = vrsqrt.pop %v6893
    %v6897 = vmul.f32 %v6873, %v6894
    %v6898 = vmul.f32 %v6874, %v6895
    %v6899 = vmul.f32 %v6875, %v6896
    %v6900 = vlaneseq
    %v6901 = vshrl.u32 %v6900, 7
    %v6902 = vsub.s32 6, %v6901
    %v6903 = vrot.slane %v5122, %v6902
    %v6904 = vmul.f32 %v6897, %v6903
    %v6905 = vmul.f32 %v6898, %v6903
    %v6906 = vmul.f32 %v6899, %v6903
    %v6907 = vlaneseq
    %v6908 = vshrl.u32 %v6907, 7
    %v6909 = vsub.s32 7, %v6908
    %v6910 = vrot.slane %v5122, %v6909
    %v6911 = vadd.f32 %v6904, %v6910
    %v6912 = vadd.f32 %v6905, %v6910
    %v6913 = vadd.f32 %v6906, %v6910
    %s6914 = scalar_lea.vmem %s5, 64
    %v6915 = vld [vmem:[%s6914] sm:$0xf]
    %v6916 = vld [vmem:[%s6914 + $0x4] sm:$0xf]
    %v6917 = vld [vmem:[%s6914 + $0x8] sm:$0xf]
    %v6918 = vld [vmem:[%s6914 + $0xc] sm:$0xf]
    %v6919 = vld [vmem:[%s6914 + $0x10] sm:$0xf]
    %v6920 = vld [vmem:[%s6914 + $0x14] sm:$0xf]
    %v6921 = vld [vmem:[%s6914 + $0x18] sm:$0xf]
    %v6922 = vld [vmem:[%s6914 + $0x1c] sm:$0xf]
    %v6923 = vld [vmem:[%s6914 + $0x20] sm:$0xf]
    %v6924 = vld [vmem:[%s6914 + $0x24] sm:$0xf]
    %v6925 = vld [vmem:[%s6914 + $0x28] sm:$0xf]
    %v6926 = vld [vmem:[%s6914 + $0x2c] sm:$0xf]
    %v6927 = vld [vmem:[%s6914 + $0x30] sm:$0xf]
    %v6928 = vld [vmem:[%s6914 + $0x34] sm:$0xf]
    %v6929 = vld [vmem:[%s6914 + $0x38] sm:$0xf]
    %v6930 = vld [vmem:[%s6914 + $0x3c] sm:$0xf]
    %s6931 = scalar_lea.vmem %s6, 8
    %v6932 = vld [vmem:[%s6931] sm:$0xff]
    %v6933 = vpack.c.bf16 %v6912, %v6911
    %v6934 = vpack.c.bf16 %v6913, %v6913
    %v6935 = vlaneseq
    %v6936 = vshrl.u32 %v6935, 7
    %v6937 = vsub.s32 0, %v6936
    %v6938 = vrot.slane %v6932, %v6937
    %v6943 = vunpack.c.l.b16 %v6915
    %v6944 = vunpack.c.l.b16 %v6916
    %v6945 = vunpack.c.l.b16 %v6917
    %v6946 = vunpack.c.l.b16 %v6918
    %v6947 = vpack.c.b16 %v6944, %v6943
    %v6948 = vpack.c.b16 %v6946, %v6945
    %v6952 = vsel %vm840, %v6933, 0
    %v6955 = vsel %vm840, %v6934, 0
    %6957 = vmatprep.subr.bf16.mxu0 0
    %6958 = vmatpush1.bf16.msra.mxu0 %v6947
    %6959 = vmatprep.subr.bf16.mxu0 0
    %6960 = vmatpush1.bf16.msra.mxu0 %v6948
    %6961 = vmatprep.subr.bf16.mxu0 0
    %6962 = vmatpush1.bf16.msra.mxu0 0
    %6963 = vmatprep.subr.bf16.mxu0 0
    %6964 = vmatpush1.bf16.msra.mxu0 0
    %6965 = vmatprep.subr.bf16.mxu0 0
    %6966 = vmatpush1.bf16.msra.mxu0 0
    %6967 = vmatprep.subr.bf16.mxu0 0
    %6968 = vmatpush1.bf16.msra.mxu0 0
    %6969 = vmatprep.subr.bf16.mxu0 0
    %6970 = vmatpush1.bf16.msra.mxu0 0
    %6971 = vmatprep.subr.bf16.mxu0 0
    %6972 = vmatpush1.bf16.msra.mxu0 0
    %6973 = vmatprep.subr.bf16.mxu0 0
    %6974 = vmatpush1.bf16.msra.mxu0 0
    %6975 = vmatprep.subr.bf16.mxu0 0
    %6976 = vmatpush1.bf16.msra.mxu0 0
    %6977 = vmatprep.subr.bf16.mxu0 0
    %6978 = vmatpush1.bf16.msra.mxu0 0
    %6979 = vmatprep.subr.bf16.mxu0 0
    %6980 = vmatpush1.bf16.msra.mxu0 0
    %6981 = vmatprep.subr.bf16.mxu0 0
    %6982 = vmatpush1.bf16.msra.mxu0 0
    %6983 = vmatprep.subr.bf16.mxu0 0
    %6984 = vmatpush1.bf16.msra.mxu0 0
    %6985 = vmatprep.subr.bf16.mxu0 0
    %6986 = vmatpush1.bf16.msra.mxu0 0
    %6987 = vmatprep.subr.bf16.mxu0 0
    %6988 = vmatpush1.bf16.msra.mxu0 0
    %6989 = vmatprep.mubr.bf16.mxu0 0
    %6990 = vmatmul.mubr.bf16.gmra.mrb[0].mxu0 %v6952
    %v6991 = vpop.f32.mrb[0].mxu0
    %v6992 = vadd.f32 %v6938, %v6991
    %v6993 = vpop.f32.mrb[0].mxu0
    %v6994 = vpop.f32.mrb[0].mxu0
    %v6995 = vadd.f32 %v6938, %v6994
    %v6996 = vpop.f32.mrb[0].mxu0
    %6997 = vmatprep.mubr.bf16.mxu0 0
    %6998 = vmatmul.mubr.bf16.gmra.mrb[0].mxu0 %v6955
    %v6999 = vpop.f32.mrb[0].mxu0
    %v7000 = vadd.f32 %v6938, %v6999
    %v7001 = vpop.f32.mrb[0].mxu0
    %v7002 = vpop.f32.mrb[0].mxu0
    %v7003 = vpop.f32.mrb[0].mxu0
    %7004 = vdwg.mxu0
    %v7005 = vpack.c.bf16 %v6995, %v6992
    %7007 = vrot.lane.b32.xlu0 %v7005, 96
    %v7008 = vpop.permute.xlu0 %7007
    %v7010 = vsel %vm5199, %v7005, 0
    %v7013 = vsel %vm5199, %v7008, 0
    %7015 = vmatprep.subr.bf16.mxu0 0
    %7016 = vmatpush1.bf16.xpose.msra.mxu0 %v7013
    %7017 = vmatprep.subr.bf16.mxu0 0
    %7018 = vmatpush1.bf16.xpose.msra.mxu0 0
    %7019 = vmatprep.subr.bf16.mxu0 0
    %7020 = vmatpush1.bf16.xpose.msra.mxu0 0
    %7021 = vmatprep.subr.bf16.mxu0 0
    %7022 = vmatpush1.bf16.xpose.msra.mxu0 0
    %7023 = vmatprep.subr.bf16.mxu0 0
    %7024 = vmatpush1.bf16.xpose.msra.mxu0 0
    %7025 = vmatprep.subr.bf16.mxu0 0
    %7026 = vmatpush1.bf16.xpose.msra.mxu0 0
    %7027 = vmatprep.subr.bf16.mxu0 0
    %7028 = vmatpush1.bf16.xpose.msra.mxu0 0
    %7029 = vmatprep.subr.bf16.mxu0 0
    %7030 = vmatpush1.bf16.xpose.msra.mxu0 0
    %7031 = vmatprep.subr.bf16.mxu0 0
    %7032 = vmatpush1.bf16.xpose.msra.mxu0 0
    %7033 = vmatprep.subr.bf16.mxu0 0
    %7034 = vmatpush1.bf16.xpose.msra.mxu0 0
    %7035 = vmatprep.subr.bf16.mxu0 0
    %7036 = vmatpush1.bf16.xpose.msra.mxu0 0
    %7037 = vmatprep.subr.bf16.mxu0 0
    %7038 = vmatpush1.bf16.xpose.msra.mxu0 0
    %7039 = vmatprep.subr.bf16.mxu0 0
    %7040 = vmatpush1.bf16.xpose.msra.mxu0 0
    %7041 = vmatprep.subr.bf16.mxu0 0
    %7042 = vmatpush1.bf16.xpose.msra.mxu0 0
    %7043 = vmatprep.subr.bf16.mxu0 0
    %7044 = vmatpush1.bf16.xpose.msra.mxu0 0
    %7045 = vmatprep.subr.bf16.mxu0 0
    %7046 = vmatpush1.bf16.xpose.msra.mxu0 0
    %7047 = vmatprep.mubr.bf16.mxu0 0
    %7048 = vmatmul.mubr.bf16.gmra.mrb[0].mxu0 %v7010
    %v7049 = vpop.f32.mrb[0].mxu0
    %v7050 = vadd.f32 0.0, %v7049
    %v7051 = vpop.f32.mrb[0].mxu0
    %v7052 = vpop.f32.mrb[0].mxu0
    %v7053 = vadd.f32 0.0, %v7052
    %v7054 = vpop.f32.mrb[0].mxu0
    %7055 = vdwg.mxu0
    %v7056 = vmul.f32 %v7050, 0.35355338
    %v7057 = vmul.f32 %v7053, 0.35355338
    %v7058 = vsel %vm5249, %v7056, -inf
    %7059 = vmax.xlane.f32.xlu0 %v7058
    %v7060 = vpop.xlane.xlu0 %7059
    %v7061 = vsel %vm5253, %v7057, -inf
    %7062 = vmax.xlane.f32.xlu0 %v7061
    %v7063 = vpop.xlane.xlu0 %7062
    %v7064 = vsub.f32 %v7056, %v7060
    %v7065 = vsub.f32 %v7057, %v7063
    %v7066 = vmul.f32 %v7064, 1.442695
    %v7067 = vpow.pop %v7066
    %v7068 = vmul.f32 %v7065, 1.442695
    %v7069 = vpow.pop %v7068
    %v7070 = vsel %vm5249, %v7067, 0.0
    %7071 = vadd.xlane.f32.xlu0 %v7070
    %v7072 = vpop.xlane.xlu0 %7071
    %v7073 = vsel %vm5253, %v7069, 0.0
    %7074 = vadd.xlane.f32.xlu0 %v7073
    %v7075 = vpop.xlane.xlu0 %7074
    %v7076 = vrcp.pop %v7072
    %v7077 = vmul.f32 %v7067, %v7076
    %v7078 = vrcp.pop %v7075
    %v7079 = vmul.f32 %v7069, %v7078
    %v7080 = vpack.c.bf16 %v7079, %v7077
    %7081 = vrot.lane.b32.xlu0 %v7005, 64
    %v7082 = vpop.permute.xlu0 %7081
    %v7084 = vsel %vm5249, %v7080, 0
    %v7087 = vand.u32 %v7082, %v5282
    %7089 = vmatprep.subr.bf16.mxu0 0
    %7090 = vmatpush1.bf16.msra.mxu0 %v7087
    %7091 = vmatprep.subr.bf16.mxu0 0
    %7092 = vmatpush1.bf16.msra.mxu0 0
    %7093 = vmatprep.subr.bf16.mxu0 0
    %7094 = vmatpush1.bf16.msra.mxu0 0
    %7095 = vmatprep.subr.bf16.mxu0 0
    %7096 = vmatpush1.bf16.msra.mxu0 0
    %7097 = vmatprep.subr.bf16.mxu0 0
    %7098 = vmatpush1.bf16.msra.mxu0 0
    %7099 = vmatprep.subr.bf16.mxu0 0
    %7100 = vmatpush1.bf16.msra.mxu0 0
    %7101 = vmatprep.subr.bf16.mxu0 0
    %7102 = vmatpush1.bf16.msra.mxu0 0
    %7103 = vmatprep.subr.bf16.mxu0 0
    %7104 = vmatpush1.bf16.msra.mxu0 0
    %7105 = vmatprep.subr.bf16.mxu0 0
    %7106 = vmatpush1.bf16.msra.mxu0 0
    %7107 = vmatprep.subr.bf16.mxu0 0
    %7108 = vmatpush1.bf16.msra.mxu0 0
    %7109 = vmatprep.subr.bf16.mxu0 0
    %7110 = vmatpush1.bf16.msra.mxu0 0
    %7111 = vmatprep.subr.bf16.mxu0 0
    %7112 = vmatpush1.bf16.msra.mxu0 0
    %7113 = vmatprep.subr.bf16.mxu0 0
    %7114 = vmatpush1.bf16.msra.mxu0 0
    %7115 = vmatprep.subr.bf16.mxu0 0
    %7116 = vmatpush1.bf16.msra.mxu0 0
    %7117 = vmatprep.subr.bf16.mxu0 0
    %7118 = vmatpush1.bf16.msra.mxu0 0
    %7119 = vmatprep.subr.bf16.mxu0 0
    %7120 = vmatpush1.bf16.msra.mxu0 0
    %7121 = vmatprep.mubr.bf16.mxu0 0
    %7122 = vmatmul.mubr.bf16.gmra.mrb[0].mxu0 %v7084
    %v7123 = vpop.f32.mrb[0].mxu0
    %v7124 = vadd.f32 0.0, %v7123
    %v7125 = vpop.f32.mrb[0].mxu0
    %v7126 = vpop.f32.mrb[0].mxu0
    %v7127 = vadd.f32 0.0, %v7126
    %v7128 = vpop.f32.mrb[0].mxu0
    %7129 = vdwg.mxu0
    %v7130 = vpack.c.bf16 %v7127, %v7124
    %7131 = vrot.lane.b32.xlu0 %v7005, 120
    %v7132 = vpop.permute.xlu0 %7131
    %7133 = vrot.lane.b32.xlu0 %v7005, 88
    %v7134 = vpop.permute.xlu0 %7133
    %v7136 = vsel %vm5199, %v7132, 0
    %v7139 = vsel %vm5199, %v7134, 0
    %7141 = vmatprep.subr.bf16.mxu0 0
    %7142 = vmatpush1.bf16.xpose.msra.mxu0 %v7139
    %7143 = vmatprep.subr.bf16.mxu0 0
    %7144 = vmatpush1.bf16.xpose.msra.mxu0 0
    %7145 = vmatprep.subr.bf16.mxu0 0
    %7146 = vmatpush1.bf16.xpose.msra.mxu0 0
    %7147 = vmatprep.subr.bf16.mxu0 0
    %7148 = vmatpush1.bf16.xpose.msra.mxu0 0
    %7149 = vmatprep.subr.bf16.mxu0 0
    %7150 = vmatpush1.bf16.xpose.msra.mxu0 0
    %7151 = vmatprep.subr.bf16.mxu0 0
    %7152 = vmatpush1.bf16.xpose.msra.mxu0 0
    %7153 = vmatprep.subr.bf16.mxu0 0
    %7154 = vmatpush1.bf16.xpose.msra.mxu0 0
    %7155 = vmatprep.subr.bf16.mxu0 0
    %7156 = vmatpush1.bf16.xpose.msra.mxu0 0
    %7157 = vmatprep.subr.bf16.mxu0 0
    %7158 = vmatpush1.bf16.xpose.msra.mxu0 0
    %7159 = vmatprep.subr.bf16.mxu0 0
    %7160 = vmatpush1.bf16.xpose.msra.mxu0 0
    %7161 = vmatprep.subr.bf16.mxu0 0
    %7162 = vmatpush1.bf16.xpose.msra.mxu0 0
    %7163 = vmatprep.subr.bf16.mxu0 0
    %7164 = vmatpush1.bf16.xpose.msra.mxu0 0
    %7165 = vmatprep.subr.bf16.mxu0 0
    %7166 = vmatpush1.bf16.xpose.msra.mxu0 0
    %7167 = vmatprep.subr.bf16.mxu0 0
    %7168 = vmatpush1.bf16.xpose.msra.mxu0 0
    %7169 = vmatprep.subr.bf16.mxu0 0
    %7170 = vmatpush1.bf16.xpose.msra.mxu0 0
    %7171 = vmatprep.subr.bf16.mxu0 0
    %7172 = vmatpush1.bf16.xpose.msra.mxu0 0
    %7173 = vmatprep.mubr.bf16.mxu0 0
    %7174 = vmatmul.mubr.bf16.gmra.mrb[0].mxu0 %v7136
    %v7175 = vpop.f32.mrb[0].mxu0
    %v7176 = vadd.f32 0.0, %v7175
    %v7177 = vpop.f32.mrb[0].mxu0
    %v7178 = vpop.f32.mrb[0].mxu0
    %v7179 = vadd.f32 0.0, %v7178
    %v7180 = vpop.f32.mrb[0].mxu0
    %7181 = vdwg.mxu0
    %v7182 = vmul.f32 %v7176, 0.35355338
    %v7183 = vmul.f32 %v7179, 0.35355338
    %v7184 = vsel %vm5249, %v7182, -inf
    %7185 = vmax.xlane.f32.xlu0 %v7184
    %v7186 = vpop.xlane.xlu0 %7185
    %v7187 = vsel %vm5253, %v7183, -inf
    %7188 = vmax.xlane.f32.xlu0 %v7187
    %v7189 = vpop.xlane.xlu0 %7188
    %v7190 = vsub.f32 %v7182, %v7186
    %v7191 = vsub.f32 %v7183, %v7189
    %v7192 = vmul.f32 %v7190, 1.442695
    %v7193 = vpow.pop %v7192
    %v7194 = vmul.f32 %v7191, 1.442695
    %v7195 = vpow.pop %v7194
    %v7196 = vsel %vm5249, %v7193, 0.0
    %7197 = vadd.xlane.f32.xlu0 %v7196
    %v7198 = vpop.xlane.xlu0 %7197
    %v7199 = vsel %vm5253, %v7195, 0.0
    %7200 = vadd.xlane.f32.xlu0 %v7199
    %v7201 = vpop.xlane.xlu0 %7200
    %v7202 = vrcp.pop %v7198
    %v7203 = vmul.f32 %v7193, %v7202
    %v7204 = vrcp.pop %v7201
    %v7205 = vmul.f32 %v7195, %v7204
    %v7206 = vpack.c.bf16 %v7205, %v7203
    %7207 = vrot.lane.b32.xlu0 %v7005, 56
    %v7208 = vpop.permute.xlu0 %7207
    %v7210 = vsel %vm5249, %v7206, 0
    %v7213 = vand.u32 %v7208, %v5282
    %7215 = vmatprep.subr.bf16.mxu0 0
    %7216 = vmatpush1.bf16.msra.mxu0 %v7213
    %7217 = vmatprep.subr.bf16.mxu0 0
    %7218 = vmatpush1.bf16.msra.mxu0 0
    %7219 = vmatprep.subr.bf16.mxu0 0
    %7220 = vmatpush1.bf16.msra.mxu0 0
    %7221 = vmatprep.subr.bf16.mxu0 0
    %7222 = vmatpush1.bf16.msra.mxu0 0
    %7223 = vmatprep.subr.bf16.mxu0 0
    %7224 = vmatpush1.bf16.msra.mxu0 0
    %7225 = vmatprep.subr.bf16.mxu0 0
    %7226 = vmatpush1.bf16.msra.mxu0 0
    %7227 = vmatprep.subr.bf16.mxu0 0
    %7228 = vmatpush1.bf16.msra.mxu0 0
    %7229 = vmatprep.subr.bf16.mxu0 0
    %7230 = vmatpush1.bf16.msra.mxu0 0
    %7231 = vmatprep.subr.bf16.mxu0 0
    %7232 = vmatpush1.bf16.msra.mxu0 0
    %7233 = vmatprep.subr.bf16.mxu0 0
    %7234 = vmatpush1.bf16.msra.mxu0 0
    %7235 = vmatprep.subr.bf16.mxu0 0
    %7236 = vmatpush1.bf16.msra.mxu0 0
    %7237 = vmatprep.subr.bf16.mxu0 0
    %7238 = vmatpush1.bf16.msra.mxu0 0
    %7239 = vmatprep.subr.bf16.mxu0 0
    %7240 = vmatpush1.bf16.msra.mxu0 0
    %7241 = vmatprep.subr.bf16.mxu0 0
    %7242 = vmatpush1.bf16.msra.mxu0 0
    %7243 = vmatprep.subr.bf16.mxu0 0
    %7244 = vmatpush1.bf16.msra.mxu0 0
    %7245 = vmatprep.subr.bf16.mxu0 0
    %7246 = vmatpush1.bf16.msra.mxu0 0
    %7247 = vmatprep.mubr.bf16.mxu0 0
    %7248 = vmatmul.mubr.bf16.gmra.mrb[0].mxu0 %v7210
    %v7249 = vpop.f32.mrb[0].mxu0
    %v7250 = vadd.f32 0.0, %v7249
    %v7251 = vpop.f32.mrb[0].mxu0
    %v7252 = vpop.f32.mrb[0].mxu0
    %v7253 = vadd.f32 0.0, %v7252
    %v7254 = vpop.f32.mrb[0].mxu0
    %7255 = vdwg.mxu0
    %v7256 = vpack.c.bf16 %v7253, %v7250
    %v7257 = vpack.c.b16 %v6944, %v6944
    %7258 = vrot.lane.b32.xlu0 %v7257, 32
    %v7259 = vpop.permute.xlu0 %7258
    %v7261 = vsel %vm5199, %v7256, 0
    %v7264 = vsel %vm5279, %v7259, 0
    %7266 = vmatprep.subr.bf16.mxu0 0
    %7267 = vmatpush1.bf16.msra.mxu0 %v7264
    %7268 = vmatprep.subr.bf16.mxu0 0
    %7269 = vmatpush1.bf16.msra.mxu0 0
    %7270 = vmatprep.subr.bf16.mxu0 0
    %7271 = vmatpush1.bf16.msra.mxu0 0
    %7272 = vmatprep.subr.bf16.mxu0 0
    %7273 = vmatpush1.bf16.msra.mxu0 0
    %7274 = vmatprep.subr.bf16.mxu0 0
    %7275 = vmatpush1.bf16.msra.mxu0 0
    %7276 = vmatprep.subr.bf16.mxu0 0
    %7277 = vmatpush1.bf16.msra.mxu0 0
    %7278 = vmatprep.subr.bf16.mxu0 0
    %7279 = vmatpush1.bf16.msra.mxu0 0
    %7280 = vmatprep.subr.bf16.mxu0 0
    %7281 = vmatpush1.bf16.msra.mxu0 0
    %7282 = vmatprep.subr.bf16.mxu0 0
    %7283 = vmatpush1.bf16.msra.mxu0 0
    %7284 = vmatprep.subr.bf16.mxu0 0
    %7285 = vmatpush1.bf16.msra.mxu0 0
    %7286 = vmatprep.subr.bf16.mxu0 0
    %7287 = vmatpush1.bf16.msra.mxu0 0
    %7288 = vmatprep.subr.bf16.mxu0 0
    %7289 = vmatpush1.bf16.msra.mxu0 0
    %7290 = vmatprep.subr.bf16.mxu0 0
    %7291 = vmatpush1.bf16.msra.mxu0 0
    %7292 = vmatprep.subr.bf16.mxu0 0
    %7293 = vmatpush1.bf16.msra.mxu0 0
    %7294 = vmatprep.subr.bf16.mxu0 0
    %7295 = vmatpush1.bf16.msra.mxu0 0
    %7296 = vmatprep.subr.bf16.mxu0 0
    %7297 = vmatpush1.bf16.msra.mxu0 0
    %7298 = vmatprep.mubr.bf16.mxu0 0
    %7299 = vmatmul.mubr.bf16.gmra.mrb[0].mxu0 %v7261
    %v7300 = vpop.f32.mrb[0].mxu0
    %v7301 = vadd.f32 0.0, %v7300
    %v7302 = vpop.f32.mrb[0].mxu0
    %v7303 = vpop.f32.mrb[0].mxu0
    %v7304 = vadd.f32 0.0, %v7303
    %v7305 = vpop.f32.mrb[0].mxu0
    %7306 = vdwg.mxu0
    %v7307 = vpack.c.b16 %v6943, %v6943
    %7308 = vrot.lane.b32.xlu0 %v7307, 32
    %v7309 = vpop.permute.xlu0 %7308
    %v7311 = vsel %vm5199, %v7130, 0
    %v7314 = vsel %vm5279, %v7309, 0
    %7316 = vmatprep.subr.bf16.mxu0 0
    %7317 = vmatpush1.bf16.msra.mxu0 %v7314
    %7318 = vmatprep.subr.bf16.mxu0 0
    %7319 = vmatpush1.bf16.msra.mxu0 0
    %7320 = vmatprep.subr.bf16.mxu0 0
    %7321 = vmatpush1.bf16.msra.mxu0 0
    %7322 = vmatprep.subr.bf16.mxu0 0
    %7323 = vmatpush1.bf16.msra.mxu0 0
    %7324 = vmatprep.subr.bf16.mxu0 0
    %7325 = vmatpush1.bf16.msra.mxu0 0
    %7326 = vmatprep.subr.bf16.mxu0 0
    %7327 = vmatpush1.bf16.msra.mxu0 0
    %7328 = vmatprep.subr.bf16.mxu0 0
    %7329 = vmatpush1.bf16.msra.mxu0 0
    %7330 = vmatprep.subr.bf16.mxu0 0
    %7331 = vmatpush1.bf16.msra.mxu0 0
    %7332 = vmatprep.subr.bf16.mxu0 0
    %7333 = vmatpush1.bf16.msra.mxu0 0
    %7334 = vmatprep.subr.bf16.mxu0 0
    %7335 = vmatpush1.bf16.msra.mxu0 0
    %7336 = vmatprep.subr.bf16.mxu0 0
    %7337 = vmatpush1.bf16.msra.mxu0 0
    %7338 = vmatprep.subr.bf16.mxu0 0
    %7339 = vmatpush1.bf16.msra.mxu0 0
    %7340 = vmatprep.subr.bf16.mxu0 0
    %7341 = vmatpush1.bf16.msra.mxu0 0
    %7342 = vmatprep.subr.bf16.mxu0 0
    %7343 = vmatpush1.bf16.msra.mxu0 0
    %7344 = vmatprep.subr.bf16.mxu0 0
    %7345 = vmatpush1.bf16.msra.mxu0 0
    %7346 = vmatprep.subr.bf16.mxu0 0
    %7347 = vmatpush1.bf16.msra.mxu0 0
    %7348 = vmatprep.mubr.bf16.mxu0 0
    %7349 = vmatmul.mubr.bf16.gmra.mrb[0].mxu0 %v7311
    %v7350 = vpop.f32.mrb[0].mxu0
    %v7351 = vadd.f32 %v7301, %v7350
    %v7352 = vpop.f32.mrb[0].mxu0
    %v7353 = vpop.f32.mrb[0].mxu0
    %v7354 = vadd.f32 %v7304, %v7353
    %v7355 = vpop.f32.mrb[0].mxu0
    %7356 = vdwg.mxu0
    %7357 = vrot.lane.b32.xlu0 %v7005, 112
    %v7358 = vpop.permute.xlu0 %7357
    %7359 = vrot.lane.b32.xlu0 %v7005, 80
    %v7360 = vpop.permute.xlu0 %7359
    %v7362 = vsel %vm5199, %v7358, 0
    %v7365 = vsel %vm5199, %v7360, 0
    %7367 = vmatprep.subr.bf16.mxu0 0
    %7368 = vmatpush1.bf16.xpose.msra.mxu0 %v7365
    %7369 = vmatprep.subr.bf16.mxu0 0
    %7370 = vmatpush1.bf16.xpose.msra.mxu0 0
    %7371 = vmatprep.subr.bf16.mxu0 0
    %7372 = vmatpush1.bf16.xpose.msra.mxu0 0
    %7373 = vmatprep.subr.bf16.mxu0 0
    %7374 = vmatpush1.bf16.xpose.msra.mxu0 0
    %7375 = vmatprep.subr.bf16.mxu0 0
    %7376 = vmatpush1.bf16.xpose.msra.mxu0 0
    %7377 = vmatprep.subr.bf16.mxu0 0
    %7378 = vmatpush1.bf16.xpose.msra.mxu0 0
    %7379 = vmatprep.subr.bf16.mxu0 0
    %7380 = vmatpush1.bf16.xpose.msra.mxu0 0
    %7381 = vmatprep.subr.bf16.mxu0 0
    %7382 = vmatpush1.bf16.xpose.msra.mxu0 0
    %7383 = vmatprep.subr.bf16.mxu0 0
    %7384 = vmatpush1.bf16.xpose.msra.mxu0 0
    %7385 = vmatprep.subr.bf16.mxu0 0
    %7386 = vmatpush1.bf16.xpose.msra.mxu0 0
    %7387 = vmatprep.subr.bf16.mxu0 0
    %7388 = vmatpush1.bf16.xpose.msra.mxu0 0
    %7389 = vmatprep.subr.bf16.mxu0 0
    %7390 = vmatpush1.bf16.xpose.msra.mxu0 0
    %7391 = vmatprep.subr.bf16.mxu0 0
    %7392 = vmatpush1.bf16.xpose.msra.mxu0 0
    %7393 = vmatprep.subr.bf16.mxu0 0
    %7394 = vmatpush1.bf16.xpose.msra.mxu0 0
    %7395 = vmatprep.subr.bf16.mxu0 0
    %7396 = vmatpush1.bf16.xpose.msra.mxu0 0
    %7397 = vmatprep.subr.bf16.mxu0 0
    %7398 = vmatpush1.bf16.xpose.msra.mxu0 0
    %7399 = vmatprep.mubr.bf16.mxu0 0
    %7400 = vmatmul.mubr.bf16.gmra.mrb[0].mxu0 %v7362
    %v7401 = vpop.f32.mrb[0].mxu0
    %v7402 = vadd.f32 0.0, %v7401
    %v7403 = vpop.f32.mrb[0].mxu0
    %v7404 = vpop.f32.mrb[0].mxu0
    %v7405 = vadd.f32 0.0, %v7404
    %v7406 = vpop.f32.mrb[0].mxu0
    %7407 = vdwg.mxu0
    %v7408 = vmul.f32 %v7402, 0.35355338
    %v7409 = vmul.f32 %v7405, 0.35355338
    %v7410 = vsel %vm5249, %v7408, -inf
    %7411 = vmax.xlane.f32.xlu0 %v7410
    %v7412 = vpop.xlane.xlu0 %7411
    %v7413 = vsel %vm5253, %v7409, -inf
    %7414 = vmax.xlane.f32.xlu0 %v7413
    %v7415 = vpop.xlane.xlu0 %7414
    %v7416 = vsub.f32 %v7408, %v7412
    %v7417 = vsub.f32 %v7409, %v7415
    %v7418 = vmul.f32 %v7416, 1.442695
    %v7419 = vpow.pop %v7418
    %v7420 = vmul.f32 %v7417, 1.442695
    %v7421 = vpow.pop %v7420
    %v7422 = vsel %vm5249, %v7419, 0.0
    %7423 = vadd.xlane.f32.xlu0 %v7422
    %v7424 = vpop.xlane.xlu0 %7423
    %v7425 = vsel %vm5253, %v7421, 0.0
    %7426 = vadd.xlane.f32.xlu0 %v7425
    %v7427 = vpop.xlane.xlu0 %7426
    %v7428 = vrcp.pop %v7424
    %v7429 = vmul.f32 %v7419, %v7428
    %v7430 = vrcp.pop %v7427
    %v7431 = vmul.f32 %v7421, %v7430
    %v7432 = vpack.c.bf16 %v7431, %v7429
    %7433 = vrot.lane.b32.xlu0 %v7005, 48
    %v7434 = vpop.permute.xlu0 %7433
    %v7436 = vsel %vm5249, %v7432, 0
    %v7439 = vand.u32 %v7434, %v5282
    %7441 = vmatprep.subr.bf16.mxu0 0
    %7442 = vmatpush1.bf16.msra.mxu0 %v7439
    %7443 = vmatprep.subr.bf16.mxu0 0
    %7444 = vmatpush1.bf16.msra.mxu0 0
    %7445 = vmatprep.subr.bf16.mxu0 0
    %7446 = vmatpush1.bf16.msra.mxu0 0
    %7447 = vmatprep.subr.bf16.mxu0 0
    %7448 = vmatpush1.bf16.msra.mxu0 0
    %7449 = vmatprep.subr.bf16.mxu0 0
    %7450 = vmatpush1.bf16.msra.mxu0 0
    %7451 = vmatprep.subr.bf16.mxu0 0
    %7452 = vmatpush1.bf16.msra.mxu0 0
    %7453 = vmatprep.subr.bf16.mxu0 0
    %7454 = vmatpush1.bf16.msra.mxu0 0
    %7455 = vmatprep.subr.bf16.mxu0 0
    %7456 = vmatpush1.bf16.msra.mxu0 0
    %7457 = vmatprep.subr.bf16.mxu0 0
    %7458 = vmatpush1.bf16.msra.mxu0 0
    %7459 = vmatprep.subr.bf16.mxu0 0
    %7460 = vmatpush1.bf16.msra.mxu0 0
    %7461 = vmatprep.subr.bf16.mxu0 0
    %7462 = vmatpush1.bf16.msra.mxu0 0
    %7463 = vmatprep.subr.bf16.mxu0 0
    %7464 = vmatpush1.bf16.msra.mxu0 0
    %7465 = vmatprep.subr.bf16.mxu0 0
    %7466 = vmatpush1.bf16.msra.mxu0 0
    %7467 = vmatprep.subr.bf16.mxu0 0
    %7468 = vmatpush1.bf16.msra.mxu0 0
    %7469 = vmatprep.subr.bf16.mxu0 0
    %7470 = vmatpush1.bf16.msra.mxu0 0
    %7471 = vmatprep.subr.bf16.mxu0 0
    %7472 = vmatpush1.bf16.msra.mxu0 0
    %7473 = vmatprep.mubr.bf16.mxu0 0
    %7474 = vmatmul.mubr.bf16.gmra.mrb[0].mxu0 %v7436
    %v7475 = vpop.f32.mrb[0].mxu0
    %v7476 = vadd.f32 0.0, %v7475
    %v7477 = vpop.f32.mrb[0].mxu0
    %v7478 = vpop.f32.mrb[0].mxu0
    %v7479 = vadd.f32 0.0, %v7478
    %v7480 = vpop.f32.mrb[0].mxu0
    %7481 = vdwg.mxu0
    %v7482 = vpack.c.bf16 %v7479, %v7476
    %v7483 = vpack.c.b16 %v6945, %v6945
    %7484 = vrot.lane.b32.xlu0 %v7483, 32
    %v7485 = vpop.permute.xlu0 %7484
    %v7487 = vsel %vm5199, %v7482, 0
    %v7490 = vsel %vm5279, %v7485, 0
    %7492 = vmatprep.subr.bf16.mxu0 0
    %7493 = vmatpush1.bf16.msra.mxu0 %v7490
    %7494 = vmatprep.subr.bf16.mxu0 0
    %7495 = vmatpush1.bf16.msra.mxu0 0
    %7496 = vmatprep.subr.bf16.mxu0 0
    %7497 = vmatpush1.bf16.msra.mxu0 0
    %7498 = vmatprep.subr.bf16.mxu0 0
    %7499 = vmatpush1.bf16.msra.mxu0 0
    %7500 = vmatprep.subr.bf16.mxu0 0
    %7501 = vmatpush1.bf16.msra.mxu0 0
    %7502 = vmatprep.subr.bf16.mxu0 0
    %7503 = vmatpush1.bf16.msra.mxu0 0
    %7504 = vmatprep.subr.bf16.mxu0 0
    %7505 = vmatpush1.bf16.msra.mxu0 0
    %7506 = vmatprep.subr.bf16.mxu0 0
    %7507 = vmatpush1.bf16.msra.mxu0 0
    %7508 = vmatprep.subr.bf16.mxu0 0
    %7509 = vmatpush1.bf16.msra.mxu0 0
    %7510 = vmatprep.subr.bf16.mxu0 0
    %7511 = vmatpush1.bf16.msra.mxu0 0
    %7512 = vmatprep.subr.bf16.mxu0 0
    %7513 = vmatpush1.bf16.msra.mxu0 0
    %7514 = vmatprep.subr.bf16.mxu0 0
    %7515 = vmatpush1.bf16.msra.mxu0 0
    %7516 = vmatprep.subr.bf16.mxu0 0
    %7517 = vmatpush1.bf16.msra.mxu0 0
    %7518 = vmatprep.subr.bf16.mxu0 0
    %7519 = vmatpush1.bf16.msra.mxu0 0
    %7520 = vmatprep.subr.bf16.mxu0 0
    %7521 = vmatpush1.bf16.msra.mxu0 0
    %7522 = vmatprep.subr.bf16.mxu0 0
    %7523 = vmatpush1.bf16.msra.mxu0 0
    %7524 = vmatprep.mubr.bf16.mxu0 0
    %7525 = vmatmul.mubr.bf16.gmra.mrb[0].mxu0 %v7487
    %v7526 = vpop.f32.mrb[0].mxu0
    %v7527 = vadd.f32 0.0, %v7526
    %v7528 = vpop.f32.mrb[0].mxu0
    %v7529 = vpop.f32.mrb[0].mxu0
    %v7530 = vadd.f32 0.0, %v7529
    %v7531 = vpop.f32.mrb[0].mxu0
    %7532 = vdwg.mxu0
    %v7533 = vadd.f32 %v7351, %v7527
    %v7534 = vadd.f32 %v7354, %v7530
    %7535 = vrot.lane.b32.xlu0 %v7005, 104
    %v7536 = vpop.permute.xlu0 %7535
    %7537 = vrot.lane.b32.xlu0 %v7005, 72
    %v7538 = vpop.permute.xlu0 %7537
    %v7540 = vsel %vm5199, %v7536, 0
    %v7543 = vsel %vm5199, %v7538, 0
    %7545 = vmatprep.subr.bf16.mxu0 0
    %7546 = vmatpush1.bf16.xpose.msra.mxu0 %v7543
    %7547 = vmatprep.subr.bf16.mxu0 0
    %7548 = vmatpush1.bf16.xpose.msra.mxu0 0
    %7549 = vmatprep.subr.bf16.mxu0 0
    %7550 = vmatpush1.bf16.xpose.msra.mxu0 0
    %7551 = vmatprep.subr.bf16.mxu0 0
    %7552 = vmatpush1.bf16.xpose.msra.mxu0 0
    %7553 = vmatprep.subr.bf16.mxu0 0
    %7554 = vmatpush1.bf16.xpose.msra.mxu0 0
    %7555 = vmatprep.subr.bf16.mxu0 0
    %7556 = vmatpush1.bf16.xpose.msra.mxu0 0
    %7557 = vmatprep.subr.bf16.mxu0 0
    %7558 = vmatpush1.bf16.xpose.msra.mxu0 0
    %7559 = vmatprep.subr.bf16.mxu0 0
    %7560 = vmatpush1.bf16.xpose.msra.mxu0 0
    %7561 = vmatprep.subr.bf16.mxu0 0
    %7562 = vmatpush1.bf16.xpose.msra.mxu0 0
    %7563 = vmatprep.subr.bf16.mxu0 0
    %7564 = vmatpush1.bf16.xpose.msra.mxu0 0
    %7565 = vmatprep.subr.bf16.mxu0 0
    %7566 = vmatpush1.bf16.xpose.msra.mxu0 0
    %7567 = vmatprep.subr.bf16.mxu0 0
    %7568 = vmatpush1.bf16.xpose.msra.mxu0 0
    %7569 = vmatprep.subr.bf16.mxu0 0
    %7570 = vmatpush1.bf16.xpose.msra.mxu0 0
    %7571 = vmatprep.subr.bf16.mxu0 0
    %7572 = vmatpush1.bf16.xpose.msra.mxu0 0
    %7573 = vmatprep.subr.bf16.mxu0 0
    %7574 = vmatpush1.bf16.xpose.msra.mxu0 0
    %7575 = vmatprep.subr.bf16.mxu0 0
    %7576 = vmatpush1.bf16.xpose.msra.mxu0 0
    %7577 = vmatprep.mubr.bf16.mxu0 0
    %7578 = vmatmul.mubr.bf16.gmra.mrb[0].mxu0 %v7540
    %v7579 = vpop.f32.mrb[0].mxu0
    %v7580 = vadd.f32 0.0, %v7579
    %v7581 = vpop.f32.mrb[0].mxu0
    %v7582 = vpop.f32.mrb[0].mxu0
    %v7583 = vadd.f32 0.0, %v7582
    %v7584 = vpop.f32.mrb[0].mxu0
    %7585 = vdwg.mxu0
    %v7586 = vmul.f32 %v7580, 0.35355338
    %v7587 = vmul.f32 %v7583, 0.35355338
    %v7588 = vsel %vm5249, %v7586, -inf
    %7589 = vmax.xlane.f32.xlu0 %v7588
    %v7590 = vpop.xlane.xlu0 %7589
    %v7591 = vsel %vm5253, %v7587, -inf
    %7592 = vmax.xlane.f32.xlu0 %v7591
    %v7593 = vpop.xlane.xlu0 %7592
    %v7594 = vsub.f32 %v7586, %v7590
    %v7595 = vsub.f32 %v7587, %v7593
    %v7596 = vmul.f32 %v7594, 1.442695
    %v7597 = vpow.pop %v7596
    %v7598 = vmul.f32 %v7595, 1.442695
    %v7599 = vpow.pop %v7598
    %v7600 = vsel %vm5249, %v7597, 0.0
    %7601 = vadd.xlane.f32.xlu0 %v7600
    %v7602 = vpop.xlane.xlu0 %7601
    %v7603 = vsel %vm5253, %v7599, 0.0
    %7604 = vadd.xlane.f32.xlu0 %v7603
    %v7605 = vpop.xlane.xlu0 %7604
    %v7606 = vrcp.pop %v7602
    %v7607 = vmul.f32 %v7597, %v7606
    %v7608 = vrcp.pop %v7605
    %v7609 = vmul.f32 %v7599, %v7608
    %v7610 = vpack.c.bf16 %v7609, %v7607
    %7611 = vrot.lane.b32.xlu0 %v7005, 40
    %v7612 = vpop.permute.xlu0 %7611
    %v7614 = vsel %vm5249, %v7610, 0
    %v7617 = vand.u32 %v7612, %v5282
    %7619 = vmatprep.subr.bf16.mxu0 0
    %7620 = vmatpush1.bf16.msra.mxu0 %v7617
    %7621 = vmatprep.subr.bf16.mxu0 0
    %7622 = vmatpush1.bf16.msra.mxu0 0
    %7623 = vmatprep.subr.bf16.mxu0 0
    %7624 = vmatpush1.bf16.msra.mxu0 0
    %7625 = vmatprep.subr.bf16.mxu0 0
    %7626 = vmatpush1.bf16.msra.mxu0 0
    %7627 = vmatprep.subr.bf16.mxu0 0
    %7628 = vmatpush1.bf16.msra.mxu0 0
    %7629 = vmatprep.subr.bf16.mxu0 0
    %7630 = vmatpush1.bf16.msra.mxu0 0
    %7631 = vmatprep.subr.bf16.mxu0 0
    %7632 = vmatpush1.bf16.msra.mxu0 0
    %7633 = vmatprep.subr.bf16.mxu0 0
    %7634 = vmatpush1.bf16.msra.mxu0 0
    %7635 = vmatprep.subr.bf16.mxu0 0
    %7636 = vmatpush1.bf16.msra.mxu0 0
    %7637 = vmatprep.subr.bf16.mxu0 0
    %7638 = vmatpush1.bf16.msra.mxu0 0
    %7639 = vmatprep.subr.bf16.mxu0 0
    %7640 = vmatpush1.bf16.msra.mxu0 0
    %7641 = vmatprep.subr.bf16.mxu0 0
    %7642 = vmatpush1.bf16.msra.mxu0 0
    %7643 = vmatprep.subr.bf16.mxu0 0
    %7644 = vmatpush1.bf16.msra.mxu0 0
    %7645 = vmatprep.subr.bf16.mxu0 0
    %7646 = vmatpush1.bf16.msra.mxu0 0
    %7647 = vmatprep.subr.bf16.mxu0 0
    %7648 = vmatpush1.bf16.msra.mxu0 0
    %7649 = vmatprep.subr.bf16.mxu0 0
    %7650 = vmatpush1.bf16.msra.mxu0 0
    %7651 = vmatprep.mubr.bf16.mxu0 0
    %7652 = vmatmul.mubr.bf16.gmra.mrb[0].mxu0 %v7614
    %v7653 = vpop.f32.mrb[0].mxu0
    %v7654 = vadd.f32 0.0, %v7653
    %v7655 = vpop.f32.mrb[0].mxu0
    %v7656 = vpop.f32.mrb[0].mxu0
    %v7657 = vadd.f32 0.0, %v7656
    %v7658 = vpop.f32.mrb[0].mxu0
    %7659 = vdwg.mxu0
    %v7660 = vpack.c.bf16 %v7657, %v7654
    %v7661 = vpack.c.b16 %v6946, %v6946
    %7662 = vrot.lane.b32.xlu0 %v7661, 32
    %v7663 = vpop.permute.xlu0 %7662
    %v7665 = vsel %vm5199, %v7660, 0
    %v7668 = vsel %vm5279, %v7663, 0
    %7670 = vmatprep.subr.bf16.mxu0 0
    %7671 = vmatpush1.bf16.msra.mxu0 %v7668
    %7672 = vmatprep.subr.bf16.mxu0 0
    %7673 = vmatpush1.bf16.msra.mxu0 0
    %7674 = vmatprep.subr.bf16.mxu0 0
    %7675 = vmatpush1.bf16.msra.mxu0 0
    %7676 = vmatprep.subr.bf16.mxu0 0
    %7677 = vmatpush1.bf16.msra.mxu0 0
    %7678 = vmatprep.subr.bf16.mxu0 0
    %7679 = vmatpush1.bf16.msra.mxu0 0
    %7680 = vmatprep.subr.bf16.mxu0 0
    %7681 = vmatpush1.bf16.msra.mxu0 0
    %7682 = vmatprep.subr.bf16.mxu0 0
    %7683 = vmatpush1.bf16.msra.mxu0 0
    %7684 = vmatprep.subr.bf16.mxu0 0
    %7685 = vmatpush1.bf16.msra.mxu0 0
    %7686 = vmatprep.subr.bf16.mxu0 0
    %7687 = vmatpush1.bf16.msra.mxu0 0
    %7688 = vmatprep.subr.bf16.mxu0 0
    %7689 = vmatpush1.bf16.msra.mxu0 0
    %7690 = vmatprep.subr.bf16.mxu0 0
    %7691 = vmatpush1.bf16.msra.mxu0 0
    %7692 = vmatprep.subr.bf16.mxu0 0
    %7693 = vmatpush1.bf16.msra.mxu0 0
    %7694 = vmatprep.subr.bf16.mxu0 0
    %7695 = vmatpush1.bf16.msra.mxu0 0
    %7696 = vmatprep.subr.bf16.mxu0 0
    %7697 = vmatpush1.bf16.msra.mxu0 0
    %7698 = vmatprep.subr.bf16.mxu0 0
    %7699 = vmatpush1.bf16.msra.mxu0 0
    %7700 = vmatprep.subr.bf16.mxu0 0
    %7701 = vmatpush1.bf16.msra.mxu0 0
    %7702 = vmatprep.mubr.bf16.mxu0 0
    %7703 = vmatmul.mubr.bf16.gmra.mrb[0].mxu0 %v7665
    %v7704 = vpop.f32.mrb[0].mxu0
    %v7705 = vadd.f32 0.0, %v7704
    %v7706 = vpop.f32.mrb[0].mxu0
    %v7707 = vpop.f32.mrb[0].mxu0
    %v7708 = vadd.f32 0.0, %v7707
    %v7709 = vpop.f32.mrb[0].mxu0
    %7710 = vdwg.mxu0
    %v7711 = vadd.f32 %v7533, %v7705
    %v7712 = vadd.f32 %v7534, %v7708
    %v7713 = vpack.c.bf16 %v7000, %v6995
    %v7715 = vshrl.u32 %v7713, 16
    %v7717 = vshll.u32 %v7713, 16
    %v7719 = vrot.slane %v7717, 1
    %v7720 = vor.u32 %v7715, %v7719
    %7721 = vrot.lane.b32.xlu0 %v7720, 96
    %v7722 = vpop.permute.xlu0 %7721
    %v7724 = vsel %vm5199, %v7720, 0
    %v7727 = vsel %vm5199, %v7722, 0
    %7729 = vmatprep.subr.bf16.mxu0 0
    %7730 = vmatpush1.bf16.xpose.msra.mxu0 %v7727
    %7731 = vmatprep.subr.bf16.mxu0 0
    %7732 = vmatpush1.bf16.xpose.msra.mxu0 0
    %7733 = vmatprep.subr.bf16.mxu0 0
    %7734 = vmatpush1.bf16.xpose.msra.mxu0 0
    %7735 = vmatprep.subr.bf16.mxu0 0
    %7736 = vmatpush1.bf16.xpose.msra.mxu0 0
    %7737 = vmatprep.subr.bf16.mxu0 0
    %7738 = vmatpush1.bf16.xpose.msra.mxu0 0
    %7739 = vmatprep.subr.bf16.mxu0 0
    %7740 = vmatpush1.bf16.xpose.msra.mxu0 0
    %7741 = vmatprep.subr.bf16.mxu0 0
    %7742 = vmatpush1.bf16.xpose.msra.mxu0 0
    %7743 = vmatprep.subr.bf16.mxu0 0
    %7744 = vmatpush1.bf16.xpose.msra.mxu0 0
    %7745 = vmatprep.subr.bf16.mxu0 0
    %7746 = vmatpush1.bf16.xpose.msra.mxu0 0
    %7747 = vmatprep.subr.bf16.mxu0 0
    %7748 = vmatpush1.bf16.xpose.msra.mxu0 0
    %7749 = vmatprep.subr.bf16.mxu0 0
    %7750 = vmatpush1.bf16.xpose.msra.mxu0 0
    %7751 = vmatprep.subr.bf16.mxu0 0
    %7752 = vmatpush1.bf16.xpose.msra.mxu0 0
    %7753 = vmatprep.subr.bf16.mxu0 0
    %7754 = vmatpush1.bf16.xpose.msra.mxu0 0
    %7755 = vmatprep.subr.bf16.mxu0 0
    %7756 = vmatpush1.bf16.xpose.msra.mxu0 0
    %7757 = vmatprep.subr.bf16.mxu0 0
    %7758 = vmatpush1.bf16.xpose.msra.mxu0 0
    %7759 = vmatprep.subr.bf16.mxu0 0
    %7760 = vmatpush1.bf16.xpose.msra.mxu0 0
    %7761 = vmatprep.mubr.bf16.mxu0 0
    %7762 = vmatmul.mubr.bf16.gmra.mrb[0].mxu0 %v7724
    %v7763 = vpop.f32.mrb[0].mxu0
    %v7764 = vadd.f32 0.0, %v7763
    %v7765 = vpop.f32.mrb[0].mxu0
    %v7766 = vpop.f32.mrb[0].mxu0
    %v7767 = vadd.f32 0.0, %v7766
    %v7768 = vpop.f32.mrb[0].mxu0
    %7769 = vdwg.mxu0
    %v7770 = vmul.f32 %v7764, 0.35355338
    %v7771 = vmul.f32 %v7767, 0.35355338
    %v7772 = vsel %vm5249, %v7770, -inf
    %7773 = vmax.xlane.f32.xlu0 %v7772
    %v7774 = vpop.xlane.xlu0 %7773
    %v7775 = vsel %vm5253, %v7771, -inf
    %7776 = vmax.xlane.f32.xlu0 %v7775
    %v7777 = vpop.xlane.xlu0 %7776
    %v7778 = vsub.f32 %v7770, %v7774
    %v7779 = vsub.f32 %v7771, %v7777
    %v7780 = vmul.f32 %v7778, 1.442695
    %v7781 = vpow.pop %v7780
    %v7782 = vmul.f32 %v7779, 1.442695
    %v7783 = vpow.pop %v7782
    %v7784 = vsel %vm5249, %v7781, 0.0
    %7785 = vadd.xlane.f32.xlu0 %v7784
    %v7786 = vpop.xlane.xlu0 %7785
    %v7787 = vsel %vm5253, %v7783, 0.0
    %7788 = vadd.xlane.f32.xlu0 %v7787
    %v7789 = vpop.xlane.xlu0 %7788
    %v7790 = vrcp.pop %v7786
    %v7791 = vmul.f32 %v7781, %v7790
    %v7792 = vrcp.pop %v7789
    %v7793 = vmul.f32 %v7783, %v7792
    %v7794 = vpack.c.bf16 %v7793, %v7791
    %7795 = vrot.lane.b32.xlu0 %v7720, 64
    %v7796 = vpop.permute.xlu0 %7795
    %v7798 = vsel %vm5249, %v7794, 0
    %v7801 = vand.u32 %v7796, %v5282
    %7803 = vmatprep.subr.bf16.mxu0 0
    %7804 = vmatpush1.bf16.msra.mxu0 %v7801
    %7805 = vmatprep.subr.bf16.mxu0 0
    %7806 = vmatpush1.bf16.msra.mxu0 0
    %7807 = vmatprep.subr.bf16.mxu0 0
    %7808 = vmatpush1.bf16.msra.mxu0 0
    %7809 = vmatprep.subr.bf16.mxu0 0
    %7810 = vmatpush1.bf16.msra.mxu0 0
    %7811 = vmatprep.subr.bf16.mxu0 0
    %7812 = vmatpush1.bf16.msra.mxu0 0
    %7813 = vmatprep.subr.bf16.mxu0 0
    %7814 = vmatpush1.bf16.msra.mxu0 0
    %7815 = vmatprep.subr.bf16.mxu0 0
    %7816 = vmatpush1.bf16.msra.mxu0 0
    %7817 = vmatprep.subr.bf16.mxu0 0
    %7818 = vmatpush1.bf16.msra.mxu0 0
    %7819 = vmatprep.subr.bf16.mxu0 0
    %7820 = vmatpush1.bf16.msra.mxu0 0
    %7821 = vmatprep.subr.bf16.mxu0 0
    %7822 = vmatpush1.bf16.msra.mxu0 0
    %7823 = vmatprep.subr.bf16.mxu0 0
    %7824 = vmatpush1.bf16.msra.mxu0 0
    %7825 = vmatprep.subr.bf16.mxu0 0
    %7826 = vmatpush1.bf16.msra.mxu0 0
    %7827 = vmatprep.subr.bf16.mxu0 0
    %7828 = vmatpush1.bf16.msra.mxu0 0
    %7829 = vmatprep.subr.bf16.mxu0 0
    %7830 = vmatpush1.bf16.msra.mxu0 0
    %7831 = vmatprep.subr.bf16.mxu0 0
    %7832 = vmatpush1.bf16.msra.mxu0 0
    %7833 = vmatprep.subr.bf16.mxu0 0
    %7834 = vmatpush1.bf16.msra.mxu0 0
    %7835 = vmatprep.mubr.bf16.mxu0 0
    %7836 = vmatmul.mubr.bf16.gmra.mrb[0].mxu0 %v7798
    %v7837 = vpop.f32.mrb[0].mxu0
    %v7838 = vadd.f32 0.0, %v7837
    %v7839 = vpop.f32.mrb[0].mxu0
    %v7840 = vpop.f32.mrb[0].mxu0
    %v7841 = vadd.f32 0.0, %v7840
    %v7842 = vpop.f32.mrb[0].mxu0
    %7843 = vdwg.mxu0
    %v7844 = vpack.c.bf16 %v7841, %v7838
    %7845 = vrot.lane.b32.xlu0 %v7720, 120
    %v7846 = vpop.permute.xlu0 %7845
    %7847 = vrot.lane.b32.xlu0 %v7720, 88
    %v7848 = vpop.permute.xlu0 %7847
    %v7850 = vsel %vm5199, %v7846, 0
    %v7853 = vsel %vm5199, %v7848, 0
    %7855 = vmatprep.subr.bf16.mxu0 0
    %7856 = vmatpush1.bf16.xpose.msra.mxu0 %v7853
    %7857 = vmatprep.subr.bf16.mxu0 0
    %7858 = vmatpush1.bf16.xpose.msra.mxu0 0
    %7859 = vmatprep.subr.bf16.mxu0 0
    %7860 = vmatpush1.bf16.xpose.msra.mxu0 0
    %7861 = vmatprep.subr.bf16.mxu0 0
    %7862 = vmatpush1.bf16.xpose.msra.mxu0 0
    %7863 = vmatprep.subr.bf16.mxu0 0
    %7864 = vmatpush1.bf16.xpose.msra.mxu0 0
    %7865 = vmatprep.subr.bf16.mxu0 0
    %7866 = vmatpush1.bf16.xpose.msra.mxu0 0
    %7867 = vmatprep.subr.bf16.mxu0 0
    %7868 = vmatpush1.bf16.xpose.msra.mxu0 0
    %7869 = vmatprep.subr.bf16.mxu0 0
    %7870 = vmatpush1.bf16.xpose.msra.mxu0 0
    %7871 = vmatprep.subr.bf16.mxu0 0
    %7872 = vmatpush1.bf16.xpose.msra.mxu0 0
    %7873 = vmatprep.subr.bf16.mxu0 0
    %7874 = vmatpush1.bf16.xpose.msra.mxu0 0
    %7875 = vmatprep.subr.bf16.mxu0 0
    %7876 = vmatpush1.bf16.xpose.msra.mxu0 0
    %7877 = vmatprep.subr.bf16.mxu0 0
    %7878 = vmatpush1.bf16.xpose.msra.mxu0 0
    %7879 = vmatprep.subr.bf16.mxu0 0
    %7880 = vmatpush1.bf16.xpose.msra.mxu0 0
    %7881 = vmatprep.subr.bf16.mxu0 0
    %7882 = vmatpush1.bf16.xpose.msra.mxu0 0
    %7883 = vmatprep.subr.bf16.mxu0 0
    %7884 = vmatpush1.bf16.xpose.msra.mxu0 0
    %7885 = vmatprep.subr.bf16.mxu0 0
    %7886 = vmatpush1.bf16.xpose.msra.mxu0 0
    %7887 = vmatprep.mubr.bf16.mxu0 0
    %7888 = vmatmul.mubr.bf16.gmra.mrb[0].mxu0 %v7850
    %v7889 = vpop.f32.mrb[0].mxu0
    %v7890 = vadd.f32 0.0, %v7889
    %v7891 = vpop.f32.mrb[0].mxu0
    %v7892 = vpop.f32.mrb[0].mxu0
    %v7893 = vadd.f32 0.0, %v7892
    %v7894 = vpop.f32.mrb[0].mxu0
    %7895 = vdwg.mxu0
    %v7896 = vmul.f32 %v7890, 0.35355338
    %v7897 = vmul.f32 %v7893, 0.35355338
    %v7898 = vsel %vm5249, %v7896, -inf
    %7899 = vmax.xlane.f32.xlu0 %v7898
    %v7900 = vpop.xlane.xlu0 %7899
    %v7901 = vsel %vm5253, %v7897, -inf
    %7902 = vmax.xlane.f32.xlu0 %v7901
    %v7903 = vpop.xlane.xlu0 %7902
    %v7904 = vsub.f32 %v7896, %v7900
    %v7905 = vsub.f32 %v7897, %v7903
    %v7906 = vmul.f32 %v7904, 1.442695
    %v7907 = vpow.pop %v7906
    %v7908 = vmul.f32 %v7905, 1.442695
    %v7909 = vpow.pop %v7908
    %v7910 = vsel %vm5249, %v7907, 0.0
    %7911 = vadd.xlane.f32.xlu0 %v7910
    %v7912 = vpop.xlane.xlu0 %7911
    %v7913 = vsel %vm5253, %v7909, 0.0
    %7914 = vadd.xlane.f32.xlu0 %v7913
    %v7915 = vpop.xlane.xlu0 %7914
    %v7916 = vrcp.pop %v7912
    %v7917 = vmul.f32 %v7907, %v7916
    %v7918 = vrcp.pop %v7915
    %v7919 = vmul.f32 %v7909, %v7918
    %v7920 = vpack.c.bf16 %v7919, %v7917
    %7921 = vrot.lane.b32.xlu0 %v7720, 56
    %v7922 = vpop.permute.xlu0 %7921
    %v7924 = vsel %vm5249, %v7920, 0
    %v7927 = vand.u32 %v7922, %v5282
    %7929 = vmatprep.subr.bf16.mxu0 0
    %7930 = vmatpush1.bf16.msra.mxu0 %v7927
    %7931 = vmatprep.subr.bf16.mxu0 0
    %7932 = vmatpush1.bf16.msra.mxu0 0
    %7933 = vmatprep.subr.bf16.mxu0 0
    %7934 = vmatpush1.bf16.msra.mxu0 0
    %7935 = vmatprep.subr.bf16.mxu0 0
    %7936 = vmatpush1.bf16.msra.mxu0 0
    %7937 = vmatprep.subr.bf16.mxu0 0
    %7938 = vmatpush1.bf16.msra.mxu0 0
    %7939 = vmatprep.subr.bf16.mxu0 0
    %7940 = vmatpush1.bf16.msra.mxu0 0
    %7941 = vmatprep.subr.bf16.mxu0 0
    %7942 = vmatpush1.bf16.msra.mxu0 0
    %7943 = vmatprep.subr.bf16.mxu0 0
    %7944 = vmatpush1.bf16.msra.mxu0 0
    %7945 = vmatprep.subr.bf16.mxu0 0
    %7946 = vmatpush1.bf16.msra.mxu0 0
    %7947 = vmatprep.subr.bf16.mxu0 0
    %7948 = vmatpush1.bf16.msra.mxu0 0
    %7949 = vmatprep.subr.bf16.mxu0 0
    %7950 = vmatpush1.bf16.msra.mxu0 0
    %7951 = vmatprep.subr.bf16.mxu0 0
    %7952 = vmatpush1.bf16.msra.mxu0 0
    %7953 = vmatprep.subr.bf16.mxu0 0
    %7954 = vmatpush1.bf16.msra.mxu0 0
    %7955 = vmatprep.subr.bf16.mxu0 0
    %7956 = vmatpush1.bf16.msra.mxu0 0
    %7957 = vmatprep.subr.bf16.mxu0 0
    %7958 = vmatpush1.bf16.msra.mxu0 0
    %7959 = vmatprep.subr.bf16.mxu0 0
    %7960 = vmatpush1.bf16.msra.mxu0 0
    %7961 = vmatprep.mubr.bf16.mxu0 0
    %7962 = vmatmul.mubr.bf16.gmra.mrb[0].mxu0 %v7924
    %v7963 = vpop.f32.mrb[0].mxu0
    %v7964 = vadd.f32 0.0, %v7963
    %v7965 = vpop.f32.mrb[0].mxu0
    %v7966 = vpop.f32.mrb[0].mxu0
    %v7967 = vadd.f32 0.0, %v7966
    %v7968 = vpop.f32.mrb[0].mxu0
    %7969 = vdwg.mxu0
    %v7970 = vpack.c.bf16 %v7967, %v7964
    %v7972 = vsel %vm5199, %v7970, 0
    %7974 = vmatprep.subr.bf16.mxu0 0
    %7975 = vmatpush1.bf16.msra.mxu0 %v7264
    %7976 = vmatprep.subr.bf16.mxu0 0
    %7977 = vmatpush1.bf16.msra.mxu0 0
    %7978 = vmatprep.subr.bf16.mxu0 0
    %7979 = vmatpush1.bf16.msra.mxu0 0
    %7980 = vmatprep.subr.bf16.mxu0 0
    %7981 = vmatpush1.bf16.msra.mxu0 0
    %7982 = vmatprep.subr.bf16.mxu0 0
    %7983 = vmatpush1.bf16.msra.mxu0 0
    %7984 = vmatprep.subr.bf16.mxu0 0
    %7985 = vmatpush1.bf16.msra.mxu0 0
    %7986 = vmatprep.subr.bf16.mxu0 0
    %7987 = vmatpush1.bf16.msra.mxu0 0
    %7988 = vmatprep.subr.bf16.mxu0 0
    %7989 = vmatpush1.bf16.msra.mxu0 0
    %7990 = vmatprep.subr.bf16.mxu0 0
    %7991 = vmatpush1.bf16.msra.mxu0 0
    %7992 = vmatprep.subr.bf16.mxu0 0
    %7993 = vmatpush1.bf16.msra.mxu0 0
    %7994 = vmatprep.subr.bf16.mxu0 0
    %7995 = vmatpush1.bf16.msra.mxu0 0
    %7996 = vmatprep.subr.bf16.mxu0 0
    %7997 = vmatpush1.bf16.msra.mxu0 0
    %7998 = vmatprep.subr.bf16.mxu0 0
    %7999 = vmatpush1.bf16.msra.mxu0 0
    %8000 = vmatprep.subr.bf16.mxu0 0
    %8001 = vmatpush1.bf16.msra.mxu0 0
    %8002 = vmatprep.subr.bf16.mxu0 0
    %8003 = vmatpush1.bf16.msra.mxu0 0
    %8004 = vmatprep.subr.bf16.mxu0 0
    %8005 = vmatpush1.bf16.msra.mxu0 0
    %8006 = vmatprep.mubr.bf16.mxu0 0
    %8007 = vmatmul.mubr.bf16.gmra.mrb[0].mxu0 %v7972
    %v8008 = vpop.f32.mrb[0].mxu0
    %v8009 = vadd.f32 0.0, %v8008
    %v8010 = vpop.f32.mrb[0].mxu0
    %v8011 = vpop.f32.mrb[0].mxu0
    %v8012 = vadd.f32 0.0, %v8011
    %v8013 = vpop.f32.mrb[0].mxu0
    %8014 = vdwg.mxu0
    %v8016 = vsel %vm5199, %v7844, 0
    %8018 = vmatprep.subr.bf16.mxu0 0
    %8019 = vmatpush1.bf16.msra.mxu0 %v7314
    %8020 = vmatprep.subr.bf16.mxu0 0
    %8021 = vmatpush1.bf16.msra.mxu0 0
    %8022 = vmatprep.subr.bf16.mxu0 0
    %8023 = vmatpush1.bf16.msra.mxu0 0
    %8024 = vmatprep.subr.bf16.mxu0 0
    %8025 = vmatpush1.bf16.msra.mxu0 0
    %8026 = vmatprep.subr.bf16.mxu0 0
    %8027 = vmatpush1.bf16.msra.mxu0 0
    %8028 = vmatprep.subr.bf16.mxu0 0
    %8029 = vmatpush1.bf16.msra.mxu0 0
    %8030 = vmatprep.subr.bf16.mxu0 0
    %8031 = vmatpush1.bf16.msra.mxu0 0
    %8032 = vmatprep.subr.bf16.mxu0 0
    %8033 = vmatpush1.bf16.msra.mxu0 0
    %8034 = vmatprep.subr.bf16.mxu0 0
    %8035 = vmatpush1.bf16.msra.mxu0 0
    %8036 = vmatprep.subr.bf16.mxu0 0
    %8037 = vmatpush1.bf16.msra.mxu0 0
    %8038 = vmatprep.subr.bf16.mxu0 0
    %8039 = vmatpush1.bf16.msra.mxu0 0
    %8040 = vmatprep.subr.bf16.mxu0 0
    %8041 = vmatpush1.bf16.msra.mxu0 0
    %8042 = vmatprep.subr.bf16.mxu0 0
    %8043 = vmatpush1.bf16.msra.mxu0 0
    %8044 = vmatprep.subr.bf16.mxu0 0
    %8045 = vmatpush1.bf16.msra.mxu0 0
    %8046 = vmatprep.subr.bf16.mxu0 0
    %8047 = vmatpush1.bf16.msra.mxu0 0
    %8048 = vmatprep.subr.bf16.mxu0 0
    %8049 = vmatpush1.bf16.msra.mxu0 0
    %8050 = vmatprep.mubr.bf16.mxu0 0
    %8051 = vmatmul.mubr.bf16.gmra.mrb[0].mxu0 %v8016
    %v8052 = vpop.f32.mrb[0].mxu0
    %v8053 = vadd.f32 %v8009, %v8052
    %v8054 = vpop.f32.mrb[0].mxu0
    %v8055 = vpop.f32.mrb[0].mxu0
    %v8056 = vadd.f32 %v8012, %v8055
    %v8057 = vpop.f32.mrb[0].mxu0
    %8058 = vdwg.mxu0
    %8059 = vrot.lane.b32.xlu0 %v7720, 112
    %v8060 = vpop.permute.xlu0 %8059
    %8061 = vrot.lane.b32.xlu0 %v7720, 80
    %v8062 = vpop.permute.xlu0 %8061
    %v8064 = vsel %vm5199, %v8060, 0
    %v8067 = vsel %vm5199, %v8062, 0
    %8069 = vmatprep.subr.bf16.mxu0 0
    %8070 = vmatpush1.bf16.xpose.msra.mxu0 %v8067
    %8071 = vmatprep.subr.bf16.mxu0 0
    %8072 = vmatpush1.bf16.xpose.msra.mxu0 0
    %8073 = vmatprep.subr.bf16.mxu0 0
    %8074 = vmatpush1.bf16.xpose.msra.mxu0 0
    %8075 = vmatprep.subr.bf16.mxu0 0
    %8076 = vmatpush1.bf16.xpose.msra.mxu0 0
    %8077 = vmatprep.subr.bf16.mxu0 0
    %8078 = vmatpush1.bf16.xpose.msra.mxu0 0
    %8079 = vmatprep.subr.bf16.mxu0 0
    %8080 = vmatpush1.bf16.xpose.msra.mxu0 0
    %8081 = vmatprep.subr.bf16.mxu0 0
    %8082 = vmatpush1.bf16.xpose.msra.mxu0 0
    %8083 = vmatprep.subr.bf16.mxu0 0
    %8084 = vmatpush1.bf16.xpose.msra.mxu0 0
    %8085 = vmatprep.subr.bf16.mxu0 0
    %8086 = vmatpush1.bf16.xpose.msra.mxu0 0
    %8087 = vmatprep.subr.bf16.mxu0 0
    %8088 = vmatpush1.bf16.xpose.msra.mxu0 0
    %8089 = vmatprep.subr.bf16.mxu0 0
    %8090 = vmatpush1.bf16.xpose.msra.mxu0 0
    %8091 = vmatprep.subr.bf16.mxu0 0
    %8092 = vmatpush1.bf16.xpose.msra.mxu0 0
    %8093 = vmatprep.subr.bf16.mxu0 0
    %8094 = vmatpush1.bf16.xpose.msra.mxu0 0
    %8095 = vmatprep.subr.bf16.mxu0 0
    %8096 = vmatpush1.bf16.xpose.msra.mxu0 0
    %8097 = vmatprep.subr.bf16.mxu0 0
    %8098 = vmatpush1.bf16.xpose.msra.mxu0 0
    %8099 = vmatprep.subr.bf16.mxu0 0
    %8100 = vmatpush1.bf16.xpose.msra.mxu0 0
    %8101 = vmatprep.mubr.bf16.mxu0 0
    %8102 = vmatmul.mubr.bf16.gmra.mrb[0].mxu0 %v8064
    %v8103 = vpop.f32.mrb[0].mxu0
    %v8104 = vadd.f32 0.0, %v8103
    %v8105 = vpop.f32.mrb[0].mxu0
    %v8106 = vpop.f32.mrb[0].mxu0
    %v8107 = vadd.f32 0.0, %v8106
    %v8108 = vpop.f32.mrb[0].mxu0
    %8109 = vdwg.mxu0
    %v8110 = vmul.f32 %v8104, 0.35355338
    %v8111 = vmul.f32 %v8107, 0.35355338
    %v8112 = vsel %vm5249, %v8110, -inf
    %8113 = vmax.xlane.f32.xlu0 %v8112
    %v8114 = vpop.xlane.xlu0 %8113
    %v8115 = vsel %vm5253, %v8111, -inf
    %8116 = vmax.xlane.f32.xlu0 %v8115
    %v8117 = vpop.xlane.xlu0 %8116
    %v8118 = vsub.f32 %v8110, %v8114
    %v8119 = vsub.f32 %v8111, %v8117
    %v8120 = vmul.f32 %v8118, 1.442695
    %v8121 = vpow.pop %v8120
    %v8122 = vmul.f32 %v8119, 1.442695
    %v8123 = vpow.pop %v8122
    %v8124 = vsel %vm5249, %v8121, 0.0
    %8125 = vadd.xlane.f32.xlu0 %v8124
    %v8126 = vpop.xlane.xlu0 %8125
    %v8127 = vsel %vm5253, %v8123, 0.0
    %8128 = vadd.xlane.f32.xlu0 %v8127
    %v8129 = vpop.xlane.xlu0 %8128
    %v8130 = vrcp.pop %v8126
    %v8131 = vmul.f32 %v8121, %v8130
    %v8132 = vrcp.pop %v8129
    %v8133 = vmul.f32 %v8123, %v8132
    %v8134 = vpack.c.bf16 %v8133, %v8131
    %8135 = vrot.lane.b32.xlu0 %v7720, 48
    %v8136 = vpop.permute.xlu0 %8135
    %v8138 = vsel %vm5249, %v8134, 0
    %v8141 = vand.u32 %v8136, %v5282
    %8143 = vmatprep.subr.bf16.mxu0 0
    %8144 = vmatpush1.bf16.msra.mxu0 %v8141
    %8145 = vmatprep.subr.bf16.mxu0 0
    %8146 = vmatpush1.bf16.msra.mxu0 0
    %8147 = vmatprep.subr.bf16.mxu0 0
    %8148 = vmatpush1.bf16.msra.mxu0 0
    %8149 = vmatprep.subr.bf16.mxu0 0
    %8150 = vmatpush1.bf16.msra.mxu0 0
    %8151 = vmatprep.subr.bf16.mxu0 0
    %8152 = vmatpush1.bf16.msra.mxu0 0
    %8153 = vmatprep.subr.bf16.mxu0 0
    %8154 = vmatpush1.bf16.msra.mxu0 0
    %8155 = vmatprep.subr.bf16.mxu0 0
    %8156 = vmatpush1.bf16.msra.mxu0 0
    %8157 = vmatprep.subr.bf16.mxu0 0
    %8158 = vmatpush1.bf16.msra.mxu0 0
    %8159 = vmatprep.subr.bf16.mxu0 0
    %8160 = vmatpush1.bf16.msra.mxu0 0
    %8161 = vmatprep.subr.bf16.mxu0 0
    %8162 = vmatpush1.bf16.msra.mxu0 0
    %8163 = vmatprep.subr.bf16.mxu0 0
    %8164 = vmatpush1.bf16.msra.mxu0 0
    %8165 = vmatprep.subr.bf16.mxu0 0
    %8166 = vmatpush1.bf16.msra.mxu0 0
    %8167 = vmatprep.subr.bf16.mxu0 0
    %8168 = vmatpush1.bf16.msra.mxu0 0
    %8169 = vmatprep.subr.bf16.mxu0 0
    %8170 = vmatpush1.bf16.msra.mxu0 0
    %8171 = vmatprep.subr.bf16.mxu0 0
    %8172 = vmatpush1.bf16.msra.mxu0 0
    %8173 = vmatprep.subr.bf16.mxu0 0
    %8174 = vmatpush1.bf16.msra.mxu0 0
    %8175 = vmatprep.mubr.bf16.mxu0 0
    %8176 = vmatmul.mubr.bf16.gmra.mrb[0].mxu0 %v8138
    %v8177 = vpop.f32.mrb[0].mxu0
    %v8178 = vadd.f32 0.0, %v8177
    %v8179 = vpop.f32.mrb[0].mxu0
    %v8180 = vpop.f32.mrb[0].mxu0
    %v8181 = vadd.f32 0.0, %v8180
    %v8182 = vpop.f32.mrb[0].mxu0
    %8183 = vdwg.mxu0
    %v8184 = vpack.c.bf16 %v8181, %v8178
    %v8186 = vsel %vm5199, %v8184, 0
    %8188 = vmatprep.subr.bf16.mxu0 0
    %8189 = vmatpush1.bf16.msra.mxu0 %v7490
    %8190 = vmatprep.subr.bf16.mxu0 0
    %8191 = vmatpush1.bf16.msra.mxu0 0
    %8192 = vmatprep.subr.bf16.mxu0 0
    %8193 = vmatpush1.bf16.msra.mxu0 0
    %8194 = vmatprep.subr.bf16.mxu0 0
    %8195 = vmatpush1.bf16.msra.mxu0 0
    %8196 = vmatprep.subr.bf16.mxu0 0
    %8197 = vmatpush1.bf16.msra.mxu0 0
    %8198 = vmatprep.subr.bf16.mxu0 0
    %8199 = vmatpush1.bf16.msra.mxu0 0
    %8200 = vmatprep.subr.bf16.mxu0 0
    %8201 = vmatpush1.bf16.msra.mxu0 0
    %8202 = vmatprep.subr.bf16.mxu0 0
    %8203 = vmatpush1.bf16.msra.mxu0 0
    %8204 = vmatprep.subr.bf16.mxu0 0
    %8205 = vmatpush1.bf16.msra.mxu0 0
    %8206 = vmatprep.subr.bf16.mxu0 0
    %8207 = vmatpush1.bf16.msra.mxu0 0
    %8208 = vmatprep.subr.bf16.mxu0 0
    %8209 = vmatpush1.bf16.msra.mxu0 0
    %8210 = vmatprep.subr.bf16.mxu0 0
    %8211 = vmatpush1.bf16.msra.mxu0 0
    %8212 = vmatprep.subr.bf16.mxu0 0
    %8213 = vmatpush1.bf16.msra.mxu0 0
    %8214 = vmatprep.subr.bf16.mxu0 0
    %8215 = vmatpush1.bf16.msra.mxu0 0
    %8216 = vmatprep.subr.bf16.mxu0 0
    %8217 = vmatpush1.bf16.msra.mxu0 0
    %8218 = vmatprep.subr.bf16.mxu0 0
    %8219 = vmatpush1.bf16.msra.mxu0 0
    %8220 = vmatprep.mubr.bf16.mxu0 0
    %8221 = vmatmul.mubr.bf16.gmra.mrb[0].mxu0 %v8186
    %v8222 = vpop.f32.mrb[0].mxu0
    %v8223 = vadd.f32 0.0, %v8222
    %v8224 = vpop.f32.mrb[0].mxu0
    %v8225 = vpop.f32.mrb[0].mxu0
    %v8226 = vadd.f32 0.0, %v8225
    %v8227 = vpop.f32.mrb[0].mxu0
    %8228 = vdwg.mxu0
    %v8229 = vadd.f32 %v8053, %v8223
    %v8230 = vadd.f32 %v8056, %v8226
    %8231 = vrot.lane.b32.xlu0 %v7720, 104
    %v8232 = vpop.permute.xlu0 %8231
    %8233 = vrot.lane.b32.xlu0 %v7720, 72
    %v8234 = vpop.permute.xlu0 %8233
    %v8236 = vsel %vm5199, %v8232, 0
    %v8239 = vsel %vm5199, %v8234, 0
    %8241 = vmatprep.subr.bf16.mxu0 0
    %8242 = vmatpush1.bf16.xpose.msra.mxu0 %v8239
    %8243 = vmatprep.subr.bf16.mxu0 0
    %8244 = vmatpush1.bf16.xpose.msra.mxu0 0
    %8245 = vmatprep.subr.bf16.mxu0 0
    %8246 = vmatpush1.bf16.xpose.msra.mxu0 0
    %8247 = vmatprep.subr.bf16.mxu0 0
    %8248 = vmatpush1.bf16.xpose.msra.mxu0 0
    %8249 = vmatprep.subr.bf16.mxu0 0
    %8250 = vmatpush1.bf16.xpose.msra.mxu0 0
    %8251 = vmatprep.subr.bf16.mxu0 0
    %8252 = vmatpush1.bf16.xpose.msra.mxu0 0
    %8253 = vmatprep.subr.bf16.mxu0 0
    %8254 = vmatpush1.bf16.xpose.msra.mxu0 0
    %8255 = vmatprep.subr.bf16.mxu0 0
    %8256 = vmatpush1.bf16.xpose.msra.mxu0 0
    %8257 = vmatprep.subr.bf16.mxu0 0
    %8258 = vmatpush1.bf16.xpose.msra.mxu0 0
    %8259 = vmatprep.subr.bf16.mxu0 0
    %8260 = vmatpush1.bf16.xpose.msra.mxu0 0
    %8261 = vmatprep.subr.bf16.mxu0 0
    %8262 = vmatpush1.bf16.xpose.msra.mxu0 0
    %8263 = vmatprep.subr.bf16.mxu0 0
    %8264 = vmatpush1.bf16.xpose.msra.mxu0 0
    %8265 = vmatprep.subr.bf16.mxu0 0
    %8266 = vmatpush1.bf16.xpose.msra.mxu0 0
    %8267 = vmatprep.subr.bf16.mxu0 0
    %8268 = vmatpush1.bf16.xpose.msra.mxu0 0
    %8269 = vmatprep.subr.bf16.mxu0 0
    %8270 = vmatpush1.bf16.xpose.msra.mxu0 0
    %8271 = vmatprep.subr.bf16.mxu0 0
    %8272 = vmatpush1.bf16.xpose.msra.mxu0 0
    %8273 = vmatprep.mubr.bf16.mxu0 0
    %8274 = vmatmul.mubr.bf16.gmra.mrb[0].mxu0 %v8236
    %v8275 = vpop.f32.mrb[0].mxu0
    %v8276 = vadd.f32 0.0, %v8275
    %v8277 = vpop.f32.mrb[0].mxu0
    %v8278 = vpop.f32.mrb[0].mxu0
    %v8279 = vadd.f32 0.0, %v8278
    %v8280 = vpop.f32.mrb[0].mxu0
    %8281 = vdwg.mxu0
    %v8282 = vmul.f32 %v8276, 0.35355338
    %v8283 = vmul.f32 %v8279, 0.35355338
    %v8284 = vsel %vm5249, %v8282, -inf
    %8285 = vmax.xlane.f32.xlu0 %v8284
    %v8286 = vpop.xlane.xlu0 %8285
    %v8287 = vsel %vm5253, %v8283, -inf
    %8288 = vmax.xlane.f32.xlu0 %v8287
    %v8289 = vpop.xlane.xlu0 %8288
    %v8290 = vsub.f32 %v8282, %v8286
    %v8291 = vsub.f32 %v8283, %v8289
    %v8292 = vmul.f32 %v8290, 1.442695
    %v8293 = vpow.pop %v8292
    %v8294 = vmul.f32 %v8291, 1.442695
    %v8295 = vpow.pop %v8294
    %v8296 = vsel %vm5249, %v8293, 0.0
    %8297 = vadd.xlane.f32.xlu0 %v8296
    %v8298 = vpop.xlane.xlu0 %8297
    %v8299 = vsel %vm5253, %v8295, 0.0
    %8300 = vadd.xlane.f32.xlu0 %v8299
    %v8301 = vpop.xlane.xlu0 %8300
    %v8302 = vrcp.pop %v8298
    %v8303 = vmul.f32 %v8293, %v8302
    %v8304 = vrcp.pop %v8301
    %v8305 = vmul.f32 %v8295, %v8304
    %v8306 = vpack.c.bf16 %v8305, %v8303
    %8307 = vrot.lane.b32.xlu0 %v7720, 40
    %v8308 = vpop.permute.xlu0 %8307
    %v8310 = vsel %vm5249, %v8306, 0
    %v8313 = vand.u32 %v8308, %v5282
    %8315 = vmatprep.subr.bf16.mxu0 0
    %8316 = vmatpush1.bf16.msra.mxu0 %v8313
    %8317 = vmatprep.subr.bf16.mxu0 0
    %8318 = vmatpush1.bf16.msra.mxu0 0
    %8319 = vmatprep.subr.bf16.mxu0 0
    %8320 = vmatpush1.bf16.msra.mxu0 0
    %8321 = vmatprep.subr.bf16.mxu0 0
    %8322 = vmatpush1.bf16.msra.mxu0 0
    %8323 = vmatprep.subr.bf16.mxu0 0
    %8324 = vmatpush1.bf16.msra.mxu0 0
    %8325 = vmatprep.subr.bf16.mxu0 0
    %8326 = vmatpush1.bf16.msra.mxu0 0
    %8327 = vmatprep.subr.bf16.mxu0 0
    %8328 = vmatpush1.bf16.msra.mxu0 0
    %8329 = vmatprep.subr.bf16.mxu0 0
    %8330 = vmatpush1.bf16.msra.mxu0 0
    %8331 = vmatprep.subr.bf16.mxu0 0
    %8332 = vmatpush1.bf16.msra.mxu0 0
    %8333 = vmatprep.subr.bf16.mxu0 0
    %8334 = vmatpush1.bf16.msra.mxu0 0
    %8335 = vmatprep.subr.bf16.mxu0 0
    %8336 = vmatpush1.bf16.msra.mxu0 0
    %8337 = vmatprep.subr.bf16.mxu0 0
    %8338 = vmatpush1.bf16.msra.mxu0 0
    %8339 = vmatprep.subr.bf16.mxu0 0
    %8340 = vmatpush1.bf16.msra.mxu0 0
    %8341 = vmatprep.subr.bf16.mxu0 0
    %8342 = vmatpush1.bf16.msra.mxu0 0
    %8343 = vmatprep.subr.bf16.mxu0 0
    %8344 = vmatpush1.bf16.msra.mxu0 0
    %8345 = vmatprep.subr.bf16.mxu0 0
    %8346 = vmatpush1.bf16.msra.mxu0 0
    %8347 = vmatprep.mubr.bf16.mxu0 0
    %8348 = vmatmul.mubr.bf16.gmra.mrb[0].mxu0 %v8310
    %v8349 = vpop.f32.mrb[0].mxu0
    %v8350 = vadd.f32 0.0, %v8349
    %v8351 = vpop.f32.mrb[0].mxu0
    %v8352 = vpop.f32.mrb[0].mxu0
    %v8353 = vadd.f32 0.0, %v8352
    %v8354 = vpop.f32.mrb[0].mxu0
    %8355 = vdwg.mxu0
    %v8356 = vpack.c.bf16 %v8353, %v8350
    %v8358 = vsel %vm5199, %v8356, 0
    %8360 = vmatprep.subr.bf16.mxu0 0
    %8361 = vmatpush1.bf16.msra.mxu0 %v7668
    %8362 = vmatprep.subr.bf16.mxu0 0
    %8363 = vmatpush1.bf16.msra.mxu0 0
    %8364 = vmatprep.subr.bf16.mxu0 0
    %8365 = vmatpush1.bf16.msra.mxu0 0
    %8366 = vmatprep.subr.bf16.mxu0 0
    %8367 = vmatpush1.bf16.msra.mxu0 0
    %8368 = vmatprep.subr.bf16.mxu0 0
    %8369 = vmatpush1.bf16.msra.mxu0 0
    %8370 = vmatprep.subr.bf16.mxu0 0
    %8371 = vmatpush1.bf16.msra.mxu0 0
    %8372 = vmatprep.subr.bf16.mxu0 0
    %8373 = vmatpush1.bf16.msra.mxu0 0
    %8374 = vmatprep.subr.bf16.mxu0 0
    %8375 = vmatpush1.bf16.msra.mxu0 0
    %8376 = vmatprep.subr.bf16.mxu0 0
    %8377 = vmatpush1.bf16.msra.mxu0 0
    %8378 = vmatprep.subr.bf16.mxu0 0
    %8379 = vmatpush1.bf16.msra.mxu0 0
    %8380 = vmatprep.subr.bf16.mxu0 0
    %8381 = vmatpush1.bf16.msra.mxu0 0
    %8382 = vmatprep.subr.bf16.mxu0 0
    %8383 = vmatpush1.bf16.msra.mxu0 0
    %8384 = vmatprep.subr.bf16.mxu0 0
    %8385 = vmatpush1.bf16.msra.mxu0 0
    %8386 = vmatprep.subr.bf16.mxu0 0
    %8387 = vmatpush1.bf16.msra.mxu0 0
    %8388 = vmatprep.subr.bf16.mxu0 0
    %8389 = vmatpush1.bf16.msra.mxu0 0
    %8390 = vmatprep.subr.bf16.mxu0 0
    %8391 = vmatpush1.bf16.msra.mxu0 0
    %8392 = vmatprep.mubr.bf16.mxu0 0
    %8393 = vmatmul.mubr.bf16.gmra.mrb[0].mxu0 %v8358
    %v8394 = vpop.f32.mrb[0].mxu0
    %v8395 = vadd.f32 0.0, %v8394
    %v8396 = vpop.f32.mrb[0].mxu0
    %v8397 = vpop.f32.mrb[0].mxu0
    %v8398 = vadd.f32 0.0, %v8397
    %v8399 = vpop.f32.mrb[0].mxu0
    %8400 = vdwg.mxu0
    %v8401 = vadd.f32 %v8229, %v8395
    %v8402 = vadd.f32 %v8230, %v8398
    %v8405 = vrot.slane %v8401, 7
    %v8406 = vrot.slane %v8402, 7
    %v8407 = vsel %vm6602, %v8405, %v8406
    %v8410 = vsel %vm6602, %v7712, %v8405
    %v8411 = vlaneseq
    %v8412 = vshrl.u32 %v8411, 7
    %v8413 = vsub.s32 1, %v8412
    %v8414 = vrot.slane %v6932, %v8413
    %v8415 = vadd.f32 %v7711, %v8414
    %v8416 = vadd.f32 %v8410, %v8414
    %v8417 = vadd.f32 %v8407, %v8414
    %v8418 = vadd.f32 %v8415, %v6911
    %v8419 = vadd.f32 %v8416, %v6912
    %v8420 = vadd.f32 %v8417, %v6913
    %v8421 = vsel %vm840, %v8418, 0.0
    %8422 = vadd.xlane.f32.xlu0 %v8421
    %v8423 = vpop.xlane.xlu0 %8422
    %v8424 = vsel %vm840, %v8419, 0.0
    %8425 = vadd.xlane.f32.xlu0 %v8424
    %v8426 = vpop.xlane.xlu0 %8425
    %v8427 = vsel %vm6625, %v8420, 0.0
    %8428 = vadd.xlane.f32.xlu0 %v8427
    %v8429 = vpop.xlane.xlu0 %8428
    %v8430 = vmul.f32 %v8423, %v6629
    %v8431 = vmul.f32 %v8426, %v6629
    %v8432 = vmul.f32 %v8429, %v6629
    %v8433 = vsub.f32 %v8418, %v8430
    %v8434 = vsub.f32 %v8419, %v8431
    %v8435 = vsub.f32 %v8420, %v8432
    %v8436 = vmul.f32 %v8433, %v8433
    %v8437 = vmul.f32 %v8434, %v8434
    %v8438 = vmul.f32 %v8435, %v8435
    %v8439 = vsel %vm840, %v8436, 0.0
    %8440 = vadd.xlane.f32.xlu0 %v8439
    %v8441 = vpop.xlane.xlu0 %8440
    %v8442 = vsel %vm840, %v8437, 0.0
    %8443 = vadd.xlane.f32.xlu0 %v8442
    %v8444 = vpop.xlane.xlu0 %8443
    %v8445 = vsel %vm6625, %v8438, 0.0
    %8446 = vadd.xlane.f32.xlu0 %v8445
    %v8447 = vpop.xlane.xlu0 %8446
    %v8448 = vmul.f32 %v8441, %v6629
    %v8449 = vmul.f32 %v8444, %v6629
    %v8450 = vmul.f32 %v8447, %v6629
    %v8451 = vadd.f32 %v8448, 1e-12
    %v8452 = vadd.f32 %v8449, 1e-12
    %v8453 = vadd.f32 %v8450, 1e-12
    %v8454 = vrsqrt.pop %v8451
    %v8455 = vrsqrt.pop %v8452
    %v8456 = vrsqrt.pop %v8453
    %v8457 = vmul.f32 %v8433, %v8454
    %v8458 = vmul.f32 %v8434, %v8455
    %v8459 = vmul.f32 %v8435, %v8456
    %v8460 = vlaneseq
    %v8461 = vshrl.u32 %v8460, 7
    %v8462 = vsub.s32 2, %v8461
    %v8463 = vrot.slane %v6932, %v8462
    %v8464 = vmul.f32 %v8457, %v8463
    %v8465 = vmul.f32 %v8458, %v8463
    %v8466 = vmul.f32 %v8459, %v8463
    %v8467 = vlaneseq
    %v8468 = vshrl.u32 %v8467, 7
    %v8469 = vsub.s32 3, %v8468
    %v8470 = vrot.slane %v6932, %v8469
    %v8471 = vadd.f32 %v8464, %v8470
    %v8472 = vadd.f32 %v8465, %v8470
    %v8473 = vadd.f32 %v8466, %v8470
    %v8474 = vpack.c.bf16 %v8472, %v8471
    %v8475 = vpack.c.bf16 %v8473, %v8473
    %v8476 = vlaneseq
    %v8477 = vshrl.u32 %v8476, 7
    %v8478 = vsub.s32 4, %v8477
    %v8479 = vrot.slane %v6932, %v8478
    %v8484 = vunpack.c.l.b16 %v6919
    %v8485 = vunpack.c.l.b16 %v6920
    %v8486 = vunpack.c.l.b16 %v6921
    %v8487 = vunpack.c.l.b16 %v6922
    %v8488 = vpack.c.b16 %v8485, %v8484
    %v8489 = vpack.c.b16 %v8487, %v8486
    %v8493 = vsel %vm840, %v8474, 0
    %v8496 = vsel %vm840, %v8475, 0
    %8498 = vmatprep.subr.bf16.mxu0 0
    %8499 = vmatpush1.bf16.msra.mxu0 %v8488
    %8500 = vmatprep.subr.bf16.mxu0 0
    %8501 = vmatpush1.bf16.msra.mxu0 %v8489
    %8502 = vmatprep.subr.bf16.mxu0 0
    %8503 = vmatpush1.bf16.msra.mxu0 0
    %8504 = vmatprep.subr.bf16.mxu0 0
    %8505 = vmatpush1.bf16.msra.mxu0 0
    %8506 = vmatprep.subr.bf16.mxu0 0
    %8507 = vmatpush1.bf16.msra.mxu0 0
    %8508 = vmatprep.subr.bf16.mxu0 0
    %8509 = vmatpush1.bf16.msra.mxu0 0
    %8510 = vmatprep.subr.bf16.mxu0 0
    %8511 = vmatpush1.bf16.msra.mxu0 0
    %8512 = vmatprep.subr.bf16.mxu0 0
    %8513 = vmatpush1.bf16.msra.mxu0 0
    %8514 = vmatprep.subr.bf16.mxu0 0
    %8515 = vmatpush1.bf16.msra.mxu0 0
    %8516 = vmatprep.subr.bf16.mxu0 0
    %8517 = vmatpush1.bf16.msra.mxu0 0
    %8518 = vmatprep.subr.bf16.mxu0 0
    %8519 = vmatpush1.bf16.msra.mxu0 0
    %8520 = vmatprep.subr.bf16.mxu0 0
    %8521 = vmatpush1.bf16.msra.mxu0 0
    %8522 = vmatprep.subr.bf16.mxu0 0
    %8523 = vmatpush1.bf16.msra.mxu0 0
    %8524 = vmatprep.subr.bf16.mxu0 0
    %8525 = vmatpush1.bf16.msra.mxu0 0
    %8526 = vmatprep.subr.bf16.mxu0 0
    %8527 = vmatpush1.bf16.msra.mxu0 0
    %8528 = vmatprep.subr.bf16.mxu0 0
    %8529 = vmatpush1.bf16.msra.mxu0 0
    %8530 = vmatprep.mubr.bf16.mxu0 0
    %8531 = vmatmul.mubr.bf16.gmra.mrb[0].mxu0 %v8493
    %v8532 = vpop.f32.mrb[0].mxu0
    %v8533 = vadd.f32 %v8479, %v8532
    %v8534 = vpop.f32.mrb[0].mxu0
    %v8535 = vpop.f32.mrb[0].mxu0
    %v8536 = vadd.f32 %v8479, %v8535
    %v8537 = vpop.f32.mrb[0].mxu0
    %8538 = vmatprep.mubr.bf16.mxu0 0
    %8539 = vmatmul.mubr.bf16.gmra.mrb[0].mxu0 %v8496
    %v8540 = vpop.f32.mrb[0].mxu0
    %v8541 = vadd.f32 %v8479, %v8540
    %v8542 = vpop.f32.mrb[0].mxu0
    %v8543 = vpop.f32.mrb[0].mxu0
    %v8544 = vpop.f32.mrb[0].mxu0
    %8545 = vdwg.mxu0
    %v8546 = vmul.f32 %v8533, 0.5
    %v8547 = vmul.f32 %v8536, 0.5
    %v8548 = vmul.f32 %v8541, 0.5
    %v8549 = vmul.f32 %v8533, 0.044715
    %v8550 = vmul.f32 %v8536, 0.044715
    %v8551 = vmul.f32 %v8541, 0.044715
    %v8552 = vmul.f32 %v8549, %v8533
    %v8553 = vmul.f32 %v8550, %v8536
    %v8554 = vmul.f32 %v8551, %v8541
    %v8555 = vmul.f32 %v8552, %v8533
    %v8556 = vmul.f32 %v8553, %v8536
    %v8557 = vmul.f32 %v8554, %v8541
    %v8558 = vadd.f32 %v8533, %v8555
    %v8559 = vadd.f32 %v8536, %v8556
    %v8560 = vadd.f32 %v8541, %v8557
    %v8561 = vmul.f32 %v8558, 0.7978846
    %v8562 = vmul.f32 %v8559, 0.7978846
    %v8563 = vmul.f32 %v8560, 0.7978846
    %v8564 = vtanh.pop %v8561
    %v8565 = vtanh.pop %v8562
    %v8566 = vtanh.pop %v8563
    %v8567 = vadd.f32 %v8564, 1.0
    %v8568 = vadd.f32 %v8565, 1.0
    %v8569 = vadd.f32 %v8566, 1.0
    %v8570 = vmul.f32 %v8546, %v8567
    %v8571 = vmul.f32 %v8547, %v8568
    %v8572 = vmul.f32 %v8548, %v8569
    %v8573 = vpack.c.bf16 %v8571, %v8570
    %v8574 = vpack.c.bf16 %v8572, %v8572
    %v8575 = vlaneseq
    %v8576 = vshrl.u32 %v8575, 7
    %v8577 = vsub.s32 5, %v8576
    %v8578 = vrot.slane %v6932, %v8577
    %v8587 = vunpack.c.l.b16 %v6923
    %v8588 = vunpack.c.l.b16 %v6924
    %v8589 = vunpack.c.l.b16 %v6925
    %v8590 = vunpack.c.l.b16 %v6926
    %v8591 = vunpack.c.l.b16 %v6927
    %v8592 = vunpack.c.l.b16 %v6928
    %v8593 = vunpack.c.l.b16 %v6929
    %v8594 = vunpack.c.l.b16 %v6930
    %v8595 = vpack.c.b16 %v8588, %v8587
    %v8596 = vpack.c.b16 %v8590, %v8589
    %v8597 = vpack.c.b16 %v8592, %v8591
    %v8598 = vpack.c.b16 %v8594, %v8593
    %v8604 = vsel %vm6803, %v8573, 0
    %v8607 = vsel %vm6803, %v8574, 0
    %8609 = vmatprep.subr.bf16.mxu0 0
    %8610 = vmatpush1.bf16.msra.mxu0 %v8595
    %8611 = vmatprep.subr.bf16.mxu0 0
    %8612 = vmatpush1.bf16.msra.mxu0 %v8596
    %8613 = vmatprep.subr.bf16.mxu0 0
    %8614 = vmatpush1.bf16.msra.mxu0 %v8597
    %8615 = vmatprep.subr.bf16.mxu0 0
    %8616 = vmatpush1.bf16.msra.mxu0 %v8598
    %8617 = vmatprep.subr.bf16.mxu0 0
    %8618 = vmatpush1.bf16.msra.mxu0 0
    %8619 = vmatprep.subr.bf16.mxu0 0
    %8620 = vmatpush1.bf16.msra.mxu0 0
    %8621 = vmatprep.subr.bf16.mxu0 0
    %8622 = vmatpush1.bf16.msra.mxu0 0
    %8623 = vmatprep.subr.bf16.mxu0 0
    %8624 = vmatpush1.bf16.msra.mxu0 0
    %8625 = vmatprep.subr.bf16.mxu0 0
    %8626 = vmatpush1.bf16.msra.mxu0 0
    %8627 = vmatprep.subr.bf16.mxu0 0
    %8628 = vmatpush1.bf16.msra.mxu0 0
    %8629 = vmatprep.subr.bf16.mxu0 0
    %8630 = vmatpush1.bf16.msra.mxu0 0
    %8631 = vmatprep.subr.bf16.mxu0 0
    %8632 = vmatpush1.bf16.msra.mxu0 0
    %8633 = vmatprep.subr.bf16.mxu0 0
    %8634 = vmatpush1.bf16.msra.mxu0 0
    %8635 = vmatprep.subr.bf16.mxu0 0
    %8636 = vmatpush1.bf16.msra.mxu0 0
    %8637 = vmatprep.subr.bf16.mxu0 0
    %8638 = vmatpush1.bf16.msra.mxu0 0
    %8639 = vmatprep.subr.bf16.mxu0 0
    %8640 = vmatpush1.bf16.msra.mxu0 0
    %8641 = vmatprep.mubr.bf16.mxu0 0
    %8642 = vmatmul.mubr.bf16.gmra.mrb[0].mxu0 %v8604
    %v8643 = vpop.f32.mrb[0].mxu0
    %v8644 = vadd.f32 %v8578, %v8643
    %v8645 = vpop.f32.mrb[0].mxu0
    %v8646 = vpop.f32.mrb[0].mxu0
    %v8647 = vadd.f32 %v8578, %v8646
    %v8648 = vpop.f32.mrb[0].mxu0
    %8649 = vmatprep.mubr.bf16.mxu0 0
    %8650 = vmatmul.mubr.bf16.gmra.mrb[0].mxu0 %v8607
    %v8651 = vpop.f32.mrb[0].mxu0
    %v8652 = vpop.f32.mrb[0].mxu0
    %v8653 = vpop.f32.mrb[0].mxu0
    %v8654 = vpop.f32.mrb[0].mxu0
    %8655 = vdwg.mxu0
    %v8656 = vadd.f32 %v8644, %v8471
    %v8657 = vadd.f32 %v8647, %v8472
    %v8658 = vsel %vm840, %v8656, 0.0
    %8659 = vadd.xlane.f32.xlu0 %v8658
    %v8660 = vpop.xlane.xlu0 %8659
    %v8661 = vsel %vm840, %v8657, 0.0
    %8662 = vadd.xlane.f32.xlu0 %v8661
    %v8663 = vpop.xlane.xlu0 %8662
    %v8664 = vmul.f32 %v8660, %v6629
    %v8665 = vmul.f32 %v8663, %v6629
    %v8666 = vsub.f32 %v8656, %v8664
    %v8667 = vsub.f32 %v8657, %v8665
    %v8668 = vmul.f32 %v8666, %v8666
    %v8669 = vmul.f32 %v8667, %v8667
    %v8670 = vsel %vm840, %v8668, 0.0
    %8671 = vadd.xlane.f32.xlu0 %v8670
    %v8672 = vpop.xlane.xlu0 %8671
    %v8673 = vsel %vm840, %v8669, 0.0
    %8674 = vadd.xlane.f32.xlu0 %v8673
    %v8675 = vpop.xlane.xlu0 %8674
    %v8676 = vmul.f32 %v8672, %v6629
    %v8677 = vmul.f32 %v8675, %v6629
    %v8678 = vadd.f32 %v8676, 1e-12
    %v8679 = vadd.f32 %v8677, 1e-12
    %v8680 = vrsqrt.pop %v8678
    %v8681 = vrsqrt.pop %v8679
    %v8682 = vmul.f32 %v8666, %v8680
    %v8683 = vmul.f32 %v8667, %v8681
    %v8684 = vlaneseq
    %v8685 = vshrl.u32 %v8684, 7
    %v8686 = vsub.s32 6, %v8685
    %v8687 = vrot.slane %v6932, %v8686
    %v8688 = vmul.f32 %v8682, %v8687
    %v8689 = vmul.f32 %v8683, %v8687
    %v8690 = vlaneseq
    %v8691 = vshrl.u32 %v8690, 7
    %v8692 = vsub.s32 7, %v8691
    %v8693 = vrot.slane %v6932, %v8692
    %v8694 = vadd.f32 %v8688, %v8693
    %v8695 = vadd.f32 %v8689, %v8693
    %v8696 = vsel %vm6602, %v8694, %v8695
    %v8697 = vpack.c.bf16 %v8696, %v8696
    %v8698 = vld [vmem:[%s7] sm:$0xf]
    %v8699 = vld [vmem:[%s7 + $0x8] sm:$0xf]
    %v8700 = vld [vmem:[%s7 + $0x10] sm:$0xf]
    %v8701 = vld [vmem:[%s7 + $0x18] sm:$0xf]
    %v8702 = vld [vmem:[%s8] sm:$0x1]
    %v8704 = vlaneseq
    %v8705 = vshrl.u32 %v8704, 7
    %v8706 = vsub.s32 0, %v8705
    %v8707 = vrot.slane %v8702, %v8706
    %v8713 = vunpack.c.l.b16 %v8698
    %v8714 = vunpack.c.l.b16 %v8699
    %v8715 = vunpack.c.l.b16 %v8700
    %v8716 = vunpack.c.l.b16 %v8701
    %v8717 = vpack.c.b16 %v8714, %v8713
    %v8718 = vpack.c.b16 %v8716, %v8715
    %v8722 = vsel %vm840, %v8697, 0
    %8724 = vmatprep.subr.bf16.mxu0 0
    %8725 = vmatpush1.bf16.msra.mxu0 %v8717
    %8726 = vmatprep.subr.bf16.mxu0 0
    %8727 = vmatpush1.bf16.msra.mxu0 %v8718
    %8728 = vmatprep.subr.bf16.mxu0 0
    %8729 = vmatpush1.bf16.msra.mxu0 0
    %8730 = vmatprep.subr.bf16.mxu0 0
    %8731 = vmatpush1.bf16.msra.mxu0 0
    %8732 = vmatprep.subr.bf16.mxu0 0
    %8733 = vmatpush1.bf16.msra.mxu0 0
    %8734 = vmatprep.subr.bf16.mxu0 0
    %8735 = vmatpush1.bf16.msra.mxu0 0
    %8736 = vmatprep.subr.bf16.mxu0 0
    %8737 = vmatpush1.bf16.msra.mxu0 0
    %8738 = vmatprep.subr.bf16.mxu0 0
    %8739 = vmatpush1.bf16.msra.mxu0 0
    %8740 = vmatprep.subr.bf16.mxu0 0
    %8741 = vmatpush1.bf16.msra.mxu0 0
    %8742 = vmatprep.subr.bf16.mxu0 0
    %8743 = vmatpush1.bf16.msra.mxu0 0
    %8744 = vmatprep.subr.bf16.mxu0 0
    %8745 = vmatpush1.bf16.msra.mxu0 0
    %8746 = vmatprep.subr.bf16.mxu0 0
    %8747 = vmatpush1.bf16.msra.mxu0 0
    %8748 = vmatprep.subr.bf16.mxu0 0
    %8749 = vmatpush1.bf16.msra.mxu0 0
    %8750 = vmatprep.subr.bf16.mxu0 0
    %8751 = vmatpush1.bf16.msra.mxu0 0
    %8752 = vmatprep.subr.bf16.mxu0 0
    %8753 = vmatpush1.bf16.msra.mxu0 0
    %8754 = vmatprep.subr.bf16.mxu0 0
    %8755 = vmatpush1.bf16.msra.mxu0 0
    %8756 = vmatprep.mubr.bf16.mxu0 0
    %8757 = vmatmul.mubr.bf16.gmra.mrb[0].mxu0 %v8722
    %v8758 = vpop.f32.mrb[0].mxu0
    %v8759 = vadd.f32 %v8707, %v8758
    %v8760 = vpop.f32.mrb[0].mxu0
    %v8761 = vpop.f32.mrb[0].mxu0
    %v8762 = vpop.f32.mrb[0].mxu0
    %8763 = vdwg.mxu0
    %v8764 = vtanh.pop %v8759
    %v8765 = vpack.c.bf16 %v8764, %v8764
    %v8766 = vld [vmem:[%s7] sm:$0xff]
    %v8767 = vld [vmem:[%s7 + $0x8] sm:$0xff]
    %v8768 = vld [vmem:[%s7 + $0x10] sm:$0xff]
    %v8769 = vld [vmem:[%s7 + $0x18] sm:$0xff]
    %v8770 = vld [vmem:[%s8] sm:$0x3]
    %v8772 = vlaneseq
    %v8773 = vshrl.u32 %v8772, 7
    %v8774 = vsub.s32 0, %v8773
    %v8775 = vrot.slane %v8770, %v8774
    %v8776 = vlaneseq
    %v8777 = vshrl.u32 %v8776, 7
    %v8778 = vsub.s32 1, %v8777
    %v8779 = vrot.slane %v8770, %v8778
    %v8784 = vunpack.c.l.b16 %v8766
    %v8785 = vunpack.c.h.b16 %v8766
    %v8786 = vunpack.c.l.b16 %v8767
    %v8787 = vunpack.c.h.b16 %v8767
    %v8788 = vunpack.c.l.b16 %v8768
    %v8789 = vunpack.c.h.b16 %v8768
    %v8790 = vunpack.c.l.b16 %v8769
    %v8791 = vunpack.c.h.b16 %v8769
    %v8792 = vpack.c.b16 %v8786, %v8784
    %v8793 = vpack.c.b16 %v8787, %v8785
    %v8794 = vpack.c.b16 %v8790, %v8788
    %v8795 = vpack.c.b16 %v8791, %v8789
    %8796 = vrot.lane.b32.xlu0 %v8792, 96
    %v8797 = vpop.permute.xlu0 %8796
    %8798 = vrot.lane.b32.xlu0 %v8793, 96
    %v8799 = vpop.permute.xlu0 %8798
    %8800 = vrot.lane.b32.xlu0 %v8794, 96
    %v8801 = vpop.permute.xlu0 %8800
    %8802 = vrot.lane.b32.xlu0 %v8795, 96
    %v8803 = vpop.permute.xlu0 %8802
    %vm8804 = vcmask 785408
    %v8805 = vsel %vm8804, %v8797, %v8799
    %v8806 = vsel %vm8804, %v8801, %v8803
    %8809 = vrot.lane.b32.xlu0 %v8775, 96
    %v8810 = vpop.permute.xlu0 %8809
    %8811 = vrot.lane.b32.xlu0 %v8779, 96
    %v8812 = vpop.permute.xlu0 %8811
    %vm8813 = vcmask 785408
    %v8814 = vsel %vm8813, %v8810, %v8812
    %v8817 = vsel %vm840, %v8765, 0
    %8819 = vmatprep.subr.bf16.mxu0 0
    %8820 = vmatpush1.bf16.msra.mxu0 %v8805
    %8821 = vmatprep.subr.bf16.mxu0 0
    %8822 = vmatpush1.bf16.msra.mxu0 %v8806
    %8823 = vmatprep.subr.bf16.mxu0 0
    %8824 = vmatpush1.bf16.msra.mxu0 0
    %8825 = vmatprep.subr.bf16.mxu0 0
    %8826 = vmatpush1.bf16.msra.mxu0 0
    %8827 = vmatprep.subr.bf16.mxu0 0
    %8828 = vmatpush1.bf16.msra.mxu0 0
    %8829 = vmatprep.subr.bf16.mxu0 0
    %8830 = vmatpush1.bf16.msra.mxu0 0
    %8831 = vmatprep.subr.bf16.mxu0 0
    %8832 = vmatpush1.bf16.msra.mxu0 0
    %8833 = vmatprep.subr.bf16.mxu0 0
    %8834 = vmatpush1.bf16.msra.mxu0 0
    %8835 = vmatprep.subr.bf16.mxu0 0
    %8836 = vmatpush1.bf16.msra.mxu0 0
    %8837 = vmatprep.subr.bf16.mxu0 0
    %8838 = vmatpush1.bf16.msra.mxu0 0
    %8839 = vmatprep.subr.bf16.mxu0 0
    %8840 = vmatpush1.bf16.msra.mxu0 0
    %8841 = vmatprep.subr.bf16.mxu0 0
    %8842 = vmatpush1.bf16.msra.mxu0 0
    %8843 = vmatprep.subr.bf16.mxu0 0
    %8844 = vmatpush1.bf16.msra.mxu0 0
    %8845 = vmatprep.subr.bf16.mxu0 0
    %8846 = vmatpush1.bf16.msra.mxu0 0
    %8847 = vmatprep.subr.bf16.mxu0 0
    %8848 = vmatpush1.bf16.msra.mxu0 0
    %8849 = vmatprep.subr.bf16.mxu0 0
    %8850 = vmatpush1.bf16.msra.mxu0 0
    %8851 = vmatprep.mubr.bf16.mxu0 0
    %8852 = vmatmul.mubr.bf16.gmra.mrb[0].mxu0 %v8817
    %v8853 = vpop.f32.mrb[0].mxu0
    %v8854 = vadd.f32 %v8814, %v8853
    %v8855 = vpop.f32.mrb[0].mxu0
    %v8856 = vpop.f32.mrb[0].mxu0
    %v8857 = vpop.f32.mrb[0].mxu0
    %8858 = vdwg.mxu0
    %8859 = vst [vmem:[#allocation2] sm:$0x1] %v8854
    %s8860 = scalar_lea.vmem [#allocation2], 1
    %8861 = vst [vmem:[%s8860 - $0x1] sm:$0x2] %v8854
    // Predicated region
    $region38: #{forward.1} parent=1 // pred_check
      _
    $region39: #{forward.1} parent=1 // pred_check_branch
      %8863 = sbr.rel (0) target = $region41
    $region40: #{forward.1} parent=1 // pred_region
      %s8865 = ssub.s32 32, 32
      %8866 = vsyncadd [#allocation3], %s8865
      %s8867 = sshll.u32 [#allocation2], 4
      %s8868 = int_to_ptr.vmem [resolvable:$true] %s8867
      %8873 = dma.vmem_to_hbm [thread:$0]  %s8868, 32, %s9, [#allocation3], 16, 16, 1
    $region41: #{forward.1} parent=1 // pred_fallthru
      _
    // Predicated region
    $region42: #{forward.1} parent=1 // pred_check
      _
    $region43: #{forward.1} parent=1 // pred_check_branch
      %8875 = sbr.rel (0) target = $region45
    $region44: #{forward.1} parent=1 // pred_region
      %8876 = dma.done [#allocation3], 32
    $region45: #{forward.1} parent=1 // pred_fallthru
      _
    %8877 = vsyncpa [#allocation3], 1

</llo_original>
